<compile_context>
chip_gen: v6e
topology: v6e:2x2x1
jax: 0.10.0
libtpu: 0.0.40
codegen_flags: <defaults>
</compile_context>

<pallas_src>
import functools

import jax
import jax.numpy as jnp
from jax.experimental import pallas as pl
from jax.experimental.pallas import tpu as pltpu  # noqa: F401  (TPU backend assumed)


# ---------------------------------------------------------------------------
# Config (mirrors the attributes used by the PyTorch module, at small sizes)
# ---------------------------------------------------------------------------
class Config:
    SEED = 0
    MODEL_SIZE = 32        # D
    DICT_SIZE_1 = 64       # vocab
    NUM_LAYER = 2
    K = 4                  # paths per batch item -> encoder output length
    MAX_SBT_LEN = 8
    MAX_OUTPUT_SIZE = 5
    START_TOKEN = 1
    END_TOKEN = 2
    DROPOUT = 0.0
    LR = 1e-3


# ---------------------------------------------------------------------------
# In-kernel helpers (pure functions over values)
# ---------------------------------------------------------------------------
def _lstm_apply_gates(gates, c, D):
    """gates:(N,4D) packed [i|f|g|o], c:(N,D) -> (h_new, c_new).
       4D = 128 lanes = exactly one vreg; gate slicing kept simple."""
    i = jax.nn.sigmoid(gates[:, 0:D])
    f = jax.nn.sigmoid(gates[:, D:2 * D])
    g = jnp.tanh(gates[:, 2 * D:3 * D])
    o = jax.nn.sigmoid(gates[:, 3 * D:4 * D])
    c_new = f * c + i * g
    h_new = o * jnp.tanh(c_new)
    return h_new, c_new


# ---------------------------------------------------------------------------
# Fused encoder kernel: 2 directions x NUM_LAYER residual LSTM layers x T steps
# + final 4D->D FC(+tanh), all in a single pallas_call.
# Sequences come in flattened time-major 2-D: row t*P + p.
# ---------------------------------------------------------------------------
def _encoder_kernel(fw_ref, bw_ref, mask_ref,
                    fw_wih_ref, fw_whh_ref, fw_b_ref,
                    bw_wih_ref, bw_whh_ref, bw_b_ref,
                    fc_w_ref, fc_b_ref,
                    enc_ref, *, T, P, D, L):
    mask = mask_ref[...]                                   # (T*P, 1)

    def run_stack(seq, wih_ref, whh_ref, b_ref):
        h = jnp.zeros((P, D), jnp.float32)
        for layer in range(L):
            wih = wih_ref[layer]                           # (D, 4D)
            whh = whh_ref[layer]                           # (D, 4D)
            b = b_ref[layer]                               # (1, 4D)
            # Batched input projection for all T steps: one (T*P, D) @ (D, 4D) matmul.
            xg = jnp.dot(seq, wih, preferred_element_type=jnp.float32) + b
            h = jnp.zeros((P, D), jnp.float32)
            c = jnp.zeros((P, D), jnp.float32)
            outs = []
            for t in range(T):
                gates = xg[t * P:(t + 1) * P, :] + jnp.dot(
                    h, whh, preferred_element_type=jnp.float32)
                h_new, c_new = _lstm_apply_gates(gates, c, D)
                m = mask[t * P:(t + 1) * P, :]             # (P, 1): 1 valid, 0 padded
                h = m * h_new + (1.0 - m) * h              # carry at padded steps
                c = m * c_new + (1.0 - m) * c
                outs.append(m * h)                         # pad positions -> 0 (pad_packed)
            seq = jnp.concatenate(outs, axis=0) + seq      # residual connection
        return h                                           # final hidden of last layer

    fw = fw_ref[...]                                       # (T*P, D) fw embeddings
    bw = bw_ref[...]                                       # (T*P, D) bw embeddings
    fh = run_stack(fw, fw_wih_ref, fw_whh_ref, fw_b_ref)   # (P, D)
    bh = run_stack(bw, bw_wih_ref, bw_whh_ref, bw_b_ref)   # (P, D)

    start = fw[0:P, :]                                     # first-token embeddings
    end = bw[0:P, :]                                       # last-token embeddings
    fc_w = fc_w_ref[...]                                   # (4D, D); split to avoid concat
    pre = (jnp.dot(start, fc_w[0:D, :], preferred_element_type=jnp.float32)
           + jnp.dot(fh, fc_w[D:2 * D, :], preferred_element_type=jnp.float32)
           + jnp.dot(bh, fc_w[2 * D:3 * D, :], preferred_element_type=jnp.float32)
           + jnp.dot(end, fc_w[3 * D:4 * D, :], preferred_element_type=jnp.float32)
           + fc_b_ref[...])
    enc_ref[...] = jnp.tanh(pre)                           # (P, D)


# ---------------------------------------------------------------------------
# Fused greedy decoder kernel: the whole MAX_OUTPUT_SIZE autoregressive loop.
# kp/vp (attention K/V projections) and h0 = mean(enc) are precomputed once outside.
# ---------------------------------------------------------------------------
def _decoder_kernel(emb_ref, kp_ref, vp_ref, mask_ref, h0_ref,
                    lay_wih_ref, lay_whh_ref, lay_b_ref,
                    lstm_wih_ref, lstm_whh_ref, lstm_b_ref,
                    q_w_ref, q_b_ref, w_w_ref, w_b_ref,
                    fc_w_ref, fc_b_ref,
                    tokens_ref, logits_ref,
                    *, num_layer, max_out, start_token):
    V, D = emb_ref.shape
    Tenc, B, _ = kp_ref.shape

    emb = emb_ref[...]                                     # (V, D)
    kp = kp_ref[...]                                       # (Tenc, B, D)
    vp = vp_ref[...]                                       # (Tenc, B, D)
    mask = mask_ref[...]                                   # (Tenc, B)
    w_w = w_w_ref[...]                                     # (1, 1, D)
    w_b = w_b_ref[...]                                     # (1, 1)
    q_w = q_w_ref[...]; q_b = q_b_ref[...]
    lstm_wih = lstm_wih_ref[...]                           # (2D, 4D) -> split below
    lstm_whh = lstm_whh_ref[...]
    lstm_b = lstm_b_ref[...]
    fc_w = fc_w_ref[...]; fc_b = fc_b_ref[...]

    h0 = h0_ref[...]                                       # (B, D)
    states = [(h0, h0) for _ in range(num_layer)]

    col_i = jax.lax.broadcasted_iota(jnp.int32, (B, V), 1)
    col_f = col_i.astype(jnp.float32)
    dec_input = jnp.full((B, 1), start_token, dtype=jnp.int32)

    logits = None
    for step in range(max_out):
        # embedding lookup as one-hot matmul (MXU; avoids in-kernel gather)
        onehot = (dec_input == col_i).astype(jnp.float32)                  # (B, V)
        x = jnp.dot(onehot, emb, preferred_element_type=jnp.float32)       # (B, D)

        new_states = []
        for i in range(num_layer - 1):
            skip = x
            h, c = states[i]
            gates = (jnp.dot(x, lay_wih_ref[i], preferred_element_type=jnp.float32)
                     + jnp.dot(h, lay_whh_ref[i], preferred_element_type=jnp.float32)
                     + lay_b_ref[i])
            h, c = _lstm_apply_gates(gates, c, D)
            new_states.append((h, c))
            x = h + skip                                                    # residual

        # additive attention (K/V hoisted; only the q path is per-step)
        qp = jnp.dot(x, q_w, preferred_element_type=jnp.float32) + q_b      # (B, D)
        s = jnp.tanh(qp[None, :, :] + kp)                                   # (Tenc, B, D)
        e = jnp.sum(s * w_w, axis=-1) + w_b                                 # (Tenc, B)
        e = jnp.where(mask > 0.5, e, jnp.float32(-1000000.0))
        e = e - jnp.max(e, axis=0, keepdims=True)                           # softmax (enc axis)
        p = jnp.exp(e)
        p = p / jnp.sum(p, axis=0, keepdims=True)
        ctx = jnp.sum(p[:, :, None] * vp, axis=0)                           # (B, D)

        # final LSTM with 2D input [x, ctx]: split weights instead of concat
        h, c = states[num_layer - 1]
        gates = (jnp.dot(x, lstm_wih[0:D, :], preferred_element_type=jnp.float32)
                 + jnp.dot(ctx, lstm_wih[D:2 * D, :], preferred_element_type=jnp.float32)
                 + jnp.dot(h, lstm_whh, preferred_element_type=jnp.float32)
                 + lstm_b)
        h, c = _lstm_apply_gates(gates, c, D)
        new_states.append((h, c))
        states = new_states

        logits = jnp.dot(h, fc_w, preferred_element_type=jnp.float32) + fc_b   # (B, V)

        # greedy argmax (first max index) using only max/min lane reduces
        mx = jnp.max(logits, axis=-1, keepdims=True)                        # (B, 1)
        cand = jnp.where(logits >= mx, col_f, jnp.float32(V))
        dec_input = jnp.min(cand, axis=-1, keepdims=True).astype(jnp.int32)  # (B, 1)
        tokens_ref[:, step:step + 1] = dec_input

    logits_ref[...] = logits


# ---------------------------------------------------------------------------
# Parameter initialization (deterministic, synthetic; layers stacked for the kernels)
# ---------------------------------------------------------------------------
def init_params(key, cfg):
    D, V, L = cfg.MODEL_SIZE, cfg.DICT_SIZE_1, cfg.NUM_LAYER
    keys = iter(jax.random.split(key, 32))

    def w(shape, scale=0.08):
        return scale * jax.random.normal(next(keys), shape, dtype=jnp.float32)

    p = {}
    p['enc_emb'] = w((V, D), 0.1)
    p['enc_fw_wih'] = w((L, D, 4 * D)); p['enc_fw_whh'] = w((L, D, 4 * D)); p['enc_fw_b'] = w((L, 1, 4 * D))
    p['enc_bw_wih'] = w((L, D, 4 * D)); p['enc_bw_whh'] = w((L, D, 4 * D)); p['enc_bw_b'] = w((L, 1, 4 * D))
    p['enc_fc_w'] = w((4 * D, D)); p['enc_fc_b'] = w((1, D))
    p['dec_emb'] = w((V, D), 0.1)
    p['attn_q_w'] = w((D, D)); p['attn_q_b'] = w((1, D))
    p['attn_k_w'] = w((D, D)); p['attn_k_b'] = w((1, D))
    p['attn_v_w'] = w((D, D)); p['attn_v_b'] = w((1, D))
    p['attn_w_w'] = w((1, 1, D)); p['attn_w_b'] = w((1, 1))
    p['dec_lay_wih'] = w((L - 1, D, 4 * D)); p['dec_lay_whh'] = w((L - 1, D, 4 * D)); p['dec_lay_b'] = w((L - 1, 1, 4 * D))
    p['dec_lstm_wih'] = w((2 * D, 4 * D)); p['dec_lstm_whh'] = w((D, 4 * D)); p['dec_lstm_b'] = w((1, 4 * D))
    p['dec_fc_w'] = w((D, V)); p['dec_fc_b'] = w((1, V))
    return p


# ---------------------------------------------------------------------------
# Single jitted device program: encoder kernel -> XLA glue -> decoder kernel
# ---------------------------------------------------------------------------
@functools.partial(jax.jit,
                   static_argnames=("T", "P", "K", "num_layer", "max_out", "start_token"))
def _forward_device(params, fw_ids, bw_ids, mask2, *,
                    T, P, K, num_layer, max_out, start_token):
    D = params['enc_emb'].shape[1]
    V = params['dec_emb'].shape[0]

    # Embedding gathers (XLA), flattened time-major: row index = t*P + p.
    fw_emb = jnp.take(params['enc_emb'], fw_ids, axis=0).reshape(T * P, D)
    bw_emb = jnp.take(params['enc_emb'], bw_ids, axis=0).reshape(T * P, D)

    enc_kernel = functools.partial(_encoder_kernel, T=T, P=P, D=D, L=num_layer)
    enc_flat = pl.pallas_call(
        enc_kernel,
        out_shape=jax.ShapeDtypeStruct((P, D), jnp.float32),
    )(fw_emb, bw_emb, mask2,
      params['enc_fw_wih'], params['enc_fw_whh'], params['enc_fw_b'],
      params['enc_bw_wih'], params['enc_bw_whh'], params['enc_bw_b'],
      params['enc_fc_w'], params['enc_fc_b'])

    B = P // K
    # pad_sequence(list of B (K,D) tensors) -> (K, B, D)
    enc_pad = enc_flat.reshape(B, K, D).transpose(1, 0, 2)                  # (Tenc, B, D)
    attn_mask = jnp.ones((K, B), jnp.float32)

    # Loop-invariant attention K/V projections and initial state: computed ONCE.
    kp = jnp.einsum('tbd,de->tbe', enc_pad, params['attn_k_w']) + params['attn_k_b']
    vp = jnp.einsum('tbd,de->tbe', enc_pad, params['attn_v_w']) + params['attn_v_b']
    h0 = jnp.mean(enc_pad, axis=0)                                          # (B, D)

    dec_kernel = functools.partial(_decoder_kernel, num_layer=num_layer,
                                   max_out=max_out, start_token=start_token)
    tokens, logits = pl.pallas_call(
        dec_kernel,
        out_shape=(jax.ShapeDtypeStruct((B, max_out), jnp.int32),
                   jax.ShapeDtypeStruct((B, V), jnp.float32)),
    )(params['dec_emb'], kp, vp, attn_mask, h0,
      params['dec_lay_wih'], params['dec_lay_whh'], params['dec_lay_b'],
      params['dec_lstm_wih'], params['dec_lstm_whh'], params['dec_lstm_b'],
      params['attn_q_w'], params['attn_q_b'],
      params['attn_w_w'], params['attn_w_b'],
      params['dec_fc_w'], params['dec_fc_b'])
    return tokens, logits


# ---------------------------------------------------------------------------
# Code2Seq.forward (inference path; mode=False -> translate)
# ---------------------------------------------------------------------------
def code2seq_forward(params, cfg, inputs, mode=False, targets=None):
    if mode:
        # TODO(synk): training path (CrossEntropy loss + backward + Adam step) has no clean
        # single-kernel Pallas equivalent; only the inference (translate) path is implemented.
        raise NotImplementedError("training mode not implemented")

    B = len(inputs)
    paths = [path for item in inputs for path in item]
    lengths = [min(len(path), cfg.MAX_SBT_LEN) for path in paths]
    P = len(paths)
    T = max(lengths)

    fw_rows, bw_rows = [], []
    for path in paths:
        f = list(path)[:cfg.MAX_SBT_LEN]
        bwd = list(path)[::-1][:cfg.MAX_SBT_LEN]
        fw_rows.append(f + [0] * (T - len(f)))
        bw_rows.append(bwd + [0] * (T - len(bwd)))
    fw_ids = jnp.array(fw_rows, dtype=jnp.int32).T                          # (T, P)
    bw_ids = jnp.array(bw_rows, dtype=jnp.int32).T
    mask2 = jnp.array([[1.0 if t < lengths[p_idx] else 0.0]
                       for t in range(T) for p_idx in range(P)], dtype=jnp.float32)  # (T*P, 1)

    tokens, logits = _forward_device(params, fw_ids, bw_ids, mask2,
                                     T=T, P=P, K=cfg.K, num_layer=cfg.NUM_LAYER,
                                     max_out=cfg.MAX_OUTPUT_SIZE,
                                     start_token=cfg.START_TOKEN)

    # single host sync at the very end; END_TOKEN trimming exactly as in PyTorch translate()
    toks = jax.device_get(tokens)                                           # (B, max_out)
    preds = [[cfg.START_TOKEN] for _ in range(B)]
    for t in range(cfg.MAX_OUTPUT_SIZE):
        for b in range(B):
            if preds[b][-1] != cfg.END_TOKEN:
                preds[b].append(int(toks[b, t]))
    preds = [pr[1:-1] if pr[-1] == cfg.END_TOKEN else pr[1:] for pr in preds]
    return preds, logits


# ---------------------------------------------------------------------------
# main
# ---------------------------------------------------------------------------
if __name__ == "__main__":
    cfg = Config()
    key = jax.random.PRNGKey(0)
    pkey, dkey = jax.random.split(key)
    params = init_params(pkey, cfg)

    # deterministic synthetic batch: B=2 items, each with K=4 token-id paths
    B = 2
    path_lengths = [3, 5, 8, 10, 4, 6, 7, 9]                                # B*K paths
    toks = jax.random.randint(dkey, (sum(path_lengths),), 3, cfg.DICT_SIZE_1)
    toks = [int(t) for t in jax.device_get(toks)]
    paths, idx = [], 0
    for L in path_lengths:
        paths.append(toks[idx:idx + L])
        idx += L
    inputs = [paths[j * cfg.K:(j + 1) * cfg.K] for j in range(B)]

    preds, last_logits = code2seq_forward(params, cfg, inputs, mode=False)
    jax.block_until_ready(last_logits)
    assert len(preds) == B and all(isinstance(pr, list) for pr in preds)
    assert last_logits.shape == (B, cfg.DICT_SIZE_1)
    print("KERNEL_OK")
</pallas_src>

<mosaic_0001>
module attributes {stable_mosaic.version = 11 : i64} {
  func.func @_decoder_kernel(%arg0: memref<64x32xf32, #tpu.memory_space<vmem>>, %arg1: memref<4x2x32xf32, #tpu.memory_space<vmem>>, %arg2: memref<4x2x32xf32, #tpu.memory_space<vmem>>, %arg3: memref<4x2xf32, #tpu.memory_space<vmem>>, %arg4: memref<2x32xf32, #tpu.memory_space<vmem>>, %arg5: memref<1x32x128xf32, #tpu.memory_space<vmem>>, %arg6: memref<1x32x128xf32, #tpu.memory_space<vmem>>, %arg7: memref<1x1x128xf32, #tpu.memory_space<vmem>>, %arg8: memref<64x128xf32, #tpu.memory_space<vmem>>, %arg9: memref<32x128xf32, #tpu.memory_space<vmem>>, %arg10: memref<1x128xf32, #tpu.memory_space<vmem>>, %arg11: memref<32x32xf32, #tpu.memory_space<vmem>>, %arg12: memref<1x32xf32, #tpu.memory_space<vmem>>, %arg13: memref<1x1x32xf32, #tpu.memory_space<vmem>>, %arg14: memref<1x1xf32, #tpu.memory_space<vmem>>, %arg15: memref<32x64xf32, #tpu.memory_space<vmem>>, %arg16: memref<1x64xf32, #tpu.memory_space<vmem>>, %arg17: memref<2x5xi32, #tpu.memory_space<vmem>>, %arg18: memref<2x64xf32, #tpu.memory_space<vmem>>) attributes {dimension_semantics = [], scalar_prefetch = 0 : i64, scratch_operands = 0 : i64, tpu.core_type = #tpu.core_type<tc>} {
    %c0 = arith.constant 0 : index
    %c0_0 = arith.constant 0 : index
    %0 = vector.load %arg0[%c0, %c0_0] : memref<64x32xf32, #tpu.memory_space<vmem>>, vector<64x32xf32>
    %c0_1 = arith.constant 0 : index
    %c0_2 = arith.constant 0 : index
    %c0_3 = arith.constant 0 : index
    %1 = vector.load %arg1[%c0_1, %c0_2, %c0_3] : memref<4x2x32xf32, #tpu.memory_space<vmem>>, vector<4x2x32xf32>
    %c0_4 = arith.constant 0 : index
    %c0_5 = arith.constant 0 : index
    %c0_6 = arith.constant 0 : index
    %2 = vector.load %arg2[%c0_4, %c0_5, %c0_6] : memref<4x2x32xf32, #tpu.memory_space<vmem>>, vector<4x2x32xf32>
    %c0_7 = arith.constant 0 : index
    %c0_8 = arith.constant 0 : index
    %3 = vector.load %arg3[%c0_7, %c0_8] : memref<4x2xf32, #tpu.memory_space<vmem>>, vector<4x2xf32>
    %c0_9 = arith.constant 0 : index
    %c0_10 = arith.constant 0 : index
    %c0_11 = arith.constant 0 : index
    %4 = vector.load %arg13[%c0_9, %c0_10, %c0_11] : memref<1x1x32xf32, #tpu.memory_space<vmem>>, vector<1x1x32xf32>
    %c0_12 = arith.constant 0 : index
    %c0_13 = arith.constant 0 : index
    %5 = vector.load %arg14[%c0_12, %c0_13] : memref<1x1xf32, #tpu.memory_space<vmem>>, vector<1x1xf32>
    %c0_14 = arith.constant 0 : index
    %c0_15 = arith.constant 0 : index
    %6 = vector.load %arg11[%c0_14, %c0_15] : memref<32x32xf32, #tpu.memory_space<vmem>>, vector<32x32xf32>
    %c0_16 = arith.constant 0 : index
    %c0_17 = arith.constant 0 : index
    %7 = vector.load %arg12[%c0_16, %c0_17] : memref<1x32xf32, #tpu.memory_space<vmem>>, vector<1x32xf32>
    %c0_18 = arith.constant 0 : index
    %c0_19 = arith.constant 0 : index
    %8 = vector.load %arg8[%c0_18, %c0_19] : memref<64x128xf32, #tpu.memory_space<vmem>>, vector<64x128xf32>
    %c0_20 = arith.constant 0 : index
    %c0_21 = arith.constant 0 : index
    %9 = vector.load %arg9[%c0_20, %c0_21] : memref<32x128xf32, #tpu.memory_space<vmem>>, vector<32x128xf32>
    %c0_22 = arith.constant 0 : index
    %c0_23 = arith.constant 0 : index
    %10 = vector.load %arg10[%c0_22, %c0_23] : memref<1x128xf32, #tpu.memory_space<vmem>>, vector<1x128xf32>
    %c0_24 = arith.constant 0 : index
    %c0_25 = arith.constant 0 : index
    %11 = vector.load %arg15[%c0_24, %c0_25] : memref<32x64xf32, #tpu.memory_space<vmem>>, vector<32x64xf32>
    %c0_26 = arith.constant 0 : index
    %c0_27 = arith.constant 0 : index
    %12 = vector.load %arg16[%c0_26, %c0_27] : memref<1x64xf32, #tpu.memory_space<vmem>>, vector<1x64xf32>
    %c0_28 = arith.constant 0 : index
    %c0_29 = arith.constant 0 : index
    %13 = vector.load %arg4[%c0_28, %c0_29] : memref<2x32xf32, #tpu.memory_space<vmem>>, vector<2x32xf32>
    %14 = tpu.iota {dimensions = array<i32: 1>} : vector<2x64xi32>
    %15 = arith.sitofp %14 : vector<2x64xi32> to vector<2x64xf32>
    %c1_i32 = arith.constant 1 : i32
    %16 = vector.broadcast %c1_i32 : i32 to vector<2x1xi32>
    %17 = vector.broadcast %16 : vector<2x1xi32> to vector<2x64xi32>
    %18 = arith.cmpi eq, %17, %14 : vector<2x64xi32>
    %19 = arith.extui %18 : vector<2x64xi1> to vector<2x64xi32>
    %20 = arith.sitofp %19 : vector<2x64xi32> to vector<2x64xf32>
    %cst = arith.constant dense<0.000000e+00> : vector<2x32xf32>
    %21 = tpu.matmul %20, %0, %cst {dimension_numbers = #tpu.dot_dimension_numbers<[1], [0], [0], [1], [0, 0, 1, 1], [], []>} : vector<2x64xf32>, vector<64x32xf32>, vector<2x32xf32> -> vector<2x32xf32>
    %c0_30 = arith.constant 0 : index
    %c0_31 = arith.constant 0 : index
    %c0_32 = arith.constant 0 : index
    %22 = vector.load %arg5[%c0_30, %c0_31, %c0_32] : memref<1x32x128xf32, #tpu.memory_space<vmem>>, vector<1x32x128xf32>
    %23 = vector.shape_cast %22 : vector<1x32x128xf32> to vector<32x128xf32>
    %cst_33 = arith.constant dense<0.000000e+00> : vector<2x128xf32>
    %24 = tpu.matmul %21, %23, %cst_33 {dimension_numbers = #tpu.dot_dimension_numbers<[1], [0], [0], [1], [0, 0, 1, 1], [], []>} : vector<2x32xf32>, vector<32x128xf32>, vector<2x128xf32> -> vector<2x128xf32>
    %c0_34 = arith.constant 0 : index
    %c0_35 = arith.constant 0 : index
    %c0_36 = arith.constant 0 : index
    %25 = vector.load %arg6[%c0_34, %c0_35, %c0_36] : memref<1x32x128xf32, #tpu.memory_space<vmem>>, vector<1x32x128xf32>
    %26 = vector.shape_cast %25 : vector<1x32x128xf32> to vector<32x128xf32>
    %cst_37 = arith.constant dense<0.000000e+00> : vector<2x128xf32>
    %27 = tpu.matmul %13, %26, %cst_37 {dimension_numbers = #tpu.dot_dimension_numbers<[1], [0], [0], [1], [0, 0, 1, 1], [], []>} : vector<2x32xf32>, vector<32x128xf32>, vector<2x128xf32> -> vector<2x128xf32>
    %28 = arith.addf %24, %27 : vector<2x128xf32>
    %c0_38 = arith.constant 0 : index
    %c0_39 = arith.constant 0 : index
    %c0_40 = arith.constant 0 : index
    %29 = vector.load %arg7[%c0_38, %c0_39, %c0_40] : memref<1x1x128xf32, #tpu.memory_space<vmem>>, vector<1x1x128xf32>
    %30 = vector.shape_cast %29 : vector<1x1x128xf32> to vector<1x128xf32>
    %31 = vector.broadcast %30 : vector<1x128xf32> to vector<2x128xf32>
    %32 = arith.addf %28, %31 : vector<2x128xf32>
    %33 = vector.extract_strided_slice %32 {offsets = [0, 0], sizes = [2, 32], strides = [1, 1]} : vector<2x128xf32> to vector<2x32xf32>
    %34 = arith.negf %33 : vector<2x32xf32>
    %35 = math.exp %34 : vector<2x32xf32>
    %cst_41 = arith.constant 1.000000e+00 : f32
    %36 = vector.broadcast %cst_41 : f32 to vector<2x32xf32>
    %37 = arith.addf %36, %35 : vector<2x32xf32>
    %38 = arith.divf %36, %37 : vector<2x32xf32>
    %39 = vector.extract_strided_slice %32 {offsets = [0, 32], sizes = [2, 32], strides = [1, 1]} : vector<2x128xf32> to vector<2x32xf32>
    %40 = arith.negf %39 : vector<2x32xf32>
    %41 = math.exp %40 : vector<2x32xf32>
    %cst_42 = arith.constant 1.000000e+00 : f32
    %42 = vector.broadcast %cst_42 : f32 to vector<2x32xf32>
    %43 = arith.addf %42, %41 : vector<2x32xf32>
    %44 = arith.divf %42, %43 : vector<2x32xf32>
    %45 = vector.extract_strided_slice %32 {offsets = [0, 64], sizes = [2, 32], strides = [1, 1]} : vector<2x128xf32> to vector<2x32xf32>
    %46 = math.tanh %45 : vector<2x32xf32>
    %47 = vector.extract_strided_slice %32 {offsets = [0, 96], sizes = [2, 32], strides = [1, 1]} : vector<2x128xf32> to vector<2x32xf32>
    %48 = arith.negf %47 : vector<2x32xf32>
    %49 = math.exp %48 : vector<2x32xf32>
    %cst_43 = arith.constant 1.000000e+00 : f32
    %50 = vector.broadcast %cst_43 : f32 to vector<2x32xf32>
    %51 = arith.addf %50, %49 : vector<2x32xf32>
    %52 = arith.divf %50, %51 : vector<2x32xf32>
    %53 = arith.mulf %44, %13 : vector<2x32xf32>
    %54 = arith.mulf %38, %46 : vector<2x32xf32>
    %55 = arith.addf %53, %54 : vector<2x32xf32>
    %56 = math.tanh %55 : vector<2x32xf32>
    %57 = arith.mulf %52, %56 : vector<2x32xf32>
    %58 = arith.addf %57, %21 : vector<2x32xf32>
    %cst_44 = arith.constant dense<0.000000e+00> : vector<2x32xf32>
    %59 = tpu.matmul %58, %6, %cst_44 {dimension_numbers = #tpu.dot_dimension_numbers<[1], [0], [0], [1], [0, 0, 1, 1], [], []>} : vector<2x32xf32>, vector<32x32xf32>, vector<2x32xf32> -> vector<2x32xf32>
    %60 = vector.broadcast %7 : vector<1x32xf32> to vector<2x32xf32>
    %61 = arith.addf %59, %60 : vector<2x32xf32>
    %62 = vector.shape_cast %61 : vector<2x32xf32> to vector<1x2x32xf32>
    %63 = vector.broadcast %62 : vector<1x2x32xf32> to vector<4x2x32xf32>
    %64 = arith.addf %63, %1 : vector<4x2x32xf32>
    %65 = math.tanh %64 : vector<4x2x32xf32>
    %66 = vector.broadcast %4 : vector<1x1x32xf32> to vector<4x2x32xf32>
    %67 = arith.mulf %65, %66 : vector<4x2x32xf32>
    %cst_45 = arith.constant dense<0.000000e+00> : vector<4x2xf32>
    %68 = vector.multi_reduction <add>, %67, %cst_45 [2] : vector<4x2x32xf32> to vector<4x2xf32>
    %69 = vector.broadcast %5 : vector<1x1xf32> to vector<4x2xf32>
    %70 = arith.addf %68, %69 : vector<4x2xf32>
    %cst_46 = arith.constant 5.000000e-01 : f32
    %71 = vector.broadcast %cst_46 : f32 to vector<4x2xf32>
    %72 = arith.cmpf ogt, %3, %71 : vector<4x2xf32>
    %cst_47 = arith.constant -1.000000e+06 : f32
    %73 = vector.broadcast %cst_47 : f32 to vector<4x2xf32>
    %74 = arith.select %72, %70, %73 : vector<4x2xi1>, vector<4x2xf32>
    %cst_48 = arith.constant dense<0xFF800000> : vector<2xf32>
    %75 = vector.multi_reduction <maximumf>, %74, %cst_48 [0] : vector<4x2xf32> to vector<2xf32>
    %76 = vector.shape_cast %75 : vector<2xf32> to vector<1x2xf32>
    %77 = vector.broadcast %76 : vector<1x2xf32> to vector<4x2xf32>
    %78 = arith.subf %74, %77 : vector<4x2xf32>
    %79 = math.exp %78 : vector<4x2xf32>
    %cst_49 = arith.constant dense<0.000000e+00> : vector<2xf32>
    %80 = vector.multi_reduction <add>, %79, %cst_49 [0] : vector<4x2xf32> to vector<2xf32>
    %81 = vector.shape_cast %80 : vector<2xf32> to vector<1x2xf32>
    %82 = vector.broadcast %81 : vector<1x2xf32> to vector<4x2xf32>
    %83 = arith.divf %79, %82 : vector<4x2xf32>
    %84 = vector.shape_cast %83 : vector<4x2xf32> to vector<4x2x1xf32>
    %85 = vector.broadcast %84 : vector<4x2x1xf32> to vector<4x2x32xf32>
    %86 = arith.mulf %85, %2 : vector<4x2x32xf32>
    %cst_50 = arith.constant dense<0.000000e+00> : vector<2x32xf32>
    %87 = vector.multi_reduction <add>, %86, %cst_50 [0] : vector<4x2x32xf32> to vector<2x32xf32>
    %88 = vector.extract_strided_slice %8 {offsets = [0, 0], sizes = [32, 128], strides = [1, 1]} : vector<64x128xf32> to vector<32x128xf32>
    %cst_51 = arith.constant dense<0.000000e+00> : vector<2x128xf32>
    %89 = tpu.matmul %58, %88, %cst_51 {dimension_numbers = #tpu.dot_dimension_numbers<[1], [0], [0], [1], [0, 0, 1, 1], [], []>} : vector<2x32xf32>, vector<32x128xf32>, vector<2x128xf32> -> vector<2x128xf32>
    %90 = vector.extract_strided_slice %8 {offsets = [32, 0], sizes = [32, 128], strides = [1, 1]} : vector<64x128xf32> to vector<32x128xf32>
    %cst_52 = arith.constant dense<0.000000e+00> : vector<2x128xf32>
    %91 = tpu.matmul %87, %90, %cst_52 {dimension_numbers = #tpu.dot_dimension_numbers<[1], [0], [0], [1], [0, 0, 1, 1], [], []>} : vector<2x32xf32>, vector<32x128xf32>, vector<2x128xf32> -> vector<2x128xf32>
    %92 = arith.addf %89, %91 : vector<2x128xf32>
    %cst_53 = arith.constant dense<0.000000e+00> : vector<2x128xf32>
    %93 = tpu.matmul %13, %9, %cst_53 {dimension_numbers = #tpu.dot_dimension_numbers<[1], [0], [0], [1], [0, 0, 1, 1], [], []>} : vector<2x32xf32>, vector<32x128xf32>, vector<2x128xf32> -> vector<2x128xf32>
    %94 = arith.addf %92, %93 : vector<2x128xf32>
    %95 = vector.broadcast %10 : vector<1x128xf32> to vector<2x128xf32>
    %96 = arith.addf %94, %95 : vector<2x128xf32>
    %97 = vector.extract_strided_slice %96 {offsets = [0, 0], sizes = [2, 32], strides = [1, 1]} : vector<2x128xf32> to vector<2x32xf32>
    %98 = arith.negf %97 : vector<2x32xf32>
    %99 = math.exp %98 : vector<2x32xf32>
    %cst_54 = arith.constant 1.000000e+00 : f32
    %100 = vector.broadcast %cst_54 : f32 to vector<2x32xf32>
    %101 = arith.addf %100, %99 : vector<2x32xf32>
    %102 = arith.divf %100, %101 : vector<2x32xf32>
    %103 = vector.extract_strided_slice %96 {offsets = [0, 32], sizes = [2, 32], strides = [1, 1]} : vector<2x128xf32> to vector<2x32xf32>
    %104 = arith.negf %103 : vector<2x32xf32>
    %105 = math.exp %104 : vector<2x32xf32>
    %cst_55 = arith.constant 1.000000e+00 : f32
    %106 = vector.broadcast %cst_55 : f32 to vector<2x32xf32>
    %107 = arith.addf %106, %105 : vector<2x32xf32>
    %108 = arith.divf %106, %107 : vector<2x32xf32>
    %109 = vector.extract_strided_slice %96 {offsets = [0, 64], sizes = [2, 32], strides = [1, 1]} : vector<2x128xf32> to vector<2x32xf32>
    %110 = math.tanh %109 : vector<2x32xf32>
    %111 = vector.extract_strided_slice %96 {offsets = [0, 96], sizes = [2, 32], strides = [1, 1]} : vector<2x128xf32> to vector<2x32xf32>
    %112 = arith.negf %111 : vector<2x32xf32>
    %113 = math.exp %112 : vector<2x32xf32>
    %cst_56 = arith.constant 1.000000e+00 : f32
    %114 = vector.broadcast %cst_56 : f32 to vector<2x32xf32>
    %115 = arith.addf %114, %113 : vector<2x32xf32>
    %116 = arith.divf %114, %115 : vector<2x32xf32>
    %117 = arith.mulf %108, %13 : vector<2x32xf32>
    %118 = arith.mulf %102, %110 : vector<2x32xf32>
    %119 = arith.addf %117, %118 : vector<2x32xf32>
    %120 = math.tanh %119 : vector<2x32xf32>
    %121 = arith.mulf %116, %120 : vector<2x32xf32>
    %cst_57 = arith.constant dense<0.000000e+00> : vector<2x64xf32>
    %122 = tpu.matmul %121, %11, %cst_57 {dimension_numbers = #tpu.dot_dimension_numbers<[1], [0], [0], [1], [0, 0, 1, 1], [], []>} : vector<2x32xf32>, vector<32x64xf32>, vector<2x64xf32> -> vector<2x64xf32>
    %123 = vector.broadcast %12 : vector<1x64xf32> to vector<2x64xf32>
    %124 = arith.addf %122, %123 : vector<2x64xf32>
    %cst_58 = arith.constant dense<0xFF800000> : vector<2xf32>
    %125 = vector.multi_reduction <maximumf>, %124, %cst_58 [1] : vector<2x64xf32> to vector<2xf32>
    %126 = vector.shape_cast %125 : vector<2xf32> to vector<2x1xf32>
    %127 = vector.broadcast %126 : vector<2x1xf32> to vector<2x64xf32>
    %128 = arith.cmpf oge, %124, %127 : vector<2x64xf32>
    %cst_59 = arith.constant 6.400000e+01 : f32
    %129 = vector.broadcast %cst_59 : f32 to vector<2x64xf32>
    %130 = arith.select %128, %15, %129 : vector<2x64xi1>, vector<2x64xf32>
    %cst_60 = arith.constant dense<0x7F800000> : vector<2xf32>
    %131 = vector.multi_reduction <minimumf>, %130, %cst_60 [1] : vector<2x64xf32> to vector<2xf32>
    %132 = vector.shape_cast %131 : vector<2xf32> to vector<2x1xf32>
    %133 = arith.fptosi %132 : vector<2x1xf32> to vector<2x1xi32>
    %c0_61 = arith.constant 0 : index
    %c0_62 = arith.constant 0 : index
    %134 = vector.load %arg17[%c0_61, %c0_62] : memref<2x5xi32, #tpu.memory_space<vmem>>, vector<2x1xi32>
    tpu.vector_store %arg17[%c0_61, %c0_62], %133 {strides = array<i32>} : memref<2x5xi32, #tpu.memory_space<vmem>>, vector<2x1xi32>,
    %135 = vector.broadcast %133 : vector<2x1xi32> to vector<2x64xi32>
    %136 = arith.cmpi eq, %135, %14 : vector<2x64xi32>
    %137 = arith.extui %136 : vector<2x64xi1> to vector<2x64xi32>
    %138 = arith.sitofp %137 : vector<2x64xi32> to vector<2x64xf32>
    %cst_63 = arith.constant dense<0.000000e+00> : vector<2x32xf32>
    %139 = tpu.matmul %138, %0, %cst_63 {dimension_numbers = #tpu.dot_dimension_numbers<[1], [0], [0], [1], [0, 0, 1, 1], [], []>} : vector<2x64xf32>, vector<64x32xf32>, vector<2x32xf32> -> vector<2x32xf32>
    %c0_64 = arith.constant 0 : index
    %c0_65 = arith.constant 0 : index
    %c0_66 = arith.constant 0 : index
    %140 = vector.load %arg5[%c0_64, %c0_65, %c0_66] : memref<1x32x128xf32, #tpu.memory_space<vmem>>, vector<1x32x128xf32>
    %141 = vector.shape_cast %140 : vector<1x32x128xf32> to vector<32x128xf32>
    %cst_67 = arith.constant dense<0.000000e+00> : vector<2x128xf32>
    %142 = tpu.matmul %139, %141, %cst_67 {dimension_numbers = #tpu.dot_dimension_numbers<[1], [0], [0], [1], [0, 0, 1, 1], [], []>} : vector<2x32xf32>, vector<32x128xf32>, vector<2x128xf32> -> vector<2x128xf32>
    %c0_68 = arith.constant 0 : index
    %c0_69 = arith.constant 0 : index
    %c0_70 = arith.constant 0 : index
    %143 = vector.load %arg6[%c0_68, %c0_69, %c0_70] : memref<1x32x128xf32, #tpu.memory_space<vmem>>, vector<1x32x128xf32>
    %144 = vector.shape_cast %143 : vector<1x32x128xf32> to vector<32x128xf32>
    %cst_71 = arith.constant dense<0.000000e+00> : vector<2x128xf32>
    %145 = tpu.matmul %57, %144, %cst_71 {dimension_numbers = #tpu.dot_dimension_numbers<[1], [0], [0], [1], [0, 0, 1, 1], [], []>} : vector<2x32xf32>, vector<32x128xf32>, vector<2x128xf32> -> vector<2x128xf32>
    %146 = arith.addf %142, %145 : vector<2x128xf32>
    %c0_72 = arith.constant 0 : index
    %c0_73 = arith.constant 0 : index
    %c0_74 = arith.constant 0 : index
    %147 = vector.load %arg7[%c0_72, %c0_73, %c0_74] : memref<1x1x128xf32, #tpu.memory_space<vmem>>, vector<1x1x128xf32>
    %148 = vector.shape_cast %147 : vector<1x1x128xf32> to vector<1x128xf32>
    %149 = vector.broadcast %148 : vector<1x128xf32> to vector<2x128xf32>
    %150 = arith.addf %146, %149 : vector<2x128xf32>
    %151 = vector.extract_strided_slice %150 {offsets = [0, 0], sizes = [2, 32], strides = [1, 1]} : vector<2x128xf32> to vector<2x32xf32>
    %152 = arith.negf %151 : vector<2x32xf32>
    %153 = math.exp %152 : vector<2x32xf32>
    %cst_75 = arith.constant 1.000000e+00 : f32
    %154 = vector.broadcast %cst_75 : f32 to vector<2x32xf32>
    %155 = arith.addf %154, %153 : vector<2x32xf32>
    %156 = arith.divf %154, %155 : vector<2x32xf32>
    %157 = vector.extract_strided_slice %150 {offsets = [0, 32], sizes = [2, 32], strides = [1, 1]} : vector<2x128xf32> to vector<2x32xf32>
    %158 = arith.negf %157 : vector<2x32xf32>
    %159 = math.exp %158 : vector<2x32xf32>
    %cst_76 = arith.constant 1.000000e+00 : f32
    %160 = vector.broadcast %cst_76 : f32 to vector<2x32xf32>
    %161 = arith.addf %160, %159 : vector<2x32xf32>
    %162 = arith.divf %160, %161 : vector<2x32xf32>
    %163 = vector.extract_strided_slice %150 {offsets = [0, 64], sizes = [2, 32], strides = [1, 1]} : vector<2x128xf32> to vector<2x32xf32>
    %164 = math.tanh %163 : vector<2x32xf32>
    %165 = vector.extract_strided_slice %150 {offsets = [0, 96], sizes = [2, 32], strides = [1, 1]} : vector<2x128xf32> to vector<2x32xf32>
    %166 = arith.negf %165 : vector<2x32xf32>
    %167 = math.exp %166 : vector<2x32xf32>
    %cst_77 = arith.constant 1.000000e+00 : f32
    %168 = vector.broadcast %cst_77 : f32 to vector<2x32xf32>
    %169 = arith.addf %168, %167 : vector<2x32xf32>
    %170 = arith.divf %168, %169 : vector<2x32xf32>
    %171 = arith.mulf %162, %55 : vector<2x32xf32>
    %172 = arith.mulf %156, %164 : vector<2x32xf32>
    %173 = arith.addf %171, %172 : vector<2x32xf32>
    %174 = math.tanh %173 : vector<2x32xf32>
    %175 = arith.mulf %170, %174 : vector<2x32xf32>
    %176 = arith.addf %175, %139 : vector<2x32xf32>
    %cst_78 = arith.constant dense<0.000000e+00> : vector<2x32xf32>
    %177 = tpu.matmul %176, %6, %cst_78 {dimension_numbers = #tpu.dot_dimension_numbers<[1], [0], [0], [1], [0, 0, 1, 1], [], []>} : vector<2x32xf32>, vector<32x32xf32>, vector<2x32xf32> -> vector<2x32xf32>
    %178 = vector.broadcast %7 : vector<1x32xf32> to vector<2x32xf32>
    %179 = arith.addf %177, %178 : vector<2x32xf32>
    %180 = vector.shape_cast %179 : vector<2x32xf32> to vector<1x2x32xf32>
    %181 = vector.broadcast %180 : vector<1x2x32xf32> to vector<4x2x32xf32>
    %182 = arith.addf %181, %1 : vector<4x2x32xf32>
    %183 = math.tanh %182 : vector<4x2x32xf32>
    %184 = vector.broadcast %4 : vector<1x1x32xf32> to vector<4x2x32xf32>
    %185 = arith.mulf %183, %184 : vector<4x2x32xf32>
    %cst_79 = arith.constant dense<0.000000e+00> : vector<4x2xf32>
    %186 = vector.multi_reduction <add>, %185, %cst_79 [2] : vector<4x2x32xf32> to vector<4x2xf32>
    %187 = vector.broadcast %5 : vector<1x1xf32> to vector<4x2xf32>
    %188 = arith.addf %186, %187 : vector<4x2xf32>
    %cst_80 = arith.constant 5.000000e-01 : f32
    %189 = vector.broadcast %cst_80 : f32 to vector<4x2xf32>
    %190 = arith.cmpf ogt, %3, %189 : vector<4x2xf32>
    %cst_81 = arith.constant -1.000000e+06 : f32
    %191 = vector.broadcast %cst_81 : f32 to vector<4x2xf32>
    %192 = arith.select %190, %188, %191 : vector<4x2xi1>, vector<4x2xf32>
    %cst_82 = arith.constant dense<0xFF800000> : vector<2xf32>
    %193 = vector.multi_reduction <maximumf>, %192, %cst_82 [0] : vector<4x2xf32> to vector<2xf32>
    %194 = vector.shape_cast %193 : vector<2xf32> to vector<1x2xf32>
    %195 = vector.broadcast %194 : vector<1x2xf32> to vector<4x2xf32>
    %196 = arith.subf %192, %195 : vector<4x2xf32>
    %197 = math.exp %196 : vector<4x2xf32>
    %cst_83 = arith.constant dense<0.000000e+00> : vector<2xf32>
    %198 = vector.multi_reduction <add>, %197, %cst_83 [0] : vector<4x2xf32> to vector<2xf32>
    %199 = vector.shape_cast %198 : vector<2xf32> to vector<1x2xf32>
    %200 = vector.broadcast %199 : vector<1x2xf32> to vector<4x2xf32>
    %201 = arith.divf %197, %200 : vector<4x2xf32>
    %202 = vector.shape_cast %201 : vector<4x2xf32> to vector<4x2x1xf32>
    %203 = vector.broadcast %202 : vector<4x2x1xf32> to vector<4x2x32xf32>
    %204 = arith.mulf %203, %2 : vector<4x2x32xf32>
    %cst_84 = arith.constant dense<0.000000e+00> : vector<2x32xf32>
    %205 = vector.multi_reduction <add>, %204, %cst_84 [0] : vector<4x2x32xf32> to vector<2x32xf32>
    %206 = vector.extract_strided_slice %8 {offsets = [0, 0], sizes = [32, 128], strides = [1, 1]} : vector<64x128xf32> to vector<32x128xf32>
    %cst_85 = arith.constant dense<0.000000e+00> : vector<2x128xf32>
    %207 = tpu.matmul %176, %206, %cst_85 {dimension_numbers = #tpu.dot_dimension_numbers<[1], [0], [0], [1], [0, 0, 1, 1], [], []>} : vector<2x32xf32>, vector<32x128xf32>, vector<2x128xf32> -> vector<2x128xf32>
    %208 = vector.extract_strided_slice %8 {offsets = [32, 0], sizes = [32, 128], strides = [1, 1]} : vector<64x128xf32> to vector<32x128xf32>
    %cst_86 = arith.constant dense<0.000000e+00> : vector<2x128xf32>
    %209 = tpu.matmul %205, %208, %cst_86 {dimension_numbers = #tpu.dot_dimension_numbers<[1], [0], [0], [1], [0, 0, 1, 1], [], []>} : vector<2x32xf32>, vector<32x128xf32>, vector<2x128xf32> -> vector<2x128xf32>
    %210 = arith.addf %207, %209 : vector<2x128xf32>
    %cst_87 = arith.constant dense<0.000000e+00> : vector<2x128xf32>
    %211 = tpu.matmul %121, %9, %cst_87 {dimension_numbers = #tpu.dot_dimension_numbers<[1], [0], [0], [1], [0, 0, 1, 1], [], []>} : vector<2x32xf32>, vector<32x128xf32>, vector<2x128xf32> -> vector<2x128xf32>
    %212 = arith.addf %210, %211 : vector<2x128xf32>
    %213 = vector.broadcast %10 : vector<1x128xf32> to vector<2x128xf32>
    %214 = arith.addf %212, %213 : vector<2x128xf32>
    %215 = vector.extract_strided_slice %214 {offsets = [0, 0], sizes = [2, 32], strides = [1, 1]} : vector<2x128xf32> to vector<2x32xf32>
    %216 = arith.negf %215 : vector<2x32xf32>
    %217 = math.exp %216 : vector<2x32xf32>
    %cst_88 = arith.constant 1.000000e+00 : f32
    %218 = vector.broadcast %cst_88 : f32 to vector<2x32xf32>
    %219 = arith.addf %218, %217 : vector<2x32xf32>
    %220 = arith.divf %218, %219 : vector<2x32xf32>
    %221 = vector.extract_strided_slice %214 {offsets = [0, 32], sizes = [2, 32], strides = [1, 1]} : vector<2x128xf32> to vector<2x32xf32>
    %222 = arith.negf %221 : vector<2x32xf32>
    %223 = math.exp %222 : vector<2x32xf32>
    %cst_89 = arith.constant 1.000000e+00 : f32
    %224 = vector.broadcast %cst_89 : f32 to vector<2x32xf32>
    %225 = arith.addf %224, %223 : vector<2x32xf32>
    %226 = arith.divf %224, %225 : vector<2x32xf32>
    %227 = vector.extract_strided_slice %214 {offsets = [0, 64], sizes = [2, 32], strides = [1, 1]} : vector<2x128xf32> to vector<2x32xf32>
    %228 = math.tanh %227 : vector<2x32xf32>
    %229 = vector.extract_strided_slice %214 {offsets = [0, 96], sizes = [2, 32], strides = [1, 1]} : vector<2x128xf32> to vector<2x32xf32>
    %230 = arith.negf %229 : vector<2x32xf32>
    %231 = math.exp %230 : vector<2x32xf32>
    %cst_90 = arith.constant 1.000000e+00 : f32
    %232 = vector.broadcast %cst_90 : f32 to vector<2x32xf32>
    %233 = arith.addf %232, %231 : vector<2x32xf32>
    %234 = arith.divf %232, %233 : vector<2x32xf32>
    %235 = arith.mulf %226, %119 : vector<2x32xf32>
    %236 = arith.mulf %220, %228 : vector<2x32xf32>
    %237 = arith.addf %235, %236 : vector<2x32xf32>
    %238 = math.tanh %237 : vector<2x32xf32>
    %239 = arith.mulf %234, %238 : vector<2x32xf32>
    %cst_91 = arith.constant dense<0.000000e+00> : vector<2x64xf32>
    %240 = tpu.matmul %239, %11, %cst_91 {dimension_numbers = #tpu.dot_dimension_numbers<[1], [0], [0], [1], [0, 0, 1, 1], [], []>} : vector<2x32xf32>, vector<32x64xf32>, vector<2x64xf32> -> vector<2x64xf32>
    %241 = vector.broadcast %12 : vector<1x64xf32> to vector<2x64xf32>
    %242 = arith.addf %240, %241 : vector<2x64xf32>
    %cst_92 = arith.constant dense<0xFF800000> : vector<2xf32>
    %243 = vector.multi_reduction <maximumf>, %242, %cst_92 [1] : vector<2x64xf32> to vector<2xf32>
    %244 = vector.shape_cast %243 : vector<2xf32> to vector<2x1xf32>
    %245 = vector.broadcast %244 : vector<2x1xf32> to vector<2x64xf32>
    %246 = arith.cmpf oge, %242, %245 : vector<2x64xf32>
    %cst_93 = arith.constant 6.400000e+01 : f32
    %247 = vector.broadcast %cst_93 : f32 to vector<2x64xf32>
    %248 = arith.select %246, %15, %247 : vector<2x64xi1>, vector<2x64xf32>
    %cst_94 = arith.constant dense<0x7F800000> : vector<2xf32>
    %249 = vector.multi_reduction <minimumf>, %248, %cst_94 [1] : vector<2x64xf32> to vector<2xf32>
    %250 = vector.shape_cast %249 : vector<2xf32> to vector<2x1xf32>
    %251 = arith.fptosi %250 : vector<2x1xf32> to vector<2x1xi32>
    %c0_95 = arith.constant 0 : index
    %c1 = arith.constant 1 : index
    %252 = vector.load %arg17[%c0_95, %c1] : memref<2x5xi32, #tpu.memory_space<vmem>>, vector<2x1xi32>
    tpu.vector_store %arg17[%c0_95, %c1], %251 {strides = array<i32>} : memref<2x5xi32, #tpu.memory_space<vmem>>, vector<2x1xi32>,
    %253 = vector.broadcast %251 : vector<2x1xi32> to vector<2x64xi32>
    %254 = arith.cmpi eq, %253, %14 : vector<2x64xi32>
    %255 = arith.extui %254 : vector<2x64xi1> to vector<2x64xi32>
    %256 = arith.sitofp %255 : vector<2x64xi32> to vector<2x64xf32>
    %cst_96 = arith.constant dense<0.000000e+00> : vector<2x32xf32>
    %257 = tpu.matmul %256, %0, %cst_96 {dimension_numbers = #tpu.dot_dimension_numbers<[1], [0], [0], [1], [0, 0, 1, 1], [], []>} : vector<2x64xf32>, vector<64x32xf32>, vector<2x32xf32> -> vector<2x32xf32>
    %c0_97 = arith.constant 0 : index
    %c0_98 = arith.constant 0 : index
    %c0_99 = arith.constant 0 : index
    %258 = vector.load %arg5[%c0_97, %c0_98, %c0_99] : memref<1x32x128xf32, #tpu.memory_space<vmem>>, vector<1x32x128xf32>
    %259 = vector.shape_cast %258 : vector<1x32x128xf32> to vector<32x128xf32>
    %cst_100 = arith.constant dense<0.000000e+00> : vector<2x128xf32>
    %260 = tpu.matmul %257, %259, %cst_100 {dimension_numbers = #tpu.dot_dimension_numbers<[1], [0], [0], [1], [0, 0, 1, 1], [], []>} : vector<2x32xf32>, vector<32x128xf32>, vector<2x128xf32> -> vector<2x128xf32>
    %c0_101 = arith.constant 0 : index
    %c0_102 = arith.constant 0 : index
    %c0_103 = arith.constant 0 : index
    %261 = vector.load %arg6[%c0_101, %c0_102, %c0_103] : memref<1x32x128xf32, #tpu.memory_space<vmem>>, vector<1x32x128xf32>
    %262 = vector.shape_cast %261 : vector<1x32x128xf32> to vector<32x128xf32>
    %cst_104 = arith.constant dense<0.000000e+00> : vector<2x128xf32>
    %263 = tpu.matmul %175, %262, %cst_104 {dimension_numbers = #tpu.dot_dimension_numbers<[1], [0], [0], [1], [0, 0, 1, 1], [], []>} : vector<2x32xf32>, vector<32x128xf32>, vector<2x128xf32> -> vector<2x128xf32>
    %264 = arith.addf %260, %263 : vector<2x128xf32>
    %c0_105 = arith.constant 0 : index
    %c0_106 = arith.constant 0 : index
    %c0_107 = arith.constant 0 : index
    %265 = vector.load %arg7[%c0_105, %c0_106, %c0_107] : memref<1x1x128xf32, #tpu.memory_space<vmem>>, vector<1x1x128xf32>
    %266 = vector.shape_cast %265 : vector<1x1x128xf32> to vector<1x128xf32>
    %267 = vector.broadcast %266 : vector<1x128xf32> to vector<2x128xf32>
    %268 = arith.addf %264, %267 : vector<2x128xf32>
    %269 = vector.extract_strided_slice %268 {offsets = [0, 0], sizes = [2, 32], strides = [1, 1]} : vector<2x128xf32> to vector<2x32xf32>
    %270 = arith.negf %269 : vector<2x32xf32>
    %271 = math.exp %270 : vector<2x32xf32>
    %cst_108 = arith.constant 1.000000e+00 : f32
    %272 = vector.broadcast %cst_108 : f32 to vector<2x32xf32>
    %273 = arith.addf %272, %271 : vector<2x32xf32>
    %274 = arith.divf %272, %273 : vector<2x32xf32>
    %275 = vector.extract_strided_slice %268 {offsets = [0, 32], sizes = [2, 32], strides = [1, 1]} : vector<2x128xf32> to vector<2x32xf32>
    %276 = arith.negf %275 : vector<2x32xf32>
    %277 = math.exp %276 : vector<2x32xf32>
    %cst_109 = arith.constant 1.000000e+00 : f32
    %278 = vector.broadcast %cst_109 : f32 to vector<2x32xf32>
    %279 = arith.addf %278, %277 : vector<2x32xf32>
    %280 = arith.divf %278, %279 : vector<2x32xf32>
    %281 = vector.extract_strided_slice %268 {offsets = [0, 64], sizes = [2, 32], strides = [1, 1]} : vector<2x128xf32> to vector<2x32xf32>
    %282 = math.tanh %281 : vector<2x32xf32>
    %283 = vector.extract_strided_slice %268 {offsets = [0, 96], sizes = [2, 32], strides = [1, 1]} : vector<2x128xf32> to vector<2x32xf32>
    %284 = arith.negf %283 : vector<2x32xf32>
    %285 = math.exp %284 : vector<2x32xf32>
    %cst_110 = arith.constant 1.000000e+00 : f32
    %286 = vector.broadcast %cst_110 : f32 to vector<2x32xf32>
    %287 = arith.addf %286, %285 : vector<2x32xf32>
    %288 = arith.divf %286, %287 : vector<2x32xf32>
    %289 = arith.mulf %280, %173 : vector<2x32xf32>
    %290 = arith.mulf %274, %282 : vector<2x32xf32>
    %291 = arith.addf %289, %290 : vector<2x32xf32>
    %292 = math.tanh %291 : vector<2x32xf32>
    %293 = arith.mulf %288, %292 : vector<2x32xf32>
    %294 = arith.addf %293, %257 : vector<2x32xf32>
    %cst_111 = arith.constant dense<0.000000e+00> : vector<2x32xf32>
    %295 = tpu.matmul %294, %6, %cst_111 {dimension_numbers = #tpu.dot_dimension_numbers<[1], [0], [0], [1], [0, 0, 1, 1], [], []>} : vector<2x32xf32>, vector<32x32xf32>, vector<2x32xf32> -> vector<2x32xf32>
    %296 = vector.broadcast %7 : vector<1x32xf32> to vector<2x32xf32>
    %297 = arith.addf %295, %296 : vector<2x32xf32>
    %298 = vector.shape_cast %297 : vector<2x32xf32> to vector<1x2x32xf32>
    %299 = vector.broadcast %298 : vector<1x2x32xf32> to vector<4x2x32xf32>
    %300 = arith.addf %299, %1 : vector<4x2x32xf32>
    %301 = math.tanh %300 : vector<4x2x32xf32>
    %302 = vector.broadcast %4 : vector<1x1x32xf32> to vector<4x2x32xf32>
    %303 = arith.mulf %301, %302 : vector<4x2x32xf32>
    %cst_112 = arith.constant dense<0.000000e+00> : vector<4x2xf32>
    %304 = vector.multi_reduction <add>, %303, %cst_112 [2] : vector<4x2x32xf32> to vector<4x2xf32>
    %305 = vector.broadcast %5 : vector<1x1xf32> to vector<4x2xf32>
    %306 = arith.addf %304, %305 : vector<4x2xf32>
    %cst_113 = arith.constant 5.000000e-01 : f32
    %307 = vector.broadcast %cst_113 : f32 to vector<4x2xf32>
    %308 = arith.cmpf ogt, %3, %307 : vector<4x2xf32>
    %cst_114 = arith.constant -1.000000e+06 : f32
    %309 = vector.broadcast %cst_114 : f32 to vector<4x2xf32>
    %310 = arith.select %308, %306, %309 : vector<4x2xi1>, vector<4x2xf32>
    %cst_115 = arith.constant dense<0xFF800000> : vector<2xf32>
    %311 = vector.multi_reduction <maximumf>, %310, %cst_115 [0] : vector<4x2xf32> to vector<2xf32>
    %312 = vector.shape_cast %311 : vector<2xf32> to vector<1x2xf32>
    %313 = vector.broadcast %312 : vector<1x2xf32> to vector<4x2xf32>
    %314 = arith.subf %310, %313 : vector<4x2xf32>
    %315 = math.exp %314 : vector<4x2xf32>
    %cst_116 = arith.constant dense<0.000000e+00> : vector<2xf32>
    %316 = vector.multi_reduction <add>, %315, %cst_116 [0] : vector<4x2xf32> to vector<2xf32>
    %317 = vector.shape_cast %316 : vector<2xf32> to vector<1x2xf32>
    %318 = vector.broadcast %317 : vector<1x2xf32> to vector<4x2xf32>
    %319 = arith.divf %315, %318 : vector<4x2xf32>
    %320 = vector.shape_cast %319 : vector<4x2xf32> to vector<4x2x1xf32>
    %321 = vector.broadcast %320 : vector<4x2x1xf32> to vector<4x2x32xf32>
    %322 = arith.mulf %321, %2 : vector<4x2x32xf32>
    %cst_117 = arith.constant dense<0.000000e+00> : vector<2x32xf32>
    %323 = vector.multi_reduction <add>, %322, %cst_117 [0] : vector<4x2x32xf32> to vector<2x32xf32>
    %324 = vector.extract_strided_slice %8 {offsets = [0, 0], sizes = [32, 128], strides = [1, 1]} : vector<64x128xf32> to vector<32x128xf32>
    %cst_118 = arith.constant dense<0.000000e+00> : vector<2x128xf32>
    %325 = tpu.matmul %294, %324, %cst_118 {dimension_numbers = #tpu.dot_dimension_numbers<[1], [0], [0], [1], [0, 0, 1, 1], [], []>} : vector<2x32xf32>, vector<32x128xf32>, vector<2x128xf32> -> vector<2x128xf32>
    %326 = vector.extract_strided_slice %8 {offsets = [32, 0], sizes = [32, 128], strides = [1, 1]} : vector<64x128xf32> to vector<32x128xf32>
    %cst_119 = arith.constant dense<0.000000e+00> : vector<2x128xf32>
    %327 = tpu.matmul %323, %326, %cst_119 {dimension_numbers = #tpu.dot_dimension_numbers<[1], [0], [0], [1], [0, 0, 1, 1], [], []>} : vector<2x32xf32>, vector<32x128xf32>, vector<2x128xf32> -> vector<2x128xf32>
    %328 = arith.addf %325, %327 : vector<2x128xf32>
    %cst_120 = arith.constant dense<0.000000e+00> : vector<2x128xf32>
    %329 = tpu.matmul %239, %9, %cst_120 {dimension_numbers = #tpu.dot_dimension_numbers<[1], [0], [0], [1], [0, 0, 1, 1], [], []>} : vector<2x32xf32>, vector<32x128xf32>, vector<2x128xf32> -> vector<2x128xf32>
    %330 = arith.addf %328, %329 : vector<2x128xf32>
    %331 = vector.broadcast %10 : vector<1x128xf32> to vector<2x128xf32>
    %332 = arith.addf %330, %331 : vector<2x128xf32>
    %333 = vector.extract_strided_slice %332 {offsets = [0, 0], sizes = [2, 32], strides = [1, 1]} : vector<2x128xf32> to vector<2x32xf32>
    %334 = arith.negf %333 : vector<2x32xf32>
    %335 = math.exp %334 : vector<2x32xf32>
    %cst_121 = arith.constant 1.000000e+00 : f32
    %336 = vector.broadcast %cst_121 : f32 to vector<2x32xf32>
    %337 = arith.addf %336, %335 : vector<2x32xf32>
    %338 = arith.divf %336, %337 : vector<2x32xf32>
    %339 = vector.extract_strided_slice %332 {offsets = [0, 32], sizes = [2, 32], strides = [1, 1]} : vector<2x128xf32> to vector<2x32xf32>
    %340 = arith.negf %339 : vector<2x32xf32>
    %341 = math.exp %340 : vector<2x32xf32>
    %cst_122 = arith.constant 1.000000e+00 : f32
    %342 = vector.broadcast %cst_122 : f32 to vector<2x32xf32>
    %343 = arith.addf %342, %341 : vector<2x32xf32>
    %344 = arith.divf %342, %343 : vector<2x32xf32>
    %345 = vector.extract_strided_slice %332 {offsets = [0, 64], sizes = [2, 32], strides = [1, 1]} : vector<2x128xf32> to vector<2x32xf32>
    %346 = math.tanh %345 : vector<2x32xf32>
    %347 = vector.extract_strided_slice %332 {offsets = [0, 96], sizes = [2, 32], strides = [1, 1]} : vector<2x128xf32> to vector<2x32xf32>
    %348 = arith.negf %347 : vector<2x32xf32>
    %349 = math.exp %348 : vector<2x32xf32>
    %cst_123 = arith.constant 1.000000e+00 : f32
    %350 = vector.broadcast %cst_123 : f32 to vector<2x32xf32>
    %351 = arith.addf %350, %349 : vector<2x32xf32>
    %352 = arith.divf %350, %351 : vector<2x32xf32>
    %353 = arith.mulf %344, %237 : vector<2x32xf32>
    %354 = arith.mulf %338, %346 : vector<2x32xf32>
    %355 = arith.addf %353, %354 : vector<2x32xf32>
    %356 = math.tanh %355 : vector<2x32xf32>
    %357 = arith.mulf %352, %356 : vector<2x32xf32>
    %cst_124 = arith.constant dense<0.000000e+00> : vector<2x64xf32>
    %358 = tpu.matmul %357, %11, %cst_124 {dimension_numbers = #tpu.dot_dimension_numbers<[1], [0], [0], [1], [0, 0, 1, 1], [], []>} : vector<2x32xf32>, vector<32x64xf32>, vector<2x64xf32> -> vector<2x64xf32>
    %359 = vector.broadcast %12 : vector<1x64xf32> to vector<2x64xf32>
    %360 = arith.addf %358, %359 : vector<2x64xf32>
    %cst_125 = arith.constant dense<0xFF800000> : vector<2xf32>
    %361 = vector.multi_reduction <maximumf>, %360, %cst_125 [1] : vector<2x64xf32> to vector<2xf32>
    %362 = vector.shape_cast %361 : vector<2xf32> to vector<2x1xf32>
    %363 = vector.broadcast %362 : vector<2x1xf32> to vector<2x64xf32>
    %364 = arith.cmpf oge, %360, %363 : vector<2x64xf32>
    %cst_126 = arith.constant 6.400000e+01 : f32
    %365 = vector.broadcast %cst_126 : f32 to vector<2x64xf32>
    %366 = arith.select %364, %15, %365 : vector<2x64xi1>, vector<2x64xf32>
    %cst_127 = arith.constant dense<0x7F800000> : vector<2xf32>
    %367 = vector.multi_reduction <minimumf>, %366, %cst_127 [1] : vector<2x64xf32> to vector<2xf32>
    %368 = vector.shape_cast %367 : vector<2xf32> to vector<2x1xf32>
    %369 = arith.fptosi %368 : vector<2x1xf32> to vector<2x1xi32>
    %c0_128 = arith.constant 0 : index
    %c2 = arith.constant 2 : index
    %370 = vector.load %arg17[%c0_128, %c2] : memref<2x5xi32, #tpu.memory_space<vmem>>, vector<2x1xi32>
    tpu.vector_store %arg17[%c0_128, %c2], %369 {strides = array<i32>} : memref<2x5xi32, #tpu.memory_space<vmem>>, vector<2x1xi32>,
    %371 = vector.broadcast %369 : vector<2x1xi32> to vector<2x64xi32>
    %372 = arith.cmpi eq, %371, %14 : vector<2x64xi32>
    %373 = arith.extui %372 : vector<2x64xi1> to vector<2x64xi32>
    %374 = arith.sitofp %373 : vector<2x64xi32> to vector<2x64xf32>
    %cst_129 = arith.constant dense<0.000000e+00> : vector<2x32xf32>
    %375 = tpu.matmul %374, %0, %cst_129 {dimension_numbers = #tpu.dot_dimension_numbers<[1], [0], [0], [1], [0, 0, 1, 1], [], []>} : vector<2x64xf32>, vector<64x32xf32>, vector<2x32xf32> -> vector<2x32xf32>
    %c0_130 = arith.constant 0 : index
    %c0_131 = arith.constant 0 : index
    %c0_132 = arith.constant 0 : index
    %376 = vector.load %arg5[%c0_130, %c0_131, %c0_132] : memref<1x32x128xf32, #tpu.memory_space<vmem>>, vector<1x32x128xf32>
    %377 = vector.shape_cast %376 : vector<1x32x128xf32> to vector<32x128xf32>
    %cst_133 = arith.constant dense<0.000000e+00> : vector<2x128xf32>
    %378 = tpu.matmul %375, %377, %cst_133 {dimension_numbers = #tpu.dot_dimension_numbers<[1], [0], [0], [1], [0, 0, 1, 1], [], []>} : vector<2x32xf32>, vector<32x128xf32>, vector<2x128xf32> -> vector<2x128xf32>
    %c0_134 = arith.constant 0 : index
    %c0_135 = arith.constant 0 : index
    %c0_136 = arith.constant 0 : index
    %379 = vector.load %arg6[%c0_134, %c0_135, %c0_136] : memref<1x32x128xf32, #tpu.memory_space<vmem>>, vector<1x32x128xf32>
    %380 = vector.shape_cast %379 : vector<1x32x128xf32> to vector<32x128xf32>
    %cst_137 = arith.constant dense<0.000000e+00> : vector<2x128xf32>
    %381 = tpu.matmul %293, %380, %cst_137 {dimension_numbers = #tpu.dot_dimension_numbers<[1], [0], [0], [1], [0, 0, 1, 1], [], []>} : vector<2x32xf32>, vector<32x128xf32>, vector<2x128xf32> -> vector<2x128xf32>
    %382 = arith.addf %378, %381 : vector<2x128xf32>
    %c0_138 = arith.constant 0 : index
    %c0_139 = arith.constant 0 : index
    %c0_140 = arith.constant 0 : index
    %383 = vector.load %arg7[%c0_138, %c0_139, %c0_140] : memref<1x1x128xf32, #tpu.memory_space<vmem>>, vector<1x1x128xf32>
    %384 = vector.shape_cast %383 : vector<1x1x128xf32> to vector<1x128xf32>
    %385 = vector.broadcast %384 : vector<1x128xf32> to vector<2x128xf32>
    %386 = arith.addf %382, %385 : vector<2x128xf32>
    %387 = vector.extract_strided_slice %386 {offsets = [0, 0], sizes = [2, 32], strides = [1, 1]} : vector<2x128xf32> to vector<2x32xf32>
    %388 = arith.negf %387 : vector<2x32xf32>
    %389 = math.exp %388 : vector<2x32xf32>
    %cst_141 = arith.constant 1.000000e+00 : f32
    %390 = vector.broadcast %cst_141 : f32 to vector<2x32xf32>
    %391 = arith.addf %390, %389 : vector<2x32xf32>
    %392 = arith.divf %390, %391 : vector<2x32xf32>
    %393 = vector.extract_strided_slice %386 {offsets = [0, 32], sizes = [2, 32], strides = [1, 1]} : vector<2x128xf32> to vector<2x32xf32>
    %394 = arith.negf %393 : vector<2x32xf32>
    %395 = math.exp %394 : vector<2x32xf32>
    %cst_142 = arith.constant 1.000000e+00 : f32
    %396 = vector.broadcast %cst_142 : f32 to vector<2x32xf32>
    %397 = arith.addf %396, %395 : vector<2x32xf32>
    %398 = arith.divf %396, %397 : vector<2x32xf32>
    %399 = vector.extract_strided_slice %386 {offsets = [0, 64], sizes = [2, 32], strides = [1, 1]} : vector<2x128xf32> to vector<2x32xf32>
    %400 = math.tanh %399 : vector<2x32xf32>
    %401 = vector.extract_strided_slice %386 {offsets = [0, 96], sizes = [2, 32], strides = [1, 1]} : vector<2x128xf32> to vector<2x32xf32>
    %402 = arith.negf %401 : vector<2x32xf32>
    %403 = math.exp %402 : vector<2x32xf32>
    %cst_143 = arith.constant 1.000000e+00 : f32
    %404 = vector.broadcast %cst_143 : f32 to vector<2x32xf32>
    %405 = arith.addf %404, %403 : vector<2x32xf32>
    %406 = arith.divf %404, %405 : vector<2x32xf32>
    %407 = arith.mulf %398, %291 : vector<2x32xf32>
    %408 = arith.mulf %392, %400 : vector<2x32xf32>
    %409 = arith.addf %407, %408 : vector<2x32xf32>
    %410 = math.tanh %409 : vector<2x32xf32>
    %411 = arith.mulf %406, %410 : vector<2x32xf32>
    %412 = arith.addf %411, %375 : vector<2x32xf32>
    %cst_144 = arith.constant dense<0.000000e+00> : vector<2x32xf32>
    %413 = tpu.matmul %412, %6, %cst_144 {dimension_numbers = #tpu.dot_dimension_numbers<[1], [0], [0], [1], [0, 0, 1, 1], [], []>} : vector<2x32xf32>, vector<32x32xf32>, vector<2x32xf32> -> vector<2x32xf32>
    %414 = vector.broadcast %7 : vector<1x32xf32> to vector<2x32xf32>
    %415 = arith.addf %413, %414 : vector<2x32xf32>
    %416 = vector.shape_cast %415 : vector<2x32xf32> to vector<1x2x32xf32>
    %417 = vector.broadcast %416 : vector<1x2x32xf32> to vector<4x2x32xf32>
    %418 = arith.addf %417, %1 : vector<4x2x32xf32>
    %419 = math.tanh %418 : vector<4x2x32xf32>
    %420 = vector.broadcast %4 : vector<1x1x32xf32> to vector<4x2x32xf32>
    %421 = arith.mulf %419, %420 : vector<4x2x32xf32>
    %cst_145 = arith.constant dense<0.000000e+00> : vector<4x2xf32>
    %422 = vector.multi_reduction <add>, %421, %cst_145 [2] : vector<4x2x32xf32> to vector<4x2xf32>
    %423 = vector.broadcast %5 : vector<1x1xf32> to vector<4x2xf32>
    %424 = arith.addf %422, %423 : vector<4x2xf32>
    %cst_146 = arith.constant 5.000000e-01 : f32
    %425 = vector.broadcast %cst_146 : f32 to vector<4x2xf32>
    %426 = arith.cmpf ogt, %3, %425 : vector<4x2xf32>
    %cst_147 = arith.constant -1.000000e+06 : f32
    %427 = vector.broadcast %cst_147 : f32 to vector<4x2xf32>
    %428 = arith.select %426, %424, %427 : vector<4x2xi1>, vector<4x2xf32>
    %cst_148 = arith.constant dense<0xFF800000> : vector<2xf32>
    %429 = vector.multi_reduction <maximumf>, %428, %cst_148 [0] : vector<4x2xf32> to vector<2xf32>
    %430 = vector.shape_cast %429 : vector<2xf32> to vector<1x2xf32>
    %431 = vector.broadcast %430 : vector<1x2xf32> to vector<4x2xf32>
    %432 = arith.subf %428, %431 : vector<4x2xf32>
    %433 = math.exp %432 : vector<4x2xf32>
    %cst_149 = arith.constant dense<0.000000e+00> : vector<2xf32>
    %434 = vector.multi_reduction <add>, %433, %cst_149 [0] : vector<4x2xf32> to vector<2xf32>
    %435 = vector.shape_cast %434 : vector<2xf32> to vector<1x2xf32>
    %436 = vector.broadcast %435 : vector<1x2xf32> to vector<4x2xf32>
    %437 = arith.divf %433, %436 : vector<4x2xf32>
    %438 = vector.shape_cast %437 : vector<4x2xf32> to vector<4x2x1xf32>
    %439 = vector.broadcast %438 : vector<4x2x1xf32> to vector<4x2x32xf32>
    %440 = arith.mulf %439, %2 : vector<4x2x32xf32>
    %cst_150 = arith.constant dense<0.000000e+00> : vector<2x32xf32>
    %441 = vector.multi_reduction <add>, %440, %cst_150 [0] : vector<4x2x32xf32> to vector<2x32xf32>
    %442 = vector.extract_strided_slice %8 {offsets = [0, 0], sizes = [32, 128], strides = [1, 1]} : vector<64x128xf32> to vector<32x128xf32>
    %cst_151 = arith.constant dense<0.000000e+00> : vector<2x128xf32>
    %443 = tpu.matmul %412, %442, %cst_151 {dimension_numbers = #tpu.dot_dimension_numbers<[1], [0], [0], [1], [0, 0, 1, 1], [], []>} : vector<2x32xf32>, vector<32x128xf32>, vector<2x128xf32> -> vector<2x128xf32>
    %444 = vector.extract_strided_slice %8 {offsets = [32, 0], sizes = [32, 128], strides = [1, 1]} : vector<64x128xf32> to vector<32x128xf32>
    %cst_152 = arith.constant dense<0.000000e+00> : vector<2x128xf32>
    %445 = tpu.matmul %441, %444, %cst_152 {dimension_numbers = #tpu.dot_dimension_numbers<[1], [0], [0], [1], [0, 0, 1, 1], [], []>} : vector<2x32xf32>, vector<32x128xf32>, vector<2x128xf32> -> vector<2x128xf32>
    %446 = arith.addf %443, %445 : vector<2x128xf32>
    %cst_153 = arith.constant dense<0.000000e+00> : vector<2x128xf32>
    %447 = tpu.matmul %357, %9, %cst_153 {dimension_numbers = #tpu.dot_dimension_numbers<[1], [0], [0], [1], [0, 0, 1, 1], [], []>} : vector<2x32xf32>, vector<32x128xf32>, vector<2x128xf32> -> vector<2x128xf32>
    %448 = arith.addf %446, %447 : vector<2x128xf32>
    %449 = vector.broadcast %10 : vector<1x128xf32> to vector<2x128xf32>
    %450 = arith.addf %448, %449 : vector<2x128xf32>
    %451 = vector.extract_strided_slice %450 {offsets = [0, 0], sizes = [2, 32], strides = [1, 1]} : vector<2x128xf32> to vector<2x32xf32>
    %452 = arith.negf %451 : vector<2x32xf32>
    %453 = math.exp %452 : vector<2x32xf32>
    %cst_154 = arith.constant 1.000000e+00 : f32
    %454 = vector.broadcast %cst_154 : f32 to vector<2x32xf32>
    %455 = arith.addf %454, %453 : vector<2x32xf32>
    %456 = arith.divf %454, %455 : vector<2x32xf32>
    %457 = vector.extract_strided_slice %450 {offsets = [0, 32], sizes = [2, 32], strides = [1, 1]} : vector<2x128xf32> to vector<2x32xf32>
    %458 = arith.negf %457 : vector<2x32xf32>
    %459 = math.exp %458 : vector<2x32xf32>
    %cst_155 = arith.constant 1.000000e+00 : f32
    %460 = vector.broadcast %cst_155 : f32 to vector<2x32xf32>
    %461 = arith.addf %460, %459 : vector<2x32xf32>
    %462 = arith.divf %460, %461 : vector<2x32xf32>
    %463 = vector.extract_strided_slice %450 {offsets = [0, 64], sizes = [2, 32], strides = [1, 1]} : vector<2x128xf32> to vector<2x32xf32>
    %464 = math.tanh %463 : vector<2x32xf32>
    %465 = vector.extract_strided_slice %450 {offsets = [0, 96], sizes = [2, 32], strides = [1, 1]} : vector<2x128xf32> to vector<2x32xf32>
    %466 = arith.negf %465 : vector<2x32xf32>
    %467 = math.exp %466 : vector<2x32xf32>
    %cst_156 = arith.constant 1.000000e+00 : f32
    %468 = vector.broadcast %cst_156 : f32 to vector<2x32xf32>
    %469 = arith.addf %468, %467 : vector<2x32xf32>
    %470 = arith.divf %468, %469 : vector<2x32xf32>
    %471 = arith.mulf %462, %355 : vector<2x32xf32>
    %472 = arith.mulf %456, %464 : vector<2x32xf32>
    %473 = arith.addf %471, %472 : vector<2x32xf32>
    %474 = math.tanh %473 : vector<2x32xf32>
    %475 = arith.mulf %470, %474 : vector<2x32xf32>
    %cst_157 = arith.constant dense<0.000000e+00> : vector<2x64xf32>
    %476 = tpu.matmul %475, %11, %cst_157 {dimension_numbers = #tpu.dot_dimension_numbers<[1], [0], [0], [1], [0, 0, 1, 1], [], []>} : vector<2x32xf32>, vector<32x64xf32>, vector<2x64xf32> -> vector<2x64xf32>
    %477 = vector.broadcast %12 : vector<1x64xf32> to vector<2x64xf32>
    %478 = arith.addf %476, %477 : vector<2x64xf32>
    %cst_158 = arith.constant dense<0xFF800000> : vector<2xf32>
    %479 = vector.multi_reduction <maximumf>, %478, %cst_158 [1] : vector<2x64xf32> to vector<2xf32>
    %480 = vector.shape_cast %479 : vector<2xf32> to vector<2x1xf32>
    %481 = vector.broadcast %480 : vector<2x1xf32> to vector<2x64xf32>
    %482 = arith.cmpf oge, %478, %481 : vector<2x64xf32>
    %cst_159 = arith.constant 6.400000e+01 : f32
    %483 = vector.broadcast %cst_159 : f32 to vector<2x64xf32>
    %484 = arith.select %482, %15, %483 : vector<2x64xi1>, vector<2x64xf32>
    %cst_160 = arith.constant dense<0x7F800000> : vector<2xf32>
    %485 = vector.multi_reduction <minimumf>, %484, %cst_160 [1] : vector<2x64xf32> to vector<2xf32>
    %486 = vector.shape_cast %485 : vector<2xf32> to vector<2x1xf32>
    %487 = arith.fptosi %486 : vector<2x1xf32> to vector<2x1xi32>
    %c0_161 = arith.constant 0 : index
    %c3 = arith.constant 3 : index
    %488 = vector.load %arg17[%c0_161, %c3] : memref<2x5xi32, #tpu.memory_space<vmem>>, vector<2x1xi32>
    tpu.vector_store %arg17[%c0_161, %c3], %487 {strides = array<i32>} : memref<2x5xi32, #tpu.memory_space<vmem>>, vector<2x1xi32>,
    %489 = vector.broadcast %487 : vector<2x1xi32> to vector<2x64xi32>
    %490 = arith.cmpi eq, %489, %14 : vector<2x64xi32>
    %491 = arith.extui %490 : vector<2x64xi1> to vector<2x64xi32>
    %492 = arith.sitofp %491 : vector<2x64xi32> to vector<2x64xf32>
    %cst_162 = arith.constant dense<0.000000e+00> : vector<2x32xf32>
    %493 = tpu.matmul %492, %0, %cst_162 {dimension_numbers = #tpu.dot_dimension_numbers<[1], [0], [0], [1], [0, 0, 1, 1], [], []>} : vector<2x64xf32>, vector<64x32xf32>, vector<2x32xf32> -> vector<2x32xf32>
    %c0_163 = arith.constant 0 : index
    %c0_164 = arith.constant 0 : index
    %c0_165 = arith.constant 0 : index
    %494 = vector.load %arg5[%c0_163, %c0_164, %c0_165] : memref<1x32x128xf32, #tpu.memory_space<vmem>>, vector<1x32x128xf32>
    %495 = vector.shape_cast %494 : vector<1x32x128xf32> to vector<32x128xf32>
    %cst_166 = arith.constant dense<0.000000e+00> : vector<2x128xf32>
    %496 = tpu.matmul %493, %495, %cst_166 {dimension_numbers = #tpu.dot_dimension_numbers<[1], [0], [0], [1], [0, 0, 1, 1], [], []>} : vector<2x32xf32>, vector<32x128xf32>, vector<2x128xf32> -> vector<2x128xf32>
    %c0_167 = arith.constant 0 : index
    %c0_168 = arith.constant 0 : index
    %c0_169 = arith.constant 0 : index
    %497 = vector.load %arg6[%c0_167, %c0_168, %c0_169] : memref<1x32x128xf32, #tpu.memory_space<vmem>>, vector<1x32x128xf32>
    %498 = vector.shape_cast %497 : vector<1x32x128xf32> to vector<32x128xf32>
    %cst_170 = arith.constant dense<0.000000e+00> : vector<2x128xf32>
    %499 = tpu.matmul %411, %498, %cst_170 {dimension_numbers = #tpu.dot_dimension_numbers<[1], [0], [0], [1], [0, 0, 1, 1], [], []>} : vector<2x32xf32>, vector<32x128xf32>, vector<2x128xf32> -> vector<2x128xf32>
    %500 = arith.addf %496, %499 : vector<2x128xf32>
    %c0_171 = arith.constant 0 : index
    %c0_172 = arith.constant 0 : index
    %c0_173 = arith.constant 0 : index
    %501 = vector.load %arg7[%c0_171, %c0_172, %c0_173] : memref<1x1x128xf32, #tpu.memory_space<vmem>>, vector<1x1x128xf32>
    %502 = vector.shape_cast %501 : vector<1x1x128xf32> to vector<1x128xf32>
    %503 = vector.broadcast %502 : vector<1x128xf32> to vector<2x128xf32>
    %504 = arith.addf %500, %503 : vector<2x128xf32>
    %505 = vector.extract_strided_slice %504 {offsets = [0, 0], sizes = [2, 32], strides = [1, 1]} : vector<2x128xf32> to vector<2x32xf32>
    %506 = arith.negf %505 : vector<2x32xf32>
    %507 = math.exp %506 : vector<2x32xf32>
    %cst_174 = arith.constant 1.000000e+00 : f32
    %508 = vector.broadcast %cst_174 : f32 to vector<2x32xf32>
    %509 = arith.addf %508, %507 : vector<2x32xf32>
    %510 = arith.divf %508, %509 : vector<2x32xf32>
    %511 = vector.extract_strided_slice %504 {offsets = [0, 32], sizes = [2, 32], strides = [1, 1]} : vector<2x128xf32> to vector<2x32xf32>
    %512 = arith.negf %511 : vector<2x32xf32>
    %513 = math.exp %512 : vector<2x32xf32>
    %cst_175 = arith.constant 1.000000e+00 : f32
    %514 = vector.broadcast %cst_175 : f32 to vector<2x32xf32>
    %515 = arith.addf %514, %513 : vector<2x32xf32>
    %516 = arith.divf %514, %515 : vector<2x32xf32>
    %517 = vector.extract_strided_slice %504 {offsets = [0, 64], sizes = [2, 32], strides = [1, 1]} : vector<2x128xf32> to vector<2x32xf32>
    %518 = math.tanh %517 : vector<2x32xf32>
    %519 = vector.extract_strided_slice %504 {offsets = [0, 96], sizes = [2, 32], strides = [1, 1]} : vector<2x128xf32> to vector<2x32xf32>
    %520 = arith.negf %519 : vector<2x32xf32>
    %521 = math.exp %520 : vector<2x32xf32>
    %cst_176 = arith.constant 1.000000e+00 : f32
    %522 = vector.broadcast %cst_176 : f32 to vector<2x32xf32>
    %523 = arith.addf %522, %521 : vector<2x32xf32>
    %524 = arith.divf %522, %523 : vector<2x32xf32>
    %525 = arith.mulf %516, %409 : vector<2x32xf32>
    %526 = arith.mulf %510, %518 : vector<2x32xf32>
    %527 = arith.addf %525, %526 : vector<2x32xf32>
    %528 = math.tanh %527 : vector<2x32xf32>
    %529 = arith.mulf %524, %528 : vector<2x32xf32>
    %530 = arith.addf %529, %493 : vector<2x32xf32>
    %cst_177 = arith.constant dense<0.000000e+00> : vector<2x32xf32>
    %531 = tpu.matmul %530, %6, %cst_177 {dimension_numbers = #tpu.dot_dimension_numbers<[1], [0], [0], [1], [0, 0, 1, 1], [], []>} : vector<2x32xf32>, vector<32x32xf32>, vector<2x32xf32> -> vector<2x32xf32>
    %532 = vector.broadcast %7 : vector<1x32xf32> to vector<2x32xf32>
    %533 = arith.addf %531, %532 : vector<2x32xf32>
    %534 = vector.shape_cast %533 : vector<2x32xf32> to vector<1x2x32xf32>
    %535 = vector.broadcast %534 : vector<1x2x32xf32> to vector<4x2x32xf32>
    %536 = arith.addf %535, %1 : vector<4x2x32xf32>
    %537 = math.tanh %536 : vector<4x2x32xf32>
    %538 = vector.broadcast %4 : vector<1x1x32xf32> to vector<4x2x32xf32>
    %539 = arith.mulf %537, %538 : vector<4x2x32xf32>
    %cst_178 = arith.constant dense<0.000000e+00> : vector<4x2xf32>
    %540 = vector.multi_reduction <add>, %539, %cst_178 [2] : vector<4x2x32xf32> to vector<4x2xf32>
    %541 = vector.broadcast %5 : vector<1x1xf32> to vector<4x2xf32>
    %542 = arith.addf %540, %541 : vector<4x2xf32>
    %cst_179 = arith.constant 5.000000e-01 : f32
    %543 = vector.broadcast %cst_179 : f32 to vector<4x2xf32>
    %544 = arith.cmpf ogt, %3, %543 : vector<4x2xf32>
    %cst_180 = arith.constant -1.000000e+06 : f32
    %545 = vector.broadcast %cst_180 : f32 to vector<4x2xf32>
    %546 = arith.select %544, %542, %545 : vector<4x2xi1>, vector<4x2xf32>
    %cst_181 = arith.constant dense<0xFF800000> : vector<2xf32>
    %547 = vector.multi_reduction <maximumf>, %546, %cst_181 [0] : vector<4x2xf32> to vector<2xf32>
    %548 = vector.shape_cast %547 : vector<2xf32> to vector<1x2xf32>
    %549 = vector.broadcast %548 : vector<1x2xf32> to vector<4x2xf32>
    %550 = arith.subf %546, %549 : vector<4x2xf32>
    %551 = math.exp %550 : vector<4x2xf32>
    %cst_182 = arith.constant dense<0.000000e+00> : vector<2xf32>
    %552 = vector.multi_reduction <add>, %551, %cst_182 [0] : vector<4x2xf32> to vector<2xf32>
    %553 = vector.shape_cast %552 : vector<2xf32> to vector<1x2xf32>
    %554 = vector.broadcast %553 : vector<1x2xf32> to vector<4x2xf32>
    %555 = arith.divf %551, %554 : vector<4x2xf32>
    %556 = vector.shape_cast %555 : vector<4x2xf32> to vector<4x2x1xf32>
    %557 = vector.broadcast %556 : vector<4x2x1xf32> to vector<4x2x32xf32>
    %558 = arith.mulf %557, %2 : vector<4x2x32xf32>
    %cst_183 = arith.constant dense<0.000000e+00> : vector<2x32xf32>
    %559 = vector.multi_reduction <add>, %558, %cst_183 [0] : vector<4x2x32xf32> to vector<2x32xf32>
    %560 = vector.extract_strided_slice %8 {offsets = [0, 0], sizes = [32, 128], strides = [1, 1]} : vector<64x128xf32> to vector<32x128xf32>
    %cst_184 = arith.constant dense<0.000000e+00> : vector<2x128xf32>
    %561 = tpu.matmul %530, %560, %cst_184 {dimension_numbers = #tpu.dot_dimension_numbers<[1], [0], [0], [1], [0, 0, 1, 1], [], []>} : vector<2x32xf32>, vector<32x128xf32>, vector<2x128xf32> -> vector<2x128xf32>
    %562 = vector.extract_strided_slice %8 {offsets = [32, 0], sizes = [32, 128], strides = [1, 1]} : vector<64x128xf32> to vector<32x128xf32>
    %cst_185 = arith.constant dense<0.000000e+00> : vector<2x128xf32>
    %563 = tpu.matmul %559, %562, %cst_185 {dimension_numbers = #tpu.dot_dimension_numbers<[1], [0], [0], [1], [0, 0, 1, 1], [], []>} : vector<2x32xf32>, vector<32x128xf32>, vector<2x128xf32> -> vector<2x128xf32>
    %564 = arith.addf %561, %563 : vector<2x128xf32>
    %cst_186 = arith.constant dense<0.000000e+00> : vector<2x128xf32>
    %565 = tpu.matmul %475, %9, %cst_186 {dimension_numbers = #tpu.dot_dimension_numbers<[1], [0], [0], [1], [0, 0, 1, 1], [], []>} : vector<2x32xf32>, vector<32x128xf32>, vector<2x128xf32> -> vector<2x128xf32>
    %566 = arith.addf %564, %565 : vector<2x128xf32>
    %567 = vector.broadcast %10 : vector<1x128xf32> to vector<2x128xf32>
    %568 = arith.addf %566, %567 : vector<2x128xf32>
    %569 = vector.extract_strided_slice %568 {offsets = [0, 0], sizes = [2, 32], strides = [1, 1]} : vector<2x128xf32> to vector<2x32xf32>
    %570 = arith.negf %569 : vector<2x32xf32>
    %571 = math.exp %570 : vector<2x32xf32>
    %cst_187 = arith.constant 1.000000e+00 : f32
    %572 = vector.broadcast %cst_187 : f32 to vector<2x32xf32>
    %573 = arith.addf %572, %571 : vector<2x32xf32>
    %574 = arith.divf %572, %573 : vector<2x32xf32>
    %575 = vector.extract_strided_slice %568 {offsets = [0, 32], sizes = [2, 32], strides = [1, 1]} : vector<2x128xf32> to vector<2x32xf32>
    %576 = arith.negf %575 : vector<2x32xf32>
    %577 = math.exp %576 : vector<2x32xf32>
    %cst_188 = arith.constant 1.000000e+00 : f32
    %578 = vector.broadcast %cst_188 : f32 to vector<2x32xf32>
    %579 = arith.addf %578, %577 : vector<2x32xf32>
    %580 = arith.divf %578, %579 : vector<2x32xf32>
    %581 = vector.extract_strided_slice %568 {offsets = [0, 64], sizes = [2, 32], strides = [1, 1]} : vector<2x128xf32> to vector<2x32xf32>
    %582 = math.tanh %581 : vector<2x32xf32>
    %583 = vector.extract_strided_slice %568 {offsets = [0, 96], sizes = [2, 32], strides = [1, 1]} : vector<2x128xf32> to vector<2x32xf32>
    %584 = arith.negf %583 : vector<2x32xf32>
    %585 = math.exp %584 : vector<2x32xf32>
    %cst_189 = arith.constant 1.000000e+00 : f32
    %586 = vector.broadcast %cst_189 : f32 to vector<2x32xf32>
    %587 = arith.addf %586, %585 : vector<2x32xf32>
    %588 = arith.divf %586, %587 : vector<2x32xf32>
    %589 = arith.mulf %580, %473 : vector<2x32xf32>
    %590 = arith.mulf %574, %582 : vector<2x32xf32>
    %591 = arith.addf %589, %590 : vector<2x32xf32>
    %592 = math.tanh %591 : vector<2x32xf32>
    %593 = arith.mulf %588, %592 : vector<2x32xf32>
    %cst_190 = arith.constant dense<0.000000e+00> : vector<2x64xf32>
    %594 = tpu.matmul %593, %11, %cst_190 {dimension_numbers = #tpu.dot_dimension_numbers<[1], [0], [0], [1], [0, 0, 1, 1], [], []>} : vector<2x32xf32>, vector<32x64xf32>, vector<2x64xf32> -> vector<2x64xf32>
    %595 = vector.broadcast %12 : vector<1x64xf32> to vector<2x64xf32>
    %596 = arith.addf %594, %595 : vector<2x64xf32>
    %cst_191 = arith.constant dense<0xFF800000> : vector<2xf32>
    %597 = vector.multi_reduction <maximumf>, %596, %cst_191 [1] : vector<2x64xf32> to vector<2xf32>
    %598 = vector.shape_cast %597 : vector<2xf32> to vector<2x1xf32>
    %599 = vector.broadcast %598 : vector<2x1xf32> to vector<2x64xf32>
    %600 = arith.cmpf oge, %596, %599 : vector<2x64xf32>
    %cst_192 = arith.constant 6.400000e+01 : f32
    %601 = vector.broadcast %cst_192 : f32 to vector<2x64xf32>
    %602 = arith.select %600, %15, %601 : vector<2x64xi1>, vector<2x64xf32>
    %cst_193 = arith.constant dense<0x7F800000> : vector<2xf32>
    %603 = vector.multi_reduction <minimumf>, %602, %cst_193 [1] : vector<2x64xf32> to vector<2xf32>
    %604 = vector.shape_cast %603 : vector<2xf32> to vector<2x1xf32>
    %605 = arith.fptosi %604 : vector<2x1xf32> to vector<2x1xi32>
    %c0_194 = arith.constant 0 : index
    %c4 = arith.constant 4 : index
    %606 = vector.load %arg17[%c0_194, %c4] : memref<2x5xi32, #tpu.memory_space<vmem>>, vector<2x1xi32>
    tpu.vector_store %arg17[%c0_194, %c4], %605 {strides = array<i32>} : memref<2x5xi32, #tpu.memory_space<vmem>>, vector<2x1xi32>,
    %c0_195 = arith.constant 0 : index
    %c0_196 = arith.constant 0 : index
    %607 = vector.load %arg18[%c0_195, %c0_196] : memref<2x64xf32, #tpu.memory_space<vmem>>, vector<2x64xf32>
    tpu.vector_store %arg18[%c0_195, %c0_196], %596 {strides = array<i32>} : memref<2x64xf32, #tpu.memory_space<vmem>>, vector<2x64xf32>,
    return
  }
}

module attributes {stable_mosaic.version = 11 : i64} {
  func.func @_encoder_kernel(%arg0: memref<64x32xf32, #tpu.memory_space<vmem>>, %arg1: memref<64x32xf32, #tpu.memory_space<vmem>>, %arg2: memref<64x1xf32, #tpu.memory_space<vmem>>, %arg3: memref<2x32x128xf32, #tpu.memory_space<vmem>>, %arg4: memref<2x32x128xf32, #tpu.memory_space<vmem>>, %arg5: memref<2x1x128xf32, #tpu.memory_space<vmem>>, %arg6: memref<2x32x128xf32, #tpu.memory_space<vmem>>, %arg7: memref<2x32x128xf32, #tpu.memory_space<vmem>>, %arg8: memref<2x1x128xf32, #tpu.memory_space<vmem>>, %arg9: memref<128x32xf32, #tpu.memory_space<vmem>>, %arg10: memref<1x32xf32, #tpu.memory_space<vmem>>, %arg11: memref<8x32xf32, #tpu.memory_space<vmem>>) attributes {dimension_semantics = [], scalar_prefetch = 0 : i64, scratch_operands = 0 : i64, tpu.core_type = #tpu.core_type<tc>} {
    %c0 = arith.constant 0 : index
    %c0_0 = arith.constant 0 : index
    %0 = vector.load %arg2[%c0, %c0_0] : memref<64x1xf32, #tpu.memory_space<vmem>>, vector<64x1xf32>
    %c0_1 = arith.constant 0 : index
    %c0_2 = arith.constant 0 : index
    %1 = vector.load %arg0[%c0_1, %c0_2] : memref<64x32xf32, #tpu.memory_space<vmem>>, vector<64x32xf32>
    %c0_3 = arith.constant 0 : index
    %c0_4 = arith.constant 0 : index
    %2 = vector.load %arg1[%c0_3, %c0_4] : memref<64x32xf32, #tpu.memory_space<vmem>>, vector<64x32xf32>
    %c0_5 = arith.constant 0 : index
    %c0_6 = arith.constant 0 : index
    %c0_7 = arith.constant 0 : index
    %3 = vector.load %arg3[%c0_5, %c0_6, %c0_7] : memref<2x32x128xf32, #tpu.memory_space<vmem>>, vector<1x32x128xf32>
    %4 = vector.shape_cast %3 : vector<1x32x128xf32> to vector<32x128xf32>
    %c0_8 = arith.constant 0 : index
    %c0_9 = arith.constant 0 : index
    %c0_10 = arith.constant 0 : index
    %5 = vector.load %arg4[%c0_8, %c0_9, %c0_10] : memref<2x32x128xf32, #tpu.memory_space<vmem>>, vector<1x32x128xf32>
    %6 = vector.shape_cast %5 : vector<1x32x128xf32> to vector<32x128xf32>
    %c0_11 = arith.constant 0 : index
    %c0_12 = arith.constant 0 : index
    %c0_13 = arith.constant 0 : index
    %7 = vector.load %arg5[%c0_11, %c0_12, %c0_13] : memref<2x1x128xf32, #tpu.memory_space<vmem>>, vector<1x1x128xf32>
    %8 = vector.shape_cast %7 : vector<1x1x128xf32> to vector<1x128xf32>
    %cst = arith.constant dense<0.000000e+00> : vector<64x128xf32>
    %9 = tpu.matmul %1, %4, %cst {dimension_numbers = #tpu.dot_dimension_numbers<[1], [0], [0], [1], [0, 0, 1, 1], [], []>} : vector<64x32xf32>, vector<32x128xf32>, vector<64x128xf32> -> vector<64x128xf32>
    %10 = vector.broadcast %8 : vector<1x128xf32> to vector<64x128xf32>
    %11 = arith.addf %9, %10 : vector<64x128xf32>
    %cst_14 = arith.constant 0.000000e+00 : f32
    %12 = vector.broadcast %cst_14 : f32 to vector<8x32xf32>
    %cst_15 = arith.constant 0.000000e+00 : f32
    %13 = vector.broadcast %cst_15 : f32 to vector<8x32xf32>
    %14 = vector.extract_strided_slice %11 {offsets = [0, 0], sizes = [8, 128], strides = [1, 1]} : vector<64x128xf32> to vector<8x128xf32>
    %cst_16 = arith.constant dense<0.000000e+00> : vector<8x128xf32>
    %15 = tpu.matmul %12, %6, %cst_16 {dimension_numbers = #tpu.dot_dimension_numbers<[1], [0], [0], [1], [0, 0, 1, 1], [], []>} : vector<8x32xf32>, vector<32x128xf32>, vector<8x128xf32> -> vector<8x128xf32>
    %16 = arith.addf %14, %15 : vector<8x128xf32>
    %17 = vector.extract_strided_slice %16 {offsets = [0, 0], sizes = [8, 32], strides = [1, 1]} : vector<8x128xf32> to vector<8x32xf32>
    %18 = arith.negf %17 : vector<8x32xf32>
    %19 = math.exp %18 : vector<8x32xf32>
    %cst_17 = arith.constant 1.000000e+00 : f32
    %20 = vector.broadcast %cst_17 : f32 to vector<8x32xf32>
    %21 = arith.addf %20, %19 : vector<8x32xf32>
    %22 = arith.divf %20, %21 : vector<8x32xf32>
    %23 = vector.extract_strided_slice %16 {offsets = [0, 32], sizes = [8, 32], strides = [1, 1]} : vector<8x128xf32> to vector<8x32xf32>
    %24 = arith.negf %23 : vector<8x32xf32>
    %25 = math.exp %24 : vector<8x32xf32>
    %cst_18 = arith.constant 1.000000e+00 : f32
    %26 = vector.broadcast %cst_18 : f32 to vector<8x32xf32>
    %27 = arith.addf %26, %25 : vector<8x32xf32>
    %28 = arith.divf %26, %27 : vector<8x32xf32>
    %29 = vector.extract_strided_slice %16 {offsets = [0, 64], sizes = [8, 32], strides = [1, 1]} : vector<8x128xf32> to vector<8x32xf32>
    %30 = math.tanh %29 : vector<8x32xf32>
    %31 = vector.extract_strided_slice %16 {offsets = [0, 96], sizes = [8, 32], strides = [1, 1]} : vector<8x128xf32> to vector<8x32xf32>
    %32 = arith.negf %31 : vector<8x32xf32>
    %33 = math.exp %32 : vector<8x32xf32>
    %cst_19 = arith.constant 1.000000e+00 : f32
    %34 = vector.broadcast %cst_19 : f32 to vector<8x32xf32>
    %35 = arith.addf %34, %33 : vector<8x32xf32>
    %36 = arith.divf %34, %35 : vector<8x32xf32>
    %37 = arith.mulf %28, %13 : vector<8x32xf32>
    %38 = arith.mulf %22, %30 : vector<8x32xf32>
    %39 = arith.addf %37, %38 : vector<8x32xf32>
    %40 = math.tanh %39 : vector<8x32xf32>
    %41 = arith.mulf %36, %40 : vector<8x32xf32>
    %42 = vector.extract_strided_slice %0 {offsets = [0, 0], sizes = [8, 1], strides = [1, 1]} : vector<64x1xf32> to vector<8x1xf32>
    %43 = vector.broadcast %42 : vector<8x1xf32> to vector<8x32xf32>
    %44 = arith.mulf %43, %41 : vector<8x32xf32>
    %cst_20 = arith.constant 1.000000e+00 : f32
    %45 = vector.broadcast %cst_20 : f32 to vector<8x1xf32>
    %46 = arith.subf %45, %42 : vector<8x1xf32>
    %47 = vector.broadcast %46 : vector<8x1xf32> to vector<8x32xf32>
    %48 = arith.mulf %47, %12 : vector<8x32xf32>
    %49 = arith.addf %44, %48 : vector<8x32xf32>
    %50 = vector.broadcast %42 : vector<8x1xf32> to vector<8x32xf32>
    %51 = arith.mulf %50, %39 : vector<8x32xf32>
    %cst_21 = arith.constant 1.000000e+00 : f32
    %52 = vector.broadcast %cst_21 : f32 to vector<8x1xf32>
    %53 = arith.subf %52, %42 : vector<8x1xf32>
    %54 = vector.broadcast %53 : vector<8x1xf32> to vector<8x32xf32>
    %55 = arith.mulf %54, %13 : vector<8x32xf32>
    %56 = arith.addf %51, %55 : vector<8x32xf32>
    %57 = vector.broadcast %42 : vector<8x1xf32> to vector<8x32xf32>
    %58 = arith.mulf %57, %49 : vector<8x32xf32>
    %59 = vector.extract_strided_slice %11 {offsets = [8, 0], sizes = [8, 128], strides = [1, 1]} : vector<64x128xf32> to vector<8x128xf32>
    %cst_22 = arith.constant dense<0.000000e+00> : vector<8x128xf32>
    %60 = tpu.matmul %49, %6, %cst_22 {dimension_numbers = #tpu.dot_dimension_numbers<[1], [0], [0], [1], [0, 0, 1, 1], [], []>} : vector<8x32xf32>, vector<32x128xf32>, vector<8x128xf32> -> vector<8x128xf32>
    %61 = arith.addf %59, %60 : vector<8x128xf32>
    %62 = vector.extract_strided_slice %61 {offsets = [0, 0], sizes = [8, 32], strides = [1, 1]} : vector<8x128xf32> to vector<8x32xf32>
    %63 = arith.negf %62 : vector<8x32xf32>
    %64 = math.exp %63 : vector<8x32xf32>
    %cst_23 = arith.constant 1.000000e+00 : f32
    %65 = vector.broadcast %cst_23 : f32 to vector<8x32xf32>
    %66 = arith.addf %65, %64 : vector<8x32xf32>
    %67 = arith.divf %65, %66 : vector<8x32xf32>
    %68 = vector.extract_strided_slice %61 {offsets = [0, 32], sizes = [8, 32], strides = [1, 1]} : vector<8x128xf32> to vector<8x32xf32>
    %69 = arith.negf %68 : vector<8x32xf32>
    %70 = math.exp %69 : vector<8x32xf32>
    %cst_24 = arith.constant 1.000000e+00 : f32
    %71 = vector.broadcast %cst_24 : f32 to vector<8x32xf32>
    %72 = arith.addf %71, %70 : vector<8x32xf32>
    %73 = arith.divf %71, %72 : vector<8x32xf32>
    %74 = vector.extract_strided_slice %61 {offsets = [0, 64], sizes = [8, 32], strides = [1, 1]} : vector<8x128xf32> to vector<8x32xf32>
    %75 = math.tanh %74 : vector<8x32xf32>
    %76 = vector.extract_strided_slice %61 {offsets = [0, 96], sizes = [8, 32], strides = [1, 1]} : vector<8x128xf32> to vector<8x32xf32>
    %77 = arith.negf %76 : vector<8x32xf32>
    %78 = math.exp %77 : vector<8x32xf32>
    %cst_25 = arith.constant 1.000000e+00 : f32
    %79 = vector.broadcast %cst_25 : f32 to vector<8x32xf32>
    %80 = arith.addf %79, %78 : vector<8x32xf32>
    %81 = arith.divf %79, %80 : vector<8x32xf32>
    %82 = arith.mulf %73, %56 : vector<8x32xf32>
    %83 = arith.mulf %67, %75 : vector<8x32xf32>
    %84 = arith.addf %82, %83 : vector<8x32xf32>
    %85 = math.tanh %84 : vector<8x32xf32>
    %86 = arith.mulf %81, %85 : vector<8x32xf32>
    %87 = vector.extract_strided_slice %0 {offsets = [8, 0], sizes = [8, 1], strides = [1, 1]} : vector<64x1xf32> to vector<8x1xf32>
    %88 = vector.broadcast %87 : vector<8x1xf32> to vector<8x32xf32>
    %89 = arith.mulf %88, %86 : vector<8x32xf32>
    %cst_26 = arith.constant 1.000000e+00 : f32
    %90 = vector.broadcast %cst_26 : f32 to vector<8x1xf32>
    %91 = arith.subf %90, %87 : vector<8x1xf32>
    %92 = vector.broadcast %91 : vector<8x1xf32> to vector<8x32xf32>
    %93 = arith.mulf %92, %49 : vector<8x32xf32>
    %94 = arith.addf %89, %93 : vector<8x32xf32>
    %95 = vector.broadcast %87 : vector<8x1xf32> to vector<8x32xf32>
    %96 = arith.mulf %95, %84 : vector<8x32xf32>
    %cst_27 = arith.constant 1.000000e+00 : f32
    %97 = vector.broadcast %cst_27 : f32 to vector<8x1xf32>
    %98 = arith.subf %97, %87 : vector<8x1xf32>
    %99 = vector.broadcast %98 : vector<8x1xf32> to vector<8x32xf32>
    %100 = arith.mulf %99, %56 : vector<8x32xf32>
    %101 = arith.addf %96, %100 : vector<8x32xf32>
    %102 = vector.broadcast %87 : vector<8x1xf32> to vector<8x32xf32>
    %103 = arith.mulf %102, %94 : vector<8x32xf32>
    %104 = vector.extract_strided_slice %11 {offsets = [16, 0], sizes = [8, 128], strides = [1, 1]} : vector<64x128xf32> to vector<8x128xf32>
    %cst_28 = arith.constant dense<0.000000e+00> : vector<8x128xf32>
    %105 = tpu.matmul %94, %6, %cst_28 {dimension_numbers = #tpu.dot_dimension_numbers<[1], [0], [0], [1], [0, 0, 1, 1], [], []>} : vector<8x32xf32>, vector<32x128xf32>, vector<8x128xf32> -> vector<8x128xf32>
    %106 = arith.addf %104, %105 : vector<8x128xf32>
    %107 = vector.extract_strided_slice %106 {offsets = [0, 0], sizes = [8, 32], strides = [1, 1]} : vector<8x128xf32> to vector<8x32xf32>
    %108 = arith.negf %107 : vector<8x32xf32>
    %109 = math.exp %108 : vector<8x32xf32>
    %cst_29 = arith.constant 1.000000e+00 : f32
    %110 = vector.broadcast %cst_29 : f32 to vector<8x32xf32>
    %111 = arith.addf %110, %109 : vector<8x32xf32>
    %112 = arith.divf %110, %111 : vector<8x32xf32>
    %113 = vector.extract_strided_slice %106 {offsets = [0, 32], sizes = [8, 32], strides = [1, 1]} : vector<8x128xf32> to vector<8x32xf32>
    %114 = arith.negf %113 : vector<8x32xf32>
    %115 = math.exp %114 : vector<8x32xf32>
    %cst_30 = arith.constant 1.000000e+00 : f32
    %116 = vector.broadcast %cst_30 : f32 to vector<8x32xf32>
    %117 = arith.addf %116, %115 : vector<8x32xf32>
    %118 = arith.divf %116, %117 : vector<8x32xf32>
    %119 = vector.extract_strided_slice %106 {offsets = [0, 64], sizes = [8, 32], strides = [1, 1]} : vector<8x128xf32> to vector<8x32xf32>
    %120 = math.tanh %119 : vector<8x32xf32>
    %121 = vector.extract_strided_slice %106 {offsets = [0, 96], sizes = [8, 32], strides = [1, 1]} : vector<8x128xf32> to vector<8x32xf32>
    %122 = arith.negf %121 : vector<8x32xf32>
    %123 = math.exp %122 : vector<8x32xf32>
    %cst_31 = arith.constant 1.000000e+00 : f32
    %124 = vector.broadcast %cst_31 : f32 to vector<8x32xf32>
    %125 = arith.addf %124, %123 : vector<8x32xf32>
    %126 = arith.divf %124, %125 : vector<8x32xf32>
    %127 = arith.mulf %118, %101 : vector<8x32xf32>
    %128 = arith.mulf %112, %120 : vector<8x32xf32>
    %129 = arith.addf %127, %128 : vector<8x32xf32>
    %130 = math.tanh %129 : vector<8x32xf32>
    %131 = arith.mulf %126, %130 : vector<8x32xf32>
    %132 = vector.extract_strided_slice %0 {offsets = [16, 0], sizes = [8, 1], strides = [1, 1]} : vector<64x1xf32> to vector<8x1xf32>
    %133 = vector.broadcast %132 : vector<8x1xf32> to vector<8x32xf32>
    %134 = arith.mulf %133, %131 : vector<8x32xf32>
    %cst_32 = arith.constant 1.000000e+00 : f32
    %135 = vector.broadcast %cst_32 : f32 to vector<8x1xf32>
    %136 = arith.subf %135, %132 : vector<8x1xf32>
    %137 = vector.broadcast %136 : vector<8x1xf32> to vector<8x32xf32>
    %138 = arith.mulf %137, %94 : vector<8x32xf32>
    %139 = arith.addf %134, %138 : vector<8x32xf32>
    %140 = vector.broadcast %132 : vector<8x1xf32> to vector<8x32xf32>
    %141 = arith.mulf %140, %129 : vector<8x32xf32>
    %cst_33 = arith.constant 1.000000e+00 : f32
    %142 = vector.broadcast %cst_33 : f32 to vector<8x1xf32>
    %143 = arith.subf %142, %132 : vector<8x1xf32>
    %144 = vector.broadcast %143 : vector<8x1xf32> to vector<8x32xf32>
    %145 = arith.mulf %144, %101 : vector<8x32xf32>
    %146 = arith.addf %141, %145 : vector<8x32xf32>
    %147 = vector.broadcast %132 : vector<8x1xf32> to vector<8x32xf32>
    %148 = arith.mulf %147, %139 : vector<8x32xf32>
    %149 = vector.extract_strided_slice %11 {offsets = [24, 0], sizes = [8, 128], strides = [1, 1]} : vector<64x128xf32> to vector<8x128xf32>
    %cst_34 = arith.constant dense<0.000000e+00> : vector<8x128xf32>
    %150 = tpu.matmul %139, %6, %cst_34 {dimension_numbers = #tpu.dot_dimension_numbers<[1], [0], [0], [1], [0, 0, 1, 1], [], []>} : vector<8x32xf32>, vector<32x128xf32>, vector<8x128xf32> -> vector<8x128xf32>
    %151 = arith.addf %149, %150 : vector<8x128xf32>
    %152 = vector.extract_strided_slice %151 {offsets = [0, 0], sizes = [8, 32], strides = [1, 1]} : vector<8x128xf32> to vector<8x32xf32>
    %153 = arith.negf %152 : vector<8x32xf32>
    %154 = math.exp %153 : vector<8x32xf32>
    %cst_35 = arith.constant 1.000000e+00 : f32
    %155 = vector.broadcast %cst_35 : f32 to vector<8x32xf32>
    %156 = arith.addf %155, %154 : vector<8x32xf32>
    %157 = arith.divf %155, %156 : vector<8x32xf32>
    %158 = vector.extract_strided_slice %151 {offsets = [0, 32], sizes = [8, 32], strides = [1, 1]} : vector<8x128xf32> to vector<8x32xf32>
    %159 = arith.negf %158 : vector<8x32xf32>
    %160 = math.exp %159 : vector<8x32xf32>
    %cst_36 = arith.constant 1.000000e+00 : f32
    %161 = vector.broadcast %cst_36 : f32 to vector<8x32xf32>
    %162 = arith.addf %161, %160 : vector<8x32xf32>
    %163 = arith.divf %161, %162 : vector<8x32xf32>
    %164 = vector.extract_strided_slice %151 {offsets = [0, 64], sizes = [8, 32], strides = [1, 1]} : vector<8x128xf32> to vector<8x32xf32>
    %165 = math.tanh %164 : vector<8x32xf32>
    %166 = vector.extract_strided_slice %151 {offsets = [0, 96], sizes = [8, 32], strides = [1, 1]} : vector<8x128xf32> to vector<8x32xf32>
    %167 = arith.negf %166 : vector<8x32xf32>
    %168 = math.exp %167 : vector<8x32xf32>
    %cst_37 = arith.constant 1.000000e+00 : f32
    %169 = vector.broadcast %cst_37 : f32 to vector<8x32xf32>
    %170 = arith.addf %169, %168 : vector<8x32xf32>
    %171 = arith.divf %169, %170 : vector<8x32xf32>
    %172 = arith.mulf %163, %146 : vector<8x32xf32>
    %173 = arith.mulf %157, %165 : vector<8x32xf32>
    %174 = arith.addf %172, %173 : vector<8x32xf32>
    %175 = math.tanh %174 : vector<8x32xf32>
    %176 = arith.mulf %171, %175 : vector<8x32xf32>
    %177 = vector.extract_strided_slice %0 {offsets = [24, 0], sizes = [8, 1], strides = [1, 1]} : vector<64x1xf32> to vector<8x1xf32>
    %178 = vector.broadcast %177 : vector<8x1xf32> to vector<8x32xf32>
    %179 = arith.mulf %178, %176 : vector<8x32xf32>
    %cst_38 = arith.constant 1.000000e+00 : f32
    %180 = vector.broadcast %cst_38 : f32 to vector<8x1xf32>
    %181 = arith.subf %180, %177 : vector<8x1xf32>
    %182 = vector.broadcast %181 : vector<8x1xf32> to vector<8x32xf32>
    %183 = arith.mulf %182, %139 : vector<8x32xf32>
    %184 = arith.addf %179, %183 : vector<8x32xf32>
    %185 = vector.broadcast %177 : vector<8x1xf32> to vector<8x32xf32>
    %186 = arith.mulf %185, %174 : vector<8x32xf32>
    %cst_39 = arith.constant 1.000000e+00 : f32
    %187 = vector.broadcast %cst_39 : f32 to vector<8x1xf32>
    %188 = arith.subf %187, %177 : vector<8x1xf32>
    %189 = vector.broadcast %188 : vector<8x1xf32> to vector<8x32xf32>
    %190 = arith.mulf %189, %146 : vector<8x32xf32>
    %191 = arith.addf %186, %190 : vector<8x32xf32>
    %192 = vector.broadcast %177 : vector<8x1xf32> to vector<8x32xf32>
    %193 = arith.mulf %192, %184 : vector<8x32xf32>
    %194 = vector.extract_strided_slice %11 {offsets = [32, 0], sizes = [8, 128], strides = [1, 1]} : vector<64x128xf32> to vector<8x128xf32>
    %cst_40 = arith.constant dense<0.000000e+00> : vector<8x128xf32>
    %195 = tpu.matmul %184, %6, %cst_40 {dimension_numbers = #tpu.dot_dimension_numbers<[1], [0], [0], [1], [0, 0, 1, 1], [], []>} : vector<8x32xf32>, vector<32x128xf32>, vector<8x128xf32> -> vector<8x128xf32>
    %196 = arith.addf %194, %195 : vector<8x128xf32>
    %197 = vector.extract_strided_slice %196 {offsets = [0, 0], sizes = [8, 32], strides = [1, 1]} : vector<8x128xf32> to vector<8x32xf32>
    %198 = arith.negf %197 : vector<8x32xf32>
    %199 = math.exp %198 : vector<8x32xf32>
    %cst_41 = arith.constant 1.000000e+00 : f32
    %200 = vector.broadcast %cst_41 : f32 to vector<8x32xf32>
    %201 = arith.addf %200, %199 : vector<8x32xf32>
    %202 = arith.divf %200, %201 : vector<8x32xf32>
    %203 = vector.extract_strided_slice %196 {offsets = [0, 32], sizes = [8, 32], strides = [1, 1]} : vector<8x128xf32> to vector<8x32xf32>
    %204 = arith.negf %203 : vector<8x32xf32>
    %205 = math.exp %204 : vector<8x32xf32>
    %cst_42 = arith.constant 1.000000e+00 : f32
    %206 = vector.broadcast %cst_42 : f32 to vector<8x32xf32>
    %207 = arith.addf %206, %205 : vector<8x32xf32>
    %208 = arith.divf %206, %207 : vector<8x32xf32>
    %209 = vector.extract_strided_slice %196 {offsets = [0, 64], sizes = [8, 32], strides = [1, 1]} : vector<8x128xf32> to vector<8x32xf32>
    %210 = math.tanh %209 : vector<8x32xf32>
    %211 = vector.extract_strided_slice %196 {offsets = [0, 96], sizes = [8, 32], strides = [1, 1]} : vector<8x128xf32> to vector<8x32xf32>
    %212 = arith.negf %211 : vector<8x32xf32>
    %213 = math.exp %212 : vector<8x32xf32>
    %cst_43 = arith.constant 1.000000e+00 : f32
    %214 = vector.broadcast %cst_43 : f32 to vector<8x32xf32>
    %215 = arith.addf %214, %213 : vector<8x32xf32>
    %216 = arith.divf %214, %215 : vector<8x32xf32>
    %217 = arith.mulf %208, %191 : vector<8x32xf32>
    %218 = arith.mulf %202, %210 : vector<8x32xf32>
    %219 = arith.addf %217, %218 : vector<8x32xf32>
    %220 = math.tanh %219 : vector<8x32xf32>
    %221 = arith.mulf %216, %220 : vector<8x32xf32>
    %222 = vector.extract_strided_slice %0 {offsets = [32, 0], sizes = [8, 1], strides = [1, 1]} : vector<64x1xf32> to vector<8x1xf32>
    %223 = vector.broadcast %222 : vector<8x1xf32> to vector<8x32xf32>
    %224 = arith.mulf %223, %221 : vector<8x32xf32>
    %cst_44 = arith.constant 1.000000e+00 : f32
    %225 = vector.broadcast %cst_44 : f32 to vector<8x1xf32>
    %226 = arith.subf %225, %222 : vector<8x1xf32>
    %227 = vector.broadcast %226 : vector<8x1xf32> to vector<8x32xf32>
    %228 = arith.mulf %227, %184 : vector<8x32xf32>
    %229 = arith.addf %224, %228 : vector<8x32xf32>
    %230 = vector.broadcast %222 : vector<8x1xf32> to vector<8x32xf32>
    %231 = arith.mulf %230, %219 : vector<8x32xf32>
    %cst_45 = arith.constant 1.000000e+00 : f32
    %232 = vector.broadcast %cst_45 : f32 to vector<8x1xf32>
    %233 = arith.subf %232, %222 : vector<8x1xf32>
    %234 = vector.broadcast %233 : vector<8x1xf32> to vector<8x32xf32>
    %235 = arith.mulf %234, %191 : vector<8x32xf32>
    %236 = arith.addf %231, %235 : vector<8x32xf32>
    %237 = vector.broadcast %222 : vector<8x1xf32> to vector<8x32xf32>
    %238 = arith.mulf %237, %229 : vector<8x32xf32>
    %239 = vector.extract_strided_slice %11 {offsets = [40, 0], sizes = [8, 128], strides = [1, 1]} : vector<64x128xf32> to vector<8x128xf32>
    %cst_46 = arith.constant dense<0.000000e+00> : vector<8x128xf32>
    %240 = tpu.matmul %229, %6, %cst_46 {dimension_numbers = #tpu.dot_dimension_numbers<[1], [0], [0], [1], [0, 0, 1, 1], [], []>} : vector<8x32xf32>, vector<32x128xf32>, vector<8x128xf32> -> vector<8x128xf32>
    %241 = arith.addf %239, %240 : vector<8x128xf32>
    %242 = vector.extract_strided_slice %241 {offsets = [0, 0], sizes = [8, 32], strides = [1, 1]} : vector<8x128xf32> to vector<8x32xf32>
    %243 = arith.negf %242 : vector<8x32xf32>
    %244 = math.exp %243 : vector<8x32xf32>
    %cst_47 = arith.constant 1.000000e+00 : f32
    %245 = vector.broadcast %cst_47 : f32 to vector<8x32xf32>
    %246 = arith.addf %245, %244 : vector<8x32xf32>
    %247 = arith.divf %245, %246 : vector<8x32xf32>
    %248 = vector.extract_strided_slice %241 {offsets = [0, 32], sizes = [8, 32], strides = [1, 1]} : vector<8x128xf32> to vector<8x32xf32>
    %249 = arith.negf %248 : vector<8x32xf32>
    %250 = math.exp %249 : vector<8x32xf32>
    %cst_48 = arith.constant 1.000000e+00 : f32
    %251 = vector.broadcast %cst_48 : f32 to vector<8x32xf32>
    %252 = arith.addf %251, %250 : vector<8x32xf32>
    %253 = arith.divf %251, %252 : vector<8x32xf32>
    %254 = vector.extract_strided_slice %241 {offsets = [0, 64], sizes = [8, 32], strides = [1, 1]} : vector<8x128xf32> to vector<8x32xf32>
    %255 = math.tanh %254 : vector<8x32xf32>
    %256 = vector.extract_strided_slice %241 {offsets = [0, 96], sizes = [8, 32], strides = [1, 1]} : vector<8x128xf32> to vector<8x32xf32>
    %257 = arith.negf %256 : vector<8x32xf32>
    %258 = math.exp %257 : vector<8x32xf32>
    %cst_49 = arith.constant 1.000000e+00 : f32
    %259 = vector.broadcast %cst_49 : f32 to vector<8x32xf32>
    %260 = arith.addf %259, %258 : vector<8x32xf32>
    %261 = arith.divf %259, %260 : vector<8x32xf32>
    %262 = arith.mulf %253, %236 : vector<8x32xf32>
    %263 = arith.mulf %247, %255 : vector<8x32xf32>
    %264 = arith.addf %262, %263 : vector<8x32xf32>
    %265 = math.tanh %264 : vector<8x32xf32>
    %266 = arith.mulf %261, %265 : vector<8x32xf32>
    %267 = vector.extract_strided_slice %0 {offsets = [40, 0], sizes = [8, 1], strides = [1, 1]} : vector<64x1xf32> to vector<8x1xf32>
    %268 = vector.broadcast %267 : vector<8x1xf32> to vector<8x32xf32>
    %269 = arith.mulf %268, %266 : vector<8x32xf32>
    %cst_50 = arith.constant 1.000000e+00 : f32
    %270 = vector.broadcast %cst_50 : f32 to vector<8x1xf32>
    %271 = arith.subf %270, %267 : vector<8x1xf32>
    %272 = vector.broadcast %271 : vector<8x1xf32> to vector<8x32xf32>
    %273 = arith.mulf %272, %229 : vector<8x32xf32>
    %274 = arith.addf %269, %273 : vector<8x32xf32>
    %275 = vector.broadcast %267 : vector<8x1xf32> to vector<8x32xf32>
    %276 = arith.mulf %275, %264 : vector<8x32xf32>
    %cst_51 = arith.constant 1.000000e+00 : f32
    %277 = vector.broadcast %cst_51 : f32 to vector<8x1xf32>
    %278 = arith.subf %277, %267 : vector<8x1xf32>
    %279 = vector.broadcast %278 : vector<8x1xf32> to vector<8x32xf32>
    %280 = arith.mulf %279, %236 : vector<8x32xf32>
    %281 = arith.addf %276, %280 : vector<8x32xf32>
    %282 = vector.broadcast %267 : vector<8x1xf32> to vector<8x32xf32>
    %283 = arith.mulf %282, %274 : vector<8x32xf32>
    %284 = vector.extract_strided_slice %11 {offsets = [48, 0], sizes = [8, 128], strides = [1, 1]} : vector<64x128xf32> to vector<8x128xf32>
    %cst_52 = arith.constant dense<0.000000e+00> : vector<8x128xf32>
    %285 = tpu.matmul %274, %6, %cst_52 {dimension_numbers = #tpu.dot_dimension_numbers<[1], [0], [0], [1], [0, 0, 1, 1], [], []>} : vector<8x32xf32>, vector<32x128xf32>, vector<8x128xf32> -> vector<8x128xf32>
    %286 = arith.addf %284, %285 : vector<8x128xf32>
    %287 = vector.extract_strided_slice %286 {offsets = [0, 0], sizes = [8, 32], strides = [1, 1]} : vector<8x128xf32> to vector<8x32xf32>
    %288 = arith.negf %287 : vector<8x32xf32>
    %289 = math.exp %288 : vector<8x32xf32>
    %cst_53 = arith.constant 1.000000e+00 : f32
    %290 = vector.broadcast %cst_53 : f32 to vector<8x32xf32>
    %291 = arith.addf %290, %289 : vector<8x32xf32>
    %292 = arith.divf %290, %291 : vector<8x32xf32>
    %293 = vector.extract_strided_slice %286 {offsets = [0, 32], sizes = [8, 32], strides = [1, 1]} : vector<8x128xf32> to vector<8x32xf32>
    %294 = arith.negf %293 : vector<8x32xf32>
    %295 = math.exp %294 : vector<8x32xf32>
    %cst_54 = arith.constant 1.000000e+00 : f32
    %296 = vector.broadcast %cst_54 : f32 to vector<8x32xf32>
    %297 = arith.addf %296, %295 : vector<8x32xf32>
    %298 = arith.divf %296, %297 : vector<8x32xf32>
    %299 = vector.extract_strided_slice %286 {offsets = [0, 64], sizes = [8, 32], strides = [1, 1]} : vector<8x128xf32> to vector<8x32xf32>
    %300 = math.tanh %299 : vector<8x32xf32>
    %301 = vector.extract_strided_slice %286 {offsets = [0, 96], sizes = [8, 32], strides = [1, 1]} : vector<8x128xf32> to vector<8x32xf32>
    %302 = arith.negf %301 : vector<8x32xf32>
    %303 = math.exp %302 : vector<8x32xf32>
    %cst_55 = arith.constant 1.000000e+00 : f32
    %304 = vector.broadcast %cst_55 : f32 to vector<8x32xf32>
    %305 = arith.addf %304, %303 : vector<8x32xf32>
    %306 = arith.divf %304, %305 : vector<8x32xf32>
    %307 = arith.mulf %298, %281 : vector<8x32xf32>
    %308 = arith.mulf %292, %300 : vector<8x32xf32>
    %309 = arith.addf %307, %308 : vector<8x32xf32>
    %310 = math.tanh %309 : vector<8x32xf32>
    %311 = arith.mulf %306, %310 : vector<8x32xf32>
    %312 = vector.extract_strided_slice %0 {offsets = [48, 0], sizes = [8, 1], strides = [1, 1]} : vector<64x1xf32> to vector<8x1xf32>
    %313 = vector.broadcast %312 : vector<8x1xf32> to vector<8x32xf32>
    %314 = arith.mulf %313, %311 : vector<8x32xf32>
    %cst_56 = arith.constant 1.000000e+00 : f32
    %315 = vector.broadcast %cst_56 : f32 to vector<8x1xf32>
    %316 = arith.subf %315, %312 : vector<8x1xf32>
    %317 = vector.broadcast %316 : vector<8x1xf32> to vector<8x32xf32>
    %318 = arith.mulf %317, %274 : vector<8x32xf32>
    %319 = arith.addf %314, %318 : vector<8x32xf32>
    %320 = vector.broadcast %312 : vector<8x1xf32> to vector<8x32xf32>
    %321 = arith.mulf %320, %309 : vector<8x32xf32>
    %cst_57 = arith.constant 1.000000e+00 : f32
    %322 = vector.broadcast %cst_57 : f32 to vector<8x1xf32>
    %323 = arith.subf %322, %312 : vector<8x1xf32>
    %324 = vector.broadcast %323 : vector<8x1xf32> to vector<8x32xf32>
    %325 = arith.mulf %324, %281 : vector<8x32xf32>
    %326 = arith.addf %321, %325 : vector<8x32xf32>
    %327 = vector.broadcast %312 : vector<8x1xf32> to vector<8x32xf32>
    %328 = arith.mulf %327, %319 : vector<8x32xf32>
    %329 = vector.extract_strided_slice %11 {offsets = [56, 0], sizes = [8, 128], strides = [1, 1]} : vector<64x128xf32> to vector<8x128xf32>
    %cst_58 = arith.constant dense<0.000000e+00> : vector<8x128xf32>
    %330 = tpu.matmul %319, %6, %cst_58 {dimension_numbers = #tpu.dot_dimension_numbers<[1], [0], [0], [1], [0, 0, 1, 1], [], []>} : vector<8x32xf32>, vector<32x128xf32>, vector<8x128xf32> -> vector<8x128xf32>
    %331 = arith.addf %329, %330 : vector<8x128xf32>
    %332 = vector.extract_strided_slice %331 {offsets = [0, 0], sizes = [8, 32], strides = [1, 1]} : vector<8x128xf32> to vector<8x32xf32>
    %333 = arith.negf %332 : vector<8x32xf32>
    %334 = math.exp %333 : vector<8x32xf32>
    %cst_59 = arith.constant 1.000000e+00 : f32
    %335 = vector.broadcast %cst_59 : f32 to vector<8x32xf32>
    %336 = arith.addf %335, %334 : vector<8x32xf32>
    %337 = arith.divf %335, %336 : vector<8x32xf32>
    %338 = vector.extract_strided_slice %331 {offsets = [0, 32], sizes = [8, 32], strides = [1, 1]} : vector<8x128xf32> to vector<8x32xf32>
    %339 = arith.negf %338 : vector<8x32xf32>
    %340 = math.exp %339 : vector<8x32xf32>
    %cst_60 = arith.constant 1.000000e+00 : f32
    %341 = vector.broadcast %cst_60 : f32 to vector<8x32xf32>
    %342 = arith.addf %341, %340 : vector<8x32xf32>
    %343 = arith.divf %341, %342 : vector<8x32xf32>
    %344 = vector.extract_strided_slice %331 {offsets = [0, 64], sizes = [8, 32], strides = [1, 1]} : vector<8x128xf32> to vector<8x32xf32>
    %345 = math.tanh %344 : vector<8x32xf32>
    %346 = vector.extract_strided_slice %331 {offsets = [0, 96], sizes = [8, 32], strides = [1, 1]} : vector<8x128xf32> to vector<8x32xf32>
    %347 = arith.negf %346 : vector<8x32xf32>
    %348 = math.exp %347 : vector<8x32xf32>
    %cst_61 = arith.constant 1.000000e+00 : f32
    %349 = vector.broadcast %cst_61 : f32 to vector<8x32xf32>
    %350 = arith.addf %349, %348 : vector<8x32xf32>
    %351 = arith.divf %349, %350 : vector<8x32xf32>
    %352 = arith.mulf %343, %326 : vector<8x32xf32>
    %353 = arith.mulf %337, %345 : vector<8x32xf32>
    %354 = arith.addf %352, %353 : vector<8x32xf32>
    %355 = math.tanh %354 : vector<8x32xf32>
    %356 = arith.mulf %351, %355 : vector<8x32xf32>
    %357 = vector.extract_strided_slice %0 {offsets = [56, 0], sizes = [8, 1], strides = [1, 1]} : vector<64x1xf32> to vector<8x1xf32>
    %358 = vector.broadcast %357 : vector<8x1xf32> to vector<8x32xf32>
    %359 = arith.mulf %358, %356 : vector<8x32xf32>
    %cst_62 = arith.constant 1.000000e+00 : f32
    %360 = vector.broadcast %cst_62 : f32 to vector<8x1xf32>
    %361 = arith.subf %360, %357 : vector<8x1xf32>
    %362 = vector.broadcast %361 : vector<8x1xf32> to vector<8x32xf32>
    %363 = arith.mulf %362, %319 : vector<8x32xf32>
    %364 = arith.addf %359, %363 : vector<8x32xf32>
    %365 = vector.broadcast %357 : vector<8x1xf32> to vector<8x32xf32>
    %366 = arith.mulf %365, %364 : vector<8x32xf32>
    %367 = tpu.concatenate %58, %103, %148, %193, %238, %283, %328, %366 in 0 : vector<8x32xf32>, vector<8x32xf32>, vector<8x32xf32>, vector<8x32xf32>, vector<8x32xf32>, vector<8x32xf32>, vector<8x32xf32>, vector<8x32xf32> -> vector<64x32xf32>
    %368 = arith.addf %367, %1 : vector<64x32xf32>
    %c1 = arith.constant 1 : index
    %c0_63 = arith.constant 0 : index
    %c0_64 = arith.constant 0 : index
    %369 = vector.load %arg3[%c1, %c0_63, %c0_64] : memref<2x32x128xf32, #tpu.memory_space<vmem>>, vector<1x32x128xf32>
    %370 = vector.shape_cast %369 : vector<1x32x128xf32> to vector<32x128xf32>
    %c1_65 = arith.constant 1 : index
    %c0_66 = arith.constant 0 : index
    %c0_67 = arith.constant 0 : index
    %371 = vector.load %arg4[%c1_65, %c0_66, %c0_67] : memref<2x32x128xf32, #tpu.memory_space<vmem>>, vector<1x32x128xf32>
    %372 = vector.shape_cast %371 : vector<1x32x128xf32> to vector<32x128xf32>
    %c1_68 = arith.constant 1 : index
    %c0_69 = arith.constant 0 : index
    %c0_70 = arith.constant 0 : index
    %373 = vector.load %arg5[%c1_68, %c0_69, %c0_70] : memref<2x1x128xf32, #tpu.memory_space<vmem>>, vector<1x1x128xf32>
    %374 = vector.shape_cast %373 : vector<1x1x128xf32> to vector<1x128xf32>
    %cst_71 = arith.constant dense<0.000000e+00> : vector<64x128xf32>
    %375 = tpu.matmul %368, %370, %cst_71 {dimension_numbers = #tpu.dot_dimension_numbers<[1], [0], [0], [1], [0, 0, 1, 1], [], []>} : vector<64x32xf32>, vector<32x128xf32>, vector<64x128xf32> -> vector<64x128xf32>
    %376 = vector.broadcast %374 : vector<1x128xf32> to vector<64x128xf32>
    %377 = arith.addf %375, %376 : vector<64x128xf32>
    %cst_72 = arith.constant 0.000000e+00 : f32
    %378 = vector.broadcast %cst_72 : f32 to vector<8x32xf32>
    %cst_73 = arith.constant 0.000000e+00 : f32
    %379 = vector.broadcast %cst_73 : f32 to vector<8x32xf32>
    %380 = vector.extract_strided_slice %377 {offsets = [0, 0], sizes = [8, 128], strides = [1, 1]} : vector<64x128xf32> to vector<8x128xf32>
    %cst_74 = arith.constant dense<0.000000e+00> : vector<8x128xf32>
    %381 = tpu.matmul %378, %372, %cst_74 {dimension_numbers = #tpu.dot_dimension_numbers<[1], [0], [0], [1], [0, 0, 1, 1], [], []>} : vector<8x32xf32>, vector<32x128xf32>, vector<8x128xf32> -> vector<8x128xf32>
    %382 = arith.addf %380, %381 : vector<8x128xf32>
    %383 = vector.extract_strided_slice %382 {offsets = [0, 0], sizes = [8, 32], strides = [1, 1]} : vector<8x128xf32> to vector<8x32xf32>
    %384 = arith.negf %383 : vector<8x32xf32>
    %385 = math.exp %384 : vector<8x32xf32>
    %cst_75 = arith.constant 1.000000e+00 : f32
    %386 = vector.broadcast %cst_75 : f32 to vector<8x32xf32>
    %387 = arith.addf %386, %385 : vector<8x32xf32>
    %388 = arith.divf %386, %387 : vector<8x32xf32>
    %389 = vector.extract_strided_slice %382 {offsets = [0, 32], sizes = [8, 32], strides = [1, 1]} : vector<8x128xf32> to vector<8x32xf32>
    %390 = arith.negf %389 : vector<8x32xf32>
    %391 = math.exp %390 : vector<8x32xf32>
    %cst_76 = arith.constant 1.000000e+00 : f32
    %392 = vector.broadcast %cst_76 : f32 to vector<8x32xf32>
    %393 = arith.addf %392, %391 : vector<8x32xf32>
    %394 = arith.divf %392, %393 : vector<8x32xf32>
    %395 = vector.extract_strided_slice %382 {offsets = [0, 64], sizes = [8, 32], strides = [1, 1]} : vector<8x128xf32> to vector<8x32xf32>
    %396 = math.tanh %395 : vector<8x32xf32>
    %397 = vector.extract_strided_slice %382 {offsets = [0, 96], sizes = [8, 32], strides = [1, 1]} : vector<8x128xf32> to vector<8x32xf32>
    %398 = arith.negf %397 : vector<8x32xf32>
    %399 = math.exp %398 : vector<8x32xf32>
    %cst_77 = arith.constant 1.000000e+00 : f32
    %400 = vector.broadcast %cst_77 : f32 to vector<8x32xf32>
    %401 = arith.addf %400, %399 : vector<8x32xf32>
    %402 = arith.divf %400, %401 : vector<8x32xf32>
    %403 = arith.mulf %394, %379 : vector<8x32xf32>
    %404 = arith.mulf %388, %396 : vector<8x32xf32>
    %405 = arith.addf %403, %404 : vector<8x32xf32>
    %406 = math.tanh %405 : vector<8x32xf32>
    %407 = arith.mulf %402, %406 : vector<8x32xf32>
    %408 = vector.extract_strided_slice %0 {offsets = [0, 0], sizes = [8, 1], strides = [1, 1]} : vector<64x1xf32> to vector<8x1xf32>
    %409 = vector.broadcast %408 : vector<8x1xf32> to vector<8x32xf32>
    %410 = arith.mulf %409, %407 : vector<8x32xf32>
    %cst_78 = arith.constant 1.000000e+00 : f32
    %411 = vector.broadcast %cst_78 : f32 to vector<8x1xf32>
    %412 = arith.subf %411, %408 : vector<8x1xf32>
    %413 = vector.broadcast %412 : vector<8x1xf32> to vector<8x32xf32>
    %414 = arith.mulf %413, %378 : vector<8x32xf32>
    %415 = arith.addf %410, %414 : vector<8x32xf32>
    %416 = vector.broadcast %408 : vector<8x1xf32> to vector<8x32xf32>
    %417 = arith.mulf %416, %405 : vector<8x32xf32>
    %cst_79 = arith.constant 1.000000e+00 : f32
    %418 = vector.broadcast %cst_79 : f32 to vector<8x1xf32>
    %419 = arith.subf %418, %408 : vector<8x1xf32>
    %420 = vector.broadcast %419 : vector<8x1xf32> to vector<8x32xf32>
    %421 = arith.mulf %420, %379 : vector<8x32xf32>
    %422 = arith.addf %417, %421 : vector<8x32xf32>
    %423 = vector.extract_strided_slice %377 {offsets = [8, 0], sizes = [8, 128], strides = [1, 1]} : vector<64x128xf32> to vector<8x128xf32>
    %cst_80 = arith.constant dense<0.000000e+00> : vector<8x128xf32>
    %424 = tpu.matmul %415, %372, %cst_80 {dimension_numbers = #tpu.dot_dimension_numbers<[1], [0], [0], [1], [0, 0, 1, 1], [], []>} : vector<8x32xf32>, vector<32x128xf32>, vector<8x128xf32> -> vector<8x128xf32>
    %425 = arith.addf %423, %424 : vector<8x128xf32>
    %426 = vector.extract_strided_slice %425 {offsets = [0, 0], sizes = [8, 32], strides = [1, 1]} : vector<8x128xf32> to vector<8x32xf32>
    %427 = arith.negf %426 : vector<8x32xf32>
    %428 = math.exp %427 : vector<8x32xf32>
    %cst_81 = arith.constant 1.000000e+00 : f32
    %429 = vector.broadcast %cst_81 : f32 to vector<8x32xf32>
    %430 = arith.addf %429, %428 : vector<8x32xf32>
    %431 = arith.divf %429, %430 : vector<8x32xf32>
    %432 = vector.extract_strided_slice %425 {offsets = [0, 32], sizes = [8, 32], strides = [1, 1]} : vector<8x128xf32> to vector<8x32xf32>
    %433 = arith.negf %432 : vector<8x32xf32>
    %434 = math.exp %433 : vector<8x32xf32>
    %cst_82 = arith.constant 1.000000e+00 : f32
    %435 = vector.broadcast %cst_82 : f32 to vector<8x32xf32>
    %436 = arith.addf %435, %434 : vector<8x32xf32>
    %437 = arith.divf %435, %436 : vector<8x32xf32>
    %438 = vector.extract_strided_slice %425 {offsets = [0, 64], sizes = [8, 32], strides = [1, 1]} : vector<8x128xf32> to vector<8x32xf32>
    %439 = math.tanh %438 : vector<8x32xf32>
    %440 = vector.extract_strided_slice %425 {offsets = [0, 96], sizes = [8, 32], strides = [1, 1]} : vector<8x128xf32> to vector<8x32xf32>
    %441 = arith.negf %440 : vector<8x32xf32>
    %442 = math.exp %441 : vector<8x32xf32>
    %cst_83 = arith.constant 1.000000e+00 : f32
    %443 = vector.broadcast %cst_83 : f32 to vector<8x32xf32>
    %444 = arith.addf %443, %442 : vector<8x32xf32>
    %445 = arith.divf %443, %444 : vector<8x32xf32>
    %446 = arith.mulf %437, %422 : vector<8x32xf32>
    %447 = arith.mulf %431, %439 : vector<8x32xf32>
    %448 = arith.addf %446, %447 : vector<8x32xf32>
    %449 = math.tanh %448 : vector<8x32xf32>
    %450 = arith.mulf %445, %449 : vector<8x32xf32>
    %451 = vector.extract_strided_slice %0 {offsets = [8, 0], sizes = [8, 1], strides = [1, 1]} : vector<64x1xf32> to vector<8x1xf32>
    %452 = vector.broadcast %451 : vector<8x1xf32> to vector<8x32xf32>
    %453 = arith.mulf %452, %450 : vector<8x32xf32>
    %cst_84 = arith.constant 1.000000e+00 : f32
    %454 = vector.broadcast %cst_84 : f32 to vector<8x1xf32>
    %455 = arith.subf %454, %451 : vector<8x1xf32>
    %456 = vector.broadcast %455 : vector<8x1xf32> to vector<8x32xf32>
    %457 = arith.mulf %456, %415 : vector<8x32xf32>
    %458 = arith.addf %453, %457 : vector<8x32xf32>
    %459 = vector.broadcast %451 : vector<8x1xf32> to vector<8x32xf32>
    %460 = arith.mulf %459, %448 : vector<8x32xf32>
    %cst_85 = arith.constant 1.000000e+00 : f32
    %461 = vector.broadcast %cst_85 : f32 to vector<8x1xf32>
    %462 = arith.subf %461, %451 : vector<8x1xf32>
    %463 = vector.broadcast %462 : vector<8x1xf32> to vector<8x32xf32>
    %464 = arith.mulf %463, %422 : vector<8x32xf32>
    %465 = arith.addf %460, %464 : vector<8x32xf32>
    %466 = vector.extract_strided_slice %377 {offsets = [16, 0], sizes = [8, 128], strides = [1, 1]} : vector<64x128xf32> to vector<8x128xf32>
    %cst_86 = arith.constant dense<0.000000e+00> : vector<8x128xf32>
    %467 = tpu.matmul %458, %372, %cst_86 {dimension_numbers = #tpu.dot_dimension_numbers<[1], [0], [0], [1], [0, 0, 1, 1], [], []>} : vector<8x32xf32>, vector<32x128xf32>, vector<8x128xf32> -> vector<8x128xf32>
    %468 = arith.addf %466, %467 : vector<8x128xf32>
    %469 = vector.extract_strided_slice %468 {offsets = [0, 0], sizes = [8, 32], strides = [1, 1]} : vector<8x128xf32> to vector<8x32xf32>
    %470 = arith.negf %469 : vector<8x32xf32>
    %471 = math.exp %470 : vector<8x32xf32>
    %cst_87 = arith.constant 1.000000e+00 : f32
    %472 = vector.broadcast %cst_87 : f32 to vector<8x32xf32>
    %473 = arith.addf %472, %471 : vector<8x32xf32>
    %474 = arith.divf %472, %473 : vector<8x32xf32>
    %475 = vector.extract_strided_slice %468 {offsets = [0, 32], sizes = [8, 32], strides = [1, 1]} : vector<8x128xf32> to vector<8x32xf32>
    %476 = arith.negf %475 : vector<8x32xf32>
    %477 = math.exp %476 : vector<8x32xf32>
    %cst_88 = arith.constant 1.000000e+00 : f32
    %478 = vector.broadcast %cst_88 : f32 to vector<8x32xf32>
    %479 = arith.addf %478, %477 : vector<8x32xf32>
    %480 = arith.divf %478, %479 : vector<8x32xf32>
    %481 = vector.extract_strided_slice %468 {offsets = [0, 64], sizes = [8, 32], strides = [1, 1]} : vector<8x128xf32> to vector<8x32xf32>
    %482 = math.tanh %481 : vector<8x32xf32>
    %483 = vector.extract_strided_slice %468 {offsets = [0, 96], sizes = [8, 32], strides = [1, 1]} : vector<8x128xf32> to vector<8x32xf32>
    %484 = arith.negf %483 : vector<8x32xf32>
    %485 = math.exp %484 : vector<8x32xf32>
    %cst_89 = arith.constant 1.000000e+00 : f32
    %486 = vector.broadcast %cst_89 : f32 to vector<8x32xf32>
    %487 = arith.addf %486, %485 : vector<8x32xf32>
    %488 = arith.divf %486, %487 : vector<8x32xf32>
    %489 = arith.mulf %480, %465 : vector<8x32xf32>
    %490 = arith.mulf %474, %482 : vector<8x32xf32>
    %491 = arith.addf %489, %490 : vector<8x32xf32>
    %492 = math.tanh %491 : vector<8x32xf32>
    %493 = arith.mulf %488, %492 : vector<8x32xf32>
    %494 = vector.extract_strided_slice %0 {offsets = [16, 0], sizes = [8, 1], strides = [1, 1]} : vector<64x1xf32> to vector<8x1xf32>
    %495 = vector.broadcast %494 : vector<8x1xf32> to vector<8x32xf32>
    %496 = arith.mulf %495, %493 : vector<8x32xf32>
    %cst_90 = arith.constant 1.000000e+00 : f32
    %497 = vector.broadcast %cst_90 : f32 to vector<8x1xf32>
    %498 = arith.subf %497, %494 : vector<8x1xf32>
    %499 = vector.broadcast %498 : vector<8x1xf32> to vector<8x32xf32>
    %500 = arith.mulf %499, %458 : vector<8x32xf32>
    %501 = arith.addf %496, %500 : vector<8x32xf32>
    %502 = vector.broadcast %494 : vector<8x1xf32> to vector<8x32xf32>
    %503 = arith.mulf %502, %491 : vector<8x32xf32>
    %cst_91 = arith.constant 1.000000e+00 : f32
    %504 = vector.broadcast %cst_91 : f32 to vector<8x1xf32>
    %505 = arith.subf %504, %494 : vector<8x1xf32>
    %506 = vector.broadcast %505 : vector<8x1xf32> to vector<8x32xf32>
    %507 = arith.mulf %506, %465 : vector<8x32xf32>
    %508 = arith.addf %503, %507 : vector<8x32xf32>
    %509 = vector.extract_strided_slice %377 {offsets = [24, 0], sizes = [8, 128], strides = [1, 1]} : vector<64x128xf32> to vector<8x128xf32>
    %cst_92 = arith.constant dense<0.000000e+00> : vector<8x128xf32>
    %510 = tpu.matmul %501, %372, %cst_92 {dimension_numbers = #tpu.dot_dimension_numbers<[1], [0], [0], [1], [0, 0, 1, 1], [], []>} : vector<8x32xf32>, vector<32x128xf32>, vector<8x128xf32> -> vector<8x128xf32>
    %511 = arith.addf %509, %510 : vector<8x128xf32>
    %512 = vector.extract_strided_slice %511 {offsets = [0, 0], sizes = [8, 32], strides = [1, 1]} : vector<8x128xf32> to vector<8x32xf32>
    %513 = arith.negf %512 : vector<8x32xf32>
    %514 = math.exp %513 : vector<8x32xf32>
    %cst_93 = arith.constant 1.000000e+00 : f32
    %515 = vector.broadcast %cst_93 : f32 to vector<8x32xf32>
    %516 = arith.addf %515, %514 : vector<8x32xf32>
    %517 = arith.divf %515, %516 : vector<8x32xf32>
    %518 = vector.extract_strided_slice %511 {offsets = [0, 32], sizes = [8, 32], strides = [1, 1]} : vector<8x128xf32> to vector<8x32xf32>
    %519 = arith.negf %518 : vector<8x32xf32>
    %520 = math.exp %519 : vector<8x32xf32>
    %cst_94 = arith.constant 1.000000e+00 : f32
    %521 = vector.broadcast %cst_94 : f32 to vector<8x32xf32>
    %522 = arith.addf %521, %520 : vector<8x32xf32>
    %523 = arith.divf %521, %522 : vector<8x32xf32>
    %524 = vector.extract_strided_slice %511 {offsets = [0, 64], sizes = [8, 32], strides = [1, 1]} : vector<8x128xf32> to vector<8x32xf32>
    %525 = math.tanh %524 : vector<8x32xf32>
    %526 = vector.extract_strided_slice %511 {offsets = [0, 96], sizes = [8, 32], strides = [1, 1]} : vector<8x128xf32> to vector<8x32xf32>
    %527 = arith.negf %526 : vector<8x32xf32>
    %528 = math.exp %527 : vector<8x32xf32>
    %cst_95 = arith.constant 1.000000e+00 : f32
    %529 = vector.broadcast %cst_95 : f32 to vector<8x32xf32>
    %530 = arith.addf %529, %528 : vector<8x32xf32>
    %531 = arith.divf %529, %530 : vector<8x32xf32>
    %532 = arith.mulf %523, %508 : vector<8x32xf32>
    %533 = arith.mulf %517, %525 : vector<8x32xf32>
    %534 = arith.addf %532, %533 : vector<8x32xf32>
    %535 = math.tanh %534 : vector<8x32xf32>
    %536 = arith.mulf %531, %535 : vector<8x32xf32>
    %537 = vector.extract_strided_slice %0 {offsets = [24, 0], sizes = [8, 1], strides = [1, 1]} : vector<64x1xf32> to vector<8x1xf32>
    %538 = vector.broadcast %537 : vector<8x1xf32> to vector<8x32xf32>
    %539 = arith.mulf %538, %536 : vector<8x32xf32>
    %cst_96 = arith.constant 1.000000e+00 : f32
    %540 = vector.broadcast %cst_96 : f32 to vector<8x1xf32>
    %541 = arith.subf %540, %537 : vector<8x1xf32>
    %542 = vector.broadcast %541 : vector<8x1xf32> to vector<8x32xf32>
    %543 = arith.mulf %542, %501 : vector<8x32xf32>
    %544 = arith.addf %539, %543 : vector<8x32xf32>
    %545 = vector.broadcast %537 : vector<8x1xf32> to vector<8x32xf32>
    %546 = arith.mulf %545, %534 : vector<8x32xf32>
    %cst_97 = arith.constant 1.000000e+00 : f32
    %547 = vector.broadcast %cst_97 : f32 to vector<8x1xf32>
    %548 = arith.subf %547, %537 : vector<8x1xf32>
    %549 = vector.broadcast %548 : vector<8x1xf32> to vector<8x32xf32>
    %550 = arith.mulf %549, %508 : vector<8x32xf32>
    %551 = arith.addf %546, %550 : vector<8x32xf32>
    %552 = vector.extract_strided_slice %377 {offsets = [32, 0], sizes = [8, 128], strides = [1, 1]} : vector<64x128xf32> to vector<8x128xf32>
    %cst_98 = arith.constant dense<0.000000e+00> : vector<8x128xf32>
    %553 = tpu.matmul %544, %372, %cst_98 {dimension_numbers = #tpu.dot_dimension_numbers<[1], [0], [0], [1], [0, 0, 1, 1], [], []>} : vector<8x32xf32>, vector<32x128xf32>, vector<8x128xf32> -> vector<8x128xf32>
    %554 = arith.addf %552, %553 : vector<8x128xf32>
    %555 = vector.extract_strided_slice %554 {offsets = [0, 0], sizes = [8, 32], strides = [1, 1]} : vector<8x128xf32> to vector<8x32xf32>
    %556 = arith.negf %555 : vector<8x32xf32>
    %557 = math.exp %556 : vector<8x32xf32>
    %cst_99 = arith.constant 1.000000e+00 : f32
    %558 = vector.broadcast %cst_99 : f32 to vector<8x32xf32>
    %559 = arith.addf %558, %557 : vector<8x32xf32>
    %560 = arith.divf %558, %559 : vector<8x32xf32>
    %561 = vector.extract_strided_slice %554 {offsets = [0, 32], sizes = [8, 32], strides = [1, 1]} : vector<8x128xf32> to vector<8x32xf32>
    %562 = arith.negf %561 : vector<8x32xf32>
    %563 = math.exp %562 : vector<8x32xf32>
    %cst_100 = arith.constant 1.000000e+00 : f32
    %564 = vector.broadcast %cst_100 : f32 to vector<8x32xf32>
    %565 = arith.addf %564, %563 : vector<8x32xf32>
    %566 = arith.divf %564, %565 : vector<8x32xf32>
    %567 = vector.extract_strided_slice %554 {offsets = [0, 64], sizes = [8, 32], strides = [1, 1]} : vector<8x128xf32> to vector<8x32xf32>
    %568 = math.tanh %567 : vector<8x32xf32>
    %569 = vector.extract_strided_slice %554 {offsets = [0, 96], sizes = [8, 32], strides = [1, 1]} : vector<8x128xf32> to vector<8x32xf32>
    %570 = arith.negf %569 : vector<8x32xf32>
    %571 = math.exp %570 : vector<8x32xf32>
    %cst_101 = arith.constant 1.000000e+00 : f32
    %572 = vector.broadcast %cst_101 : f32 to vector<8x32xf32>
    %573 = arith.addf %572, %571 : vector<8x32xf32>
    %574 = arith.divf %572, %573 : vector<8x32xf32>
    %575 = arith.mulf %566, %551 : vector<8x32xf32>
    %576 = arith.mulf %560, %568 : vector<8x32xf32>
    %577 = arith.addf %575, %576 : vector<8x32xf32>
    %578 = math.tanh %577 : vector<8x32xf32>
    %579 = arith.mulf %574, %578 : vector<8x32xf32>
    %580 = vector.extract_strided_slice %0 {offsets = [32, 0], sizes = [8, 1], strides = [1, 1]} : vector<64x1xf32> to vector<8x1xf32>
    %581 = vector.broadcast %580 : vector<8x1xf32> to vector<8x32xf32>
    %582 = arith.mulf %581, %579 : vector<8x32xf32>
    %cst_102 = arith.constant 1.000000e+00 : f32
    %583 = vector.broadcast %cst_102 : f32 to vector<8x1xf32>
    %584 = arith.subf %583, %580 : vector<8x1xf32>
    %585 = vector.broadcast %584 : vector<8x1xf32> to vector<8x32xf32>
    %586 = arith.mulf %585, %544 : vector<8x32xf32>
    %587 = arith.addf %582, %586 : vector<8x32xf32>
    %588 = vector.broadcast %580 : vector<8x1xf32> to vector<8x32xf32>
    %589 = arith.mulf %588, %577 : vector<8x32xf32>
    %cst_103 = arith.constant 1.000000e+00 : f32
    %590 = vector.broadcast %cst_103 : f32 to vector<8x1xf32>
    %591 = arith.subf %590, %580 : vector<8x1xf32>
    %592 = vector.broadcast %591 : vector<8x1xf32> to vector<8x32xf32>
    %593 = arith.mulf %592, %551 : vector<8x32xf32>
    %594 = arith.addf %589, %593 : vector<8x32xf32>
    %595 = vector.extract_strided_slice %377 {offsets = [40, 0], sizes = [8, 128], strides = [1, 1]} : vector<64x128xf32> to vector<8x128xf32>
    %cst_104 = arith.constant dense<0.000000e+00> : vector<8x128xf32>
    %596 = tpu.matmul %587, %372, %cst_104 {dimension_numbers = #tpu.dot_dimension_numbers<[1], [0], [0], [1], [0, 0, 1, 1], [], []>} : vector<8x32xf32>, vector<32x128xf32>, vector<8x128xf32> -> vector<8x128xf32>
    %597 = arith.addf %595, %596 : vector<8x128xf32>
    %598 = vector.extract_strided_slice %597 {offsets = [0, 0], sizes = [8, 32], strides = [1, 1]} : vector<8x128xf32> to vector<8x32xf32>
    %599 = arith.negf %598 : vector<8x32xf32>
    %600 = math.exp %599 : vector<8x32xf32>
    %cst_105 = arith.constant 1.000000e+00 : f32
    %601 = vector.broadcast %cst_105 : f32 to vector<8x32xf32>
    %602 = arith.addf %601, %600 : vector<8x32xf32>
    %603 = arith.divf %601, %602 : vector<8x32xf32>
    %604 = vector.extract_strided_slice %597 {offsets = [0, 32], sizes = [8, 32], strides = [1, 1]} : vector<8x128xf32> to vector<8x32xf32>
    %605 = arith.negf %604 : vector<8x32xf32>
    %606 = math.exp %605 : vector<8x32xf32>
    %cst_106 = arith.constant 1.000000e+00 : f32
    %607 = vector.broadcast %cst_106 : f32 to vector<8x32xf32>
    %608 = arith.addf %607, %606 : vector<8x32xf32>
    %609 = arith.divf %607, %608 : vector<8x32xf32>
    %610 = vector.extract_strided_slice %597 {offsets = [0, 64], sizes = [8, 32], strides = [1, 1]} : vector<8x128xf32> to vector<8x32xf32>
    %611 = math.tanh %610 : vector<8x32xf32>
    %612 = vector.extract_strided_slice %597 {offsets = [0, 96], sizes = [8, 32], strides = [1, 1]} : vector<8x128xf32> to vector<8x32xf32>
    %613 = arith.negf %612 : vector<8x32xf32>
    %614 = math.exp %613 : vector<8x32xf32>
    %cst_107 = arith.constant 1.000000e+00 : f32
    %615 = vector.broadcast %cst_107 : f32 to vector<8x32xf32>
    %616 = arith.addf %615, %614 : vector<8x32xf32>
    %617 = arith.divf %615, %616 : vector<8x32xf32>
    %618 = arith.mulf %609, %594 : vector<8x32xf32>
    %619 = arith.mulf %603, %611 : vector<8x32xf32>
    %620 = arith.addf %618, %619 : vector<8x32xf32>
    %621 = math.tanh %620 : vector<8x32xf32>
    %622 = arith.mulf %617, %621 : vector<8x32xf32>
    %623 = vector.extract_strided_slice %0 {offsets = [40, 0], sizes = [8, 1], strides = [1, 1]} : vector<64x1xf32> to vector<8x1xf32>
    %624 = vector.broadcast %623 : vector<8x1xf32> to vector<8x32xf32>
    %625 = arith.mulf %624, %622 : vector<8x32xf32>
    %cst_108 = arith.constant 1.000000e+00 : f32
    %626 = vector.broadcast %cst_108 : f32 to vector<8x1xf32>
    %627 = arith.subf %626, %623 : vector<8x1xf32>
    %628 = vector.broadcast %627 : vector<8x1xf32> to vector<8x32xf32>
    %629 = arith.mulf %628, %587 : vector<8x32xf32>
    %630 = arith.addf %625, %629 : vector<8x32xf32>
    %631 = vector.broadcast %623 : vector<8x1xf32> to vector<8x32xf32>
    %632 = arith.mulf %631, %620 : vector<8x32xf32>
    %cst_109 = arith.constant 1.000000e+00 : f32
    %633 = vector.broadcast %cst_109 : f32 to vector<8x1xf32>
    %634 = arith.subf %633, %623 : vector<8x1xf32>
    %635 = vector.broadcast %634 : vector<8x1xf32> to vector<8x32xf32>
    %636 = arith.mulf %635, %594 : vector<8x32xf32>
    %637 = arith.addf %632, %636 : vector<8x32xf32>
    %638 = vector.extract_strided_slice %377 {offsets = [48, 0], sizes = [8, 128], strides = [1, 1]} : vector<64x128xf32> to vector<8x128xf32>
    %cst_110 = arith.constant dense<0.000000e+00> : vector<8x128xf32>
    %639 = tpu.matmul %630, %372, %cst_110 {dimension_numbers = #tpu.dot_dimension_numbers<[1], [0], [0], [1], [0, 0, 1, 1], [], []>} : vector<8x32xf32>, vector<32x128xf32>, vector<8x128xf32> -> vector<8x128xf32>
    %640 = arith.addf %638, %639 : vector<8x128xf32>
    %641 = vector.extract_strided_slice %640 {offsets = [0, 0], sizes = [8, 32], strides = [1, 1]} : vector<8x128xf32> to vector<8x32xf32>
    %642 = arith.negf %641 : vector<8x32xf32>
    %643 = math.exp %642 : vector<8x32xf32>
    %cst_111 = arith.constant 1.000000e+00 : f32
    %644 = vector.broadcast %cst_111 : f32 to vector<8x32xf32>
    %645 = arith.addf %644, %643 : vector<8x32xf32>
    %646 = arith.divf %644, %645 : vector<8x32xf32>
    %647 = vector.extract_strided_slice %640 {offsets = [0, 32], sizes = [8, 32], strides = [1, 1]} : vector<8x128xf32> to vector<8x32xf32>
    %648 = arith.negf %647 : vector<8x32xf32>
    %649 = math.exp %648 : vector<8x32xf32>
    %cst_112 = arith.constant 1.000000e+00 : f32
    %650 = vector.broadcast %cst_112 : f32 to vector<8x32xf32>
    %651 = arith.addf %650, %649 : vector<8x32xf32>
    %652 = arith.divf %650, %651 : vector<8x32xf32>
    %653 = vector.extract_strided_slice %640 {offsets = [0, 64], sizes = [8, 32], strides = [1, 1]} : vector<8x128xf32> to vector<8x32xf32>
    %654 = math.tanh %653 : vector<8x32xf32>
    %655 = vector.extract_strided_slice %640 {offsets = [0, 96], sizes = [8, 32], strides = [1, 1]} : vector<8x128xf32> to vector<8x32xf32>
    %656 = arith.negf %655 : vector<8x32xf32>
    %657 = math.exp %656 : vector<8x32xf32>
    %cst_113 = arith.constant 1.000000e+00 : f32
    %658 = vector.broadcast %cst_113 : f32 to vector<8x32xf32>
    %659 = arith.addf %658, %657 : vector<8x32xf32>
    %660 = arith.divf %658, %659 : vector<8x32xf32>
    %661 = arith.mulf %652, %637 : vector<8x32xf32>
    %662 = arith.mulf %646, %654 : vector<8x32xf32>
    %663 = arith.addf %661, %662 : vector<8x32xf32>
    %664 = math.tanh %663 : vector<8x32xf32>
    %665 = arith.mulf %660, %664 : vector<8x32xf32>
    %666 = vector.extract_strided_slice %0 {offsets = [48, 0], sizes = [8, 1], strides = [1, 1]} : vector<64x1xf32> to vector<8x1xf32>
    %667 = vector.broadcast %666 : vector<8x1xf32> to vector<8x32xf32>
    %668 = arith.mulf %667, %665 : vector<8x32xf32>
    %cst_114 = arith.constant 1.000000e+00 : f32
    %669 = vector.broadcast %cst_114 : f32 to vector<8x1xf32>
    %670 = arith.subf %669, %666 : vector<8x1xf32>
    %671 = vector.broadcast %670 : vector<8x1xf32> to vector<8x32xf32>
    %672 = arith.mulf %671, %630 : vector<8x32xf32>
    %673 = arith.addf %668, %672 : vector<8x32xf32>
    %674 = vector.broadcast %666 : vector<8x1xf32> to vector<8x32xf32>
    %675 = arith.mulf %674, %663 : vector<8x32xf32>
    %cst_115 = arith.constant 1.000000e+00 : f32
    %676 = vector.broadcast %cst_115 : f32 to vector<8x1xf32>
    %677 = arith.subf %676, %666 : vector<8x1xf32>
    %678 = vector.broadcast %677 : vector<8x1xf32> to vector<8x32xf32>
    %679 = arith.mulf %678, %637 : vector<8x32xf32>
    %680 = arith.addf %675, %679 : vector<8x32xf32>
    %681 = vector.extract_strided_slice %377 {offsets = [56, 0], sizes = [8, 128], strides = [1, 1]} : vector<64x128xf32> to vector<8x128xf32>
    %cst_116 = arith.constant dense<0.000000e+00> : vector<8x128xf32>
    %682 = tpu.matmul %673, %372, %cst_116 {dimension_numbers = #tpu.dot_dimension_numbers<[1], [0], [0], [1], [0, 0, 1, 1], [], []>} : vector<8x32xf32>, vector<32x128xf32>, vector<8x128xf32> -> vector<8x128xf32>
    %683 = arith.addf %681, %682 : vector<8x128xf32>
    %684 = vector.extract_strided_slice %683 {offsets = [0, 0], sizes = [8, 32], strides = [1, 1]} : vector<8x128xf32> to vector<8x32xf32>
    %685 = arith.negf %684 : vector<8x32xf32>
    %686 = math.exp %685 : vector<8x32xf32>
    %cst_117 = arith.constant 1.000000e+00 : f32
    %687 = vector.broadcast %cst_117 : f32 to vector<8x32xf32>
    %688 = arith.addf %687, %686 : vector<8x32xf32>
    %689 = arith.divf %687, %688 : vector<8x32xf32>
    %690 = vector.extract_strided_slice %683 {offsets = [0, 32], sizes = [8, 32], strides = [1, 1]} : vector<8x128xf32> to vector<8x32xf32>
    %691 = arith.negf %690 : vector<8x32xf32>
    %692 = math.exp %691 : vector<8x32xf32>
    %cst_118 = arith.constant 1.000000e+00 : f32
    %693 = vector.broadcast %cst_118 : f32 to vector<8x32xf32>
    %694 = arith.addf %693, %692 : vector<8x32xf32>
    %695 = arith.divf %693, %694 : vector<8x32xf32>
    %696 = vector.extract_strided_slice %683 {offsets = [0, 64], sizes = [8, 32], strides = [1, 1]} : vector<8x128xf32> to vector<8x32xf32>
    %697 = math.tanh %696 : vector<8x32xf32>
    %698 = vector.extract_strided_slice %683 {offsets = [0, 96], sizes = [8, 32], strides = [1, 1]} : vector<8x128xf32> to vector<8x32xf32>
    %699 = arith.negf %698 : vector<8x32xf32>
    %700 = math.exp %699 : vector<8x32xf32>
    %cst_119 = arith.constant 1.000000e+00 : f32
    %701 = vector.broadcast %cst_119 : f32 to vector<8x32xf32>
    %702 = arith.addf %701, %700 : vector<8x32xf32>
    %703 = arith.divf %701, %702 : vector<8x32xf32>
    %704 = arith.mulf %695, %680 : vector<8x32xf32>
    %705 = arith.mulf %689, %697 : vector<8x32xf32>
    %706 = arith.addf %704, %705 : vector<8x32xf32>
    %707 = math.tanh %706 : vector<8x32xf32>
    %708 = arith.mulf %703, %707 : vector<8x32xf32>
    %709 = vector.extract_strided_slice %0 {offsets = [56, 0], sizes = [8, 1], strides = [1, 1]} : vector<64x1xf32> to vector<8x1xf32>
    %710 = vector.broadcast %709 : vector<8x1xf32> to vector<8x32xf32>
    %711 = arith.mulf %710, %708 : vector<8x32xf32>
    %cst_120 = arith.constant 1.000000e+00 : f32
    %712 = vector.broadcast %cst_120 : f32 to vector<8x1xf32>
    %713 = arith.subf %712, %709 : vector<8x1xf32>
    %714 = vector.broadcast %713 : vector<8x1xf32> to vector<8x32xf32>
    %715 = arith.mulf %714, %673 : vector<8x32xf32>
    %716 = arith.addf %711, %715 : vector<8x32xf32>
    %c0_121 = arith.constant 0 : index
    %c0_122 = arith.constant 0 : index
    %c0_123 = arith.constant 0 : index
    %717 = vector.load %arg6[%c0_121, %c0_122, %c0_123] : memref<2x32x128xf32, #tpu.memory_space<vmem>>, vector<1x32x128xf32>
    %718 = vector.shape_cast %717 : vector<1x32x128xf32> to vector<32x128xf32>
    %c0_124 = arith.constant 0 : index
    %c0_125 = arith.constant 0 : index
    %c0_126 = arith.constant 0 : index
    %719 = vector.load %arg7[%c0_124, %c0_125, %c0_126] : memref<2x32x128xf32, #tpu.memory_space<vmem>>, vector<1x32x128xf32>
    %720 = vector.shape_cast %719 : vector<1x32x128xf32> to vector<32x128xf32>
    %c0_127 = arith.constant 0 : index
    %c0_128 = arith.constant 0 : index
    %c0_129 = arith.constant 0 : index
    %721 = vector.load %arg8[%c0_127, %c0_128, %c0_129] : memref<2x1x128xf32, #tpu.memory_space<vmem>>, vector<1x1x128xf32>
    %722 = vector.shape_cast %721 : vector<1x1x128xf32> to vector<1x128xf32>
    %cst_130 = arith.constant dense<0.000000e+00> : vector<64x128xf32>
    %723 = tpu.matmul %2, %718, %cst_130 {dimension_numbers = #tpu.dot_dimension_numbers<[1], [0], [0], [1], [0, 0, 1, 1], [], []>} : vector<64x32xf32>, vector<32x128xf32>, vector<64x128xf32> -> vector<64x128xf32>
    %724 = vector.broadcast %722 : vector<1x128xf32> to vector<64x128xf32>
    %725 = arith.addf %723, %724 : vector<64x128xf32>
    %cst_131 = arith.constant 0.000000e+00 : f32
    %726 = vector.broadcast %cst_131 : f32 to vector<8x32xf32>
    %cst_132 = arith.constant 0.000000e+00 : f32
    %727 = vector.broadcast %cst_132 : f32 to vector<8x32xf32>
    %728 = vector.extract_strided_slice %725 {offsets = [0, 0], sizes = [8, 128], strides = [1, 1]} : vector<64x128xf32> to vector<8x128xf32>
    %cst_133 = arith.constant dense<0.000000e+00> : vector<8x128xf32>
    %729 = tpu.matmul %726, %720, %cst_133 {dimension_numbers = #tpu.dot_dimension_numbers<[1], [0], [0], [1], [0, 0, 1, 1], [], []>} : vector<8x32xf32>, vector<32x128xf32>, vector<8x128xf32> -> vector<8x128xf32>
    %730 = arith.addf %728, %729 : vector<8x128xf32>
    %731 = vector.extract_strided_slice %730 {offsets = [0, 0], sizes = [8, 32], strides = [1, 1]} : vector<8x128xf32> to vector<8x32xf32>
    %732 = arith.negf %731 : vector<8x32xf32>
    %733 = math.exp %732 : vector<8x32xf32>
    %cst_134 = arith.constant 1.000000e+00 : f32
    %734 = vector.broadcast %cst_134 : f32 to vector<8x32xf32>
    %735 = arith.addf %734, %733 : vector<8x32xf32>
    %736 = arith.divf %734, %735 : vector<8x32xf32>
    %737 = vector.extract_strided_slice %730 {offsets = [0, 32], sizes = [8, 32], strides = [1, 1]} : vector<8x128xf32> to vector<8x32xf32>
    %738 = arith.negf %737 : vector<8x32xf32>
    %739 = math.exp %738 : vector<8x32xf32>
    %cst_135 = arith.constant 1.000000e+00 : f32
    %740 = vector.broadcast %cst_135 : f32 to vector<8x32xf32>
    %741 = arith.addf %740, %739 : vector<8x32xf32>
    %742 = arith.divf %740, %741 : vector<8x32xf32>
    %743 = vector.extract_strided_slice %730 {offsets = [0, 64], sizes = [8, 32], strides = [1, 1]} : vector<8x128xf32> to vector<8x32xf32>
    %744 = math.tanh %743 : vector<8x32xf32>
    %745 = vector.extract_strided_slice %730 {offsets = [0, 96], sizes = [8, 32], strides = [1, 1]} : vector<8x128xf32> to vector<8x32xf32>
    %746 = arith.negf %745 : vector<8x32xf32>
    %747 = math.exp %746 : vector<8x32xf32>
    %cst_136 = arith.constant 1.000000e+00 : f32
    %748 = vector.broadcast %cst_136 : f32 to vector<8x32xf32>
    %749 = arith.addf %748, %747 : vector<8x32xf32>
    %750 = arith.divf %748, %749 : vector<8x32xf32>
    %751 = arith.mulf %742, %727 : vector<8x32xf32>
    %752 = arith.mulf %736, %744 : vector<8x32xf32>
    %753 = arith.addf %751, %752 : vector<8x32xf32>
    %754 = math.tanh %753 : vector<8x32xf32>
    %755 = arith.mulf %750, %754 : vector<8x32xf32>
    %756 = vector.extract_strided_slice %0 {offsets = [0, 0], sizes = [8, 1], strides = [1, 1]} : vector<64x1xf32> to vector<8x1xf32>
    %757 = vector.broadcast %756 : vector<8x1xf32> to vector<8x32xf32>
    %758 = arith.mulf %757, %755 : vector<8x32xf32>
    %cst_137 = arith.constant 1.000000e+00 : f32
    %759 = vector.broadcast %cst_137 : f32 to vector<8x1xf32>
    %760 = arith.subf %759, %756 : vector<8x1xf32>
    %761 = vector.broadcast %760 : vector<8x1xf32> to vector<8x32xf32>
    %762 = arith.mulf %761, %726 : vector<8x32xf32>
    %763 = arith.addf %758, %762 : vector<8x32xf32>
    %764 = vector.broadcast %756 : vector<8x1xf32> to vector<8x32xf32>
    %765 = arith.mulf %764, %753 : vector<8x32xf32>
    %cst_138 = arith.constant 1.000000e+00 : f32
    %766 = vector.broadcast %cst_138 : f32 to vector<8x1xf32>
    %767 = arith.subf %766, %756 : vector<8x1xf32>
    %768 = vector.broadcast %767 : vector<8x1xf32> to vector<8x32xf32>
    %769 = arith.mulf %768, %727 : vector<8x32xf32>
    %770 = arith.addf %765, %769 : vector<8x32xf32>
    %771 = vector.broadcast %756 : vector<8x1xf32> to vector<8x32xf32>
    %772 = arith.mulf %771, %763 : vector<8x32xf32>
    %773 = vector.extract_strided_slice %725 {offsets = [8, 0], sizes = [8, 128], strides = [1, 1]} : vector<64x128xf32> to vector<8x128xf32>
    %cst_139 = arith.constant dense<0.000000e+00> : vector<8x128xf32>
    %774 = tpu.matmul %763, %720, %cst_139 {dimension_numbers = #tpu.dot_dimension_numbers<[1], [0], [0], [1], [0, 0, 1, 1], [], []>} : vector<8x32xf32>, vector<32x128xf32>, vector<8x128xf32> -> vector<8x128xf32>
    %775 = arith.addf %773, %774 : vector<8x128xf32>
    %776 = vector.extract_strided_slice %775 {offsets = [0, 0], sizes = [8, 32], strides = [1, 1]} : vector<8x128xf32> to vector<8x32xf32>
    %777 = arith.negf %776 : vector<8x32xf32>
    %778 = math.exp %777 : vector<8x32xf32>
    %cst_140 = arith.constant 1.000000e+00 : f32
    %779 = vector.broadcast %cst_140 : f32 to vector<8x32xf32>
    %780 = arith.addf %779, %778 : vector<8x32xf32>
    %781 = arith.divf %779, %780 : vector<8x32xf32>
    %782 = vector.extract_strided_slice %775 {offsets = [0, 32], sizes = [8, 32], strides = [1, 1]} : vector<8x128xf32> to vector<8x32xf32>
    %783 = arith.negf %782 : vector<8x32xf32>
    %784 = math.exp %783 : vector<8x32xf32>
    %cst_141 = arith.constant 1.000000e+00 : f32
    %785 = vector.broadcast %cst_141 : f32 to vector<8x32xf32>
    %786 = arith.addf %785, %784 : vector<8x32xf32>
    %787 = arith.divf %785, %786 : vector<8x32xf32>
    %788 = vector.extract_strided_slice %775 {offsets = [0, 64], sizes = [8, 32], strides = [1, 1]} : vector<8x128xf32> to vector<8x32xf32>
    %789 = math.tanh %788 : vector<8x32xf32>
    %790 = vector.extract_strided_slice %775 {offsets = [0, 96], sizes = [8, 32], strides = [1, 1]} : vector<8x128xf32> to vector<8x32xf32>
    %791 = arith.negf %790 : vector<8x32xf32>
    %792 = math.exp %791 : vector<8x32xf32>
    %cst_142 = arith.constant 1.000000e+00 : f32
    %793 = vector.broadcast %cst_142 : f32 to vector<8x32xf32>
    %794 = arith.addf %793, %792 : vector<8x32xf32>
    %795 = arith.divf %793, %794 : vector<8x32xf32>
    %796 = arith.mulf %787, %770 : vector<8x32xf32>
    %797 = arith.mulf %781, %789 : vector<8x32xf32>
    %798 = arith.addf %796, %797 : vector<8x32xf32>
    %799 = math.tanh %798 : vector<8x32xf32>
    %800 = arith.mulf %795, %799 : vector<8x32xf32>
    %801 = vector.extract_strided_slice %0 {offsets = [8, 0], sizes = [8, 1], strides = [1, 1]} : vector<64x1xf32> to vector<8x1xf32>
    %802 = vector.broadcast %801 : vector<8x1xf32> to vector<8x32xf32>
    %803 = arith.mulf %802, %800 : vector<8x32xf32>
    %cst_143 = arith.constant 1.000000e+00 : f32
    %804 = vector.broadcast %cst_143 : f32 to vector<8x1xf32>
    %805 = arith.subf %804, %801 : vector<8x1xf32>
    %806 = vector.broadcast %805 : vector<8x1xf32> to vector<8x32xf32>
    %807 = arith.mulf %806, %763 : vector<8x32xf32>
    %808 = arith.addf %803, %807 : vector<8x32xf32>
    %809 = vector.broadcast %801 : vector<8x1xf32> to vector<8x32xf32>
    %810 = arith.mulf %809, %798 : vector<8x32xf32>
    %cst_144 = arith.constant 1.000000e+00 : f32
    %811 = vector.broadcast %cst_144 : f32 to vector<8x1xf32>
    %812 = arith.subf %811, %801 : vector<8x1xf32>
    %813 = vector.broadcast %812 : vector<8x1xf32> to vector<8x32xf32>
    %814 = arith.mulf %813, %770 : vector<8x32xf32>
    %815 = arith.addf %810, %814 : vector<8x32xf32>
    %816 = vector.broadcast %801 : vector<8x1xf32> to vector<8x32xf32>
    %817 = arith.mulf %816, %808 : vector<8x32xf32>
    %818 = vector.extract_strided_slice %725 {offsets = [16, 0], sizes = [8, 128], strides = [1, 1]} : vector<64x128xf32> to vector<8x128xf32>
    %cst_145 = arith.constant dense<0.000000e+00> : vector<8x128xf32>
    %819 = tpu.matmul %808, %720, %cst_145 {dimension_numbers = #tpu.dot_dimension_numbers<[1], [0], [0], [1], [0, 0, 1, 1], [], []>} : vector<8x32xf32>, vector<32x128xf32>, vector<8x128xf32> -> vector<8x128xf32>
    %820 = arith.addf %818, %819 : vector<8x128xf32>
    %821 = vector.extract_strided_slice %820 {offsets = [0, 0], sizes = [8, 32], strides = [1, 1]} : vector<8x128xf32> to vector<8x32xf32>
    %822 = arith.negf %821 : vector<8x32xf32>
    %823 = math.exp %822 : vector<8x32xf32>
    %cst_146 = arith.constant 1.000000e+00 : f32
    %824 = vector.broadcast %cst_146 : f32 to vector<8x32xf32>
    %825 = arith.addf %824, %823 : vector<8x32xf32>
    %826 = arith.divf %824, %825 : vector<8x32xf32>
    %827 = vector.extract_strided_slice %820 {offsets = [0, 32], sizes = [8, 32], strides = [1, 1]} : vector<8x128xf32> to vector<8x32xf32>
    %828 = arith.negf %827 : vector<8x32xf32>
    %829 = math.exp %828 : vector<8x32xf32>
    %cst_147 = arith.constant 1.000000e+00 : f32
    %830 = vector.broadcast %cst_147 : f32 to vector<8x32xf32>
    %831 = arith.addf %830, %829 : vector<8x32xf32>
    %832 = arith.divf %830, %831 : vector<8x32xf32>
    %833 = vector.extract_strided_slice %820 {offsets = [0, 64], sizes = [8, 32], strides = [1, 1]} : vector<8x128xf32> to vector<8x32xf32>
    %834 = math.tanh %833 : vector<8x32xf32>
    %835 = vector.extract_strided_slice %820 {offsets = [0, 96], sizes = [8, 32], strides = [1, 1]} : vector<8x128xf32> to vector<8x32xf32>
    %836 = arith.negf %835 : vector<8x32xf32>
    %837 = math.exp %836 : vector<8x32xf32>
    %cst_148 = arith.constant 1.000000e+00 : f32
    %838 = vector.broadcast %cst_148 : f32 to vector<8x32xf32>
    %839 = arith.addf %838, %837 : vector<8x32xf32>
    %840 = arith.divf %838, %839 : vector<8x32xf32>
    %841 = arith.mulf %832, %815 : vector<8x32xf32>
    %842 = arith.mulf %826, %834 : vector<8x32xf32>
    %843 = arith.addf %841, %842 : vector<8x32xf32>
    %844 = math.tanh %843 : vector<8x32xf32>
    %845 = arith.mulf %840, %844 : vector<8x32xf32>
    %846 = vector.extract_strided_slice %0 {offsets = [16, 0], sizes = [8, 1], strides = [1, 1]} : vector<64x1xf32> to vector<8x1xf32>
    %847 = vector.broadcast %846 : vector<8x1xf32> to vector<8x32xf32>
    %848 = arith.mulf %847, %845 : vector<8x32xf32>
    %cst_149 = arith.constant 1.000000e+00 : f32
    %849 = vector.broadcast %cst_149 : f32 to vector<8x1xf32>
    %850 = arith.subf %849, %846 : vector<8x1xf32>
    %851 = vector.broadcast %850 : vector<8x1xf32> to vector<8x32xf32>
    %852 = arith.mulf %851, %808 : vector<8x32xf32>
    %853 = arith.addf %848, %852 : vector<8x32xf32>
    %854 = vector.broadcast %846 : vector<8x1xf32> to vector<8x32xf32>
    %855 = arith.mulf %854, %843 : vector<8x32xf32>
    %cst_150 = arith.constant 1.000000e+00 : f32
    %856 = vector.broadcast %cst_150 : f32 to vector<8x1xf32>
    %857 = arith.subf %856, %846 : vector<8x1xf32>
    %858 = vector.broadcast %857 : vector<8x1xf32> to vector<8x32xf32>
    %859 = arith.mulf %858, %815 : vector<8x32xf32>
    %860 = arith.addf %855, %859 : vector<8x32xf32>
    %861 = vector.broadcast %846 : vector<8x1xf32> to vector<8x32xf32>
    %862 = arith.mulf %861, %853 : vector<8x32xf32>
    %863 = vector.extract_strided_slice %725 {offsets = [24, 0], sizes = [8, 128], strides = [1, 1]} : vector<64x128xf32> to vector<8x128xf32>
    %cst_151 = arith.constant dense<0.000000e+00> : vector<8x128xf32>
    %864 = tpu.matmul %853, %720, %cst_151 {dimension_numbers = #tpu.dot_dimension_numbers<[1], [0], [0], [1], [0, 0, 1, 1], [], []>} : vector<8x32xf32>, vector<32x128xf32>, vector<8x128xf32> -> vector<8x128xf32>
    %865 = arith.addf %863, %864 : vector<8x128xf32>
    %866 = vector.extract_strided_slice %865 {offsets = [0, 0], sizes = [8, 32], strides = [1, 1]} : vector<8x128xf32> to vector<8x32xf32>
    %867 = arith.negf %866 : vector<8x32xf32>
    %868 = math.exp %867 : vector<8x32xf32>
    %cst_152 = arith.constant 1.000000e+00 : f32
    %869 = vector.broadcast %cst_152 : f32 to vector<8x32xf32>
    %870 = arith.addf %869, %868 : vector<8x32xf32>
    %871 = arith.divf %869, %870 : vector<8x32xf32>
    %872 = vector.extract_strided_slice %865 {offsets = [0, 32], sizes = [8, 32], strides = [1, 1]} : vector<8x128xf32> to vector<8x32xf32>
    %873 = arith.negf %872 : vector<8x32xf32>
    %874 = math.exp %873 : vector<8x32xf32>
    %cst_153 = arith.constant 1.000000e+00 : f32
    %875 = vector.broadcast %cst_153 : f32 to vector<8x32xf32>
    %876 = arith.addf %875, %874 : vector<8x32xf32>
    %877 = arith.divf %875, %876 : vector<8x32xf32>
    %878 = vector.extract_strided_slice %865 {offsets = [0, 64], sizes = [8, 32], strides = [1, 1]} : vector<8x128xf32> to vector<8x32xf32>
    %879 = math.tanh %878 : vector<8x32xf32>
    %880 = vector.extract_strided_slice %865 {offsets = [0, 96], sizes = [8, 32], strides = [1, 1]} : vector<8x128xf32> to vector<8x32xf32>
    %881 = arith.negf %880 : vector<8x32xf32>
    %882 = math.exp %881 : vector<8x32xf32>
    %cst_154 = arith.constant 1.000000e+00 : f32
    %883 = vector.broadcast %cst_154 : f32 to vector<8x32xf32>
    %884 = arith.addf %883, %882 : vector<8x32xf32>
    %885 = arith.divf %883, %884 : vector<8x32xf32>
    %886 = arith.mulf %877, %860 : vector<8x32xf32>
    %887 = arith.mulf %871, %879 : vector<8x32xf32>
    %888 = arith.addf %886, %887 : vector<8x32xf32>
    %889 = math.tanh %888 : vector<8x32xf32>
    %890 = arith.mulf %885, %889 : vector<8x32xf32>
    %891 = vector.extract_strided_slice %0 {offsets = [24, 0], sizes = [8, 1], strides = [1, 1]} : vector<64x1xf32> to vector<8x1xf32>
    %892 = vector.broadcast %891 : vector<8x1xf32> to vector<8x32xf32>
    %893 = arith.mulf %892, %890 : vector<8x32xf32>
    %cst_155 = arith.constant 1.000000e+00 : f32
    %894 = vector.broadcast %cst_155 : f32 to vector<8x1xf32>
    %895 = arith.subf %894, %891 : vector<8x1xf32>
    %896 = vector.broadcast %895 : vector<8x1xf32> to vector<8x32xf32>
    %897 = arith.mulf %896, %853 : vector<8x32xf32>
    %898 = arith.addf %893, %897 : vector<8x32xf32>
    %899 = vector.broadcast %891 : vector<8x1xf32> to vector<8x32xf32>
    %900 = arith.mulf %899, %888 : vector<8x32xf32>
    %cst_156 = arith.constant 1.000000e+00 : f32
    %901 = vector.broadcast %cst_156 : f32 to vector<8x1xf32>
    %902 = arith.subf %901, %891 : vector<8x1xf32>
    %903 = vector.broadcast %902 : vector<8x1xf32> to vector<8x32xf32>
    %904 = arith.mulf %903, %860 : vector<8x32xf32>
    %905 = arith.addf %900, %904 : vector<8x32xf32>
    %906 = vector.broadcast %891 : vector<8x1xf32> to vector<8x32xf32>
    %907 = arith.mulf %906, %898 : vector<8x32xf32>
    %908 = vector.extract_strided_slice %725 {offsets = [32, 0], sizes = [8, 128], strides = [1, 1]} : vector<64x128xf32> to vector<8x128xf32>
    %cst_157 = arith.constant dense<0.000000e+00> : vector<8x128xf32>
    %909 = tpu.matmul %898, %720, %cst_157 {dimension_numbers = #tpu.dot_dimension_numbers<[1], [0], [0], [1], [0, 0, 1, 1], [], []>} : vector<8x32xf32>, vector<32x128xf32>, vector<8x128xf32> -> vector<8x128xf32>
    %910 = arith.addf %908, %909 : vector<8x128xf32>
    %911 = vector.extract_strided_slice %910 {offsets = [0, 0], sizes = [8, 32], strides = [1, 1]} : vector<8x128xf32> to vector<8x32xf32>
    %912 = arith.negf %911 : vector<8x32xf32>
    %913 = math.exp %912 : vector<8x32xf32>
    %cst_158 = arith.constant 1.000000e+00 : f32
    %914 = vector.broadcast %cst_158 : f32 to vector<8x32xf32>
    %915 = arith.addf %914, %913 : vector<8x32xf32>
    %916 = arith.divf %914, %915 : vector<8x32xf32>
    %917 = vector.extract_strided_slice %910 {offsets = [0, 32], sizes = [8, 32], strides = [1, 1]} : vector<8x128xf32> to vector<8x32xf32>
    %918 = arith.negf %917 : vector<8x32xf32>
    %919 = math.exp %918 : vector<8x32xf32>
    %cst_159 = arith.constant 1.000000e+00 : f32
    %920 = vector.broadcast %cst_159 : f32 to vector<8x32xf32>
    %921 = arith.addf %920, %919 : vector<8x32xf32>
    %922 = arith.divf %920, %921 : vector<8x32xf32>
    %923 = vector.extract_strided_slice %910 {offsets = [0, 64], sizes = [8, 32], strides = [1, 1]} : vector<8x128xf32> to vector<8x32xf32>
    %924 = math.tanh %923 : vector<8x32xf32>
    %925 = vector.extract_strided_slice %910 {offsets = [0, 96], sizes = [8, 32], strides = [1, 1]} : vector<8x128xf32> to vector<8x32xf32>
    %926 = arith.negf %925 : vector<8x32xf32>
    %927 = math.exp %926 : vector<8x32xf32>
    %cst_160 = arith.constant 1.000000e+00 : f32
    %928 = vector.broadcast %cst_160 : f32 to vector<8x32xf32>
    %929 = arith.addf %928, %927 : vector<8x32xf32>
    %930 = arith.divf %928, %929 : vector<8x32xf32>
    %931 = arith.mulf %922, %905 : vector<8x32xf32>
    %932 = arith.mulf %916, %924 : vector<8x32xf32>
    %933 = arith.addf %931, %932 : vector<8x32xf32>
    %934 = math.tanh %933 : vector<8x32xf32>
    %935 = arith.mulf %930, %934 : vector<8x32xf32>
    %936 = vector.extract_strided_slice %0 {offsets = [32, 0], sizes = [8, 1], strides = [1, 1]} : vector<64x1xf32> to vector<8x1xf32>
    %937 = vector.broadcast %936 : vector<8x1xf32> to vector<8x32xf32>
    %938 = arith.mulf %937, %935 : vector<8x32xf32>
    %cst_161 = arith.constant 1.000000e+00 : f32
    %939 = vector.broadcast %cst_161 : f32 to vector<8x1xf32>
    %940 = arith.subf %939, %936 : vector<8x1xf32>
    %941 = vector.broadcast %940 : vector<8x1xf32> to vector<8x32xf32>
    %942 = arith.mulf %941, %898 : vector<8x32xf32>
    %943 = arith.addf %938, %942 : vector<8x32xf32>
    %944 = vector.broadcast %936 : vector<8x1xf32> to vector<8x32xf32>
    %945 = arith.mulf %944, %933 : vector<8x32xf32>
    %cst_162 = arith.constant 1.000000e+00 : f32
    %946 = vector.broadcast %cst_162 : f32 to vector<8x1xf32>
    %947 = arith.subf %946, %936 : vector<8x1xf32>
    %948 = vector.broadcast %947 : vector<8x1xf32> to vector<8x32xf32>
    %949 = arith.mulf %948, %905 : vector<8x32xf32>
    %950 = arith.addf %945, %949 : vector<8x32xf32>
    %951 = vector.broadcast %936 : vector<8x1xf32> to vector<8x32xf32>
    %952 = arith.mulf %951, %943 : vector<8x32xf32>
    %953 = vector.extract_strided_slice %725 {offsets = [40, 0], sizes = [8, 128], strides = [1, 1]} : vector<64x128xf32> to vector<8x128xf32>
    %cst_163 = arith.constant dense<0.000000e+00> : vector<8x128xf32>
    %954 = tpu.matmul %943, %720, %cst_163 {dimension_numbers = #tpu.dot_dimension_numbers<[1], [0], [0], [1], [0, 0, 1, 1], [], []>} : vector<8x32xf32>, vector<32x128xf32>, vector<8x128xf32> -> vector<8x128xf32>
    %955 = arith.addf %953, %954 : vector<8x128xf32>
    %956 = vector.extract_strided_slice %955 {offsets = [0, 0], sizes = [8, 32], strides = [1, 1]} : vector<8x128xf32> to vector<8x32xf32>
    %957 = arith.negf %956 : vector<8x32xf32>
    %958 = math.exp %957 : vector<8x32xf32>
    %cst_164 = arith.constant 1.000000e+00 : f32
    %959 = vector.broadcast %cst_164 : f32 to vector<8x32xf32>
    %960 = arith.addf %959, %958 : vector<8x32xf32>
    %961 = arith.divf %959, %960 : vector<8x32xf32>
    %962 = vector.extract_strided_slice %955 {offsets = [0, 32], sizes = [8, 32], strides = [1, 1]} : vector<8x128xf32> to vector<8x32xf32>
    %963 = arith.negf %962 : vector<8x32xf32>
    %964 = math.exp %963 : vector<8x32xf32>
    %cst_165 = arith.constant 1.000000e+00 : f32
    %965 = vector.broadcast %cst_165 : f32 to vector<8x32xf32>
    %966 = arith.addf %965, %964 : vector<8x32xf32>
    %967 = arith.divf %965, %966 : vector<8x32xf32>
    %968 = vector.extract_strided_slice %955 {offsets = [0, 64], sizes = [8, 32], strides = [1, 1]} : vector<8x128xf32> to vector<8x32xf32>
    %969 = math.tanh %968 : vector<8x32xf32>
    %970 = vector.extract_strided_slice %955 {offsets = [0, 96], sizes = [8, 32], strides = [1, 1]} : vector<8x128xf32> to vector<8x32xf32>
    %971 = arith.negf %970 : vector<8x32xf32>
    %972 = math.exp %971 : vector<8x32xf32>
    %cst_166 = arith.constant 1.000000e+00 : f32
    %973 = vector.broadcast %cst_166 : f32 to vector<8x32xf32>
    %974 = arith.addf %973, %972 : vector<8x32xf32>
    %975 = arith.divf %973, %974 : vector<8x32xf32>
    %976 = arith.mulf %967, %950 : vector<8x32xf32>
    %977 = arith.mulf %961, %969 : vector<8x32xf32>
    %978 = arith.addf %976, %977 : vector<8x32xf32>
    %979 = math.tanh %978 : vector<8x32xf32>
    %980 = arith.mulf %975, %979 : vector<8x32xf32>
    %981 = vector.extract_strided_slice %0 {offsets = [40, 0], sizes = [8, 1], strides = [1, 1]} : vector<64x1xf32> to vector<8x1xf32>
    %982 = vector.broadcast %981 : vector<8x1xf32> to vector<8x32xf32>
    %983 = arith.mulf %982, %980 : vector<8x32xf32>
    %cst_167 = arith.constant 1.000000e+00 : f32
    %984 = vector.broadcast %cst_167 : f32 to vector<8x1xf32>
    %985 = arith.subf %984, %981 : vector<8x1xf32>
    %986 = vector.broadcast %985 : vector<8x1xf32> to vector<8x32xf32>
    %987 = arith.mulf %986, %943 : vector<8x32xf32>
    %988 = arith.addf %983, %987 : vector<8x32xf32>
    %989 = vector.broadcast %981 : vector<8x1xf32> to vector<8x32xf32>
    %990 = arith.mulf %989, %978 : vector<8x32xf32>
    %cst_168 = arith.constant 1.000000e+00 : f32
    %991 = vector.broadcast %cst_168 : f32 to vector<8x1xf32>
    %992 = arith.subf %991, %981 : vector<8x1xf32>
    %993 = vector.broadcast %992 : vector<8x1xf32> to vector<8x32xf32>
    %994 = arith.mulf %993, %950 : vector<8x32xf32>
    %995 = arith.addf %990, %994 : vector<8x32xf32>
    %996 = vector.broadcast %981 : vector<8x1xf32> to vector<8x32xf32>
    %997 = arith.mulf %996, %988 : vector<8x32xf32>
    %998 = vector.extract_strided_slice %725 {offsets = [48, 0], sizes = [8, 128], strides = [1, 1]} : vector<64x128xf32> to vector<8x128xf32>
    %cst_169 = arith.constant dense<0.000000e+00> : vector<8x128xf32>
    %999 = tpu.matmul %988, %720, %cst_169 {dimension_numbers = #tpu.dot_dimension_numbers<[1], [0], [0], [1], [0, 0, 1, 1], [], []>} : vector<8x32xf32>, vector<32x128xf32>, vector<8x128xf32> -> vector<8x128xf32>
    %1000 = arith.addf %998, %999 : vector<8x128xf32>
    %1001 = vector.extract_strided_slice %1000 {offsets = [0, 0], sizes = [8, 32], strides = [1, 1]} : vector<8x128xf32> to vector<8x32xf32>
    %1002 = arith.negf %1001 : vector<8x32xf32>
    %1003 = math.exp %1002 : vector<8x32xf32>
    %cst_170 = arith.constant 1.000000e+00 : f32
    %1004 = vector.broadcast %cst_170 : f32 to vector<8x32xf32>
    %1005 = arith.addf %1004, %1003 : vector<8x32xf32>
    %1006 = arith.divf %1004, %1005 : vector<8x32xf32>
    %1007 = vector.extract_strided_slice %1000 {offsets = [0, 32], sizes = [8, 32], strides = [1, 1]} : vector<8x128xf32> to vector<8x32xf32>
    %1008 = arith.negf %1007 : vector<8x32xf32>
    %1009 = math.exp %1008 : vector<8x32xf32>
    %cst_171 = arith.constant 1.000000e+00 : f32
    %1010 = vector.broadcast %cst_171 : f32 to vector<8x32xf32>
    %1011 = arith.addf %1010, %1009 : vector<8x32xf32>
    %1012 = arith.divf %1010, %1011 : vector<8x32xf32>
    %1013 = vector.extract_strided_slice %1000 {offsets = [0, 64], sizes = [8, 32], strides = [1, 1]} : vector<8x128xf32> to vector<8x32xf32>
    %1014 = math.tanh %1013 : vector<8x32xf32>
    %1015 = vector.extract_strided_slice %1000 {offsets = [0, 96], sizes = [8, 32], strides = [1, 1]} : vector<8x128xf32> to vector<8x32xf32>
    %1016 = arith.negf %1015 : vector<8x32xf32>
    %1017 = math.exp %1016 : vector<8x32xf32>
    %cst_172 = arith.constant 1.000000e+00 : f32
    %1018 = vector.broadcast %cst_172 : f32 to vector<8x32xf32>
    %1019 = arith.addf %1018, %1017 : vector<8x32xf32>
    %1020 = arith.divf %1018, %1019 : vector<8x32xf32>
    %1021 = arith.mulf %1012, %995 : vector<8x32xf32>
    %1022 = arith.mulf %1006, %1014 : vector<8x32xf32>
    %1023 = arith.addf %1021, %1022 : vector<8x32xf32>
    %1024 = math.tanh %1023 : vector<8x32xf32>
    %1025 = arith.mulf %1020, %1024 : vector<8x32xf32>
    %1026 = vector.extract_strided_slice %0 {offsets = [48, 0], sizes = [8, 1], strides = [1, 1]} : vector<64x1xf32> to vector<8x1xf32>
    %1027 = vector.broadcast %1026 : vector<8x1xf32> to vector<8x32xf32>
    %1028 = arith.mulf %1027, %1025 : vector<8x32xf32>
    %cst_173 = arith.constant 1.000000e+00 : f32
    %1029 = vector.broadcast %cst_173 : f32 to vector<8x1xf32>
    %1030 = arith.subf %1029, %1026 : vector<8x1xf32>
    %1031 = vector.broadcast %1030 : vector<8x1xf32> to vector<8x32xf32>
    %1032 = arith.mulf %1031, %988 : vector<8x32xf32>
    %1033 = arith.addf %1028, %1032 : vector<8x32xf32>
    %1034 = vector.broadcast %1026 : vector<8x1xf32> to vector<8x32xf32>
    %1035 = arith.mulf %1034, %1023 : vector<8x32xf32>
    %cst_174 = arith.constant 1.000000e+00 : f32
    %1036 = vector.broadcast %cst_174 : f32 to vector<8x1xf32>
    %1037 = arith.subf %1036, %1026 : vector<8x1xf32>
    %1038 = vector.broadcast %1037 : vector<8x1xf32> to vector<8x32xf32>
    %1039 = arith.mulf %1038, %995 : vector<8x32xf32>
    %1040 = arith.addf %1035, %1039 : vector<8x32xf32>
    %1041 = vector.broadcast %1026 : vector<8x1xf32> to vector<8x32xf32>
    %1042 = arith.mulf %1041, %1033 : vector<8x32xf32>
    %1043 = vector.extract_strided_slice %725 {offsets = [56, 0], sizes = [8, 128], strides = [1, 1]} : vector<64x128xf32> to vector<8x128xf32>
    %cst_175 = arith.constant dense<0.000000e+00> : vector<8x128xf32>
    %1044 = tpu.matmul %1033, %720, %cst_175 {dimension_numbers = #tpu.dot_dimension_numbers<[1], [0], [0], [1], [0, 0, 1, 1], [], []>} : vector<8x32xf32>, vector<32x128xf32>, vector<8x128xf32> -> vector<8x128xf32>
    %1045 = arith.addf %1043, %1044 : vector<8x128xf32>
    %1046 = vector.extract_strided_slice %1045 {offsets = [0, 0], sizes = [8, 32], strides = [1, 1]} : vector<8x128xf32> to vector<8x32xf32>
    %1047 = arith.negf %1046 : vector<8x32xf32>
    %1048 = math.exp %1047 : vector<8x32xf32>
    %cst_176 = arith.constant 1.000000e+00 : f32
    %1049 = vector.broadcast %cst_176 : f32 to vector<8x32xf32>
    %1050 = arith.addf %1049, %1048 : vector<8x32xf32>
    %1051 = arith.divf %1049, %1050 : vector<8x32xf32>
    %1052 = vector.extract_strided_slice %1045 {offsets = [0, 32], sizes = [8, 32], strides = [1, 1]} : vector<8x128xf32> to vector<8x32xf32>
    %1053 = arith.negf %1052 : vector<8x32xf32>
    %1054 = math.exp %1053 : vector<8x32xf32>
    %cst_177 = arith.constant 1.000000e+00 : f32
    %1055 = vector.broadcast %cst_177 : f32 to vector<8x32xf32>
    %1056 = arith.addf %1055, %1054 : vector<8x32xf32>
    %1057 = arith.divf %1055, %1056 : vector<8x32xf32>
    %1058 = vector.extract_strided_slice %1045 {offsets = [0, 64], sizes = [8, 32], strides = [1, 1]} : vector<8x128xf32> to vector<8x32xf32>
    %1059 = math.tanh %1058 : vector<8x32xf32>
    %1060 = vector.extract_strided_slice %1045 {offsets = [0, 96], sizes = [8, 32], strides = [1, 1]} : vector<8x128xf32> to vector<8x32xf32>
    %1061 = arith.negf %1060 : vector<8x32xf32>
    %1062 = math.exp %1061 : vector<8x32xf32>
    %cst_178 = arith.constant 1.000000e+00 : f32
    %1063 = vector.broadcast %cst_178 : f32 to vector<8x32xf32>
    %1064 = arith.addf %1063, %1062 : vector<8x32xf32>
    %1065 = arith.divf %1063, %1064 : vector<8x32xf32>
    %1066 = arith.mulf %1057, %1040 : vector<8x32xf32>
    %1067 = arith.mulf %1051, %1059 : vector<8x32xf32>
    %1068 = arith.addf %1066, %1067 : vector<8x32xf32>
    %1069 = math.tanh %1068 : vector<8x32xf32>
    %1070 = arith.mulf %1065, %1069 : vector<8x32xf32>
    %1071 = vector.extract_strided_slice %0 {offsets = [56, 0], sizes = [8, 1], strides = [1, 1]} : vector<64x1xf32> to vector<8x1xf32>
    %1072 = vector.broadcast %1071 : vector<8x1xf32> to vector<8x32xf32>
    %1073 = arith.mulf %1072, %1070 : vector<8x32xf32>
    %cst_179 = arith.constant 1.000000e+00 : f32
    %1074 = vector.broadcast %cst_179 : f32 to vector<8x1xf32>
    %1075 = arith.subf %1074, %1071 : vector<8x1xf32>
    %1076 = vector.broadcast %1075 : vector<8x1xf32> to vector<8x32xf32>
    %1077 = arith.mulf %1076, %1033 : vector<8x32xf32>
    %1078 = arith.addf %1073, %1077 : vector<8x32xf32>
    %1079 = vector.broadcast %1071 : vector<8x1xf32> to vector<8x32xf32>
    %1080 = arith.mulf %1079, %1078 : vector<8x32xf32>
    %1081 = tpu.concatenate %772, %817, %862, %907, %952, %997, %1042, %1080 in 0 : vector<8x32xf32>, vector<8x32xf32>, vector<8x32xf32>, vector<8x32xf32>, vector<8x32xf32>, vector<8x32xf32>, vector<8x32xf32>, vector<8x32xf32> -> vector<64x32xf32>
    %1082 = arith.addf %1081, %2 : vector<64x32xf32>
    %c1_180 = arith.constant 1 : index
    %c0_181 = arith.constant 0 : index
    %c0_182 = arith.constant 0 : index
    %1083 = vector.load %arg6[%c1_180, %c0_181, %c0_182] : memref<2x32x128xf32, #tpu.memory_space<vmem>>, vector<1x32x128xf32>
    %1084 = vector.shape_cast %1083 : vector<1x32x128xf32> to vector<32x128xf32>
    %c1_183 = arith.constant 1 : index
    %c0_184 = arith.constant 0 : index
    %c0_185 = arith.constant 0 : index
    %1085 = vector.load %arg7[%c1_183, %c0_184, %c0_185] : memref<2x32x128xf32, #tpu.memory_space<vmem>>, vector<1x32x128xf32>
    %1086 = vector.shape_cast %1085 : vector<1x32x128xf32> to vector<32x128xf32>
    %c1_186 = arith.constant 1 : index
    %c0_187 = arith.constant 0 : index
    %c0_188 = arith.constant 0 : index
    %1087 = vector.load %arg8[%c1_186, %c0_187, %c0_188] : memref<2x1x128xf32, #tpu.memory_space<vmem>>, vector<1x1x128xf32>
    %1088 = vector.shape_cast %1087 : vector<1x1x128xf32> to vector<1x128xf32>
    %cst_189 = arith.constant dense<0.000000e+00> : vector<64x128xf32>
    %1089 = tpu.matmul %1082, %1084, %cst_189 {dimension_numbers = #tpu.dot_dimension_numbers<[1], [0], [0], [1], [0, 0, 1, 1], [], []>} : vector<64x32xf32>, vector<32x128xf32>, vector<64x128xf32> -> vector<64x128xf32>
    %1090 = vector.broadcast %1088 : vector<1x128xf32> to vector<64x128xf32>
    %1091 = arith.addf %1089, %1090 : vector<64x128xf32>
    %cst_190 = arith.constant 0.000000e+00 : f32
    %1092 = vector.broadcast %cst_190 : f32 to vector<8x32xf32>
    %cst_191 = arith.constant 0.000000e+00 : f32
    %1093 = vector.broadcast %cst_191 : f32 to vector<8x32xf32>
    %1094 = vector.extract_strided_slice %1091 {offsets = [0, 0], sizes = [8, 128], strides = [1, 1]} : vector<64x128xf32> to vector<8x128xf32>
    %cst_192 = arith.constant dense<0.000000e+00> : vector<8x128xf32>
    %1095 = tpu.matmul %1092, %1086, %cst_192 {dimension_numbers = #tpu.dot_dimension_numbers<[1], [0], [0], [1], [0, 0, 1, 1], [], []>} : vector<8x32xf32>, vector<32x128xf32>, vector<8x128xf32> -> vector<8x128xf32>
    %1096 = arith.addf %1094, %1095 : vector<8x128xf32>
    %1097 = vector.extract_strided_slice %1096 {offsets = [0, 0], sizes = [8, 32], strides = [1, 1]} : vector<8x128xf32> to vector<8x32xf32>
    %1098 = arith.negf %1097 : vector<8x32xf32>
    %1099 = math.exp %1098 : vector<8x32xf32>
    %cst_193 = arith.constant 1.000000e+00 : f32
    %1100 = vector.broadcast %cst_193 : f32 to vector<8x32xf32>
    %1101 = arith.addf %1100, %1099 : vector<8x32xf32>
    %1102 = arith.divf %1100, %1101 : vector<8x32xf32>
    %1103 = vector.extract_strided_slice %1096 {offsets = [0, 32], sizes = [8, 32], strides = [1, 1]} : vector<8x128xf32> to vector<8x32xf32>
    %1104 = arith.negf %1103 : vector<8x32xf32>
    %1105 = math.exp %1104 : vector<8x32xf32>
    %cst_194 = arith.constant 1.000000e+00 : f32
    %1106 = vector.broadcast %cst_194 : f32 to vector<8x32xf32>
    %1107 = arith.addf %1106, %1105 : vector<8x32xf32>
    %1108 = arith.divf %1106, %1107 : vector<8x32xf32>
    %1109 = vector.extract_strided_slice %1096 {offsets = [0, 64], sizes = [8, 32], strides = [1, 1]} : vector<8x128xf32> to vector<8x32xf32>
    %1110 = math.tanh %1109 : vector<8x32xf32>
    %1111 = vector.extract_strided_slice %1096 {offsets = [0, 96], sizes = [8, 32], strides = [1, 1]} : vector<8x128xf32> to vector<8x32xf32>
    %1112 = arith.negf %1111 : vector<8x32xf32>
    %1113 = math.exp %1112 : vector<8x32xf32>
    %cst_195 = arith.constant 1.000000e+00 : f32
    %1114 = vector.broadcast %cst_195 : f32 to vector<8x32xf32>
    %1115 = arith.addf %1114, %1113 : vector<8x32xf32>
    %1116 = arith.divf %1114, %1115 : vector<8x32xf32>
    %1117 = arith.mulf %1108, %1093 : vector<8x32xf32>
    %1118 = arith.mulf %1102, %1110 : vector<8x32xf32>
    %1119 = arith.addf %1117, %1118 : vector<8x32xf32>
    %1120 = math.tanh %1119 : vector<8x32xf32>
    %1121 = arith.mulf %1116, %1120 : vector<8x32xf32>
    %1122 = vector.extract_strided_slice %0 {offsets = [0, 0], sizes = [8, 1], strides = [1, 1]} : vector<64x1xf32> to vector<8x1xf32>
    %1123 = vector.broadcast %1122 : vector<8x1xf32> to vector<8x32xf32>
    %1124 = arith.mulf %1123, %1121 : vector<8x32xf32>
    %cst_196 = arith.constant 1.000000e+00 : f32
    %1125 = vector.broadcast %cst_196 : f32 to vector<8x1xf32>
    %1126 = arith.subf %1125, %1122 : vector<8x1xf32>
    %1127 = vector.broadcast %1126 : vector<8x1xf32> to vector<8x32xf32>
    %1128 = arith.mulf %1127, %1092 : vector<8x32xf32>
    %1129 = arith.addf %1124, %1128 : vector<8x32xf32>
    %1130 = vector.broadcast %1122 : vector<8x1xf32> to vector<8x32xf32>
    %1131 = arith.mulf %1130, %1119 : vector<8x32xf32>
    %cst_197 = arith.constant 1.000000e+00 : f32
    %1132 = vector.broadcast %cst_197 : f32 to vector<8x1xf32>
    %1133 = arith.subf %1132, %1122 : vector<8x1xf32>
    %1134 = vector.broadcast %1133 : vector<8x1xf32> to vector<8x32xf32>
    %1135 = arith.mulf %1134, %1093 : vector<8x32xf32>
    %1136 = arith.addf %1131, %1135 : vector<8x32xf32>
    %1137 = vector.extract_strided_slice %1091 {offsets = [8, 0], sizes = [8, 128], strides = [1, 1]} : vector<64x128xf32> to vector<8x128xf32>
    %cst_198 = arith.constant dense<0.000000e+00> : vector<8x128xf32>
    %1138 = tpu.matmul %1129, %1086, %cst_198 {dimension_numbers = #tpu.dot_dimension_numbers<[1], [0], [0], [1], [0, 0, 1, 1], [], []>} : vector<8x32xf32>, vector<32x128xf32>, vector<8x128xf32> -> vector<8x128xf32>
    %1139 = arith.addf %1137, %1138 : vector<8x128xf32>
    %1140 = vector.extract_strided_slice %1139 {offsets = [0, 0], sizes = [8, 32], strides = [1, 1]} : vector<8x128xf32> to vector<8x32xf32>
    %1141 = arith.negf %1140 : vector<8x32xf32>
    %1142 = math.exp %1141 : vector<8x32xf32>
    %cst_199 = arith.constant 1.000000e+00 : f32
    %1143 = vector.broadcast %cst_199 : f32 to vector<8x32xf32>
    %1144 = arith.addf %1143, %1142 : vector<8x32xf32>
    %1145 = arith.divf %1143, %1144 : vector<8x32xf32>
    %1146 = vector.extract_strided_slice %1139 {offsets = [0, 32], sizes = [8, 32], strides = [1, 1]} : vector<8x128xf32> to vector<8x32xf32>
    %1147 = arith.negf %1146 : vector<8x32xf32>
    %1148 = math.exp %1147 : vector<8x32xf32>
    %cst_200 = arith.constant 1.000000e+00 : f32
    %1149 = vector.broadcast %cst_200 : f32 to vector<8x32xf32>
    %1150 = arith.addf %1149, %1148 : vector<8x32xf32>
    %1151 = arith.divf %1149, %1150 : vector<8x32xf32>
    %1152 = vector.extract_strided_slice %1139 {offsets = [0, 64], sizes = [8, 32], strides = [1, 1]} : vector<8x128xf32> to vector<8x32xf32>
    %1153 = math.tanh %1152 : vector<8x32xf32>
    %1154 = vector.extract_strided_slice %1139 {offsets = [0, 96], sizes = [8, 32], strides = [1, 1]} : vector<8x128xf32> to vector<8x32xf32>
    %1155 = arith.negf %1154 : vector<8x32xf32>
    %1156 = math.exp %1155 : vector<8x32xf32>
    %cst_201 = arith.constant 1.000000e+00 : f32
    %1157 = vector.broadcast %cst_201 : f32 to vector<8x32xf32>
    %1158 = arith.addf %1157, %1156 : vector<8x32xf32>
    %1159 = arith.divf %1157, %1158 : vector<8x32xf32>
    %1160 = arith.mulf %1151, %1136 : vector<8x32xf32>
    %1161 = arith.mulf %1145, %1153 : vector<8x32xf32>
    %1162 = arith.addf %1160, %1161 : vector<8x32xf32>
    %1163 = math.tanh %1162 : vector<8x32xf32>
    %1164 = arith.mulf %1159, %1163 : vector<8x32xf32>
    %1165 = vector.extract_strided_slice %0 {offsets = [8, 0], sizes = [8, 1], strides = [1, 1]} : vector<64x1xf32> to vector<8x1xf32>
    %1166 = vector.broadcast %1165 : vector<8x1xf32> to vector<8x32xf32>
    %1167 = arith.mulf %1166, %1164 : vector<8x32xf32>
    %cst_202 = arith.constant 1.000000e+00 : f32
    %1168 = vector.broadcast %cst_202 : f32 to vector<8x1xf32>
    %1169 = arith.subf %1168, %1165 : vector<8x1xf32>
    %1170 = vector.broadcast %1169 : vector<8x1xf32> to vector<8x32xf32>
    %1171 = arith.mulf %1170, %1129 : vector<8x32xf32>
    %1172 = arith.addf %1167, %1171 : vector<8x32xf32>
    %1173 = vector.broadcast %1165 : vector<8x1xf32> to vector<8x32xf32>
    %1174 = arith.mulf %1173, %1162 : vector<8x32xf32>
    %cst_203 = arith.constant 1.000000e+00 : f32
    %1175 = vector.broadcast %cst_203 : f32 to vector<8x1xf32>
    %1176 = arith.subf %1175, %1165 : vector<8x1xf32>
    %1177 = vector.broadcast %1176 : vector<8x1xf32> to vector<8x32xf32>
    %1178 = arith.mulf %1177, %1136 : vector<8x32xf32>
    %1179 = arith.addf %1174, %1178 : vector<8x32xf32>
    %1180 = vector.extract_strided_slice %1091 {offsets = [16, 0], sizes = [8, 128], strides = [1, 1]} : vector<64x128xf32> to vector<8x128xf32>
    %cst_204 = arith.constant dense<0.000000e+00> : vector<8x128xf32>
    %1181 = tpu.matmul %1172, %1086, %cst_204 {dimension_numbers = #tpu.dot_dimension_numbers<[1], [0], [0], [1], [0, 0, 1, 1], [], []>} : vector<8x32xf32>, vector<32x128xf32>, vector<8x128xf32> -> vector<8x128xf32>
    %1182 = arith.addf %1180, %1181 : vector<8x128xf32>
    %1183 = vector.extract_strided_slice %1182 {offsets = [0, 0], sizes = [8, 32], strides = [1, 1]} : vector<8x128xf32> to vector<8x32xf32>
    %1184 = arith.negf %1183 : vector<8x32xf32>
    %1185 = math.exp %1184 : vector<8x32xf32>
    %cst_205 = arith.constant 1.000000e+00 : f32
    %1186 = vector.broadcast %cst_205 : f32 to vector<8x32xf32>
    %1187 = arith.addf %1186, %1185 : vector<8x32xf32>
    %1188 = arith.divf %1186, %1187 : vector<8x32xf32>
    %1189 = vector.extract_strided_slice %1182 {offsets = [0, 32], sizes = [8, 32], strides = [1, 1]} : vector<8x128xf32> to vector<8x32xf32>
    %1190 = arith.negf %1189 : vector<8x32xf32>
    %1191 = math.exp %1190 : vector<8x32xf32>
    %cst_206 = arith.constant 1.000000e+00 : f32
    %1192 = vector.broadcast %cst_206 : f32 to vector<8x32xf32>
    %1193 = arith.addf %1192, %1191 : vector<8x32xf32>
    %1194 = arith.divf %1192, %1193 : vector<8x32xf32>
    %1195 = vector.extract_strided_slice %1182 {offsets = [0, 64], sizes = [8, 32], strides = [1, 1]} : vector<8x128xf32> to vector<8x32xf32>
    %1196 = math.tanh %1195 : vector<8x32xf32>
    %1197 = vector.extract_strided_slice %1182 {offsets = [0, 96], sizes = [8, 32], strides = [1, 1]} : vector<8x128xf32> to vector<8x32xf32>
    %1198 = arith.negf %1197 : vector<8x32xf32>
    %1199 = math.exp %1198 : vector<8x32xf32>
    %cst_207 = arith.constant 1.000000e+00 : f32
    %1200 = vector.broadcast %cst_207 : f32 to vector<8x32xf32>
    %1201 = arith.addf %1200, %1199 : vector<8x32xf32>
    %1202 = arith.divf %1200, %1201 : vector<8x32xf32>
    %1203 = arith.mulf %1194, %1179 : vector<8x32xf32>
    %1204 = arith.mulf %1188, %1196 : vector<8x32xf32>
    %1205 = arith.addf %1203, %1204 : vector<8x32xf32>
    %1206 = math.tanh %1205 : vector<8x32xf32>
    %1207 = arith.mulf %1202, %1206 : vector<8x32xf32>
    %1208 = vector.extract_strided_slice %0 {offsets = [16, 0], sizes = [8, 1], strides = [1, 1]} : vector<64x1xf32> to vector<8x1xf32>
    %1209 = vector.broadcast %1208 : vector<8x1xf32> to vector<8x32xf32>
    %1210 = arith.mulf %1209, %1207 : vector<8x32xf32>
    %cst_208 = arith.constant 1.000000e+00 : f32
    %1211 = vector.broadcast %cst_208 : f32 to vector<8x1xf32>
    %1212 = arith.subf %1211, %1208 : vector<8x1xf32>
    %1213 = vector.broadcast %1212 : vector<8x1xf32> to vector<8x32xf32>
    %1214 = arith.mulf %1213, %1172 : vector<8x32xf32>
    %1215 = arith.addf %1210, %1214 : vector<8x32xf32>
    %1216 = vector.broadcast %1208 : vector<8x1xf32> to vector<8x32xf32>
    %1217 = arith.mulf %1216, %1205 : vector<8x32xf32>
    %cst_209 = arith.constant 1.000000e+00 : f32
    %1218 = vector.broadcast %cst_209 : f32 to vector<8x1xf32>
    %1219 = arith.subf %1218, %1208 : vector<8x1xf32>
    %1220 = vector.broadcast %1219 : vector<8x1xf32> to vector<8x32xf32>
    %1221 = arith.mulf %1220, %1179 : vector<8x32xf32>
    %1222 = arith.addf %1217, %1221 : vector<8x32xf32>
    %1223 = vector.extract_strided_slice %1091 {offsets = [24, 0], sizes = [8, 128], strides = [1, 1]} : vector<64x128xf32> to vector<8x128xf32>
    %cst_210 = arith.constant dense<0.000000e+00> : vector<8x128xf32>
    %1224 = tpu.matmul %1215, %1086, %cst_210 {dimension_numbers = #tpu.dot_dimension_numbers<[1], [0], [0], [1], [0, 0, 1, 1], [], []>} : vector<8x32xf32>, vector<32x128xf32>, vector<8x128xf32> -> vector<8x128xf32>
    %1225 = arith.addf %1223, %1224 : vector<8x128xf32>
    %1226 = vector.extract_strided_slice %1225 {offsets = [0, 0], sizes = [8, 32], strides = [1, 1]} : vector<8x128xf32> to vector<8x32xf32>
    %1227 = arith.negf %1226 : vector<8x32xf32>
    %1228 = math.exp %1227 : vector<8x32xf32>
    %cst_211 = arith.constant 1.000000e+00 : f32
    %1229 = vector.broadcast %cst_211 : f32 to vector<8x32xf32>
    %1230 = arith.addf %1229, %1228 : vector<8x32xf32>
    %1231 = arith.divf %1229, %1230 : vector<8x32xf32>
    %1232 = vector.extract_strided_slice %1225 {offsets = [0, 32], sizes = [8, 32], strides = [1, 1]} : vector<8x128xf32> to vector<8x32xf32>
    %1233 = arith.negf %1232 : vector<8x32xf32>
    %1234 = math.exp %1233 : vector<8x32xf32>
    %cst_212 = arith.constant 1.000000e+00 : f32
    %1235 = vector.broadcast %cst_212 : f32 to vector<8x32xf32>
    %1236 = arith.addf %1235, %1234 : vector<8x32xf32>
    %1237 = arith.divf %1235, %1236 : vector<8x32xf32>
    %1238 = vector.extract_strided_slice %1225 {offsets = [0, 64], sizes = [8, 32], strides = [1, 1]} : vector<8x128xf32> to vector<8x32xf32>
    %1239 = math.tanh %1238 : vector<8x32xf32>
    %1240 = vector.extract_strided_slice %1225 {offsets = [0, 96], sizes = [8, 32], strides = [1, 1]} : vector<8x128xf32> to vector<8x32xf32>
    %1241 = arith.negf %1240 : vector<8x32xf32>
    %1242 = math.exp %1241 : vector<8x32xf32>
    %cst_213 = arith.constant 1.000000e+00 : f32
    %1243 = vector.broadcast %cst_213 : f32 to vector<8x32xf32>
    %1244 = arith.addf %1243, %1242 : vector<8x32xf32>
    %1245 = arith.divf %1243, %1244 : vector<8x32xf32>
    %1246 = arith.mulf %1237, %1222 : vector<8x32xf32>
    %1247 = arith.mulf %1231, %1239 : vector<8x32xf32>
    %1248 = arith.addf %1246, %1247 : vector<8x32xf32>
    %1249 = math.tanh %1248 : vector<8x32xf32>
    %1250 = arith.mulf %1245, %1249 : vector<8x32xf32>
    %1251 = vector.extract_strided_slice %0 {offsets = [24, 0], sizes = [8, 1], strides = [1, 1]} : vector<64x1xf32> to vector<8x1xf32>
    %1252 = vector.broadcast %1251 : vector<8x1xf32> to vector<8x32xf32>
    %1253 = arith.mulf %1252, %1250 : vector<8x32xf32>
    %cst_214 = arith.constant 1.000000e+00 : f32
    %1254 = vector.broadcast %cst_214 : f32 to vector<8x1xf32>
    %1255 = arith.subf %1254, %1251 : vector<8x1xf32>
    %1256 = vector.broadcast %1255 : vector<8x1xf32> to vector<8x32xf32>
    %1257 = arith.mulf %1256, %1215 : vector<8x32xf32>
    %1258 = arith.addf %1253, %1257 : vector<8x32xf32>
    %1259 = vector.broadcast %1251 : vector<8x1xf32> to vector<8x32xf32>
    %1260 = arith.mulf %1259, %1248 : vector<8x32xf32>
    %cst_215 = arith.constant 1.000000e+00 : f32
    %1261 = vector.broadcast %cst_215 : f32 to vector<8x1xf32>
    %1262 = arith.subf %1261, %1251 : vector<8x1xf32>
    %1263 = vector.broadcast %1262 : vector<8x1xf32> to vector<8x32xf32>
    %1264 = arith.mulf %1263, %1222 : vector<8x32xf32>
    %1265 = arith.addf %1260, %1264 : vector<8x32xf32>
    %1266 = vector.extract_strided_slice %1091 {offsets = [32, 0], sizes = [8, 128], strides = [1, 1]} : vector<64x128xf32> to vector<8x128xf32>
    %cst_216 = arith.constant dense<0.000000e+00> : vector<8x128xf32>
    %1267 = tpu.matmul %1258, %1086, %cst_216 {dimension_numbers = #tpu.dot_dimension_numbers<[1], [0], [0], [1], [0, 0, 1, 1], [], []>} : vector<8x32xf32>, vector<32x128xf32>, vector<8x128xf32> -> vector<8x128xf32>
    %1268 = arith.addf %1266, %1267 : vector<8x128xf32>
    %1269 = vector.extract_strided_slice %1268 {offsets = [0, 0], sizes = [8, 32], strides = [1, 1]} : vector<8x128xf32> to vector<8x32xf32>
    %1270 = arith.negf %1269 : vector<8x32xf32>
    %1271 = math.exp %1270 : vector<8x32xf32>
    %cst_217 = arith.constant 1.000000e+00 : f32
    %1272 = vector.broadcast %cst_217 : f32 to vector<8x32xf32>
    %1273 = arith.addf %1272, %1271 : vector<8x32xf32>
    %1274 = arith.divf %1272, %1273 : vector<8x32xf32>
    %1275 = vector.extract_strided_slice %1268 {offsets = [0, 32], sizes = [8, 32], strides = [1, 1]} : vector<8x128xf32> to vector<8x32xf32>
    %1276 = arith.negf %1275 : vector<8x32xf32>
    %1277 = math.exp %1276 : vector<8x32xf32>
    %cst_218 = arith.constant 1.000000e+00 : f32
    %1278 = vector.broadcast %cst_218 : f32 to vector<8x32xf32>
    %1279 = arith.addf %1278, %1277 : vector<8x32xf32>
    %1280 = arith.divf %1278, %1279 : vector<8x32xf32>
    %1281 = vector.extract_strided_slice %1268 {offsets = [0, 64], sizes = [8, 32], strides = [1, 1]} : vector<8x128xf32> to vector<8x32xf32>
    %1282 = math.tanh %1281 : vector<8x32xf32>
    %1283 = vector.extract_strided_slice %1268 {offsets = [0, 96], sizes = [8, 32], strides = [1, 1]} : vector<8x128xf32> to vector<8x32xf32>
    %1284 = arith.negf %1283 : vector<8x32xf32>
    %1285 = math.exp %1284 : vector<8x32xf32>
    %cst_219 = arith.constant 1.000000e+00 : f32
    %1286 = vector.broadcast %cst_219 : f32 to vector<8x32xf32>
    %1287 = arith.addf %1286, %1285 : vector<8x32xf32>
    %1288 = arith.divf %1286, %1287 : vector<8x32xf32>
    %1289 = arith.mulf %1280, %1265 : vector<8x32xf32>
    %1290 = arith.mulf %1274, %1282 : vector<8x32xf32>
    %1291 = arith.addf %1289, %1290 : vector<8x32xf32>
    %1292 = math.tanh %1291 : vector<8x32xf32>
    %1293 = arith.mulf %1288, %1292 : vector<8x32xf32>
    %1294 = vector.extract_strided_slice %0 {offsets = [32, 0], sizes = [8, 1], strides = [1, 1]} : vector<64x1xf32> to vector<8x1xf32>
    %1295 = vector.broadcast %1294 : vector<8x1xf32> to vector<8x32xf32>
    %1296 = arith.mulf %1295, %1293 : vector<8x32xf32>
    %cst_220 = arith.constant 1.000000e+00 : f32
    %1297 = vector.broadcast %cst_220 : f32 to vector<8x1xf32>
    %1298 = arith.subf %1297, %1294 : vector<8x1xf32>
    %1299 = vector.broadcast %1298 : vector<8x1xf32> to vector<8x32xf32>
    %1300 = arith.mulf %1299, %1258 : vector<8x32xf32>
    %1301 = arith.addf %1296, %1300 : vector<8x32xf32>
    %1302 = vector.broadcast %1294 : vector<8x1xf32> to vector<8x32xf32>
    %1303 = arith.mulf %1302, %1291 : vector<8x32xf32>
    %cst_221 = arith.constant 1.000000e+00 : f32
    %1304 = vector.broadcast %cst_221 : f32 to vector<8x1xf32>
    %1305 = arith.subf %1304, %1294 : vector<8x1xf32>
    %1306 = vector.broadcast %1305 : vector<8x1xf32> to vector<8x32xf32>
    %1307 = arith.mulf %1306, %1265 : vector<8x32xf32>
    %1308 = arith.addf %1303, %1307 : vector<8x32xf32>
    %1309 = vector.extract_strided_slice %1091 {offsets = [40, 0], sizes = [8, 128], strides = [1, 1]} : vector<64x128xf32> to vector<8x128xf32>
    %cst_222 = arith.constant dense<0.000000e+00> : vector<8x128xf32>
    %1310 = tpu.matmul %1301, %1086, %cst_222 {dimension_numbers = #tpu.dot_dimension_numbers<[1], [0], [0], [1], [0, 0, 1, 1], [], []>} : vector<8x32xf32>, vector<32x128xf32>, vector<8x128xf32> -> vector<8x128xf32>
    %1311 = arith.addf %1309, %1310 : vector<8x128xf32>
    %1312 = vector.extract_strided_slice %1311 {offsets = [0, 0], sizes = [8, 32], strides = [1, 1]} : vector<8x128xf32> to vector<8x32xf32>
    %1313 = arith.negf %1312 : vector<8x32xf32>
    %1314 = math.exp %1313 : vector<8x32xf32>
    %cst_223 = arith.constant 1.000000e+00 : f32
    %1315 = vector.broadcast %cst_223 : f32 to vector<8x32xf32>
    %1316 = arith.addf %1315, %1314 : vector<8x32xf32>
    %1317 = arith.divf %1315, %1316 : vector<8x32xf32>
    %1318 = vector.extract_strided_slice %1311 {offsets = [0, 32], sizes = [8, 32], strides = [1, 1]} : vector<8x128xf32> to vector<8x32xf32>
    %1319 = arith.negf %1318 : vector<8x32xf32>
    %1320 = math.exp %1319 : vector<8x32xf32>
    %cst_224 = arith.constant 1.000000e+00 : f32
    %1321 = vector.broadcast %cst_224 : f32 to vector<8x32xf32>
    %1322 = arith.addf %1321, %1320 : vector<8x32xf32>
    %1323 = arith.divf %1321, %1322 : vector<8x32xf32>
    %1324 = vector.extract_strided_slice %1311 {offsets = [0, 64], sizes = [8, 32], strides = [1, 1]} : vector<8x128xf32> to vector<8x32xf32>
    %1325 = math.tanh %1324 : vector<8x32xf32>
    %1326 = vector.extract_strided_slice %1311 {offsets = [0, 96], sizes = [8, 32], strides = [1, 1]} : vector<8x128xf32> to vector<8x32xf32>
    %1327 = arith.negf %1326 : vector<8x32xf32>
    %1328 = math.exp %1327 : vector<8x32xf32>
    %cst_225 = arith.constant 1.000000e+00 : f32
    %1329 = vector.broadcast %cst_225 : f32 to vector<8x32xf32>
    %1330 = arith.addf %1329, %1328 : vector<8x32xf32>
    %1331 = arith.divf %1329, %1330 : vector<8x32xf32>
    %1332 = arith.mulf %1323, %1308 : vector<8x32xf32>
    %1333 = arith.mulf %1317, %1325 : vector<8x32xf32>
    %1334 = arith.addf %1332, %1333 : vector<8x32xf32>
    %1335 = math.tanh %1334 : vector<8x32xf32>
    %1336 = arith.mulf %1331, %1335 : vector<8x32xf32>
    %1337 = vector.extract_strided_slice %0 {offsets = [40, 0], sizes = [8, 1], strides = [1, 1]} : vector<64x1xf32> to vector<8x1xf32>
    %1338 = vector.broadcast %1337 : vector<8x1xf32> to vector<8x32xf32>
    %1339 = arith.mulf %1338, %1336 : vector<8x32xf32>
    %cst_226 = arith.constant 1.000000e+00 : f32
    %1340 = vector.broadcast %cst_226 : f32 to vector<8x1xf32>
    %1341 = arith.subf %1340, %1337 : vector<8x1xf32>
    %1342 = vector.broadcast %1341 : vector<8x1xf32> to vector<8x32xf32>
    %1343 = arith.mulf %1342, %1301 : vector<8x32xf32>
    %1344 = arith.addf %1339, %1343 : vector<8x32xf32>
    %1345 = vector.broadcast %1337 : vector<8x1xf32> to vector<8x32xf32>
    %1346 = arith.mulf %1345, %1334 : vector<8x32xf32>
    %cst_227 = arith.constant 1.000000e+00 : f32
    %1347 = vector.broadcast %cst_227 : f32 to vector<8x1xf32>
    %1348 = arith.subf %1347, %1337 : vector<8x1xf32>
    %1349 = vector.broadcast %1348 : vector<8x1xf32> to vector<8x32xf32>
    %1350 = arith.mulf %1349, %1308 : vector<8x32xf32>
    %1351 = arith.addf %1346, %1350 : vector<8x32xf32>
    %1352 = vector.extract_strided_slice %1091 {offsets = [48, 0], sizes = [8, 128], strides = [1, 1]} : vector<64x128xf32> to vector<8x128xf32>
    %cst_228 = arith.constant dense<0.000000e+00> : vector<8x128xf32>
    %1353 = tpu.matmul %1344, %1086, %cst_228 {dimension_numbers = #tpu.dot_dimension_numbers<[1], [0], [0], [1], [0, 0, 1, 1], [], []>} : vector<8x32xf32>, vector<32x128xf32>, vector<8x128xf32> -> vector<8x128xf32>
    %1354 = arith.addf %1352, %1353 : vector<8x128xf32>
    %1355 = vector.extract_strided_slice %1354 {offsets = [0, 0], sizes = [8, 32], strides = [1, 1]} : vector<8x128xf32> to vector<8x32xf32>
    %1356 = arith.negf %1355 : vector<8x32xf32>
    %1357 = math.exp %1356 : vector<8x32xf32>
    %cst_229 = arith.constant 1.000000e+00 : f32
    %1358 = vector.broadcast %cst_229 : f32 to vector<8x32xf32>
    %1359 = arith.addf %1358, %1357 : vector<8x32xf32>
    %1360 = arith.divf %1358, %1359 : vector<8x32xf32>
    %1361 = vector.extract_strided_slice %1354 {offsets = [0, 32], sizes = [8, 32], strides = [1, 1]} : vector<8x128xf32> to vector<8x32xf32>
    %1362 = arith.negf %1361 : vector<8x32xf32>
    %1363 = math.exp %1362 : vector<8x32xf32>
    %cst_230 = arith.constant 1.000000e+00 : f32
    %1364 = vector.broadcast %cst_230 : f32 to vector<8x32xf32>
    %1365 = arith.addf %1364, %1363 : vector<8x32xf32>
    %1366 = arith.divf %1364, %1365 : vector<8x32xf32>
    %1367 = vector.extract_strided_slice %1354 {offsets = [0, 64], sizes = [8, 32], strides = [1, 1]} : vector<8x128xf32> to vector<8x32xf32>
    %1368 = math.tanh %1367 : vector<8x32xf32>
    %1369 = vector.extract_strided_slice %1354 {offsets = [0, 96], sizes = [8, 32], strides = [1, 1]} : vector<8x128xf32> to vector<8x32xf32>
    %1370 = arith.negf %1369 : vector<8x32xf32>
    %1371 = math.exp %1370 : vector<8x32xf32>
    %cst_231 = arith.constant 1.000000e+00 : f32
    %1372 = vector.broadcast %cst_231 : f32 to vector<8x32xf32>
    %1373 = arith.addf %1372, %1371 : vector<8x32xf32>
    %1374 = arith.divf %1372, %1373 : vector<8x32xf32>
    %1375 = arith.mulf %1366, %1351 : vector<8x32xf32>
    %1376 = arith.mulf %1360, %1368 : vector<8x32xf32>
    %1377 = arith.addf %1375, %1376 : vector<8x32xf32>
    %1378 = math.tanh %1377 : vector<8x32xf32>
    %1379 = arith.mulf %1374, %1378 : vector<8x32xf32>
    %1380 = vector.extract_strided_slice %0 {offsets = [48, 0], sizes = [8, 1], strides = [1, 1]} : vector<64x1xf32> to vector<8x1xf32>
    %1381 = vector.broadcast %1380 : vector<8x1xf32> to vector<8x32xf32>
    %1382 = arith.mulf %1381, %1379 : vector<8x32xf32>
    %cst_232 = arith.constant 1.000000e+00 : f32
    %1383 = vector.broadcast %cst_232 : f32 to vector<8x1xf32>
    %1384 = arith.subf %1383, %1380 : vector<8x1xf32>
    %1385 = vector.broadcast %1384 : vector<8x1xf32> to vector<8x32xf32>
    %1386 = arith.mulf %1385, %1344 : vector<8x32xf32>
    %1387 = arith.addf %1382, %1386 : vector<8x32xf32>
    %1388 = vector.broadcast %1380 : vector<8x1xf32> to vector<8x32xf32>
    %1389 = arith.mulf %1388, %1377 : vector<8x32xf32>
    %cst_233 = arith.constant 1.000000e+00 : f32
    %1390 = vector.broadcast %cst_233 : f32 to vector<8x1xf32>
    %1391 = arith.subf %1390, %1380 : vector<8x1xf32>
    %1392 = vector.broadcast %1391 : vector<8x1xf32> to vector<8x32xf32>
    %1393 = arith.mulf %1392, %1351 : vector<8x32xf32>
    %1394 = arith.addf %1389, %1393 : vector<8x32xf32>
    %1395 = vector.extract_strided_slice %1091 {offsets = [56, 0], sizes = [8, 128], strides = [1, 1]} : vector<64x128xf32> to vector<8x128xf32>
    %cst_234 = arith.constant dense<0.000000e+00> : vector<8x128xf32>
    %1396 = tpu.matmul %1387, %1086, %cst_234 {dimension_numbers = #tpu.dot_dimension_numbers<[1], [0], [0], [1], [0, 0, 1, 1], [], []>} : vector<8x32xf32>, vector<32x128xf32>, vector<8x128xf32> -> vector<8x128xf32>
    %1397 = arith.addf %1395, %1396 : vector<8x128xf32>
    %1398 = vector.extract_strided_slice %1397 {offsets = [0, 0], sizes = [8, 32], strides = [1, 1]} : vector<8x128xf32> to vector<8x32xf32>
    %1399 = arith.negf %1398 : vector<8x32xf32>
    %1400 = math.exp %1399 : vector<8x32xf32>
    %cst_235 = arith.constant 1.000000e+00 : f32
    %1401 = vector.broadcast %cst_235 : f32 to vector<8x32xf32>
    %1402 = arith.addf %1401, %1400 : vector<8x32xf32>
    %1403 = arith.divf %1401, %1402 : vector<8x32xf32>
    %1404 = vector.extract_strided_slice %1397 {offsets = [0, 32], sizes = [8, 32], strides = [1, 1]} : vector<8x128xf32> to vector<8x32xf32>
    %1405 = arith.negf %1404 : vector<8x32xf32>
    %1406 = math.exp %1405 : vector<8x32xf32>
    %cst_236 = arith.constant 1.000000e+00 : f32
    %1407 = vector.broadcast %cst_236 : f32 to vector<8x32xf32>
    %1408 = arith.addf %1407, %1406 : vector<8x32xf32>
    %1409 = arith.divf %1407, %1408 : vector<8x32xf32>
    %1410 = vector.extract_strided_slice %1397 {offsets = [0, 64], sizes = [8, 32], strides = [1, 1]} : vector<8x128xf32> to vector<8x32xf32>
    %1411 = math.tanh %1410 : vector<8x32xf32>
    %1412 = vector.extract_strided_slice %1397 {offsets = [0, 96], sizes = [8, 32], strides = [1, 1]} : vector<8x128xf32> to vector<8x32xf32>
    %1413 = arith.negf %1412 : vector<8x32xf32>
    %1414 = math.exp %1413 : vector<8x32xf32>
    %cst_237 = arith.constant 1.000000e+00 : f32
    %1415 = vector.broadcast %cst_237 : f32 to vector<8x32xf32>
    %1416 = arith.addf %1415, %1414 : vector<8x32xf32>
    %1417 = arith.divf %1415, %1416 : vector<8x32xf32>
    %1418 = arith.mulf %1409, %1394 : vector<8x32xf32>
    %1419 = arith.mulf %1403, %1411 : vector<8x32xf32>
    %1420 = arith.addf %1418, %1419 : vector<8x32xf32>
    %1421 = math.tanh %1420 : vector<8x32xf32>
    %1422 = arith.mulf %1417, %1421 : vector<8x32xf32>
    %1423 = vector.extract_strided_slice %0 {offsets = [56, 0], sizes = [8, 1], strides = [1, 1]} : vector<64x1xf32> to vector<8x1xf32>
    %1424 = vector.broadcast %1423 : vector<8x1xf32> to vector<8x32xf32>
    %1425 = arith.mulf %1424, %1422 : vector<8x32xf32>
    %cst_238 = arith.constant 1.000000e+00 : f32
    %1426 = vector.broadcast %cst_238 : f32 to vector<8x1xf32>
    %1427 = arith.subf %1426, %1423 : vector<8x1xf32>
    %1428 = vector.broadcast %1427 : vector<8x1xf32> to vector<8x32xf32>
    %1429 = arith.mulf %1428, %1387 : vector<8x32xf32>
    %1430 = arith.addf %1425, %1429 : vector<8x32xf32>
    %1431 = vector.extract_strided_slice %1 {offsets = [0, 0], sizes = [8, 32], strides = [1, 1]} : vector<64x32xf32> to vector<8x32xf32>
    %1432 = vector.extract_strided_slice %2 {offsets = [0, 0], sizes = [8, 32], strides = [1, 1]} : vector<64x32xf32> to vector<8x32xf32>
    %c0_239 = arith.constant 0 : index
    %c0_240 = arith.constant 0 : index
    %1433 = vector.load %arg9[%c0_239, %c0_240] : memref<128x32xf32, #tpu.memory_space<vmem>>, vector<128x32xf32>
    %1434 = vector.extract_strided_slice %1433 {offsets = [0, 0], sizes = [32, 32], strides = [1, 1]} : vector<128x32xf32> to vector<32x32xf32>
    %cst_241 = arith.constant dense<0.000000e+00> : vector<8x32xf32>
    %1435 = tpu.matmul %1431, %1434, %cst_241 {dimension_numbers = #tpu.dot_dimension_numbers<[1], [0], [0], [1], [0, 0, 1, 1], [], []>} : vector<8x32xf32>, vector<32x32xf32>, vector<8x32xf32> -> vector<8x32xf32>
    %1436 = vector.extract_strided_slice %1433 {offsets = [32, 0], sizes = [32, 32], strides = [1, 1]} : vector<128x32xf32> to vector<32x32xf32>
    %cst_242 = arith.constant dense<0.000000e+00> : vector<8x32xf32>
    %1437 = tpu.matmul %716, %1436, %cst_242 {dimension_numbers = #tpu.dot_dimension_numbers<[1], [0], [0], [1], [0, 0, 1, 1], [], []>} : vector<8x32xf32>, vector<32x32xf32>, vector<8x32xf32> -> vector<8x32xf32>
    %1438 = arith.addf %1435, %1437 : vector<8x32xf32>
    %1439 = vector.extract_strided_slice %1433 {offsets = [64, 0], sizes = [32, 32], strides = [1, 1]} : vector<128x32xf32> to vector<32x32xf32>
    %cst_243 = arith.constant dense<0.000000e+00> : vector<8x32xf32>
    %1440 = tpu.matmul %1430, %1439, %cst_243 {dimension_numbers = #tpu.dot_dimension_numbers<[1], [0], [0], [1], [0, 0, 1, 1], [], []>} : vector<8x32xf32>, vector<32x32xf32>, vector<8x32xf32> -> vector<8x32xf32>
    %1441 = arith.addf %1438, %1440 : vector<8x32xf32>
    %1442 = vector.extract_strided_slice %1433 {offsets = [96, 0], sizes = [32, 32], strides = [1, 1]} : vector<128x32xf32> to vector<32x32xf32>
    %cst_244 = arith.constant dense<0.000000e+00> : vector<8x32xf32>
    %1443 = tpu.matmul %1432, %1442, %cst_244 {dimension_numbers = #tpu.dot_dimension_numbers<[1], [0], [0], [1], [0, 0, 1, 1], [], []>} : vector<8x32xf32>, vector<32x32xf32>, vector<8x32xf32> -> vector<8x32xf32>
    %1444 = arith.addf %1441, %1443 : vector<8x32xf32>
    %c0_245 = arith.constant 0 : index
    %c0_246 = arith.constant 0 : index
    %1445 = vector.load %arg10[%c0_245, %c0_246] : memref<1x32xf32, #tpu.memory_space<vmem>>, vector<1x32xf32>
    %1446 = vector.broadcast %1445 : vector<1x32xf32> to vector<8x32xf32>
    %1447 = arith.addf %1444, %1446 : vector<8x32xf32>
    %1448 = math.tanh %1447 : vector<8x32xf32>
    %c0_247 = arith.constant 0 : index
    %c0_248 = arith.constant 0 : index
    %1449 = vector.load %arg11[%c0_247, %c0_248] : memref<8x32xf32, #tpu.memory_space<vmem>>, vector<8x32xf32>
    tpu.vector_store %arg11[%c0_247, %c0_248], %1448 {strides = array<i32>} : memref<8x32xf32, #tpu.memory_space<vmem>>, vector<8x32xf32>,
    return
  }
}

</mosaic_0001>

<llo_original>
// kernel: _forward_device.3
$region0: #{_forward_device.3}
  #allocation0 [shape = 'u32[]', space=smem, size = 0x4, offset = 0x4, fixed_abs, tag = 'smem constant byte address 0x4 - core index']
  #allocation1 [shape = 'u32[144,128]{1,0:T(1,128)}', space=vmem, size = 0x12000, scoped, tag = 'internal scratch']
  #allocation2 [shape = 'f32[1,1]{1,0:T(1,128)S(1)}', space=vmem, size = 0x200, scoped, tag = 'scoped memory for _forward_device.3']
  %s0 = inlined_call_operand.vmem [shape: f32[64,32], index: 0, kind: input, shape index: {}]
  %s1 = inlined_call_operand.vmem [shape: f32[4,2,32], index: 1, kind: input, shape index: {}]
  %s2 = inlined_call_operand.vmem [shape: f32[4,2,32], index: 2, kind: input, shape index: {}]
  %s3 = inlined_call_operand.vmem [shape: f32[4,2], index: 3, kind: input, shape index: {}]
  %s4 = inlined_call_operand.vmem [shape: f32[2,32], index: 4, kind: input, shape index: {}]
  %s5 = inlined_call_operand.vmem [shape: f32[1,32,128], index: 5, kind: input, shape index: {}]
  %s6 = inlined_call_operand.vmem [shape: f32[1,32,128], index: 6, kind: input, shape index: {}]
  %s7 = inlined_call_operand.vmem [shape: f32[1,1,128], index: 7, kind: input, shape index: {}]
  %s8 = inlined_call_operand.vmem [shape: f32[64,128], index: 8, kind: input, shape index: {}]
  %s9 = inlined_call_operand.vmem [shape: f32[32,128], index: 9, kind: input, shape index: {}]
  %s10 = inlined_call_operand.vmem [shape: f32[1,128], index: 10, kind: input, shape index: {}]
  %s11 = inlined_call_operand.vmem [shape: f32[32,32], index: 11, kind: input, shape index: {}]
  %s12 = inlined_call_operand.vmem [shape: f32[1,32], index: 12, kind: input, shape index: {}]
  %s13 = inlined_call_operand.vmem [shape: f32[1,1,32], index: 13, kind: input, shape index: {}]
  %s14 = inlined_call_operand.<no memory space> [shape: f32[1,1], index: 14, kind: input, shape index: {}]
  %s15 = inlined_call_operand.vmem [shape: f32[32,64], index: 15, kind: input, shape index: {}]
  %s16 = inlined_call_operand.vmem [shape: f32[1,64], index: 16, kind: input, shape index: {}]
  %s17 = inlined_call_operand.hbm [shape: s32[2,5], index: 17, kind: output, shape index: {0}]
  %s18 = inlined_call_operand.hbm [shape: f32[2,64], index: 18, kind: output, shape index: {1}]
  %19 = xla_tuple %s17, %s18
  %s20 = sld [smem:[#allocation0]]
  $region86: #{_forward_device.3} parent=0
    _
  %s22 = ssub.s32 1, %s20
  %s23 = scalar_select 0, %s22, %s20
  %v24 = vstv %s14
  %25 = vst [vmem:[#allocation2] sm:$0x1] %v24
  $region1: #{_forward_device.3} parent=0
    #allocation3 [shape = 'u8[1024]{0}', space=vmem, size = 0x400, scoped, tag = 'output window, operand 0, single buffered']
    #allocation4 [shape = 's32[1]{0}', space=sflag, size = 0x4, scoped, tag = 'scoped memory for _forward_device.3']
    #allocation5 [shape = 'u8[1024]{0}', space=vmem, size = 0x400, scoped, tag = 'output window, operand 1, single buffered']
    #allocation6 [shape = 's32[1]{0}', space=sflag, size = 0x4, scoped, tag = 'scoped memory for _forward_device.3']
    %26 = vsyncpa [#allocation4], 0
    %27 = vsyncpa [#allocation6], 0
    // Predicated region
    $region2: #{_forward_device.3} parent=1 // pred_check
      _
    $region3: #{_forward_device.3} parent=1 // pred_check_branch
      %29 = sbr.rel (0) target = $region5
    $region4: #{_forward_device.3} parent=1 // pred_region
      _
    $region5: #{_forward_device.3} parent=1 // pred_fallthru
      _
    // Predicated region
    $region6: #{_forward_device.3} parent=1 // pred_check
      _
    $region7: #{_forward_device.3} parent=1 // pred_check_branch
      %31 = sbr.rel (0) target = $region9
    $region8: #{_forward_device.3} parent=1 // pred_region
      _
    $region9: #{_forward_device.3} parent=1 // pred_fallthru
      _
    // Predicated region
    $region10: #{_forward_device.3} parent=1 // pred_check
      _
    $region11: #{_forward_device.3} parent=1 // pred_check_branch
      %33 = sbr.rel (0) target = $region13
    $region12: #{_forward_device.3} parent=1 // pred_region
      _
    $region13: #{_forward_device.3} parent=1 // pred_fallthru
      _
    // Predicated region
    $region14: #{_forward_device.3} parent=1 // pred_check
      _
    $region15: #{_forward_device.3} parent=1 // pred_check_branch
      %35 = sbr.rel (0) target = $region17
    $region16: #{_forward_device.3} parent=1 // pred_region
      _
    $region17: #{_forward_device.3} parent=1 // pred_fallthru
      _
    // Predicated region
    $region18: #{_forward_device.3} parent=1 // pred_check
      _
    $region19: #{_forward_device.3} parent=1 // pred_check_branch
      %37 = sbr.rel (0) target = $region21
    $region20: #{_forward_device.3} parent=1 // pred_region
      _
    $region21: #{_forward_device.3} parent=1 // pred_fallthru
      _
    // Predicated region
    $region22: #{_forward_device.3} parent=1 // pred_check
      _
    $region23: #{_forward_device.3} parent=1 // pred_check_branch
      %39 = sbr.rel (0) target = $region25
    $region24: #{_forward_device.3} parent=1 // pred_region
      _
    $region25: #{_forward_device.3} parent=1 // pred_fallthru
      _
    // Predicated region
    $region26: #{_forward_device.3} parent=1 // pred_check
      _
    $region27: #{_forward_device.3} parent=1 // pred_check_branch
      %41 = sbr.rel (0) target = $region29
    $region28: #{_forward_device.3} parent=1 // pred_region
      _
    $region29: #{_forward_device.3} parent=1 // pred_fallthru
      _
    // Predicated region
    $region30: #{_forward_device.3} parent=1 // pred_check
      _
    $region31: #{_forward_device.3} parent=1 // pred_check_branch
      %43 = sbr.rel (0) target = $region33
    $region32: #{_forward_device.3} parent=1 // pred_region
      _
    $region33: #{_forward_device.3} parent=1 // pred_fallthru
      _
    // Predicated region
    $region34: #{_forward_device.3} parent=1 // pred_check
      _
    $region35: #{_forward_device.3} parent=1 // pred_check_branch
      %45 = sbr.rel (0) target = $region37
    $region36: #{_forward_device.3} parent=1 // pred_region
      _
    $region37: #{_forward_device.3} parent=1 // pred_fallthru
      _
    // Predicated region
    $region38: #{_forward_device.3} parent=1 // pred_check
      _
    $region39: #{_forward_device.3} parent=1 // pred_check_branch
      %47 = sbr.rel (0) target = $region41
    $region40: #{_forward_device.3} parent=1 // pred_region
      _
    $region41: #{_forward_device.3} parent=1 // pred_fallthru
      _
    // Predicated region
    $region42: #{_forward_device.3} parent=1 // pred_check
      _
    $region43: #{_forward_device.3} parent=1 // pred_check_branch
      %49 = sbr.rel (0) target = $region45
    $region44: #{_forward_device.3} parent=1 // pred_region
      _
    $region45: #{_forward_device.3} parent=1 // pred_fallthru
      _
    // Predicated region
    $region46: #{_forward_device.3} parent=1 // pred_check
      _
    $region47: #{_forward_device.3} parent=1 // pred_check_branch
      %51 = sbr.rel (0) target = $region49
    $region48: #{_forward_device.3} parent=1 // pred_region
      _
    $region49: #{_forward_device.3} parent=1 // pred_fallthru
      _
    // Predicated region
    $region50: #{_forward_device.3} parent=1 // pred_check
      _
    $region51: #{_forward_device.3} parent=1 // pred_check_branch
      %53 = sbr.rel (0) target = $region53
    $region52: #{_forward_device.3} parent=1 // pred_region
      _
    $region53: #{_forward_device.3} parent=1 // pred_fallthru
      _
    // Predicated region
    $region54: #{_forward_device.3} parent=1 // pred_check
      _
    $region55: #{_forward_device.3} parent=1 // pred_check_branch
      %55 = sbr.rel (0) target = $region57
    $region56: #{_forward_device.3} parent=1 // pred_region
      _
    $region57: #{_forward_device.3} parent=1 // pred_fallthru
      _
    // Predicated region
    $region58: #{_forward_device.3} parent=1 // pred_check
      _
    $region59: #{_forward_device.3} parent=1 // pred_check_branch
      %57 = sbr.rel (0) target = $region61
    $region60: #{_forward_device.3} parent=1 // pred_region
      _
    $region61: #{_forward_device.3} parent=1 // pred_fallthru
      _
    // Predicated region
    $region62: #{_forward_device.3} parent=1 // pred_check
      _
    $region63: #{_forward_device.3} parent=1 // pred_check_branch
      %59 = sbr.rel (0) target = $region65
    $region64: #{_forward_device.3} parent=1 // pred_region
      _
    $region65: #{_forward_device.3} parent=1 // pred_fallthru
      _
    // Predicated region
    $region66: #{_forward_device.3} parent=1 // pred_check
      _
    $region67: #{_forward_device.3} parent=1 // pred_check_branch
      %61 = sbr.rel (0) target = $region69
    $region68: #{_forward_device.3} parent=1 // pred_region
      _
    $region69: #{_forward_device.3} parent=1 // pred_fallthru
      _
    %v62 = vld [vmem:[%s0] sm:$0xff]
    %v63 = vld [vmem:[%s0 + $0x8] sm:$0xff]
    %v64 = vld [vmem:[%s0 + $0x10] sm:$0xff]
    %v65 = vld [vmem:[%s0 + $0x18] sm:$0xff]
    %v66 = vld [vmem:[%s0 + $0x20] sm:$0xff]
    %v67 = vld [vmem:[%s0 + $0x28] sm:$0xff]
    %v68 = vld [vmem:[%s0 + $0x30] sm:$0xff]
    %v69 = vld [vmem:[%s0 + $0x38] sm:$0xff]
    %v70 = vld [vmem:[%s1] sm:$0x3]
    %v71 = vld [vmem:[%s1 + $0x2] sm:$0x3]
    %v72 = vld [vmem:[%s1 + $0x4] sm:$0x3]
    %v73 = vld [vmem:[%s1 + $0x6] sm:$0x3]
    %v74 = vld [vmem:[%s2] sm:$0x3]
    %v75 = vld [vmem:[%s2 + $0x2] sm:$0x3]
    %v76 = vld [vmem:[%s2 + $0x4] sm:$0x3]
    %v77 = vld [vmem:[%s2 + $0x6] sm:$0x3]
    %v78 = vld [vmem:[%s3] sm:$0xf]
    %v79 = vld [vmem:[%s13] sm:$0x1]
    %v80 = vld [vmem:[#allocation2] sm:$0x1]
    %v81 = vld [vmem:[%s11] sm:$0xff]
    %v82 = vld [vmem:[%s11 + $0x8] sm:$0xff]
    %v83 = vld [vmem:[%s11 + $0x10] sm:$0xff]
    %v84 = vld [vmem:[%s11 + $0x18] sm:$0xff]
    %v85 = vld [vmem:[%s12] sm:$0x1]
    %v86 = vld [vmem:[%s8] sm:$0xff]
    %v87 = vld [vmem:[%s8 + $0x8] sm:$0xff]
    %v88 = vld [vmem:[%s8 + $0x10] sm:$0xff]
    %v89 = vld [vmem:[%s8 + $0x18] sm:$0xff]
    %v90 = vld [vmem:[%s8 + $0x20] sm:$0xff]
    %v91 = vld [vmem:[%s8 + $0x28] sm:$0xff]
    %v92 = vld [vmem:[%s8 + $0x30] sm:$0xff]
    %v93 = vld [vmem:[%s8 + $0x38] sm:$0xff]
    %v94 = vld [vmem:[%s9] sm:$0xff]
    %v95 = vld [vmem:[%s9 + $0x8] sm:$0xff]
    %v96 = vld [vmem:[%s9 + $0x10] sm:$0xff]
    %v97 = vld [vmem:[%s9 + $0x18] sm:$0xff]
    %v98 = vld [vmem:[%s10] sm:$0x1]
    %v99 = vld [vmem:[%s15] sm:$0xff]
    %v100 = vld [vmem:[%s15 + $0x8] sm:$0xff]
    %v101 = vld [vmem:[%s15 + $0x10] sm:$0xff]
    %v102 = vld [vmem:[%s15 + $0x18] sm:$0xff]
    %v103 = vld [vmem:[%s16] sm:$0x1]
    %v104 = vld [vmem:[%s4] sm:$0x3]
    %v105 = vlaneseq
    %v106 = vand.u32 %v105, 127
    %v107 = vcvt.s32.f32 %v106
    %vm108 = vcmp.eq.s32.totalorder %v106, 1
    %v109 = vsel %vm108, 1, 0
    %v110 = vcvt.s32.f32 %v109
    %vm111 = vcmask 523264
    %v113 = vsel %vm111, %v110, 0
    %115 = vmatprep.subr.mxu0 0.0
    %116 = vmatpush1.msra.mxu0 0.0
    %117 = vmatprep.subr.mxu0 0.0
    %118 = vmatpush1.msra.mxu0 0.0
    %119 = vmatprep.subr.mxu0 0.0
    %120 = vmatpush1.msra.mxu0 0.0
    %121 = vmatprep.subr.mxu0 0.0
    %122 = vmatpush1.msra.mxu0 0.0
    %123 = vmatprep.subr.mxu0 0.0
    %124 = vmatpush1.msra.mxu0 0.0
    %125 = vmatprep.subr.mxu0 0.0
    %126 = vmatpush1.msra.mxu0 0.0
    %127 = vmatprep.subr.mxu0 0.0
    %128 = vmatpush1.msra.mxu0 0.0
    %129 = vmatprep.subr.mxu0 0.0
    %130 = vmatpush1.msra.mxu0 0.0
    %131 = vmatprep.subr.mxu0 0.0
    %132 = vmatpush1.msra.mxu0 %v69
    %133 = vmatprep.subr.mxu0 0.0
    %134 = vmatpush1.msra.mxu0 %v68
    %135 = vmatprep.subr.mxu0 0.0
    %136 = vmatpush1.msra.mxu0 %v67
    %137 = vmatprep.subr.mxu0 0.0
    %138 = vmatpush1.msra.mxu0 %v66
    %139 = vmatprep.subr.mxu0 0.0
    %140 = vmatpush1.msra.mxu0 %v65
    %141 = vmatprep.subr.mxu0 0.0
    %142 = vmatpush1.msra.mxu0 %v64
    %143 = vmatprep.subr.mxu0 0.0
    %144 = vmatpush1.msra.mxu0 %v63
    %145 = vmatprep.subr.mxu0 0.0
    %146 = vmatpush1.msra.mxu0 %v62
    %147 = vmatprep.subr.mxu0 0.0
    %148 = vmatpush2.msra.mxu0 0.0
    %149 = vmatprep.subr.mxu0 0.0
    %150 = vmatpush2.msra.mxu0 0.0
    %151 = vmatprep.subr.mxu0 0.0
    %152 = vmatpush2.msra.mxu0 0.0
    %153 = vmatprep.subr.mxu0 0.0
    %154 = vmatpush2.msra.mxu0 0.0
    %155 = vmatprep.subr.mxu0 0.0
    %156 = vmatpush2.msra.mxu0 0.0
    %157 = vmatprep.subr.mxu0 0.0
    %158 = vmatpush2.msra.mxu0 0.0
    %159 = vmatprep.subr.mxu0 0.0
    %160 = vmatpush2.msra.mxu0 0.0
    %161 = vmatprep.subr.mxu0 0.0
    %162 = vmatpush2.msra.mxu0 0.0
    %163 = vmatprep.subr.mxu0 0.0
    %164 = vmatpush2.msra.mxu0 0.0
    %165 = vmatprep.subr.mxu0 0.0
    %166 = vmatpush2.msra.mxu0 0.0
    %167 = vmatprep.subr.mxu0 0.0
    %168 = vmatpush2.msra.mxu0 0.0
    %169 = vmatprep.subr.mxu0 0.0
    %170 = vmatpush2.msra.mxu0 0.0
    %171 = vmatprep.subr.mxu0 0.0
    %172 = vmatpush2.msra.mxu0 0.0
    %173 = vmatprep.subr.mxu0 0.0
    %174 = vmatpush2.msra.mxu0 0.0
    %175 = vmatprep.subr.mxu0 0.0
    %176 = vmatpush2.msra.mxu0 0.0
    %177 = vmatprep.subr.mxu0 0.0
    %178 = vmatpush2.msra.mxu0 0.0
    %179 = vmatprep.mubr.f32.mxu0 0.0
    %180 = vmatmul.mubr.f32.gmra.mxu0 %v113
    %v181 = vpop.f32.mrf.mxu0
    %v182 = vadd.f32 0.0, %v181
    %v183 = vpop.f32.mrf.mxu0
    %184 = vdwg.mxu0
    %v185 = vld [vmem:[%s5] sm:$0xff]
    %v186 = vld [vmem:[%s5 + $0x8] sm:$0xff]
    %v187 = vld [vmem:[%s5 + $0x10] sm:$0xff]
    %v188 = vld [vmem:[%s5 + $0x18] sm:$0xff]
    %v189 = vld [vmem:[%s6] sm:$0xff]
    %v190 = vld [vmem:[%s6 + $0x8] sm:$0xff]
    %v191 = vld [vmem:[%s6 + $0x10] sm:$0xff]
    %v192 = vld [vmem:[%s6 + $0x18] sm:$0xff]
    %vm193 = vcmask 261120
    %v195 = vsel %vm193, %v104, 0
    %197 = vmatprep.subr.mxu0 0.0
    %198 = vmatpush1.msra.mxu0 0.0
    %199 = vmatprep.subr.mxu0 0.0
    %200 = vmatpush1.msra.mxu0 0.0
    %201 = vmatprep.subr.mxu0 0.0
    %202 = vmatpush1.msra.mxu0 0.0
    %203 = vmatprep.subr.mxu0 0.0
    %204 = vmatpush1.msra.mxu0 0.0
    %205 = vmatprep.subr.mxu0 0.0
    %206 = vmatpush1.msra.mxu0 0.0
    %207 = vmatprep.subr.mxu0 0.0
    %208 = vmatpush1.msra.mxu0 0.0
    %209 = vmatprep.subr.mxu0 0.0
    %210 = vmatpush1.msra.mxu0 0.0
    %211 = vmatprep.subr.mxu0 0.0
    %212 = vmatpush1.msra.mxu0 0.0
    %213 = vmatprep.subr.mxu0 0.0
    %214 = vmatpush1.msra.mxu0 0.0
    %215 = vmatprep.subr.mxu0 0.0
    %216 = vmatpush1.msra.mxu0 0.0
    %217 = vmatprep.subr.mxu0 0.0
    %218 = vmatpush1.msra.mxu0 0.0
    %219 = vmatprep.subr.mxu0 0.0
    %220 = vmatpush1.msra.mxu0 0.0
    %221 = vmatprep.subr.mxu0 0.0
    %222 = vmatpush1.msra.mxu0 %v192
    %223 = vmatprep.subr.mxu0 0.0
    %224 = vmatpush1.msra.mxu0 %v191
    %225 = vmatprep.subr.mxu0 0.0
    %226 = vmatpush1.msra.mxu0 %v190
    %227 = vmatprep.subr.mxu0 0.0
    %228 = vmatpush1.msra.mxu0 %v189
    %229 = vmatprep.subr.mxu0 0.0
    %230 = vmatpush2.msra.mxu0 0.0
    %231 = vmatprep.subr.mxu0 0.0
    %232 = vmatpush2.msra.mxu0 0.0
    %233 = vmatprep.subr.mxu0 0.0
    %234 = vmatpush2.msra.mxu0 0.0
    %235 = vmatprep.subr.mxu0 0.0
    %236 = vmatpush2.msra.mxu0 0.0
    %237 = vmatprep.subr.mxu0 0.0
    %238 = vmatpush2.msra.mxu0 0.0
    %239 = vmatprep.subr.mxu0 0.0
    %240 = vmatpush2.msra.mxu0 0.0
    %241 = vmatprep.subr.mxu0 0.0
    %242 = vmatpush2.msra.mxu0 0.0
    %243 = vmatprep.subr.mxu0 0.0
    %244 = vmatpush2.msra.mxu0 0.0
    %245 = vmatprep.subr.mxu0 0.0
    %246 = vmatpush2.msra.mxu0 0.0
    %247 = vmatprep.subr.mxu0 0.0
    %248 = vmatpush2.msra.mxu0 0.0
    %249 = vmatprep.subr.mxu0 0.0
    %250 = vmatpush2.msra.mxu0 0.0
    %251 = vmatprep.subr.mxu0 0.0
    %252 = vmatpush2.msra.mxu0 0.0
    %253 = vmatprep.subr.mxu0 0.0
    %254 = vmatpush2.msra.mxu0 0.0
    %255 = vmatprep.subr.mxu0 0.0
    %256 = vmatpush2.msra.mxu0 0.0
    %257 = vmatprep.subr.mxu0 0.0
    %258 = vmatpush2.msra.mxu0 0.0
    %259 = vmatprep.subr.mxu0 0.0
    %260 = vmatpush2.msra.mxu0 0.0
    %261 = vmatprep.mubr.f32.mxu0 0.0
    %262 = vmatmul.mubr.f32.gmra.mxu0 %v195
    %v263 = vpop.f32.mrf.mxu0
    %v264 = vadd.f32 0.0, %v263
    %v265 = vpop.f32.mrf.mxu0
    %266 = vdwg.mxu0
    %v268 = vsel %vm193, %v182, 0
    %270 = vmatprep.subr.mxu0 0.0
    %271 = vmatpush1.msra.mxu0 0.0
    %272 = vmatprep.subr.mxu0 0.0
    %273 = vmatpush1.msra.mxu0 0.0
    %274 = vmatprep.subr.mxu0 0.0
    %275 = vmatpush1.msra.mxu0 0.0
    %276 = vmatprep.subr.mxu0 0.0
    %277 = vmatpush1.msra.mxu0 0.0
    %278 = vmatprep.subr.mxu0 0.0
    %279 = vmatpush1.msra.mxu0 0.0
    %280 = vmatprep.subr.mxu0 0.0
    %281 = vmatpush1.msra.mxu0 0.0
    %282 = vmatprep.subr.mxu0 0.0
    %283 = vmatpush1.msra.mxu0 0.0
    %284 = vmatprep.subr.mxu0 0.0
    %285 = vmatpush1.msra.mxu0 0.0
    %286 = vmatprep.subr.mxu0 0.0
    %287 = vmatpush1.msra.mxu0 0.0
    %288 = vmatprep.subr.mxu0 0.0
    %289 = vmatpush1.msra.mxu0 0.0
    %290 = vmatprep.subr.mxu0 0.0
    %291 = vmatpush1.msra.mxu0 0.0
    %292 = vmatprep.subr.mxu0 0.0
    %293 = vmatpush1.msra.mxu0 0.0
    %294 = vmatprep.subr.mxu0 0.0
    %295 = vmatpush1.msra.mxu0 %v188
    %296 = vmatprep.subr.mxu0 0.0
    %297 = vmatpush1.msra.mxu0 %v187
    %298 = vmatprep.subr.mxu0 0.0
    %299 = vmatpush1.msra.mxu0 %v186
    %300 = vmatprep.subr.mxu0 0.0
    %301 = vmatpush1.msra.mxu0 %v185
    %302 = vmatprep.subr.mxu0 0.0
    %303 = vmatpush2.msra.mxu0 0.0
    %304 = vmatprep.subr.mxu0 0.0
    %305 = vmatpush2.msra.mxu0 0.0
    %306 = vmatprep.subr.mxu0 0.0
    %307 = vmatpush2.msra.mxu0 0.0
    %308 = vmatprep.subr.mxu0 0.0
    %309 = vmatpush2.msra.mxu0 0.0
    %310 = vmatprep.subr.mxu0 0.0
    %311 = vmatpush2.msra.mxu0 0.0
    %312 = vmatprep.subr.mxu0 0.0
    %313 = vmatpush2.msra.mxu0 0.0
    %314 = vmatprep.subr.mxu0 0.0
    %315 = vmatpush2.msra.mxu0 0.0
    %316 = vmatprep.subr.mxu0 0.0
    %317 = vmatpush2.msra.mxu0 0.0
    %318 = vmatprep.subr.mxu0 0.0
    %319 = vmatpush2.msra.mxu0 0.0
    %320 = vmatprep.subr.mxu0 0.0
    %321 = vmatpush2.msra.mxu0 0.0
    %322 = vmatprep.subr.mxu0 0.0
    %323 = vmatpush2.msra.mxu0 0.0
    %324 = vmatprep.subr.mxu0 0.0
    %325 = vmatpush2.msra.mxu0 0.0
    %326 = vmatprep.subr.mxu0 0.0
    %327 = vmatpush2.msra.mxu0 0.0
    %328 = vmatprep.subr.mxu0 0.0
    %329 = vmatpush2.msra.mxu0 0.0
    %330 = vmatprep.subr.mxu0 0.0
    %331 = vmatpush2.msra.mxu0 0.0
    %332 = vmatprep.subr.mxu0 0.0
    %333 = vmatpush2.msra.mxu0 0.0
    %334 = vmatprep.mubr.f32.mxu0 0.0
    %335 = vmatmul.mubr.f32.gmra.mxu0 %v268
    %v336 = vpop.f32.mrf.mxu0
    %v337 = vadd.f32 %v264, %v336
    %v338 = vpop.f32.mrf.mxu0
    %339 = vdwg.mxu0
    %v340 = vld [vmem:[%s7] sm:$0x1]
    %v342 = vlaneseq
    %v343 = vshrl.u32 %v342, 7
    %v344 = vsub.s32 0, %v343
    %v345 = vrot.slane %v340, %v344
    %v347 = vadd.f32 %v337, %v345
    %v348 = vxor.u32 %v347, 2147483648
    %v349 = vmul.f32 %v348, 1.442695
    %v350 = vpow.pop %v349
    %v351 = vadd.f32 %v350, 1.0
    %v352 = vrcp.pop %v351
    %v353 = vmul.f32 1.0, %v352
    %v354 = vtanh.pop %v347
    %355 = vrot.lane.b32.xlu0 %v104, 32
    %v356 = vpop.permute.xlu0 %355
    %v358 = vmul.f32 %v353, %v356
    %360 = vrot.lane.b32.xlu0 %v354, 64
    %v361 = vpop.permute.xlu0 %360
    %v363 = vmul.f32 %v353, %v361
    %365 = vrot.lane.b32.xlu0 %v363, 32
    %v366 = vpop.permute.xlu0 %365
    %v368 = vadd.f32 %v358, %v366
    %v369 = vtanh.pop %v368
    %371 = vrot.lane.b32.xlu0 %v369, 64
    %v372 = vpop.permute.xlu0 %371
    %v374 = vmul.f32 %v353, %v372
    %375 = vrot.lane.b32.xlu0 %v182, 96
    %v376 = vpop.permute.xlu0 %375
    %v378 = vadd.f32 %v374, %v376
    %v380 = vlaneseq
    %v381 = vshrl.u32 %v380, 7
    %v382 = vsub.s32 0, %v381
    %v383 = vrot.slane %v85, %v382
    %386 = vrot.lane.b32.xlu0 %v378, 32
    %v387 = vpop.permute.xlu0 %386
    %v388 = vsel %vm193, %v387, 0
    %390 = vmatprep.subr.mxu0 0.0
    %391 = vmatpush1.msra.mxu0 0.0
    %392 = vmatprep.subr.mxu0 0.0
    %393 = vmatpush1.msra.mxu0 0.0
    %394 = vmatprep.subr.mxu0 0.0
    %395 = vmatpush1.msra.mxu0 0.0
    %396 = vmatprep.subr.mxu0 0.0
    %397 = vmatpush1.msra.mxu0 0.0
    %398 = vmatprep.subr.mxu0 0.0
    %399 = vmatpush1.msra.mxu0 0.0
    %400 = vmatprep.subr.mxu0 0.0
    %401 = vmatpush1.msra.mxu0 0.0
    %402 = vmatprep.subr.mxu0 0.0
    %403 = vmatpush1.msra.mxu0 0.0
    %404 = vmatprep.subr.mxu0 0.0
    %405 = vmatpush1.msra.mxu0 0.0
    %406 = vmatprep.subr.mxu0 0.0
    %407 = vmatpush1.msra.mxu0 0.0
    %408 = vmatprep.subr.mxu0 0.0
    %409 = vmatpush1.msra.mxu0 0.0
    %410 = vmatprep.subr.mxu0 0.0
    %411 = vmatpush1.msra.mxu0 0.0
    %412 = vmatprep.subr.mxu0 0.0
    %413 = vmatpush1.msra.mxu0 0.0
    %414 = vmatprep.subr.mxu0 0.0
    %415 = vmatpush1.msra.mxu0 %v84
    %416 = vmatprep.subr.mxu0 0.0
    %417 = vmatpush1.msra.mxu0 %v83
    %418 = vmatprep.subr.mxu0 0.0
    %419 = vmatpush1.msra.mxu0 %v82
    %420 = vmatprep.subr.mxu0 0.0
    %421 = vmatpush1.msra.mxu0 %v81
    %422 = vmatprep.subr.mxu0 0.0
    %423 = vmatpush2.msra.mxu0 0.0
    %424 = vmatprep.subr.mxu0 0.0
    %425 = vmatpush2.msra.mxu0 0.0
    %426 = vmatprep.subr.mxu0 0.0
    %427 = vmatpush2.msra.mxu0 0.0
    %428 = vmatprep.subr.mxu0 0.0
    %429 = vmatpush2.msra.mxu0 0.0
    %430 = vmatprep.subr.mxu0 0.0
    %431 = vmatpush2.msra.mxu0 0.0
    %432 = vmatprep.subr.mxu0 0.0
    %433 = vmatpush2.msra.mxu0 0.0
    %434 = vmatprep.subr.mxu0 0.0
    %435 = vmatpush2.msra.mxu0 0.0
    %436 = vmatprep.subr.mxu0 0.0
    %437 = vmatpush2.msra.mxu0 0.0
    %438 = vmatprep.subr.mxu0 0.0
    %439 = vmatpush2.msra.mxu0 0.0
    %440 = vmatprep.subr.mxu0 0.0
    %441 = vmatpush2.msra.mxu0 0.0
    %442 = vmatprep.subr.mxu0 0.0
    %443 = vmatpush2.msra.mxu0 0.0
    %444 = vmatprep.subr.mxu0 0.0
    %445 = vmatpush2.msra.mxu0 0.0
    %446 = vmatprep.subr.mxu0 0.0
    %447 = vmatpush2.msra.mxu0 0.0
    %448 = vmatprep.subr.mxu0 0.0
    %449 = vmatpush2.msra.mxu0 0.0
    %450 = vmatprep.subr.mxu0 0.0
    %451 = vmatpush2.msra.mxu0 0.0
    %452 = vmatprep.subr.mxu0 0.0
    %453 = vmatpush2.msra.mxu0 0.0
    %454 = vmatprep.mubr.f32.mxu0 0.0
    %455 = vmatmul.mubr.f32.gmra.mxu0 %v388
    %v456 = vpop.f32.mrf.mxu0
    %v457 = vadd.f32 %v383, %v456
    %v458 = vpop.f32.mrf.mxu0
    %459 = vdwg.mxu0
    %v460 = vadd.f32 %v457, %v70
    %v461 = vadd.f32 %v457, %v71
    %v462 = vadd.f32 %v457, %v72
    %v463 = vadd.f32 %v457, %v73
    %v464 = vtanh.pop %v460
    %v465 = vtanh.pop %v461
    %v466 = vtanh.pop %v462
    %v467 = vtanh.pop %v463
    %v469 = vlaneseq
    %v470 = vshrl.u32 %v469, 7
    %v471 = vsub.s32 0, %v470
    %v472 = vrot.slane %v79, %v471
    %v474 = vmul.f32 %v464, %v472
    %v475 = vmul.f32 %v465, %v472
    %v476 = vmul.f32 %v466, %v472
    %v477 = vmul.f32 %v467, %v472
    %vm478 = vcmask 254976
    %v479 = vsel %vm478, %v474, 0.0
    %480 = vadd.xlane.f32.xlu0 %v479
    %v481 = vpop.xlane.xlu0 %480
    %v482 = vsel %vm478, %v475, 0.0
    %483 = vadd.xlane.f32.xlu0 %v482
    %v484 = vpop.xlane.xlu0 %483
    %v485 = vsel %vm478, %v476, 0.0
    %486 = vadd.xlane.f32.xlu0 %v485
    %v487 = vpop.xlane.xlu0 %486
    %v488 = vsel %vm478, %v477, 0.0
    %489 = vadd.xlane.f32.xlu0 %v488
    %v490 = vpop.xlane.xlu0 %489
    %v492 = vlaneseq
    %v493 = vshrl.u32 %v492, 7
    %v494 = vsub.s32 0, %v493
    %v495 = vrot.slane %v80, %v494
    %496 = vset.pattern.permute.xlu0 0
    %497 = vperm.xlu0 %496, %v495
    %v498 = vpop.permute.xlu0 %497
    %v500 = vadd.f32 %v481, %v498
    %v501 = vadd.f32 %v484, %v498
    %v502 = vadd.f32 %v487, %v498
    %v503 = vadd.f32 %v490, %v498
    %vm504 = vcmp.gt.f32.partialorder %v78, 0.5
    %v509 = vlaneseq
    %v510 = vshrl.u32 %v509, 7
    %v511 = vsub.s32 %v106, %v510
    %v512 = vrot.slane %v500, %v511
    %v513 = vlaneseq
    %v514 = vshrl.u32 %v513, 7
    %v515 = vsub.s32 %v106, %v514
    %v516 = vrot.slane %v501, %v515
    %v517 = vlaneseq
    %v518 = vshrl.u32 %v517, 7
    %v519 = vsub.s32 %v106, %v518
    %v520 = vrot.slane %v502, %v519
    %v521 = vlaneseq
    %v522 = vshrl.u32 %v521, 7
    %v523 = vsub.s32 %v106, %v522
    %v524 = vrot.slane %v503, %v523
    %vm525 = vcmask 1041409
    %v526 = vsel %vm525, %v516, %v512
    %vm527 = vcmask 1042434
    %v528 = vsel %vm527, %v520, %v526
    %vm529 = vcmask 1043459
    %v530 = vsel %vm529, %v524, %v528
    %v532 = vsel %vm504, %v530, -1000000.0
    %vm533 = vcmask 11264
    %v534 = vsel %vm533, %v532, -inf
    %v535 = vrot.slane %v534, 4
    %v536 = vmax.f32 %v534, %v535
    %v537 = vrot.slane %v536, 2
    %v538 = vmax.f32 %v536, %v537
    %v539 = vrot.slane %v538, 1
    %v540 = vmax.f32 %v538, %v539
    %v541 = vsub.f32 %v532, %v540
    %v542 = vmul.f32 %v541, 1.442695
    %v543 = vpow.pop %v542
    %v544 = vsel %vm533, %v543, 0.0
    %v545 = vrot.slane %v544, 4
    %v546 = vadd.f32 %v544, %v545
    %v547 = vrot.slane %v546, 2
    %v548 = vadd.f32 %v546, %v547
    %v549 = vrot.slane %v548, 1
    %v550 = vadd.f32 %v548, %v549
    %v551 = vrcp.pop %v550
    %v552 = vmul.f32 %v543, %v551
    %v553 = vlaneseq
    %v554 = vshrl.u32 %v553, 7
    %v555 = vsub.s32 0, %v554
    %v556 = vrot.slane %v552, %v555
    %558 = vbcast.lane.b32.xlu0 %v556, 256
    %v559 = vpop.permute.xlu0 %558
    %v560 = vlaneseq
    %v561 = vshrl.u32 %v560, 7
    %v562 = vsub.s32 1, %v561
    %v563 = vrot.slane %v552, %v562
    %565 = vbcast.lane.b32.xlu0 %v563, 256
    %v566 = vpop.permute.xlu0 %565
    %v567 = vlaneseq
    %v568 = vshrl.u32 %v567, 7
    %v569 = vsub.s32 2, %v568
    %v570 = vrot.slane %v552, %v569
    %572 = vbcast.lane.b32.xlu0 %v570, 256
    %v573 = vpop.permute.xlu0 %572
    %v574 = vlaneseq
    %v575 = vshrl.u32 %v574, 7
    %v576 = vsub.s32 3, %v575
    %v577 = vrot.slane %v552, %v576
    %579 = vbcast.lane.b32.xlu0 %v577, 256
    %v580 = vpop.permute.xlu0 %579
    %v581 = vmul.f32 %v559, %v74
    %v582 = vmul.f32 %v566, %v75
    %v583 = vmul.f32 %v573, %v76
    %v584 = vmul.f32 %v580, %v77
    %v585 = vsel %vm478, %v581, 0.0
    %v586 = vsel %vm478, %v582, 0.0
    %v587 = vadd.f32 %v585, %v586
    %v588 = vsel %vm478, %v583, 0.0
    %v589 = vadd.f32 %v587, %v588
    %v590 = vsel %vm478, %v584, 0.0
    %v591 = vadd.f32 %v589, %v590
    %v593 = vsel %vm193, %v591, 0
    %595 = vmatprep.subr.mxu0 0.0
    %596 = vmatpush1.msra.mxu0 0.0
    %597 = vmatprep.subr.mxu0 0.0
    %598 = vmatpush1.msra.mxu0 0.0
    %599 = vmatprep.subr.mxu0 0.0
    %600 = vmatpush1.msra.mxu0 0.0
    %601 = vmatprep.subr.mxu0 0.0
    %602 = vmatpush1.msra.mxu0 0.0
    %603 = vmatprep.subr.mxu0 0.0
    %604 = vmatpush1.msra.mxu0 0.0
    %605 = vmatprep.subr.mxu0 0.0
    %606 = vmatpush1.msra.mxu0 0.0
    %607 = vmatprep.subr.mxu0 0.0
    %608 = vmatpush1.msra.mxu0 0.0
    %609 = vmatprep.subr.mxu0 0.0
    %610 = vmatpush1.msra.mxu0 0.0
    %611 = vmatprep.subr.mxu0 0.0
    %612 = vmatpush1.msra.mxu0 0.0
    %613 = vmatprep.subr.mxu0 0.0
    %614 = vmatpush1.msra.mxu0 0.0
    %615 = vmatprep.subr.mxu0 0.0
    %616 = vmatpush1.msra.mxu0 0.0
    %617 = vmatprep.subr.mxu0 0.0
    %618 = vmatpush1.msra.mxu0 0.0
    %619 = vmatprep.subr.mxu0 0.0
    %620 = vmatpush1.msra.mxu0 %v93
    %621 = vmatprep.subr.mxu0 0.0
    %622 = vmatpush1.msra.mxu0 %v92
    %623 = vmatprep.subr.mxu0 0.0
    %624 = vmatpush1.msra.mxu0 %v91
    %625 = vmatprep.subr.mxu0 0.0
    %626 = vmatpush1.msra.mxu0 %v90
    %627 = vmatprep.subr.mxu0 0.0
    %628 = vmatpush2.msra.mxu0 0.0
    %629 = vmatprep.subr.mxu0 0.0
    %630 = vmatpush2.msra.mxu0 0.0
    %631 = vmatprep.subr.mxu0 0.0
    %632 = vmatpush2.msra.mxu0 0.0
    %633 = vmatprep.subr.mxu0 0.0
    %634 = vmatpush2.msra.mxu0 0.0
    %635 = vmatprep.subr.mxu0 0.0
    %636 = vmatpush2.msra.mxu0 0.0
    %637 = vmatprep.subr.mxu0 0.0
    %638 = vmatpush2.msra.mxu0 0.0
    %639 = vmatprep.subr.mxu0 0.0
    %640 = vmatpush2.msra.mxu0 0.0
    %641 = vmatprep.subr.mxu0 0.0
    %642 = vmatpush2.msra.mxu0 0.0
    %643 = vmatprep.subr.mxu0 0.0
    %644 = vmatpush2.msra.mxu0 0.0
    %645 = vmatprep.subr.mxu0 0.0
    %646 = vmatpush2.msra.mxu0 0.0
    %647 = vmatprep.subr.mxu0 0.0
    %648 = vmatpush2.msra.mxu0 0.0
    %649 = vmatprep.subr.mxu0 0.0
    %650 = vmatpush2.msra.mxu0 0.0
    %651 = vmatprep.subr.mxu0 0.0
    %652 = vmatpush2.msra.mxu0 0.0
    %653 = vmatprep.subr.mxu0 0.0
    %654 = vmatpush2.msra.mxu0 0.0
    %655 = vmatprep.subr.mxu0 0.0
    %656 = vmatpush2.msra.mxu0 0.0
    %657 = vmatprep.subr.mxu0 0.0
    %658 = vmatpush2.msra.mxu0 0.0
    %659 = vmatprep.mubr.f32.mxu0 0.0
    %660 = vmatmul.mubr.f32.gmra.mxu0 %v593
    %v661 = vpop.f32.mrf.mxu0
    %v662 = vadd.f32 0.0, %v661
    %v663 = vpop.f32.mrf.mxu0
    %664 = vdwg.mxu0
    %665 = vmatprep.subr.mxu0 0.0
    %666 = vmatpush1.msra.mxu0 0.0
    %667 = vmatprep.subr.mxu0 0.0
    %668 = vmatpush1.msra.mxu0 0.0
    %669 = vmatprep.subr.mxu0 0.0
    %670 = vmatpush1.msra.mxu0 0.0
    %671 = vmatprep.subr.mxu0 0.0
    %672 = vmatpush1.msra.mxu0 0.0
    %673 = vmatprep.subr.mxu0 0.0
    %674 = vmatpush1.msra.mxu0 0.0
    %675 = vmatprep.subr.mxu0 0.0
    %676 = vmatpush1.msra.mxu0 0.0
    %677 = vmatprep.subr.mxu0 0.0
    %678 = vmatpush1.msra.mxu0 0.0
    %679 = vmatprep.subr.mxu0 0.0
    %680 = vmatpush1.msra.mxu0 0.0
    %681 = vmatprep.subr.mxu0 0.0
    %682 = vmatpush1.msra.mxu0 0.0
    %683 = vmatprep.subr.mxu0 0.0
    %684 = vmatpush1.msra.mxu0 0.0
    %685 = vmatprep.subr.mxu0 0.0
    %686 = vmatpush1.msra.mxu0 0.0
    %687 = vmatprep.subr.mxu0 0.0
    %688 = vmatpush1.msra.mxu0 0.0
    %689 = vmatprep.subr.mxu0 0.0
    %690 = vmatpush1.msra.mxu0 %v89
    %691 = vmatprep.subr.mxu0 0.0
    %692 = vmatpush1.msra.mxu0 %v88
    %693 = vmatprep.subr.mxu0 0.0
    %694 = vmatpush1.msra.mxu0 %v87
    %695 = vmatprep.subr.mxu0 0.0
    %696 = vmatpush1.msra.mxu0 %v86
    %697 = vmatprep.subr.mxu0 0.0
    %698 = vmatpush2.msra.mxu0 0.0
    %699 = vmatprep.subr.mxu0 0.0
    %700 = vmatpush2.msra.mxu0 0.0
    %701 = vmatprep.subr.mxu0 0.0
    %702 = vmatpush2.msra.mxu0 0.0
    %703 = vmatprep.subr.mxu0 0.0
    %704 = vmatpush2.msra.mxu0 0.0
    %705 = vmatprep.subr.mxu0 0.0
    %706 = vmatpush2.msra.mxu0 0.0
    %707 = vmatprep.subr.mxu0 0.0
    %708 = vmatpush2.msra.mxu0 0.0
    %709 = vmatprep.subr.mxu0 0.0
    %710 = vmatpush2.msra.mxu0 0.0
    %711 = vmatprep.subr.mxu0 0.0
    %712 = vmatpush2.msra.mxu0 0.0
    %713 = vmatprep.subr.mxu0 0.0
    %714 = vmatpush2.msra.mxu0 0.0
    %715 = vmatprep.subr.mxu0 0.0
    %716 = vmatpush2.msra.mxu0 0.0
    %717 = vmatprep.subr.mxu0 0.0
    %718 = vmatpush2.msra.mxu0 0.0
    %719 = vmatprep.subr.mxu0 0.0
    %720 = vmatpush2.msra.mxu0 0.0
    %721 = vmatprep.subr.mxu0 0.0
    %722 = vmatpush2.msra.mxu0 0.0
    %723 = vmatprep.subr.mxu0 0.0
    %724 = vmatpush2.msra.mxu0 0.0
    %725 = vmatprep.subr.mxu0 0.0
    %726 = vmatpush2.msra.mxu0 0.0
    %727 = vmatprep.subr.mxu0 0.0
    %728 = vmatpush2.msra.mxu0 0.0
    %729 = vmatprep.mubr.f32.mxu0 0.0
    %730 = vmatmul.mubr.f32.gmra.mxu0 %v388
    %v731 = vpop.f32.mrf.mxu0
    %v732 = vadd.f32 %v662, %v731
    %v733 = vpop.f32.mrf.mxu0
    %734 = vdwg.mxu0
    %735 = vmatprep.subr.mxu0 0.0
    %736 = vmatpush1.msra.mxu0 0.0
    %737 = vmatprep.subr.mxu0 0.0
    %738 = vmatpush1.msra.mxu0 0.0
    %739 = vmatprep.subr.mxu0 0.0
    %740 = vmatpush1.msra.mxu0 0.0
    %741 = vmatprep.subr.mxu0 0.0
    %742 = vmatpush1.msra.mxu0 0.0
    %743 = vmatprep.subr.mxu0 0.0
    %744 = vmatpush1.msra.mxu0 0.0
    %745 = vmatprep.subr.mxu0 0.0
    %746 = vmatpush1.msra.mxu0 0.0
    %747 = vmatprep.subr.mxu0 0.0
    %748 = vmatpush1.msra.mxu0 0.0
    %749 = vmatprep.subr.mxu0 0.0
    %750 = vmatpush1.msra.mxu0 0.0
    %751 = vmatprep.subr.mxu0 0.0
    %752 = vmatpush1.msra.mxu0 0.0
    %753 = vmatprep.subr.mxu0 0.0
    %754 = vmatpush1.msra.mxu0 0.0
    %755 = vmatprep.subr.mxu0 0.0
    %756 = vmatpush1.msra.mxu0 0.0
    %757 = vmatprep.subr.mxu0 0.0
    %758 = vmatpush1.msra.mxu0 0.0
    %759 = vmatprep.subr.mxu0 0.0
    %760 = vmatpush1.msra.mxu0 %v97
    %761 = vmatprep.subr.mxu0 0.0
    %762 = vmatpush1.msra.mxu0 %v96
    %763 = vmatprep.subr.mxu0 0.0
    %764 = vmatpush1.msra.mxu0 %v95
    %765 = vmatprep.subr.mxu0 0.0
    %766 = vmatpush1.msra.mxu0 %v94
    %767 = vmatprep.subr.mxu0 0.0
    %768 = vmatpush2.msra.mxu0 0.0
    %769 = vmatprep.subr.mxu0 0.0
    %770 = vmatpush2.msra.mxu0 0.0
    %771 = vmatprep.subr.mxu0 0.0
    %772 = vmatpush2.msra.mxu0 0.0
    %773 = vmatprep.subr.mxu0 0.0
    %774 = vmatpush2.msra.mxu0 0.0
    %775 = vmatprep.subr.mxu0 0.0
    %776 = vmatpush2.msra.mxu0 0.0
    %777 = vmatprep.subr.mxu0 0.0
    %778 = vmatpush2.msra.mxu0 0.0
    %779 = vmatprep.subr.mxu0 0.0
    %780 = vmatpush2.msra.mxu0 0.0
    %781 = vmatprep.subr.mxu0 0.0
    %782 = vmatpush2.msra.mxu0 0.0
    %783 = vmatprep.subr.mxu0 0.0
    %784 = vmatpush2.msra.mxu0 0.0
    %785 = vmatprep.subr.mxu0 0.0
    %786 = vmatpush2.msra.mxu0 0.0
    %787 = vmatprep.subr.mxu0 0.0
    %788 = vmatpush2.msra.mxu0 0.0
    %789 = vmatprep.subr.mxu0 0.0
    %790 = vmatpush2.msra.mxu0 0.0
    %791 = vmatprep.subr.mxu0 0.0
    %792 = vmatpush2.msra.mxu0 0.0
    %793 = vmatprep.subr.mxu0 0.0
    %794 = vmatpush2.msra.mxu0 0.0
    %795 = vmatprep.subr.mxu0 0.0
    %796 = vmatpush2.msra.mxu0 0.0
    %797 = vmatprep.subr.mxu0 0.0
    %798 = vmatpush2.msra.mxu0 0.0
    %799 = vmatprep.mubr.f32.mxu0 0.0
    %800 = vmatmul.mubr.f32.gmra.mxu0 %v195
    %v801 = vpop.f32.mrf.mxu0
    %v802 = vadd.f32 0.0, %v801
    %v803 = vpop.f32.mrf.mxu0
    %804 = vdwg.mxu0
    %v805 = vadd.f32 %v732, %v802
    %v807 = vlaneseq
    %v808 = vshrl.u32 %v807, 7
    %v809 = vsub.s32 0, %v808
    %v810 = vrot.slane %v98, %v809
    %v812 = vadd.f32 %v805, %v810
    %v813 = vxor.u32 %v812, 2147483648
    %v814 = vmul.f32 %v813, 1.442695
    %v815 = vpow.pop %v814
    %v816 = vadd.f32 %v815, 1.0
    %v817 = vrcp.pop %v816
    %v818 = vmul.f32 1.0, %v817
    %v819 = vtanh.pop %v812
    %v820 = vmul.f32 %v818, %v356
    %822 = vrot.lane.b32.xlu0 %v819, 64
    %v823 = vpop.permute.xlu0 %822
    %v825 = vmul.f32 %v818, %v823
    %827 = vrot.lane.b32.xlu0 %v825, 32
    %v828 = vpop.permute.xlu0 %827
    %v830 = vadd.f32 %v820, %v828
    %v831 = vtanh.pop %v830
    %833 = vrot.lane.b32.xlu0 %v831, 64
    %v834 = vpop.permute.xlu0 %833
    %v836 = vmul.f32 %v818, %v834
    %v838 = vlaneseq
    %v839 = vshrl.u32 %v838, 7
    %v840 = vsub.s32 0, %v839
    %v841 = vrot.slane %v103, %v840
    %844 = vrot.lane.b32.xlu0 %v836, 32
    %v845 = vpop.permute.xlu0 %844
    %v846 = vsel %vm193, %v845, 0
    %848 = vmatprep.subr.mxu0 0.0
    %849 = vmatpush1.msra.mxu0 0.0
    %850 = vmatprep.subr.mxu0 0.0
    %851 = vmatpush1.msra.mxu0 0.0
    %852 = vmatprep.subr.mxu0 0.0
    %853 = vmatpush1.msra.mxu0 0.0
    %854 = vmatprep.subr.mxu0 0.0
    %855 = vmatpush1.msra.mxu0 0.0
    %856 = vmatprep.subr.mxu0 0.0
    %857 = vmatpush1.msra.mxu0 0.0
    %858 = vmatprep.subr.mxu0 0.0
    %859 = vmatpush1.msra.mxu0 0.0
    %860 = vmatprep.subr.mxu0 0.0
    %861 = vmatpush1.msra.mxu0 0.0
    %862 = vmatprep.subr.mxu0 0.0
    %863 = vmatpush1.msra.mxu0 0.0
    %864 = vmatprep.subr.mxu0 0.0
    %865 = vmatpush1.msra.mxu0 0.0
    %866 = vmatprep.subr.mxu0 0.0
    %867 = vmatpush1.msra.mxu0 0.0
    %868 = vmatprep.subr.mxu0 0.0
    %869 = vmatpush1.msra.mxu0 0.0
    %870 = vmatprep.subr.mxu0 0.0
    %871 = vmatpush1.msra.mxu0 0.0
    %872 = vmatprep.subr.mxu0 0.0
    %873 = vmatpush1.msra.mxu0 %v102
    %874 = vmatprep.subr.mxu0 0.0
    %875 = vmatpush1.msra.mxu0 %v101
    %876 = vmatprep.subr.mxu0 0.0
    %877 = vmatpush1.msra.mxu0 %v100
    %878 = vmatprep.subr.mxu0 0.0
    %879 = vmatpush1.msra.mxu0 %v99
    %880 = vmatprep.subr.mxu0 0.0
    %881 = vmatpush2.msra.mxu0 0.0
    %882 = vmatprep.subr.mxu0 0.0
    %883 = vmatpush2.msra.mxu0 0.0
    %884 = vmatprep.subr.mxu0 0.0
    %885 = vmatpush2.msra.mxu0 0.0
    %886 = vmatprep.subr.mxu0 0.0
    %887 = vmatpush2.msra.mxu0 0.0
    %888 = vmatprep.subr.mxu0 0.0
    %889 = vmatpush2.msra.mxu0 0.0
    %890 = vmatprep.subr.mxu0 0.0
    %891 = vmatpush2.msra.mxu0 0.0
    %892 = vmatprep.subr.mxu0 0.0
    %893 = vmatpush2.msra.mxu0 0.0
    %894 = vmatprep.subr.mxu0 0.0
    %895 = vmatpush2.msra.mxu0 0.0
    %896 = vmatprep.subr.mxu0 0.0
    %897 = vmatpush2.msra.mxu0 0.0
    %898 = vmatprep.subr.mxu0 0.0
    %899 = vmatpush2.msra.mxu0 0.0
    %900 = vmatprep.subr.mxu0 0.0
    %901 = vmatpush2.msra.mxu0 0.0
    %902 = vmatprep.subr.mxu0 0.0
    %903 = vmatpush2.msra.mxu0 0.0
    %904 = vmatprep.subr.mxu0 0.0
    %905 = vmatpush2.msra.mxu0 0.0
    %906 = vmatprep.subr.mxu0 0.0
    %907 = vmatpush2.msra.mxu0 0.0
    %908 = vmatprep.subr.mxu0 0.0
    %909 = vmatpush2.msra.mxu0 0.0
    %910 = vmatprep.subr.mxu0 0.0
    %911 = vmatpush2.msra.mxu0 0.0
    %912 = vmatprep.mubr.f32.mxu0 0.0
    %913 = vmatmul.mubr.f32.gmra.mxu0 %v846
    %v914 = vpop.f32.mrf.mxu0
    %v915 = vadd.f32 %v841, %v914
    %v916 = vpop.f32.mrf.mxu0
    %917 = vdwg.mxu0
    %vm918 = vcmask 517120
    %v919 = vsel %vm918, %v915, -inf
    %920 = vmax.xlane.f32.xlu0 %v919
    %v921 = vpop.xlane.xlu0 %920
    %vm922 = vcmp.ge.f32.partialorder %v915, %v921
    %v923 = vsel %vm922, %v107, 64.0
    %v924 = vsel %vm918, %v923, inf
    %925 = vmin.xlane.f32.xlu0 %v924
    %v926 = vpop.xlane.xlu0 %925
    %v927 = vcvt.f32.s32.to.zero.pseudo %v926
    %vm928 = vcmask 1024
    %929 = vst.msk [vmem:[#allocation3] sm:$0x3] %vm928, %v927
    %vm930 = vcmp.eq.s32.totalorder %v927, %v106
    %v931 = vsel %vm930, 1, 0
    %v932 = vcvt.s32.f32 %v931
    %v934 = vsel %vm111, %v932, 0
    %936 = vmatprep.subr.mxu0 0.0
    %937 = vmatpush1.msra.mxu0 0.0
    %938 = vmatprep.subr.mxu0 0.0
    %939 = vmatpush1.msra.mxu0 0.0
    %940 = vmatprep.subr.mxu0 0.0
    %941 = vmatpush1.msra.mxu0 0.0
    %942 = vmatprep.subr.mxu0 0.0
    %943 = vmatpush1.msra.mxu0 0.0
    %944 = vmatprep.subr.mxu0 0.0
    %945 = vmatpush1.msra.mxu0 0.0
    %946 = vmatprep.subr.mxu0 0.0
    %947 = vmatpush1.msra.mxu0 0.0
    %948 = vmatprep.subr.mxu0 0.0
    %949 = vmatpush1.msra.mxu0 0.0
    %950 = vmatprep.subr.mxu0 0.0
    %951 = vmatpush1.msra.mxu0 0.0
    %952 = vmatprep.subr.mxu0 0.0
    %953 = vmatpush1.msra.mxu0 %v69
    %954 = vmatprep.subr.mxu0 0.0
    %955 = vmatpush1.msra.mxu0 %v68
    %956 = vmatprep.subr.mxu0 0.0
    %957 = vmatpush1.msra.mxu0 %v67
    %958 = vmatprep.subr.mxu0 0.0
    %959 = vmatpush1.msra.mxu0 %v66
    %960 = vmatprep.subr.mxu0 0.0
    %961 = vmatpush1.msra.mxu0 %v65
    %962 = vmatprep.subr.mxu0 0.0
    %963 = vmatpush1.msra.mxu0 %v64
    %964 = vmatprep.subr.mxu0 0.0
    %965 = vmatpush1.msra.mxu0 %v63
    %966 = vmatprep.subr.mxu0 0.0
    %967 = vmatpush1.msra.mxu0 %v62
    %968 = vmatprep.subr.mxu0 0.0
    %969 = vmatpush2.msra.mxu0 0.0
    %970 = vmatprep.subr.mxu0 0.0
    %971 = vmatpush2.msra.mxu0 0.0
    %972 = vmatprep.subr.mxu0 0.0
    %973 = vmatpush2.msra.mxu0 0.0
    %974 = vmatprep.subr.mxu0 0.0
    %975 = vmatpush2.msra.mxu0 0.0
    %976 = vmatprep.subr.mxu0 0.0
    %977 = vmatpush2.msra.mxu0 0.0
    %978 = vmatprep.subr.mxu0 0.0
    %979 = vmatpush2.msra.mxu0 0.0
    %980 = vmatprep.subr.mxu0 0.0
    %981 = vmatpush2.msra.mxu0 0.0
    %982 = vmatprep.subr.mxu0 0.0
    %983 = vmatpush2.msra.mxu0 0.0
    %984 = vmatprep.subr.mxu0 0.0
    %985 = vmatpush2.msra.mxu0 0.0
    %986 = vmatprep.subr.mxu0 0.0
    %987 = vmatpush2.msra.mxu0 0.0
    %988 = vmatprep.subr.mxu0 0.0
    %989 = vmatpush2.msra.mxu0 0.0
    %990 = vmatprep.subr.mxu0 0.0
    %991 = vmatpush2.msra.mxu0 0.0
    %992 = vmatprep.subr.mxu0 0.0
    %993 = vmatpush2.msra.mxu0 0.0
    %994 = vmatprep.subr.mxu0 0.0
    %995 = vmatpush2.msra.mxu0 0.0
    %996 = vmatprep.subr.mxu0 0.0
    %997 = vmatpush2.msra.mxu0 0.0
    %998 = vmatprep.subr.mxu0 0.0
    %999 = vmatpush2.msra.mxu0 0.0
    %1000 = vmatprep.mubr.f32.mxu0 0.0
    %1001 = vmatmul.mubr.f32.gmra.mxu0 %v934
    %v1002 = vpop.f32.mrf.mxu0
    %v1003 = vadd.f32 0.0, %v1002
    %v1004 = vpop.f32.mrf.mxu0
    %1005 = vdwg.mxu0
    %v1006 = vld [vmem:[%s5] sm:$0xff]
    %v1007 = vld [vmem:[%s5 + $0x8] sm:$0xff]
    %v1008 = vld [vmem:[%s5 + $0x10] sm:$0xff]
    %v1009 = vld [vmem:[%s5 + $0x18] sm:$0xff]
    %v1010 = vld [vmem:[%s6] sm:$0xff]
    %v1011 = vld [vmem:[%s6 + $0x8] sm:$0xff]
    %v1012 = vld [vmem:[%s6 + $0x10] sm:$0xff]
    %v1013 = vld [vmem:[%s6 + $0x18] sm:$0xff]
    %1015 = vrot.lane.b32.xlu0 %v374, 32
    %v1016 = vpop.permute.xlu0 %1015
    %v1017 = vsel %vm193, %v1016, 0
    %1019 = vmatprep.subr.mxu0 0.0
    %1020 = vmatpush1.msra.mxu0 0.0
    %1021 = vmatprep.subr.mxu0 0.0
    %1022 = vmatpush1.msra.mxu0 0.0
    %1023 = vmatprep.subr.mxu0 0.0
    %1024 = vmatpush1.msra.mxu0 0.0
    %1025 = vmatprep.subr.mxu0 0.0
    %1026 = vmatpush1.msra.mxu0 0.0
    %1027 = vmatprep.subr.mxu0 0.0
    %1028 = vmatpush1.msra.mxu0 0.0
    %1029 = vmatprep.subr.mxu0 0.0
    %1030 = vmatpush1.msra.mxu0 0.0
    %1031 = vmatprep.subr.mxu0 0.0
    %1032 = vmatpush1.msra.mxu0 0.0
    %1033 = vmatprep.subr.mxu0 0.0
    %1034 = vmatpush1.msra.mxu0 0.0
    %1035 = vmatprep.subr.mxu0 0.0
    %1036 = vmatpush1.msra.mxu0 0.0
    %1037 = vmatprep.subr.mxu0 0.0
    %1038 = vmatpush1.msra.mxu0 0.0
    %1039 = vmatprep.subr.mxu0 0.0
    %1040 = vmatpush1.msra.mxu0 0.0
    %1041 = vmatprep.subr.mxu0 0.0
    %1042 = vmatpush1.msra.mxu0 0.0
    %1043 = vmatprep.subr.mxu0 0.0
    %1044 = vmatpush1.msra.mxu0 %v1013
    %1045 = vmatprep.subr.mxu0 0.0
    %1046 = vmatpush1.msra.mxu0 %v1012
    %1047 = vmatprep.subr.mxu0 0.0
    %1048 = vmatpush1.msra.mxu0 %v1011
    %1049 = vmatprep.subr.mxu0 0.0
    %1050 = vmatpush1.msra.mxu0 %v1010
    %1051 = vmatprep.subr.mxu0 0.0
    %1052 = vmatpush2.msra.mxu0 0.0
    %1053 = vmatprep.subr.mxu0 0.0
    %1054 = vmatpush2.msra.mxu0 0.0
    %1055 = vmatprep.subr.mxu0 0.0
    %1056 = vmatpush2.msra.mxu0 0.0
    %1057 = vmatprep.subr.mxu0 0.0
    %1058 = vmatpush2.msra.mxu0 0.0
    %1059 = vmatprep.subr.mxu0 0.0
    %1060 = vmatpush2.msra.mxu0 0.0
    %1061 = vmatprep.subr.mxu0 0.0
    %1062 = vmatpush2.msra.mxu0 0.0
    %1063 = vmatprep.subr.mxu0 0.0
    %1064 = vmatpush2.msra.mxu0 0.0
    %1065 = vmatprep.subr.mxu0 0.0
    %1066 = vmatpush2.msra.mxu0 0.0
    %1067 = vmatprep.subr.mxu0 0.0
    %1068 = vmatpush2.msra.mxu0 0.0
    %1069 = vmatprep.subr.mxu0 0.0
    %1070 = vmatpush2.msra.mxu0 0.0
    %1071 = vmatprep.subr.mxu0 0.0
    %1072 = vmatpush2.msra.mxu0 0.0
    %1073 = vmatprep.subr.mxu0 0.0
    %1074 = vmatpush2.msra.mxu0 0.0
    %1075 = vmatprep.subr.mxu0 0.0
    %1076 = vmatpush2.msra.mxu0 0.0
    %1077 = vmatprep.subr.mxu0 0.0
    %1078 = vmatpush2.msra.mxu0 0.0
    %1079 = vmatprep.subr.mxu0 0.0
    %1080 = vmatpush2.msra.mxu0 0.0
    %1081 = vmatprep.subr.mxu0 0.0
    %1082 = vmatpush2.msra.mxu0 0.0
    %1083 = vmatprep.mubr.f32.mxu0 0.0
    %1084 = vmatmul.mubr.f32.gmra.mxu0 %v1017
    %v1085 = vpop.f32.mrf.mxu0
    %v1086 = vadd.f32 0.0, %v1085
    %v1087 = vpop.f32.mrf.mxu0
    %1088 = vdwg.mxu0
    %v1090 = vsel %vm193, %v1003, 0
    %1092 = vmatprep.subr.mxu0 0.0
    %1093 = vmatpush1.msra.mxu0 0.0
    %1094 = vmatprep.subr.mxu0 0.0
    %1095 = vmatpush1.msra.mxu0 0.0
    %1096 = vmatprep.subr.mxu0 0.0
    %1097 = vmatpush1.msra.mxu0 0.0
    %1098 = vmatprep.subr.mxu0 0.0
    %1099 = vmatpush1.msra.mxu0 0.0
    %1100 = vmatprep.subr.mxu0 0.0
    %1101 = vmatpush1.msra.mxu0 0.0
    %1102 = vmatprep.subr.mxu0 0.0
    %1103 = vmatpush1.msra.mxu0 0.0
    %1104 = vmatprep.subr.mxu0 0.0
    %1105 = vmatpush1.msra.mxu0 0.0
    %1106 = vmatprep.subr.mxu0 0.0
    %1107 = vmatpush1.msra.mxu0 0.0
    %1108 = vmatprep.subr.mxu0 0.0
    %1109 = vmatpush1.msra.mxu0 0.0
    %1110 = vmatprep.subr.mxu0 0.0
    %1111 = vmatpush1.msra.mxu0 0.0
    %1112 = vmatprep.subr.mxu0 0.0
    %1113 = vmatpush1.msra.mxu0 0.0
    %1114 = vmatprep.subr.mxu0 0.0
    %1115 = vmatpush1.msra.mxu0 0.0
    %1116 = vmatprep.subr.mxu0 0.0
    %1117 = vmatpush1.msra.mxu0 %v1009
    %1118 = vmatprep.subr.mxu0 0.0
    %1119 = vmatpush1.msra.mxu0 %v1008
    %1120 = vmatprep.subr.mxu0 0.0
    %1121 = vmatpush1.msra.mxu0 %v1007
    %1122 = vmatprep.subr.mxu0 0.0
    %1123 = vmatpush1.msra.mxu0 %v1006
    %1124 = vmatprep.subr.mxu0 0.0
    %1125 = vmatpush2.msra.mxu0 0.0
    %1126 = vmatprep.subr.mxu0 0.0
    %1127 = vmatpush2.msra.mxu0 0.0
    %1128 = vmatprep.subr.mxu0 0.0
    %1129 = vmatpush2.msra.mxu0 0.0
    %1130 = vmatprep.subr.mxu0 0.0
    %1131 = vmatpush2.msra.mxu0 0.0
    %1132 = vmatprep.subr.mxu0 0.0
    %1133 = vmatpush2.msra.mxu0 0.0
    %1134 = vmatprep.subr.mxu0 0.0
    %1135 = vmatpush2.msra.mxu0 0.0
    %1136 = vmatprep.subr.mxu0 0.0
    %1137 = vmatpush2.msra.mxu0 0.0
    %1138 = vmatprep.subr.mxu0 0.0
    %1139 = vmatpush2.msra.mxu0 0.0
    %1140 = vmatprep.subr.mxu0 0.0
    %1141 = vmatpush2.msra.mxu0 0.0
    %1142 = vmatprep.subr.mxu0 0.0
    %1143 = vmatpush2.msra.mxu0 0.0
    %1144 = vmatprep.subr.mxu0 0.0
    %1145 = vmatpush2.msra.mxu0 0.0
    %1146 = vmatprep.subr.mxu0 0.0
    %1147 = vmatpush2.msra.mxu0 0.0
    %1148 = vmatprep.subr.mxu0 0.0
    %1149 = vmatpush2.msra.mxu0 0.0
    %1150 = vmatprep.subr.mxu0 0.0
    %1151 = vmatpush2.msra.mxu0 0.0
    %1152 = vmatprep.subr.mxu0 0.0
    %1153 = vmatpush2.msra.mxu0 0.0
    %1154 = vmatprep.subr.mxu0 0.0
    %1155 = vmatpush2.msra.mxu0 0.0
    %1156 = vmatprep.mubr.f32.mxu0 0.0
    %1157 = vmatmul.mubr.f32.gmra.mxu0 %v1090
    %v1158 = vpop.f32.mrf.mxu0
    %v1159 = vadd.f32 %v1086, %v1158
    %v1160 = vpop.f32.mrf.mxu0
    %1161 = vdwg.mxu0
    %v1162 = vld [vmem:[%s7] sm:$0x1]
    %v1164 = vlaneseq
    %v1165 = vshrl.u32 %v1164, 7
    %v1166 = vsub.s32 0, %v1165
    %v1167 = vrot.slane %v1162, %v1166
    %v1169 = vadd.f32 %v1159, %v1167
    %v1170 = vxor.u32 %v1169, 2147483648
    %v1171 = vmul.f32 %v1170, 1.442695
    %v1172 = vpow.pop %v1171
    %v1173 = vadd.f32 %v1172, 1.0
    %v1174 = vrcp.pop %v1173
    %v1175 = vmul.f32 1.0, %v1174
    %v1176 = vtanh.pop %v1169
    %v1177 = vmul.f32 %v1175, %v368
    %1179 = vrot.lane.b32.xlu0 %v1176, 64
    %v1180 = vpop.permute.xlu0 %1179
    %v1182 = vmul.f32 %v1175, %v1180
    %1184 = vrot.lane.b32.xlu0 %v1182, 32
    %v1185 = vpop.permute.xlu0 %1184
    %v1187 = vadd.f32 %v1177, %v1185
    %v1188 = vtanh.pop %v1187
    %1190 = vrot.lane.b32.xlu0 %v1188, 64
    %v1191 = vpop.permute.xlu0 %1190
    %v1193 = vmul.f32 %v1175, %v1191
    %1194 = vrot.lane.b32.xlu0 %v1003, 96
    %v1195 = vpop.permute.xlu0 %1194
    %v1197 = vadd.f32 %v1193, %v1195
    %1199 = vrot.lane.b32.xlu0 %v1197, 32
    %v1200 = vpop.permute.xlu0 %1199
    %v1201 = vsel %vm193, %v1200, 0
    %1203 = vmatprep.subr.mxu0 0.0
    %1204 = vmatpush1.msra.mxu0 0.0
    %1205 = vmatprep.subr.mxu0 0.0
    %1206 = vmatpush1.msra.mxu0 0.0
    %1207 = vmatprep.subr.mxu0 0.0
    %1208 = vmatpush1.msra.mxu0 0.0
    %1209 = vmatprep.subr.mxu0 0.0
    %1210 = vmatpush1.msra.mxu0 0.0
    %1211 = vmatprep.subr.mxu0 0.0
    %1212 = vmatpush1.msra.mxu0 0.0
    %1213 = vmatprep.subr.mxu0 0.0
    %1214 = vmatpush1.msra.mxu0 0.0
    %1215 = vmatprep.subr.mxu0 0.0
    %1216 = vmatpush1.msra.mxu0 0.0
    %1217 = vmatprep.subr.mxu0 0.0
    %1218 = vmatpush1.msra.mxu0 0.0
    %1219 = vmatprep.subr.mxu0 0.0
    %1220 = vmatpush1.msra.mxu0 0.0
    %1221 = vmatprep.subr.mxu0 0.0
    %1222 = vmatpush1.msra.mxu0 0.0
    %1223 = vmatprep.subr.mxu0 0.0
    %1224 = vmatpush1.msra.mxu0 0.0
    %1225 = vmatprep.subr.mxu0 0.0
    %1226 = vmatpush1.msra.mxu0 0.0
    %1227 = vmatprep.subr.mxu0 0.0
    %1228 = vmatpush1.msra.mxu0 %v84
    %1229 = vmatprep.subr.mxu0 0.0
    %1230 = vmatpush1.msra.mxu0 %v83
    %1231 = vmatprep.subr.mxu0 0.0
    %1232 = vmatpush1.msra.mxu0 %v82
    %1233 = vmatprep.subr.mxu0 0.0
    %1234 = vmatpush1.msra.mxu0 %v81
    %1235 = vmatprep.subr.mxu0 0.0
    %1236 = vmatpush2.msra.mxu0 0.0
    %1237 = vmatprep.subr.mxu0 0.0
    %1238 = vmatpush2.msra.mxu0 0.0
    %1239 = vmatprep.subr.mxu0 0.0
    %1240 = vmatpush2.msra.mxu0 0.0
    %1241 = vmatprep.subr.mxu0 0.0
    %1242 = vmatpush2.msra.mxu0 0.0
    %1243 = vmatprep.subr.mxu0 0.0
    %1244 = vmatpush2.msra.mxu0 0.0
    %1245 = vmatprep.subr.mxu0 0.0
    %1246 = vmatpush2.msra.mxu0 0.0
    %1247 = vmatprep.subr.mxu0 0.0
    %1248 = vmatpush2.msra.mxu0 0.0
    %1249 = vmatprep.subr.mxu0 0.0
    %1250 = vmatpush2.msra.mxu0 0.0
    %1251 = vmatprep.subr.mxu0 0.0
    %1252 = vmatpush2.msra.mxu0 0.0
    %1253 = vmatprep.subr.mxu0 0.0
    %1254 = vmatpush2.msra.mxu0 0.0
    %1255 = vmatprep.subr.mxu0 0.0
    %1256 = vmatpush2.msra.mxu0 0.0
    %1257 = vmatprep.subr.mxu0 0.0
    %1258 = vmatpush2.msra.mxu0 0.0
    %1259 = vmatprep.subr.mxu0 0.0
    %1260 = vmatpush2.msra.mxu0 0.0
    %1261 = vmatprep.subr.mxu0 0.0
    %1262 = vmatpush2.msra.mxu0 0.0
    %1263 = vmatprep.subr.mxu0 0.0
    %1264 = vmatpush2.msra.mxu0 0.0
    %1265 = vmatprep.subr.mxu0 0.0
    %1266 = vmatpush2.msra.mxu0 0.0
    %1267 = vmatprep.mubr.f32.mxu0 0.0
    %1268 = vmatmul.mubr.f32.gmra.mxu0 %v1201
    %v1269 = vpop.f32.mrf.mxu0
    %v1270 = vadd.f32 %v383, %v1269
    %v1271 = vpop.f32.mrf.mxu0
    %1272 = vdwg.mxu0
    %v1273 = vadd.f32 %v1270, %v70
    %v1274 = vadd.f32 %v1270, %v71
    %v1275 = vadd.f32 %v1270, %v72
    %v1276 = vadd.f32 %v1270, %v73
    %v1277 = vtanh.pop %v1273
    %v1278 = vtanh.pop %v1274
    %v1279 = vtanh.pop %v1275
    %v1280 = vtanh.pop %v1276
    %v1281 = vmul.f32 %v1277, %v472
    %v1282 = vmul.f32 %v1278, %v472
    %v1283 = vmul.f32 %v1279, %v472
    %v1284 = vmul.f32 %v1280, %v472
    %v1285 = vsel %vm478, %v1281, 0.0
    %1286 = vadd.xlane.f32.xlu0 %v1285
    %v1287 = vpop.xlane.xlu0 %1286
    %v1288 = vsel %vm478, %v1282, 0.0
    %1289 = vadd.xlane.f32.xlu0 %v1288
    %v1290 = vpop.xlane.xlu0 %1289
    %v1291 = vsel %vm478, %v1283, 0.0
    %1292 = vadd.xlane.f32.xlu0 %v1291
    %v1293 = vpop.xlane.xlu0 %1292
    %v1294 = vsel %vm478, %v1284, 0.0
    %1295 = vadd.xlane.f32.xlu0 %v1294
    %v1296 = vpop.xlane.xlu0 %1295
    %v1297 = vadd.f32 %v1287, %v498
    %v1298 = vadd.f32 %v1290, %v498
    %v1299 = vadd.f32 %v1293, %v498
    %v1300 = vadd.f32 %v1296, %v498
    %v1305 = vlaneseq
    %v1306 = vshrl.u32 %v1305, 7
    %v1307 = vsub.s32 %v106, %v1306
    %v1308 = vrot.slane %v1297, %v1307
    %v1309 = vlaneseq
    %v1310 = vshrl.u32 %v1309, 7
    %v1311 = vsub.s32 %v106, %v1310
    %v1312 = vrot.slane %v1298, %v1311
    %v1313 = vlaneseq
    %v1314 = vshrl.u32 %v1313, 7
    %v1315 = vsub.s32 %v106, %v1314
    %v1316 = vrot.slane %v1299, %v1315
    %v1317 = vlaneseq
    %v1318 = vshrl.u32 %v1317, 7
    %v1319 = vsub.s32 %v106, %v1318
    %v1320 = vrot.slane %v1300, %v1319
    %v1321 = vsel %vm525, %v1312, %v1308
    %v1322 = vsel %vm527, %v1316, %v1321
    %v1323 = vsel %vm529, %v1320, %v1322
    %v1325 = vsel %vm504, %v1323, -1000000.0
    %v1326 = vsel %vm533, %v1325, -inf
    %v1327 = vrot.slane %v1326, 4
    %v1328 = vmax.f32 %v1326, %v1327
    %v1329 = vrot.slane %v1328, 2
    %v1330 = vmax.f32 %v1328, %v1329
    %v1331 = vrot.slane %v1330, 1
    %v1332 = vmax.f32 %v1330, %v1331
    %v1333 = vsub.f32 %v1325, %v1332
    %v1334 = vmul.f32 %v1333, 1.442695
    %v1335 = vpow.pop %v1334
    %v1336 = vsel %vm533, %v1335, 0.0
    %v1337 = vrot.slane %v1336, 4
    %v1338 = vadd.f32 %v1336, %v1337
    %v1339 = vrot.slane %v1338, 2
    %v1340 = vadd.f32 %v1338, %v1339
    %v1341 = vrot.slane %v1340, 1
    %v1342 = vadd.f32 %v1340, %v1341
    %v1343 = vrcp.pop %v1342
    %v1344 = vmul.f32 %v1335, %v1343
    %v1345 = vlaneseq
    %v1346 = vshrl.u32 %v1345, 7
    %v1347 = vsub.s32 0, %v1346
    %v1348 = vrot.slane %v1344, %v1347
    %1350 = vbcast.lane.b32.xlu0 %v1348, 256
    %v1351 = vpop.permute.xlu0 %1350
    %v1352 = vlaneseq
    %v1353 = vshrl.u32 %v1352, 7
    %v1354 = vsub.s32 1, %v1353
    %v1355 = vrot.slane %v1344, %v1354
    %1357 = vbcast.lane.b32.xlu0 %v1355, 256
    %v1358 = vpop.permute.xlu0 %1357
    %v1359 = vlaneseq
    %v1360 = vshrl.u32 %v1359, 7
    %v1361 = vsub.s32 2, %v1360
    %v1362 = vrot.slane %v1344, %v1361
    %1364 = vbcast.lane.b32.xlu0 %v1362, 256
    %v1365 = vpop.permute.xlu0 %1364
    %v1366 = vlaneseq
    %v1367 = vshrl.u32 %v1366, 7
    %v1368 = vsub.s32 3, %v1367
    %v1369 = vrot.slane %v1344, %v1368
    %1371 = vbcast.lane.b32.xlu0 %v1369, 256
    %v1372 = vpop.permute.xlu0 %1371
    %v1373 = vmul.f32 %v1351, %v74
    %v1374 = vmul.f32 %v1358, %v75
    %v1375 = vmul.f32 %v1365, %v76
    %v1376 = vmul.f32 %v1372, %v77
    %v1377 = vsel %vm478, %v1373, 0.0
    %v1378 = vsel %vm478, %v1374, 0.0
    %v1379 = vadd.f32 %v1377, %v1378
    %v1380 = vsel %vm478, %v1375, 0.0
    %v1381 = vadd.f32 %v1379, %v1380
    %v1382 = vsel %vm478, %v1376, 0.0
    %v1383 = vadd.f32 %v1381, %v1382
    %v1385 = vsel %vm193, %v1383, 0
    %1387 = vmatprep.subr.mxu0 0.0
    %1388 = vmatpush1.msra.mxu0 0.0
    %1389 = vmatprep.subr.mxu0 0.0
    %1390 = vmatpush1.msra.mxu0 0.0
    %1391 = vmatprep.subr.mxu0 0.0
    %1392 = vmatpush1.msra.mxu0 0.0
    %1393 = vmatprep.subr.mxu0 0.0
    %1394 = vmatpush1.msra.mxu0 0.0
    %1395 = vmatprep.subr.mxu0 0.0
    %1396 = vmatpush1.msra.mxu0 0.0
    %1397 = vmatprep.subr.mxu0 0.0
    %1398 = vmatpush1.msra.mxu0 0.0
    %1399 = vmatprep.subr.mxu0 0.0
    %1400 = vmatpush1.msra.mxu0 0.0
    %1401 = vmatprep.subr.mxu0 0.0
    %1402 = vmatpush1.msra.mxu0 0.0
    %1403 = vmatprep.subr.mxu0 0.0
    %1404 = vmatpush1.msra.mxu0 0.0
    %1405 = vmatprep.subr.mxu0 0.0
    %1406 = vmatpush1.msra.mxu0 0.0
    %1407 = vmatprep.subr.mxu0 0.0
    %1408 = vmatpush1.msra.mxu0 0.0
    %1409 = vmatprep.subr.mxu0 0.0
    %1410 = vmatpush1.msra.mxu0 0.0
    %1411 = vmatprep.subr.mxu0 0.0
    %1412 = vmatpush1.msra.mxu0 %v93
    %1413 = vmatprep.subr.mxu0 0.0
    %1414 = vmatpush1.msra.mxu0 %v92
    %1415 = vmatprep.subr.mxu0 0.0
    %1416 = vmatpush1.msra.mxu0 %v91
    %1417 = vmatprep.subr.mxu0 0.0
    %1418 = vmatpush1.msra.mxu0 %v90
    %1419 = vmatprep.subr.mxu0 0.0
    %1420 = vmatpush2.msra.mxu0 0.0
    %1421 = vmatprep.subr.mxu0 0.0
    %1422 = vmatpush2.msra.mxu0 0.0
    %1423 = vmatprep.subr.mxu0 0.0
    %1424 = vmatpush2.msra.mxu0 0.0
    %1425 = vmatprep.subr.mxu0 0.0
    %1426 = vmatpush2.msra.mxu0 0.0
    %1427 = vmatprep.subr.mxu0 0.0
    %1428 = vmatpush2.msra.mxu0 0.0
    %1429 = vmatprep.subr.mxu0 0.0
    %1430 = vmatpush2.msra.mxu0 0.0
    %1431 = vmatprep.subr.mxu0 0.0
    %1432 = vmatpush2.msra.mxu0 0.0
    %1433 = vmatprep.subr.mxu0 0.0
    %1434 = vmatpush2.msra.mxu0 0.0
    %1435 = vmatprep.subr.mxu0 0.0
    %1436 = vmatpush2.msra.mxu0 0.0
    %1437 = vmatprep.subr.mxu0 0.0
    %1438 = vmatpush2.msra.mxu0 0.0
    %1439 = vmatprep.subr.mxu0 0.0
    %1440 = vmatpush2.msra.mxu0 0.0
    %1441 = vmatprep.subr.mxu0 0.0
    %1442 = vmatpush2.msra.mxu0 0.0
    %1443 = vmatprep.subr.mxu0 0.0
    %1444 = vmatpush2.msra.mxu0 0.0
    %1445 = vmatprep.subr.mxu0 0.0
    %1446 = vmatpush2.msra.mxu0 0.0
    %1447 = vmatprep.subr.mxu0 0.0
    %1448 = vmatpush2.msra.mxu0 0.0
    %1449 = vmatprep.subr.mxu0 0.0
    %1450 = vmatpush2.msra.mxu0 0.0
    %1451 = vmatprep.mubr.f32.mxu0 0.0
    %1452 = vmatmul.mubr.f32.gmra.mxu0 %v1385
    %v1453 = vpop.f32.mrf.mxu0
    %v1454 = vadd.f32 0.0, %v1453
    %v1455 = vpop.f32.mrf.mxu0
    %1456 = vdwg.mxu0
    %1457 = vmatprep.subr.mxu0 0.0
    %1458 = vmatpush1.msra.mxu0 0.0
    %1459 = vmatprep.subr.mxu0 0.0
    %1460 = vmatpush1.msra.mxu0 0.0
    %1461 = vmatprep.subr.mxu0 0.0
    %1462 = vmatpush1.msra.mxu0 0.0
    %1463 = vmatprep.subr.mxu0 0.0
    %1464 = vmatpush1.msra.mxu0 0.0
    %1465 = vmatprep.subr.mxu0 0.0
    %1466 = vmatpush1.msra.mxu0 0.0
    %1467 = vmatprep.subr.mxu0 0.0
    %1468 = vmatpush1.msra.mxu0 0.0
    %1469 = vmatprep.subr.mxu0 0.0
    %1470 = vmatpush1.msra.mxu0 0.0
    %1471 = vmatprep.subr.mxu0 0.0
    %1472 = vmatpush1.msra.mxu0 0.0
    %1473 = vmatprep.subr.mxu0 0.0
    %1474 = vmatpush1.msra.mxu0 0.0
    %1475 = vmatprep.subr.mxu0 0.0
    %1476 = vmatpush1.msra.mxu0 0.0
    %1477 = vmatprep.subr.mxu0 0.0
    %1478 = vmatpush1.msra.mxu0 0.0
    %1479 = vmatprep.subr.mxu0 0.0
    %1480 = vmatpush1.msra.mxu0 0.0
    %1481 = vmatprep.subr.mxu0 0.0
    %1482 = vmatpush1.msra.mxu0 %v89
    %1483 = vmatprep.subr.mxu0 0.0
    %1484 = vmatpush1.msra.mxu0 %v88
    %1485 = vmatprep.subr.mxu0 0.0
    %1486 = vmatpush1.msra.mxu0 %v87
    %1487 = vmatprep.subr.mxu0 0.0
    %1488 = vmatpush1.msra.mxu0 %v86
    %1489 = vmatprep.subr.mxu0 0.0
    %1490 = vmatpush2.msra.mxu0 0.0
    %1491 = vmatprep.subr.mxu0 0.0
    %1492 = vmatpush2.msra.mxu0 0.0
    %1493 = vmatprep.subr.mxu0 0.0
    %1494 = vmatpush2.msra.mxu0 0.0
    %1495 = vmatprep.subr.mxu0 0.0
    %1496 = vmatpush2.msra.mxu0 0.0
    %1497 = vmatprep.subr.mxu0 0.0
    %1498 = vmatpush2.msra.mxu0 0.0
    %1499 = vmatprep.subr.mxu0 0.0
    %1500 = vmatpush2.msra.mxu0 0.0
    %1501 = vmatprep.subr.mxu0 0.0
    %1502 = vmatpush2.msra.mxu0 0.0
    %1503 = vmatprep.subr.mxu0 0.0
    %1504 = vmatpush2.msra.mxu0 0.0
    %1505 = vmatprep.subr.mxu0 0.0
    %1506 = vmatpush2.msra.mxu0 0.0
    %1507 = vmatprep.subr.mxu0 0.0
    %1508 = vmatpush2.msra.mxu0 0.0
    %1509 = vmatprep.subr.mxu0 0.0
    %1510 = vmatpush2.msra.mxu0 0.0
    %1511 = vmatprep.subr.mxu0 0.0
    %1512 = vmatpush2.msra.mxu0 0.0
    %1513 = vmatprep.subr.mxu0 0.0
    %1514 = vmatpush2.msra.mxu0 0.0
    %1515 = vmatprep.subr.mxu0 0.0
    %1516 = vmatpush2.msra.mxu0 0.0
    %1517 = vmatprep.subr.mxu0 0.0
    %1518 = vmatpush2.msra.mxu0 0.0
    %1519 = vmatprep.subr.mxu0 0.0
    %1520 = vmatpush2.msra.mxu0 0.0
    %1521 = vmatprep.mubr.f32.mxu0 0.0
    %1522 = vmatmul.mubr.f32.gmra.mxu0 %v1201
    %v1523 = vpop.f32.mrf.mxu0
    %v1524 = vadd.f32 %v1454, %v1523
    %v1525 = vpop.f32.mrf.mxu0
    %1526 = vdwg.mxu0
    %1527 = vmatprep.subr.mxu0 0.0
    %1528 = vmatpush1.msra.mxu0 0.0
    %1529 = vmatprep.subr.mxu0 0.0
    %1530 = vmatpush1.msra.mxu0 0.0
    %1531 = vmatprep.subr.mxu0 0.0
    %1532 = vmatpush1.msra.mxu0 0.0
    %1533 = vmatprep.subr.mxu0 0.0
    %1534 = vmatpush1.msra.mxu0 0.0
    %1535 = vmatprep.subr.mxu0 0.0
    %1536 = vmatpush1.msra.mxu0 0.0
    %1537 = vmatprep.subr.mxu0 0.0
    %1538 = vmatpush1.msra.mxu0 0.0
    %1539 = vmatprep.subr.mxu0 0.0
    %1540 = vmatpush1.msra.mxu0 0.0
    %1541 = vmatprep.subr.mxu0 0.0
    %1542 = vmatpush1.msra.mxu0 0.0
    %1543 = vmatprep.subr.mxu0 0.0
    %1544 = vmatpush1.msra.mxu0 0.0
    %1545 = vmatprep.subr.mxu0 0.0
    %1546 = vmatpush1.msra.mxu0 0.0
    %1547 = vmatprep.subr.mxu0 0.0
    %1548 = vmatpush1.msra.mxu0 0.0
    %1549 = vmatprep.subr.mxu0 0.0
    %1550 = vmatpush1.msra.mxu0 0.0
    %1551 = vmatprep.subr.mxu0 0.0
    %1552 = vmatpush1.msra.mxu0 %v97
    %1553 = vmatprep.subr.mxu0 0.0
    %1554 = vmatpush1.msra.mxu0 %v96
    %1555 = vmatprep.subr.mxu0 0.0
    %1556 = vmatpush1.msra.mxu0 %v95
    %1557 = vmatprep.subr.mxu0 0.0
    %1558 = vmatpush1.msra.mxu0 %v94
    %1559 = vmatprep.subr.mxu0 0.0
    %1560 = vmatpush2.msra.mxu0 0.0
    %1561 = vmatprep.subr.mxu0 0.0
    %1562 = vmatpush2.msra.mxu0 0.0
    %1563 = vmatprep.subr.mxu0 0.0
    %1564 = vmatpush2.msra.mxu0 0.0
    %1565 = vmatprep.subr.mxu0 0.0
    %1566 = vmatpush2.msra.mxu0 0.0
    %1567 = vmatprep.subr.mxu0 0.0
    %1568 = vmatpush2.msra.mxu0 0.0
    %1569 = vmatprep.subr.mxu0 0.0
    %1570 = vmatpush2.msra.mxu0 0.0
    %1571 = vmatprep.subr.mxu0 0.0
    %1572 = vmatpush2.msra.mxu0 0.0
    %1573 = vmatprep.subr.mxu0 0.0
    %1574 = vmatpush2.msra.mxu0 0.0
    %1575 = vmatprep.subr.mxu0 0.0
    %1576 = vmatpush2.msra.mxu0 0.0
    %1577 = vmatprep.subr.mxu0 0.0
    %1578 = vmatpush2.msra.mxu0 0.0
    %1579 = vmatprep.subr.mxu0 0.0
    %1580 = vmatpush2.msra.mxu0 0.0
    %1581 = vmatprep.subr.mxu0 0.0
    %1582 = vmatpush2.msra.mxu0 0.0
    %1583 = vmatprep.subr.mxu0 0.0
    %1584 = vmatpush2.msra.mxu0 0.0
    %1585 = vmatprep.subr.mxu0 0.0
    %1586 = vmatpush2.msra.mxu0 0.0
    %1587 = vmatprep.subr.mxu0 0.0
    %1588 = vmatpush2.msra.mxu0 0.0
    %1589 = vmatprep.subr.mxu0 0.0
    %1590 = vmatpush2.msra.mxu0 0.0
    %1591 = vmatprep.mubr.f32.mxu0 0.0
    %1592 = vmatmul.mubr.f32.gmra.mxu0 %v846
    %v1593 = vpop.f32.mrf.mxu0
    %v1594 = vadd.f32 0.0, %v1593
    %v1595 = vpop.f32.mrf.mxu0
    %1596 = vdwg.mxu0
    %v1597 = vadd.f32 %v1524, %v1594
    %v1598 = vadd.f32 %v1597, %v810
    %v1599 = vxor.u32 %v1598, 2147483648
    %v1600 = vmul.f32 %v1599, 1.442695
    %v1601 = vpow.pop %v1600
    %v1602 = vadd.f32 %v1601, 1.0
    %v1603 = vrcp.pop %v1602
    %v1604 = vmul.f32 1.0, %v1603
    %v1605 = vtanh.pop %v1598
    %v1606 = vmul.f32 %v1604, %v830
    %1608 = vrot.lane.b32.xlu0 %v1605, 64
    %v1609 = vpop.permute.xlu0 %1608
    %v1611 = vmul.f32 %v1604, %v1609
    %1613 = vrot.lane.b32.xlu0 %v1611, 32
    %v1614 = vpop.permute.xlu0 %1613
    %v1616 = vadd.f32 %v1606, %v1614
    %v1617 = vtanh.pop %v1616
    %1619 = vrot.lane.b32.xlu0 %v1617, 64
    %v1620 = vpop.permute.xlu0 %1619
    %v1622 = vmul.f32 %v1604, %v1620
    %1624 = vrot.lane.b32.xlu0 %v1622, 32
    %v1625 = vpop.permute.xlu0 %1624
    %v1626 = vsel %vm193, %v1625, 0
    %1628 = vmatprep.subr.mxu0 0.0
    %1629 = vmatpush1.msra.mxu0 0.0
    %1630 = vmatprep.subr.mxu0 0.0
    %1631 = vmatpush1.msra.mxu0 0.0
    %1632 = vmatprep.subr.mxu0 0.0
    %1633 = vmatpush1.msra.mxu0 0.0
    %1634 = vmatprep.subr.mxu0 0.0
    %1635 = vmatpush1.msra.mxu0 0.0
    %1636 = vmatprep.subr.mxu0 0.0
    %1637 = vmatpush1.msra.mxu0 0.0
    %1638 = vmatprep.subr.mxu0 0.0
    %1639 = vmatpush1.msra.mxu0 0.0
    %1640 = vmatprep.subr.mxu0 0.0
    %1641 = vmatpush1.msra.mxu0 0.0
    %1642 = vmatprep.subr.mxu0 0.0
    %1643 = vmatpush1.msra.mxu0 0.0
    %1644 = vmatprep.subr.mxu0 0.0
    %1645 = vmatpush1.msra.mxu0 0.0
    %1646 = vmatprep.subr.mxu0 0.0
    %1647 = vmatpush1.msra.mxu0 0.0
    %1648 = vmatprep.subr.mxu0 0.0
    %1649 = vmatpush1.msra.mxu0 0.0
    %1650 = vmatprep.subr.mxu0 0.0
    %1651 = vmatpush1.msra.mxu0 0.0
    %1652 = vmatprep.subr.mxu0 0.0
    %1653 = vmatpush1.msra.mxu0 %v102
    %1654 = vmatprep.subr.mxu0 0.0
    %1655 = vmatpush1.msra.mxu0 %v101
    %1656 = vmatprep.subr.mxu0 0.0
    %1657 = vmatpush1.msra.mxu0 %v100
    %1658 = vmatprep.subr.mxu0 0.0
    %1659 = vmatpush1.msra.mxu0 %v99
    %1660 = vmatprep.subr.mxu0 0.0
    %1661 = vmatpush2.msra.mxu0 0.0
    %1662 = vmatprep.subr.mxu0 0.0
    %1663 = vmatpush2.msra.mxu0 0.0
    %1664 = vmatprep.subr.mxu0 0.0
    %1665 = vmatpush2.msra.mxu0 0.0
    %1666 = vmatprep.subr.mxu0 0.0
    %1667 = vmatpush2.msra.mxu0 0.0
    %1668 = vmatprep.subr.mxu0 0.0
    %1669 = vmatpush2.msra.mxu0 0.0
    %1670 = vmatprep.subr.mxu0 0.0
    %1671 = vmatpush2.msra.mxu0 0.0
    %1672 = vmatprep.subr.mxu0 0.0
    %1673 = vmatpush2.msra.mxu0 0.0
    %1674 = vmatprep.subr.mxu0 0.0
    %1675 = vmatpush2.msra.mxu0 0.0
    %1676 = vmatprep.subr.mxu0 0.0
    %1677 = vmatpush2.msra.mxu0 0.0
    %1678 = vmatprep.subr.mxu0 0.0
    %1679 = vmatpush2.msra.mxu0 0.0
    %1680 = vmatprep.subr.mxu0 0.0
    %1681 = vmatpush2.msra.mxu0 0.0
    %1682 = vmatprep.subr.mxu0 0.0
    %1683 = vmatpush2.msra.mxu0 0.0
    %1684 = vmatprep.subr.mxu0 0.0
    %1685 = vmatpush2.msra.mxu0 0.0
    %1686 = vmatprep.subr.mxu0 0.0
    %1687 = vmatpush2.msra.mxu0 0.0
    %1688 = vmatprep.subr.mxu0 0.0
    %1689 = vmatpush2.msra.mxu0 0.0
    %1690 = vmatprep.subr.mxu0 0.0
    %1691 = vmatpush2.msra.mxu0 0.0
    %1692 = vmatprep.mubr.f32.mxu0 0.0
    %1693 = vmatmul.mubr.f32.gmra.mxu0 %v1626
    %v1694 = vpop.f32.mrf.mxu0
    %v1695 = vadd.f32 %v841, %v1694
    %v1696 = vpop.f32.mrf.mxu0
    %1697 = vdwg.mxu0
    %v1698 = vsel %vm918, %v1695, -inf
    %1699 = vmax.xlane.f32.xlu0 %v1698
    %v1700 = vpop.xlane.xlu0 %1699
    %vm1701 = vcmp.ge.f32.partialorder %v1695, %v1700
    %v1702 = vsel %vm1701, %v107, 64.0
    %v1703 = vsel %vm918, %v1702, inf
    %1704 = vmin.xlane.f32.xlu0 %v1703
    %v1705 = vpop.xlane.xlu0 %1704
    %v1706 = vcvt.f32.s32.to.zero.pseudo %v1705
    %vm1707 = vcmask 9224
    %1708 = vst.msk [vmem:[#allocation3] sm:$0x3] %vm1707, %v1706
    %vm1709 = vcmp.eq.s32.totalorder %v1706, %v106
    %v1710 = vsel %vm1709, 1, 0
    %v1711 = vcvt.s32.f32 %v1710
    %v1713 = vsel %vm111, %v1711, 0
    %1715 = vmatprep.subr.mxu0 0.0
    %1716 = vmatpush1.msra.mxu0 0.0
    %1717 = vmatprep.subr.mxu0 0.0
    %1718 = vmatpush1.msra.mxu0 0.0
    %1719 = vmatprep.subr.mxu0 0.0
    %1720 = vmatpush1.msra.mxu0 0.0
    %1721 = vmatprep.subr.mxu0 0.0
    %1722 = vmatpush1.msra.mxu0 0.0
    %1723 = vmatprep.subr.mxu0 0.0
    %1724 = vmatpush1.msra.mxu0 0.0
    %1725 = vmatprep.subr.mxu0 0.0
    %1726 = vmatpush1.msra.mxu0 0.0
    %1727 = vmatprep.subr.mxu0 0.0
    %1728 = vmatpush1.msra.mxu0 0.0
    %1729 = vmatprep.subr.mxu0 0.0
    %1730 = vmatpush1.msra.mxu0 0.0
    %1731 = vmatprep.subr.mxu0 0.0
    %1732 = vmatpush1.msra.mxu0 %v69
    %1733 = vmatprep.subr.mxu0 0.0
    %1734 = vmatpush1.msra.mxu0 %v68
    %1735 = vmatprep.subr.mxu0 0.0
    %1736 = vmatpush1.msra.mxu0 %v67
    %1737 = vmatprep.subr.mxu0 0.0
    %1738 = vmatpush1.msra.mxu0 %v66
    %1739 = vmatprep.subr.mxu0 0.0
    %1740 = vmatpush1.msra.mxu0 %v65
    %1741 = vmatprep.subr.mxu0 0.0
    %1742 = vmatpush1.msra.mxu0 %v64
    %1743 = vmatprep.subr.mxu0 0.0
    %1744 = vmatpush1.msra.mxu0 %v63
    %1745 = vmatprep.subr.mxu0 0.0
    %1746 = vmatpush1.msra.mxu0 %v62
    %1747 = vmatprep.subr.mxu0 0.0
    %1748 = vmatpush2.msra.mxu0 0.0
    %1749 = vmatprep.subr.mxu0 0.0
    %1750 = vmatpush2.msra.mxu0 0.0
    %1751 = vmatprep.subr.mxu0 0.0
    %1752 = vmatpush2.msra.mxu0 0.0
    %1753 = vmatprep.subr.mxu0 0.0
    %1754 = vmatpush2.msra.mxu0 0.0
    %1755 = vmatprep.subr.mxu0 0.0
    %1756 = vmatpush2.msra.mxu0 0.0
    %1757 = vmatprep.subr.mxu0 0.0
    %1758 = vmatpush2.msra.mxu0 0.0
    %1759 = vmatprep.subr.mxu0 0.0
    %1760 = vmatpush2.msra.mxu0 0.0
    %1761 = vmatprep.subr.mxu0 0.0
    %1762 = vmatpush2.msra.mxu0 0.0
    %1763 = vmatprep.subr.mxu0 0.0
    %1764 = vmatpush2.msra.mxu0 0.0
    %1765 = vmatprep.subr.mxu0 0.0
    %1766 = vmatpush2.msra.mxu0 0.0
    %1767 = vmatprep.subr.mxu0 0.0
    %1768 = vmatpush2.msra.mxu0 0.0
    %1769 = vmatprep.subr.mxu0 0.0
    %1770 = vmatpush2.msra.mxu0 0.0
    %1771 = vmatprep.subr.mxu0 0.0
    %1772 = vmatpush2.msra.mxu0 0.0
    %1773 = vmatprep.subr.mxu0 0.0
    %1774 = vmatpush2.msra.mxu0 0.0
    %1775 = vmatprep.subr.mxu0 0.0
    %1776 = vmatpush2.msra.mxu0 0.0
    %1777 = vmatprep.subr.mxu0 0.0
    %1778 = vmatpush2.msra.mxu0 0.0
    %1779 = vmatprep.mubr.f32.mxu0 0.0
    %1780 = vmatmul.mubr.f32.gmra.mxu0 %v1713
    %v1781 = vpop.f32.mrf.mxu0
    %v1782 = vadd.f32 0.0, %v1781
    %v1783 = vpop.f32.mrf.mxu0
    %1784 = vdwg.mxu0
    %v1785 = vld [vmem:[%s5] sm:$0xff]
    %v1786 = vld [vmem:[%s5 + $0x8] sm:$0xff]
    %v1787 = vld [vmem:[%s5 + $0x10] sm:$0xff]
    %v1788 = vld [vmem:[%s5 + $0x18] sm:$0xff]
    %v1789 = vld [vmem:[%s6] sm:$0xff]
    %v1790 = vld [vmem:[%s6 + $0x8] sm:$0xff]
    %v1791 = vld [vmem:[%s6 + $0x10] sm:$0xff]
    %v1792 = vld [vmem:[%s6 + $0x18] sm:$0xff]
    %1794 = vrot.lane.b32.xlu0 %v1193, 32
    %v1795 = vpop.permute.xlu0 %1794
    %v1796 = vsel %vm193, %v1795, 0
    %1798 = vmatprep.subr.mxu0 0.0
    %1799 = vmatpush1.msra.mxu0 0.0
    %1800 = vmatprep.subr.mxu0 0.0
    %1801 = vmatpush1.msra.mxu0 0.0
    %1802 = vmatprep.subr.mxu0 0.0
    %1803 = vmatpush1.msra.mxu0 0.0
    %1804 = vmatprep.subr.mxu0 0.0
    %1805 = vmatpush1.msra.mxu0 0.0
    %1806 = vmatprep.subr.mxu0 0.0
    %1807 = vmatpush1.msra.mxu0 0.0
    %1808 = vmatprep.subr.mxu0 0.0
    %1809 = vmatpush1.msra.mxu0 0.0
    %1810 = vmatprep.subr.mxu0 0.0
    %1811 = vmatpush1.msra.mxu0 0.0
    %1812 = vmatprep.subr.mxu0 0.0
    %1813 = vmatpush1.msra.mxu0 0.0
    %1814 = vmatprep.subr.mxu0 0.0
    %1815 = vmatpush1.msra.mxu0 0.0
    %1816 = vmatprep.subr.mxu0 0.0
    %1817 = vmatpush1.msra.mxu0 0.0
    %1818 = vmatprep.subr.mxu0 0.0
    %1819 = vmatpush1.msra.mxu0 0.0
    %1820 = vmatprep.subr.mxu0 0.0
    %1821 = vmatpush1.msra.mxu0 0.0
    %1822 = vmatprep.subr.mxu0 0.0
    %1823 = vmatpush1.msra.mxu0 %v1792
    %1824 = vmatprep.subr.mxu0 0.0
    %1825 = vmatpush1.msra.mxu0 %v1791
    %1826 = vmatprep.subr.mxu0 0.0
    %1827 = vmatpush1.msra.mxu0 %v1790
    %1828 = vmatprep.subr.mxu0 0.0
    %1829 = vmatpush1.msra.mxu0 %v1789
    %1830 = vmatprep.subr.mxu0 0.0
    %1831 = vmatpush2.msra.mxu0 0.0
    %1832 = vmatprep.subr.mxu0 0.0
    %1833 = vmatpush2.msra.mxu0 0.0
    %1834 = vmatprep.subr.mxu0 0.0
    %1835 = vmatpush2.msra.mxu0 0.0
    %1836 = vmatprep.subr.mxu0 0.0
    %1837 = vmatpush2.msra.mxu0 0.0
    %1838 = vmatprep.subr.mxu0 0.0
    %1839 = vmatpush2.msra.mxu0 0.0
    %1840 = vmatprep.subr.mxu0 0.0
    %1841 = vmatpush2.msra.mxu0 0.0
    %1842 = vmatprep.subr.mxu0 0.0
    %1843 = vmatpush2.msra.mxu0 0.0
    %1844 = vmatprep.subr.mxu0 0.0
    %1845 = vmatpush2.msra.mxu0 0.0
    %1846 = vmatprep.subr.mxu0 0.0
    %1847 = vmatpush2.msra.mxu0 0.0
    %1848 = vmatprep.subr.mxu0 0.0
    %1849 = vmatpush2.msra.mxu0 0.0
    %1850 = vmatprep.subr.mxu0 0.0
    %1851 = vmatpush2.msra.mxu0 0.0
    %1852 = vmatprep.subr.mxu0 0.0
    %1853 = vmatpush2.msra.mxu0 0.0
    %1854 = vmatprep.subr.mxu0 0.0
    %1855 = vmatpush2.msra.mxu0 0.0
    %1856 = vmatprep.subr.mxu0 0.0
    %1857 = vmatpush2.msra.mxu0 0.0
    %1858 = vmatprep.subr.mxu0 0.0
    %1859 = vmatpush2.msra.mxu0 0.0
    %1860 = vmatprep.subr.mxu0 0.0
    %1861 = vmatpush2.msra.mxu0 0.0
    %1862 = vmatprep.mubr.f32.mxu0 0.0
    %1863 = vmatmul.mubr.f32.gmra.mxu0 %v1796
    %v1864 = vpop.f32.mrf.mxu0
    %v1865 = vadd.f32 0.0, %v1864
    %v1866 = vpop.f32.mrf.mxu0
    %1867 = vdwg.mxu0
    %v1869 = vsel %vm193, %v1782, 0
    %1871 = vmatprep.subr.mxu0 0.0
    %1872 = vmatpush1.msra.mxu0 0.0
    %1873 = vmatprep.subr.mxu0 0.0
    %1874 = vmatpush1.msra.mxu0 0.0
    %1875 = vmatprep.subr.mxu0 0.0
    %1876 = vmatpush1.msra.mxu0 0.0
    %1877 = vmatprep.subr.mxu0 0.0
    %1878 = vmatpush1.msra.mxu0 0.0
    %1879 = vmatprep.subr.mxu0 0.0
    %1880 = vmatpush1.msra.mxu0 0.0
    %1881 = vmatprep.subr.mxu0 0.0
    %1882 = vmatpush1.msra.mxu0 0.0
    %1883 = vmatprep.subr.mxu0 0.0
    %1884 = vmatpush1.msra.mxu0 0.0
    %1885 = vmatprep.subr.mxu0 0.0
    %1886 = vmatpush1.msra.mxu0 0.0
    %1887 = vmatprep.subr.mxu0 0.0
    %1888 = vmatpush1.msra.mxu0 0.0
    %1889 = vmatprep.subr.mxu0 0.0
    %1890 = vmatpush1.msra.mxu0 0.0
    %1891 = vmatprep.subr.mxu0 0.0
    %1892 = vmatpush1.msra.mxu0 0.0
    %1893 = vmatprep.subr.mxu0 0.0
    %1894 = vmatpush1.msra.mxu0 0.0
    %1895 = vmatprep.subr.mxu0 0.0
    %1896 = vmatpush1.msra.mxu0 %v1788
    %1897 = vmatprep.subr.mxu0 0.0
    %1898 = vmatpush1.msra.mxu0 %v1787
    %1899 = vmatprep.subr.mxu0 0.0
    %1900 = vmatpush1.msra.mxu0 %v1786
    %1901 = vmatprep.subr.mxu0 0.0
    %1902 = vmatpush1.msra.mxu0 %v1785
    %1903 = vmatprep.subr.mxu0 0.0
    %1904 = vmatpush2.msra.mxu0 0.0
    %1905 = vmatprep.subr.mxu0 0.0
    %1906 = vmatpush2.msra.mxu0 0.0
    %1907 = vmatprep.subr.mxu0 0.0
    %1908 = vmatpush2.msra.mxu0 0.0
    %1909 = vmatprep.subr.mxu0 0.0
    %1910 = vmatpush2.msra.mxu0 0.0
    %1911 = vmatprep.subr.mxu0 0.0
    %1912 = vmatpush2.msra.mxu0 0.0
    %1913 = vmatprep.subr.mxu0 0.0
    %1914 = vmatpush2.msra.mxu0 0.0
    %1915 = vmatprep.subr.mxu0 0.0
    %1916 = vmatpush2.msra.mxu0 0.0
    %1917 = vmatprep.subr.mxu0 0.0
    %1918 = vmatpush2.msra.mxu0 0.0
    %1919 = vmatprep.subr.mxu0 0.0
    %1920 = vmatpush2.msra.mxu0 0.0
    %1921 = vmatprep.subr.mxu0 0.0
    %1922 = vmatpush2.msra.mxu0 0.0
    %1923 = vmatprep.subr.mxu0 0.0
    %1924 = vmatpush2.msra.mxu0 0.0
    %1925 = vmatprep.subr.mxu0 0.0
    %1926 = vmatpush2.msra.mxu0 0.0
    %1927 = vmatprep.subr.mxu0 0.0
    %1928 = vmatpush2.msra.mxu0 0.0
    %1929 = vmatprep.subr.mxu0 0.0
    %1930 = vmatpush2.msra.mxu0 0.0
    %1931 = vmatprep.subr.mxu0 0.0
    %1932 = vmatpush2.msra.mxu0 0.0
    %1933 = vmatprep.subr.mxu0 0.0
    %1934 = vmatpush2.msra.mxu0 0.0
    %1935 = vmatprep.mubr.f32.mxu0 0.0
    %1936 = vmatmul.mubr.f32.gmra.mxu0 %v1869
    %v1937 = vpop.f32.mrf.mxu0
    %v1938 = vadd.f32 %v1865, %v1937
    %v1939 = vpop.f32.mrf.mxu0
    %1940 = vdwg.mxu0
    %v1941 = vld [vmem:[%s7] sm:$0x1]
    %v1943 = vlaneseq
    %v1944 = vshrl.u32 %v1943, 7
    %v1945 = vsub.s32 0, %v1944
    %v1946 = vrot.slane %v1941, %v1945
    %v1948 = vadd.f32 %v1938, %v1946
    %v1949 = vxor.u32 %v1948, 2147483648
    %v1950 = vmul.f32 %v1949, 1.442695
    %v1951 = vpow.pop %v1950
    %v1952 = vadd.f32 %v1951, 1.0
    %v1953 = vrcp.pop %v1952
    %v1954 = vmul.f32 1.0, %v1953
    %v1955 = vtanh.pop %v1948
    %v1956 = vmul.f32 %v1954, %v1187
    %1958 = vrot.lane.b32.xlu0 %v1955, 64
    %v1959 = vpop.permute.xlu0 %1958
    %v1961 = vmul.f32 %v1954, %v1959
    %1963 = vrot.lane.b32.xlu0 %v1961, 32
    %v1964 = vpop.permute.xlu0 %1963
    %v1966 = vadd.f32 %v1956, %v1964
    %v1967 = vtanh.pop %v1966
    %1969 = vrot.lane.b32.xlu0 %v1967, 64
    %v1970 = vpop.permute.xlu0 %1969
    %v1972 = vmul.f32 %v1954, %v1970
    %1973 = vrot.lane.b32.xlu0 %v1782, 96
    %v1974 = vpop.permute.xlu0 %1973
    %v1976 = vadd.f32 %v1972, %v1974
    %1978 = vrot.lane.b32.xlu0 %v1976, 32
    %v1979 = vpop.permute.xlu0 %1978
    %v1980 = vsel %vm193, %v1979, 0
    %1982 = vmatprep.subr.mxu0 0.0
    %1983 = vmatpush1.msra.mxu0 0.0
    %1984 = vmatprep.subr.mxu0 0.0
    %1985 = vmatpush1.msra.mxu0 0.0
    %1986 = vmatprep.subr.mxu0 0.0
    %1987 = vmatpush1.msra.mxu0 0.0
    %1988 = vmatprep.subr.mxu0 0.0
    %1989 = vmatpush1.msra.mxu0 0.0
    %1990 = vmatprep.subr.mxu0 0.0
    %1991 = vmatpush1.msra.mxu0 0.0
    %1992 = vmatprep.subr.mxu0 0.0
    %1993 = vmatpush1.msra.mxu0 0.0
    %1994 = vmatprep.subr.mxu0 0.0
    %1995 = vmatpush1.msra.mxu0 0.0
    %1996 = vmatprep.subr.mxu0 0.0
    %1997 = vmatpush1.msra.mxu0 0.0
    %1998 = vmatprep.subr.mxu0 0.0
    %1999 = vmatpush1.msra.mxu0 0.0
    %2000 = vmatprep.subr.mxu0 0.0
    %2001 = vmatpush1.msra.mxu0 0.0
    %2002 = vmatprep.subr.mxu0 0.0
    %2003 = vmatpush1.msra.mxu0 0.0
    %2004 = vmatprep.subr.mxu0 0.0
    %2005 = vmatpush1.msra.mxu0 0.0
    %2006 = vmatprep.subr.mxu0 0.0
    %2007 = vmatpush1.msra.mxu0 %v84
    %2008 = vmatprep.subr.mxu0 0.0
    %2009 = vmatpush1.msra.mxu0 %v83
    %2010 = vmatprep.subr.mxu0 0.0
    %2011 = vmatpush1.msra.mxu0 %v82
    %2012 = vmatprep.subr.mxu0 0.0
    %2013 = vmatpush1.msra.mxu0 %v81
    %2014 = vmatprep.subr.mxu0 0.0
    %2015 = vmatpush2.msra.mxu0 0.0
    %2016 = vmatprep.subr.mxu0 0.0
    %2017 = vmatpush2.msra.mxu0 0.0
    %2018 = vmatprep.subr.mxu0 0.0
    %2019 = vmatpush2.msra.mxu0 0.0
    %2020 = vmatprep.subr.mxu0 0.0
    %2021 = vmatpush2.msra.mxu0 0.0
    %2022 = vmatprep.subr.mxu0 0.0
    %2023 = vmatpush2.msra.mxu0 0.0
    %2024 = vmatprep.subr.mxu0 0.0
    %2025 = vmatpush2.msra.mxu0 0.0
    %2026 = vmatprep.subr.mxu0 0.0
    %2027 = vmatpush2.msra.mxu0 0.0
    %2028 = vmatprep.subr.mxu0 0.0
    %2029 = vmatpush2.msra.mxu0 0.0
    %2030 = vmatprep.subr.mxu0 0.0
    %2031 = vmatpush2.msra.mxu0 0.0
    %2032 = vmatprep.subr.mxu0 0.0
    %2033 = vmatpush2.msra.mxu0 0.0
    %2034 = vmatprep.subr.mxu0 0.0
    %2035 = vmatpush2.msra.mxu0 0.0
    %2036 = vmatprep.subr.mxu0 0.0
    %2037 = vmatpush2.msra.mxu0 0.0
    %2038 = vmatprep.subr.mxu0 0.0
    %2039 = vmatpush2.msra.mxu0 0.0
    %2040 = vmatprep.subr.mxu0 0.0
    %2041 = vmatpush2.msra.mxu0 0.0
    %2042 = vmatprep.subr.mxu0 0.0
    %2043 = vmatpush2.msra.mxu0 0.0
    %2044 = vmatprep.subr.mxu0 0.0
    %2045 = vmatpush2.msra.mxu0 0.0
    %2046 = vmatprep.mubr.f32.mxu0 0.0
    %2047 = vmatmul.mubr.f32.gmra.mxu0 %v1980
    %v2048 = vpop.f32.mrf.mxu0
    %v2049 = vadd.f32 %v383, %v2048
    %v2050 = vpop.f32.mrf.mxu0
    %2051 = vdwg.mxu0
    %v2052 = vadd.f32 %v2049, %v70
    %v2053 = vadd.f32 %v2049, %v71
    %v2054 = vadd.f32 %v2049, %v72
    %v2055 = vadd.f32 %v2049, %v73
    %v2056 = vtanh.pop %v2052
    %v2057 = vtanh.pop %v2053
    %v2058 = vtanh.pop %v2054
    %v2059 = vtanh.pop %v2055
    %v2060 = vmul.f32 %v2056, %v472
    %v2061 = vmul.f32 %v2057, %v472
    %v2062 = vmul.f32 %v2058, %v472
    %v2063 = vmul.f32 %v2059, %v472
    %v2064 = vsel %vm478, %v2060, 0.0
    %2065 = vadd.xlane.f32.xlu0 %v2064
    %v2066 = vpop.xlane.xlu0 %2065
    %v2067 = vsel %vm478, %v2061, 0.0
    %2068 = vadd.xlane.f32.xlu0 %v2067
    %v2069 = vpop.xlane.xlu0 %2068
    %v2070 = vsel %vm478, %v2062, 0.0
    %2071 = vadd.xlane.f32.xlu0 %v2070
    %v2072 = vpop.xlane.xlu0 %2071
    %v2073 = vsel %vm478, %v2063, 0.0
    %2074 = vadd.xlane.f32.xlu0 %v2073
    %v2075 = vpop.xlane.xlu0 %2074
    %v2076 = vadd.f32 %v2066, %v498
    %v2077 = vadd.f32 %v2069, %v498
    %v2078 = vadd.f32 %v2072, %v498
    %v2079 = vadd.f32 %v2075, %v498
    %v2084 = vlaneseq
    %v2085 = vshrl.u32 %v2084, 7
    %v2086 = vsub.s32 %v106, %v2085
    %v2087 = vrot.slane %v2076, %v2086
    %v2088 = vlaneseq
    %v2089 = vshrl.u32 %v2088, 7
    %v2090 = vsub.s32 %v106, %v2089
    %v2091 = vrot.slane %v2077, %v2090
    %v2092 = vlaneseq
    %v2093 = vshrl.u32 %v2092, 7
    %v2094 = vsub.s32 %v106, %v2093
    %v2095 = vrot.slane %v2078, %v2094
    %v2096 = vlaneseq
    %v2097 = vshrl.u32 %v2096, 7
    %v2098 = vsub.s32 %v106, %v2097
    %v2099 = vrot.slane %v2079, %v2098
    %v2100 = vsel %vm525, %v2091, %v2087
    %v2101 = vsel %vm527, %v2095, %v2100
    %v2102 = vsel %vm529, %v2099, %v2101
    %v2104 = vsel %vm504, %v2102, -1000000.0
    %v2105 = vsel %vm533, %v2104, -inf
    %v2106 = vrot.slane %v2105, 4
    %v2107 = vmax.f32 %v2105, %v2106
    %v2108 = vrot.slane %v2107, 2
    %v2109 = vmax.f32 %v2107, %v2108
    %v2110 = vrot.slane %v2109, 1
    %v2111 = vmax.f32 %v2109, %v2110
    %v2112 = vsub.f32 %v2104, %v2111
    %v2113 = vmul.f32 %v2112, 1.442695
    %v2114 = vpow.pop %v2113
    %v2115 = vsel %vm533, %v2114, 0.0
    %v2116 = vrot.slane %v2115, 4
    %v2117 = vadd.f32 %v2115, %v2116
    %v2118 = vrot.slane %v2117, 2
    %v2119 = vadd.f32 %v2117, %v2118
    %v2120 = vrot.slane %v2119, 1
    %v2121 = vadd.f32 %v2119, %v2120
    %v2122 = vrcp.pop %v2121
    %v2123 = vmul.f32 %v2114, %v2122
    %v2124 = vlaneseq
    %v2125 = vshrl.u32 %v2124, 7
    %v2126 = vsub.s32 0, %v2125
    %v2127 = vrot.slane %v2123, %v2126
    %2129 = vbcast.lane.b32.xlu0 %v2127, 256
    %v2130 = vpop.permute.xlu0 %2129
    %v2131 = vlaneseq
    %v2132 = vshrl.u32 %v2131, 7
    %v2133 = vsub.s32 1, %v2132
    %v2134 = vrot.slane %v2123, %v2133
    %2136 = vbcast.lane.b32.xlu0 %v2134, 256
    %v2137 = vpop.permute.xlu0 %2136
    %v2138 = vlaneseq
    %v2139 = vshrl.u32 %v2138, 7
    %v2140 = vsub.s32 2, %v2139
    %v2141 = vrot.slane %v2123, %v2140
    %2143 = vbcast.lane.b32.xlu0 %v2141, 256
    %v2144 = vpop.permute.xlu0 %2143
    %v2145 = vlaneseq
    %v2146 = vshrl.u32 %v2145, 7
    %v2147 = vsub.s32 3, %v2146
    %v2148 = vrot.slane %v2123, %v2147
    %2150 = vbcast.lane.b32.xlu0 %v2148, 256
    %v2151 = vpop.permute.xlu0 %2150
    %v2152 = vmul.f32 %v2130, %v74
    %v2153 = vmul.f32 %v2137, %v75
    %v2154 = vmul.f32 %v2144, %v76
    %v2155 = vmul.f32 %v2151, %v77
    %v2156 = vsel %vm478, %v2152, 0.0
    %v2157 = vsel %vm478, %v2153, 0.0
    %v2158 = vadd.f32 %v2156, %v2157
    %v2159 = vsel %vm478, %v2154, 0.0
    %v2160 = vadd.f32 %v2158, %v2159
    %v2161 = vsel %vm478, %v2155, 0.0
    %v2162 = vadd.f32 %v2160, %v2161
    %v2164 = vsel %vm193, %v2162, 0
    %2166 = vmatprep.subr.mxu0 0.0
    %2167 = vmatpush1.msra.mxu0 0.0
    %2168 = vmatprep.subr.mxu0 0.0
    %2169 = vmatpush1.msra.mxu0 0.0
    %2170 = vmatprep.subr.mxu0 0.0
    %2171 = vmatpush1.msra.mxu0 0.0
    %2172 = vmatprep.subr.mxu0 0.0
    %2173 = vmatpush1.msra.mxu0 0.0
    %2174 = vmatprep.subr.mxu0 0.0
    %2175 = vmatpush1.msra.mxu0 0.0
    %2176 = vmatprep.subr.mxu0 0.0
    %2177 = vmatpush1.msra.mxu0 0.0
    %2178 = vmatprep.subr.mxu0 0.0
    %2179 = vmatpush1.msra.mxu0 0.0
    %2180 = vmatprep.subr.mxu0 0.0
    %2181 = vmatpush1.msra.mxu0 0.0
    %2182 = vmatprep.subr.mxu0 0.0
    %2183 = vmatpush1.msra.mxu0 0.0
    %2184 = vmatprep.subr.mxu0 0.0
    %2185 = vmatpush1.msra.mxu0 0.0
    %2186 = vmatprep.subr.mxu0 0.0
    %2187 = vmatpush1.msra.mxu0 0.0
    %2188 = vmatprep.subr.mxu0 0.0
    %2189 = vmatpush1.msra.mxu0 0.0
    %2190 = vmatprep.subr.mxu0 0.0
    %2191 = vmatpush1.msra.mxu0 %v93
    %2192 = vmatprep.subr.mxu0 0.0
    %2193 = vmatpush1.msra.mxu0 %v92
    %2194 = vmatprep.subr.mxu0 0.0
    %2195 = vmatpush1.msra.mxu0 %v91
    %2196 = vmatprep.subr.mxu0 0.0
    %2197 = vmatpush1.msra.mxu0 %v90
    %2198 = vmatprep.subr.mxu0 0.0
    %2199 = vmatpush2.msra.mxu0 0.0
    %2200 = vmatprep.subr.mxu0 0.0
    %2201 = vmatpush2.msra.mxu0 0.0
    %2202 = vmatprep.subr.mxu0 0.0
    %2203 = vmatpush2.msra.mxu0 0.0
    %2204 = vmatprep.subr.mxu0 0.0
    %2205 = vmatpush2.msra.mxu0 0.0
    %2206 = vmatprep.subr.mxu0 0.0
    %2207 = vmatpush2.msra.mxu0 0.0
    %2208 = vmatprep.subr.mxu0 0.0
    %2209 = vmatpush2.msra.mxu0 0.0
    %2210 = vmatprep.subr.mxu0 0.0
    %2211 = vmatpush2.msra.mxu0 0.0
    %2212 = vmatprep.subr.mxu0 0.0
    %2213 = vmatpush2.msra.mxu0 0.0
    %2214 = vmatprep.subr.mxu0 0.0
    %2215 = vmatpush2.msra.mxu0 0.0
    %2216 = vmatprep.subr.mxu0 0.0
    %2217 = vmatpush2.msra.mxu0 0.0
    %2218 = vmatprep.subr.mxu0 0.0
    %2219 = vmatpush2.msra.mxu0 0.0
    %2220 = vmatprep.subr.mxu0 0.0
    %2221 = vmatpush2.msra.mxu0 0.0
    %2222 = vmatprep.subr.mxu0 0.0
    %2223 = vmatpush2.msra.mxu0 0.0
    %2224 = vmatprep.subr.mxu0 0.0
    %2225 = vmatpush2.msra.mxu0 0.0
    %2226 = vmatprep.subr.mxu0 0.0
    %2227 = vmatpush2.msra.mxu0 0.0
    %2228 = vmatprep.subr.mxu0 0.0
    %2229 = vmatpush2.msra.mxu0 0.0
    %2230 = vmatprep.mubr.f32.mxu0 0.0
    %2231 = vmatmul.mubr.f32.gmra.mxu0 %v2164
    %v2232 = vpop.f32.mrf.mxu0
    %v2233 = vadd.f32 0.0, %v2232
    %v2234 = vpop.f32.mrf.mxu0
    %2235 = vdwg.mxu0
    %2236 = vmatprep.subr.mxu0 0.0
    %2237 = vmatpush1.msra.mxu0 0.0
    %2238 = vmatprep.subr.mxu0 0.0
    %2239 = vmatpush1.msra.mxu0 0.0
    %2240 = vmatprep.subr.mxu0 0.0
    %2241 = vmatpush1.msra.mxu0 0.0
    %2242 = vmatprep.subr.mxu0 0.0
    %2243 = vmatpush1.msra.mxu0 0.0
    %2244 = vmatprep.subr.mxu0 0.0
    %2245 = vmatpush1.msra.mxu0 0.0
    %2246 = vmatprep.subr.mxu0 0.0
    %2247 = vmatpush1.msra.mxu0 0.0
    %2248 = vmatprep.subr.mxu0 0.0
    %2249 = vmatpush1.msra.mxu0 0.0
    %2250 = vmatprep.subr.mxu0 0.0
    %2251 = vmatpush1.msra.mxu0 0.0
    %2252 = vmatprep.subr.mxu0 0.0
    %2253 = vmatpush1.msra.mxu0 0.0
    %2254 = vmatprep.subr.mxu0 0.0
    %2255 = vmatpush1.msra.mxu0 0.0
    %2256 = vmatprep.subr.mxu0 0.0
    %2257 = vmatpush1.msra.mxu0 0.0
    %2258 = vmatprep.subr.mxu0 0.0
    %2259 = vmatpush1.msra.mxu0 0.0
    %2260 = vmatprep.subr.mxu0 0.0
    %2261 = vmatpush1.msra.mxu0 %v89
    %2262 = vmatprep.subr.mxu0 0.0
    %2263 = vmatpush1.msra.mxu0 %v88
    %2264 = vmatprep.subr.mxu0 0.0
    %2265 = vmatpush1.msra.mxu0 %v87
    %2266 = vmatprep.subr.mxu0 0.0
    %2267 = vmatpush1.msra.mxu0 %v86
    %2268 = vmatprep.subr.mxu0 0.0
    %2269 = vmatpush2.msra.mxu0 0.0
    %2270 = vmatprep.subr.mxu0 0.0
    %2271 = vmatpush2.msra.mxu0 0.0
    %2272 = vmatprep.subr.mxu0 0.0
    %2273 = vmatpush2.msra.mxu0 0.0
    %2274 = vmatprep.subr.mxu0 0.0
    %2275 = vmatpush2.msra.mxu0 0.0
    %2276 = vmatprep.subr.mxu0 0.0
    %2277 = vmatpush2.msra.mxu0 0.0
    %2278 = vmatprep.subr.mxu0 0.0
    %2279 = vmatpush2.msra.mxu0 0.0
    %2280 = vmatprep.subr.mxu0 0.0
    %2281 = vmatpush2.msra.mxu0 0.0
    %2282 = vmatprep.subr.mxu0 0.0
    %2283 = vmatpush2.msra.mxu0 0.0
    %2284 = vmatprep.subr.mxu0 0.0
    %2285 = vmatpush2.msra.mxu0 0.0
    %2286 = vmatprep.subr.mxu0 0.0
    %2287 = vmatpush2.msra.mxu0 0.0
    %2288 = vmatprep.subr.mxu0 0.0
    %2289 = vmatpush2.msra.mxu0 0.0
    %2290 = vmatprep.subr.mxu0 0.0
    %2291 = vmatpush2.msra.mxu0 0.0
    %2292 = vmatprep.subr.mxu0 0.0
    %2293 = vmatpush2.msra.mxu0 0.0
    %2294 = vmatprep.subr.mxu0 0.0
    %2295 = vmatpush2.msra.mxu0 0.0
    %2296 = vmatprep.subr.mxu0 0.0
    %2297 = vmatpush2.msra.mxu0 0.0
    %2298 = vmatprep.subr.mxu0 0.0
    %2299 = vmatpush2.msra.mxu0 0.0
    %2300 = vmatprep.mubr.f32.mxu0 0.0
    %2301 = vmatmul.mubr.f32.gmra.mxu0 %v1980
    %v2302 = vpop.f32.mrf.mxu0
    %v2303 = vadd.f32 %v2233, %v2302
    %v2304 = vpop.f32.mrf.mxu0
    %2305 = vdwg.mxu0
    %2306 = vmatprep.subr.mxu0 0.0
    %2307 = vmatpush1.msra.mxu0 0.0
    %2308 = vmatprep.subr.mxu0 0.0
    %2309 = vmatpush1.msra.mxu0 0.0
    %2310 = vmatprep.subr.mxu0 0.0
    %2311 = vmatpush1.msra.mxu0 0.0
    %2312 = vmatprep.subr.mxu0 0.0
    %2313 = vmatpush1.msra.mxu0 0.0
    %2314 = vmatprep.subr.mxu0 0.0
    %2315 = vmatpush1.msra.mxu0 0.0
    %2316 = vmatprep.subr.mxu0 0.0
    %2317 = vmatpush1.msra.mxu0 0.0
    %2318 = vmatprep.subr.mxu0 0.0
    %2319 = vmatpush1.msra.mxu0 0.0
    %2320 = vmatprep.subr.mxu0 0.0
    %2321 = vmatpush1.msra.mxu0 0.0
    %2322 = vmatprep.subr.mxu0 0.0
    %2323 = vmatpush1.msra.mxu0 0.0
    %2324 = vmatprep.subr.mxu0 0.0
    %2325 = vmatpush1.msra.mxu0 0.0
    %2326 = vmatprep.subr.mxu0 0.0
    %2327 = vmatpush1.msra.mxu0 0.0
    %2328 = vmatprep.subr.mxu0 0.0
    %2329 = vmatpush1.msra.mxu0 0.0
    %2330 = vmatprep.subr.mxu0 0.0
    %2331 = vmatpush1.msra.mxu0 %v97
    %2332 = vmatprep.subr.mxu0 0.0
    %2333 = vmatpush1.msra.mxu0 %v96
    %2334 = vmatprep.subr.mxu0 0.0
    %2335 = vmatpush1.msra.mxu0 %v95
    %2336 = vmatprep.subr.mxu0 0.0
    %2337 = vmatpush1.msra.mxu0 %v94
    %2338 = vmatprep.subr.mxu0 0.0
    %2339 = vmatpush2.msra.mxu0 0.0
    %2340 = vmatprep.subr.mxu0 0.0
    %2341 = vmatpush2.msra.mxu0 0.0
    %2342 = vmatprep.subr.mxu0 0.0
    %2343 = vmatpush2.msra.mxu0 0.0
    %2344 = vmatprep.subr.mxu0 0.0
    %2345 = vmatpush2.msra.mxu0 0.0
    %2346 = vmatprep.subr.mxu0 0.0
    %2347 = vmatpush2.msra.mxu0 0.0
    %2348 = vmatprep.subr.mxu0 0.0
    %2349 = vmatpush2.msra.mxu0 0.0
    %2350 = vmatprep.subr.mxu0 0.0
    %2351 = vmatpush2.msra.mxu0 0.0
    %2352 = vmatprep.subr.mxu0 0.0
    %2353 = vmatpush2.msra.mxu0 0.0
    %2354 = vmatprep.subr.mxu0 0.0
    %2355 = vmatpush2.msra.mxu0 0.0
    %2356 = vmatprep.subr.mxu0 0.0
    %2357 = vmatpush2.msra.mxu0 0.0
    %2358 = vmatprep.subr.mxu0 0.0
    %2359 = vmatpush2.msra.mxu0 0.0
    %2360 = vmatprep.subr.mxu0 0.0
    %2361 = vmatpush2.msra.mxu0 0.0
    %2362 = vmatprep.subr.mxu0 0.0
    %2363 = vmatpush2.msra.mxu0 0.0
    %2364 = vmatprep.subr.mxu0 0.0
    %2365 = vmatpush2.msra.mxu0 0.0
    %2366 = vmatprep.subr.mxu0 0.0
    %2367 = vmatpush2.msra.mxu0 0.0
    %2368 = vmatprep.subr.mxu0 0.0
    %2369 = vmatpush2.msra.mxu0 0.0
    %2370 = vmatprep.mubr.f32.mxu0 0.0
    %2371 = vmatmul.mubr.f32.gmra.mxu0 %v1626
    %v2372 = vpop.f32.mrf.mxu0
    %v2373 = vadd.f32 0.0, %v2372
    %v2374 = vpop.f32.mrf.mxu0
    %2375 = vdwg.mxu0
    %v2376 = vadd.f32 %v2303, %v2373
    %v2377 = vadd.f32 %v2376, %v810
    %v2378 = vxor.u32 %v2377, 2147483648
    %v2379 = vmul.f32 %v2378, 1.442695
    %v2380 = vpow.pop %v2379
    %v2381 = vadd.f32 %v2380, 1.0
    %v2382 = vrcp.pop %v2381
    %v2383 = vmul.f32 1.0, %v2382
    %v2384 = vtanh.pop %v2377
    %v2385 = vmul.f32 %v2383, %v1616
    %2387 = vrot.lane.b32.xlu0 %v2384, 64
    %v2388 = vpop.permute.xlu0 %2387
    %v2390 = vmul.f32 %v2383, %v2388
    %2392 = vrot.lane.b32.xlu0 %v2390, 32
    %v2393 = vpop.permute.xlu0 %2392
    %v2395 = vadd.f32 %v2385, %v2393
    %v2396 = vtanh.pop %v2395
    %2398 = vrot.lane.b32.xlu0 %v2396, 64
    %v2399 = vpop.permute.xlu0 %2398
    %v2401 = vmul.f32 %v2383, %v2399
    %2403 = vrot.lane.b32.xlu0 %v2401, 32
    %v2404 = vpop.permute.xlu0 %2403
    %v2405 = vsel %vm193, %v2404, 0
    %2407 = vmatprep.subr.mxu0 0.0
    %2408 = vmatpush1.msra.mxu0 0.0
    %2409 = vmatprep.subr.mxu0 0.0
    %2410 = vmatpush1.msra.mxu0 0.0
    %2411 = vmatprep.subr.mxu0 0.0
    %2412 = vmatpush1.msra.mxu0 0.0
    %2413 = vmatprep.subr.mxu0 0.0
    %2414 = vmatpush1.msra.mxu0 0.0
    %2415 = vmatprep.subr.mxu0 0.0
    %2416 = vmatpush1.msra.mxu0 0.0
    %2417 = vmatprep.subr.mxu0 0.0
    %2418 = vmatpush1.msra.mxu0 0.0
    %2419 = vmatprep.subr.mxu0 0.0
    %2420 = vmatpush1.msra.mxu0 0.0
    %2421 = vmatprep.subr.mxu0 0.0
    %2422 = vmatpush1.msra.mxu0 0.0
    %2423 = vmatprep.subr.mxu0 0.0
    %2424 = vmatpush1.msra.mxu0 0.0
    %2425 = vmatprep.subr.mxu0 0.0
    %2426 = vmatpush1.msra.mxu0 0.0
    %2427 = vmatprep.subr.mxu0 0.0
    %2428 = vmatpush1.msra.mxu0 0.0
    %2429 = vmatprep.subr.mxu0 0.0
    %2430 = vmatpush1.msra.mxu0 0.0
    %2431 = vmatprep.subr.mxu0 0.0
    %2432 = vmatpush1.msra.mxu0 %v102
    %2433 = vmatprep.subr.mxu0 0.0
    %2434 = vmatpush1.msra.mxu0 %v101
    %2435 = vmatprep.subr.mxu0 0.0
    %2436 = vmatpush1.msra.mxu0 %v100
    %2437 = vmatprep.subr.mxu0 0.0
    %2438 = vmatpush1.msra.mxu0 %v99
    %2439 = vmatprep.subr.mxu0 0.0
    %2440 = vmatpush2.msra.mxu0 0.0
    %2441 = vmatprep.subr.mxu0 0.0
    %2442 = vmatpush2.msra.mxu0 0.0
    %2443 = vmatprep.subr.mxu0 0.0
    %2444 = vmatpush2.msra.mxu0 0.0
    %2445 = vmatprep.subr.mxu0 0.0
    %2446 = vmatpush2.msra.mxu0 0.0
    %2447 = vmatprep.subr.mxu0 0.0
    %2448 = vmatpush2.msra.mxu0 0.0
    %2449 = vmatprep.subr.mxu0 0.0
    %2450 = vmatpush2.msra.mxu0 0.0
    %2451 = vmatprep.subr.mxu0 0.0
    %2452 = vmatpush2.msra.mxu0 0.0
    %2453 = vmatprep.subr.mxu0 0.0
    %2454 = vmatpush2.msra.mxu0 0.0
    %2455 = vmatprep.subr.mxu0 0.0
    %2456 = vmatpush2.msra.mxu0 0.0
    %2457 = vmatprep.subr.mxu0 0.0
    %2458 = vmatpush2.msra.mxu0 0.0
    %2459 = vmatprep.subr.mxu0 0.0
    %2460 = vmatpush2.msra.mxu0 0.0
    %2461 = vmatprep.subr.mxu0 0.0
    %2462 = vmatpush2.msra.mxu0 0.0
    %2463 = vmatprep.subr.mxu0 0.0
    %2464 = vmatpush2.msra.mxu0 0.0
    %2465 = vmatprep.subr.mxu0 0.0
    %2466 = vmatpush2.msra.mxu0 0.0
    %2467 = vmatprep.subr.mxu0 0.0
    %2468 = vmatpush2.msra.mxu0 0.0
    %2469 = vmatprep.subr.mxu0 0.0
    %2470 = vmatpush2.msra.mxu0 0.0
    %2471 = vmatprep.mubr.f32.mxu0 0.0
    %2472 = vmatmul.mubr.f32.gmra.mxu0 %v2405
    %v2473 = vpop.f32.mrf.mxu0
    %v2474 = vadd.f32 %v841, %v2473
    %v2475 = vpop.f32.mrf.mxu0
    %2476 = vdwg.mxu0
    %v2477 = vsel %vm918, %v2474, -inf
    %2478 = vmax.xlane.f32.xlu0 %v2477
    %v2479 = vpop.xlane.xlu0 %2478
    %vm2480 = vcmp.ge.f32.partialorder %v2474, %v2479
    %v2481 = vsel %vm2480, %v107, 64.0
    %v2482 = vsel %vm918, %v2481, inf
    %2483 = vmin.xlane.f32.xlu0 %v2482
    %v2484 = vpop.xlane.xlu0 %2483
    %v2485 = vcvt.f32.s32.to.zero.pseudo %v2484
    %vm2486 = vcmask 17424
    %2487 = vst.msk [vmem:[#allocation3] sm:$0x3] %vm2486, %v2485
    %vm2488 = vcmp.eq.s32.totalorder %v2485, %v106
    %v2489 = vsel %vm2488, 1, 0
    %v2490 = vcvt.s32.f32 %v2489
    %v2492 = vsel %vm111, %v2490, 0
    %2494 = vmatprep.subr.mxu0 0.0
    %2495 = vmatpush1.msra.mxu0 0.0
    %2496 = vmatprep.subr.mxu0 0.0
    %2497 = vmatpush1.msra.mxu0 0.0
    %2498 = vmatprep.subr.mxu0 0.0
    %2499 = vmatpush1.msra.mxu0 0.0
    %2500 = vmatprep.subr.mxu0 0.0
    %2501 = vmatpush1.msra.mxu0 0.0
    %2502 = vmatprep.subr.mxu0 0.0
    %2503 = vmatpush1.msra.mxu0 0.0
    %2504 = vmatprep.subr.mxu0 0.0
    %2505 = vmatpush1.msra.mxu0 0.0
    %2506 = vmatprep.subr.mxu0 0.0
    %2507 = vmatpush1.msra.mxu0 0.0
    %2508 = vmatprep.subr.mxu0 0.0
    %2509 = vmatpush1.msra.mxu0 0.0
    %2510 = vmatprep.subr.mxu0 0.0
    %2511 = vmatpush1.msra.mxu0 %v69
    %2512 = vmatprep.subr.mxu0 0.0
    %2513 = vmatpush1.msra.mxu0 %v68
    %2514 = vmatprep.subr.mxu0 0.0
    %2515 = vmatpush1.msra.mxu0 %v67
    %2516 = vmatprep.subr.mxu0 0.0
    %2517 = vmatpush1.msra.mxu0 %v66
    %2518 = vmatprep.subr.mxu0 0.0
    %2519 = vmatpush1.msra.mxu0 %v65
    %2520 = vmatprep.subr.mxu0 0.0
    %2521 = vmatpush1.msra.mxu0 %v64
    %2522 = vmatprep.subr.mxu0 0.0
    %2523 = vmatpush1.msra.mxu0 %v63
    %2524 = vmatprep.subr.mxu0 0.0
    %2525 = vmatpush1.msra.mxu0 %v62
    %2526 = vmatprep.subr.mxu0 0.0
    %2527 = vmatpush2.msra.mxu0 0.0
    %2528 = vmatprep.subr.mxu0 0.0
    %2529 = vmatpush2.msra.mxu0 0.0
    %2530 = vmatprep.subr.mxu0 0.0
    %2531 = vmatpush2.msra.mxu0 0.0
    %2532 = vmatprep.subr.mxu0 0.0
    %2533 = vmatpush2.msra.mxu0 0.0
    %2534 = vmatprep.subr.mxu0 0.0
    %2535 = vmatpush2.msra.mxu0 0.0
    %2536 = vmatprep.subr.mxu0 0.0
    %2537 = vmatpush2.msra.mxu0 0.0
    %2538 = vmatprep.subr.mxu0 0.0
    %2539 = vmatpush2.msra.mxu0 0.0
    %2540 = vmatprep.subr.mxu0 0.0
    %2541 = vmatpush2.msra.mxu0 0.0
    %2542 = vmatprep.subr.mxu0 0.0
    %2543 = vmatpush2.msra.mxu0 0.0
    %2544 = vmatprep.subr.mxu0 0.0
    %2545 = vmatpush2.msra.mxu0 0.0
    %2546 = vmatprep.subr.mxu0 0.0
    %2547 = vmatpush2.msra.mxu0 0.0
    %2548 = vmatprep.subr.mxu0 0.0
    %2549 = vmatpush2.msra.mxu0 0.0
    %2550 = vmatprep.subr.mxu0 0.0
    %2551 = vmatpush2.msra.mxu0 0.0
    %2552 = vmatprep.subr.mxu0 0.0
    %2553 = vmatpush2.msra.mxu0 0.0
    %2554 = vmatprep.subr.mxu0 0.0
    %2555 = vmatpush2.msra.mxu0 0.0
    %2556 = vmatprep.subr.mxu0 0.0
    %2557 = vmatpush2.msra.mxu0 0.0
    %2558 = vmatprep.mubr.f32.mxu0 0.0
    %2559 = vmatmul.mubr.f32.gmra.mxu0 %v2492
    %v2560 = vpop.f32.mrf.mxu0
    %v2561 = vadd.f32 0.0, %v2560
    %v2562 = vpop.f32.mrf.mxu0
    %2563 = vdwg.mxu0
    %v2564 = vld [vmem:[%s5] sm:$0xff]
    %v2565 = vld [vmem:[%s5 + $0x8] sm:$0xff]
    %v2566 = vld [vmem:[%s5 + $0x10] sm:$0xff]
    %v2567 = vld [vmem:[%s5 + $0x18] sm:$0xff]
    %v2568 = vld [vmem:[%s6] sm:$0xff]
    %v2569 = vld [vmem:[%s6 + $0x8] sm:$0xff]
    %v2570 = vld [vmem:[%s6 + $0x10] sm:$0xff]
    %v2571 = vld [vmem:[%s6 + $0x18] sm:$0xff]
    %2573 = vrot.lane.b32.xlu0 %v1972, 32
    %v2574 = vpop.permute.xlu0 %2573
    %v2575 = vsel %vm193, %v2574, 0
    %2577 = vmatprep.subr.mxu0 0.0
    %2578 = vmatpush1.msra.mxu0 0.0
    %2579 = vmatprep.subr.mxu0 0.0
    %2580 = vmatpush1.msra.mxu0 0.0
    %2581 = vmatprep.subr.mxu0 0.0
    %2582 = vmatpush1.msra.mxu0 0.0
    %2583 = vmatprep.subr.mxu0 0.0
    %2584 = vmatpush1.msra.mxu0 0.0
    %2585 = vmatprep.subr.mxu0 0.0
    %2586 = vmatpush1.msra.mxu0 0.0
    %2587 = vmatprep.subr.mxu0 0.0
    %2588 = vmatpush1.msra.mxu0 0.0
    %2589 = vmatprep.subr.mxu0 0.0
    %2590 = vmatpush1.msra.mxu0 0.0
    %2591 = vmatprep.subr.mxu0 0.0
    %2592 = vmatpush1.msra.mxu0 0.0
    %2593 = vmatprep.subr.mxu0 0.0
    %2594 = vmatpush1.msra.mxu0 0.0
    %2595 = vmatprep.subr.mxu0 0.0
    %2596 = vmatpush1.msra.mxu0 0.0
    %2597 = vmatprep.subr.mxu0 0.0
    %2598 = vmatpush1.msra.mxu0 0.0
    %2599 = vmatprep.subr.mxu0 0.0
    %2600 = vmatpush1.msra.mxu0 0.0
    %2601 = vmatprep.subr.mxu0 0.0
    %2602 = vmatpush1.msra.mxu0 %v2571
    %2603 = vmatprep.subr.mxu0 0.0
    %2604 = vmatpush1.msra.mxu0 %v2570
    %2605 = vmatprep.subr.mxu0 0.0
    %2606 = vmatpush1.msra.mxu0 %v2569
    %2607 = vmatprep.subr.mxu0 0.0
    %2608 = vmatpush1.msra.mxu0 %v2568
    %2609 = vmatprep.subr.mxu0 0.0
    %2610 = vmatpush2.msra.mxu0 0.0
    %2611 = vmatprep.subr.mxu0 0.0
    %2612 = vmatpush2.msra.mxu0 0.0
    %2613 = vmatprep.subr.mxu0 0.0
    %2614 = vmatpush2.msra.mxu0 0.0
    %2615 = vmatprep.subr.mxu0 0.0
    %2616 = vmatpush2.msra.mxu0 0.0
    %2617 = vmatprep.subr.mxu0 0.0
    %2618 = vmatpush2.msra.mxu0 0.0
    %2619 = vmatprep.subr.mxu0 0.0
    %2620 = vmatpush2.msra.mxu0 0.0
    %2621 = vmatprep.subr.mxu0 0.0
    %2622 = vmatpush2.msra.mxu0 0.0
    %2623 = vmatprep.subr.mxu0 0.0
    %2624 = vmatpush2.msra.mxu0 0.0
    %2625 = vmatprep.subr.mxu0 0.0
    %2626 = vmatpush2.msra.mxu0 0.0
    %2627 = vmatprep.subr.mxu0 0.0
    %2628 = vmatpush2.msra.mxu0 0.0
    %2629 = vmatprep.subr.mxu0 0.0
    %2630 = vmatpush2.msra.mxu0 0.0
    %2631 = vmatprep.subr.mxu0 0.0
    %2632 = vmatpush2.msra.mxu0 0.0
    %2633 = vmatprep.subr.mxu0 0.0
    %2634 = vmatpush2.msra.mxu0 0.0
    %2635 = vmatprep.subr.mxu0 0.0
    %2636 = vmatpush2.msra.mxu0 0.0
    %2637 = vmatprep.subr.mxu0 0.0
    %2638 = vmatpush2.msra.mxu0 0.0
    %2639 = vmatprep.subr.mxu0 0.0
    %2640 = vmatpush2.msra.mxu0 0.0
    %2641 = vmatprep.mubr.f32.mxu0 0.0
    %2642 = vmatmul.mubr.f32.gmra.mxu0 %v2575
    %v2643 = vpop.f32.mrf.mxu0
    %v2644 = vadd.f32 0.0, %v2643
    %v2645 = vpop.f32.mrf.mxu0
    %2646 = vdwg.mxu0
    %v2648 = vsel %vm193, %v2561, 0
    %2650 = vmatprep.subr.mxu0 0.0
    %2651 = vmatpush1.msra.mxu0 0.0
    %2652 = vmatprep.subr.mxu0 0.0
    %2653 = vmatpush1.msra.mxu0 0.0
    %2654 = vmatprep.subr.mxu0 0.0
    %2655 = vmatpush1.msra.mxu0 0.0
    %2656 = vmatprep.subr.mxu0 0.0
    %2657 = vmatpush1.msra.mxu0 0.0
    %2658 = vmatprep.subr.mxu0 0.0
    %2659 = vmatpush1.msra.mxu0 0.0
    %2660 = vmatprep.subr.mxu0 0.0
    %2661 = vmatpush1.msra.mxu0 0.0
    %2662 = vmatprep.subr.mxu0 0.0
    %2663 = vmatpush1.msra.mxu0 0.0
    %2664 = vmatprep.subr.mxu0 0.0
    %2665 = vmatpush1.msra.mxu0 0.0
    %2666 = vmatprep.subr.mxu0 0.0
    %2667 = vmatpush1.msra.mxu0 0.0
    %2668 = vmatprep.subr.mxu0 0.0
    %2669 = vmatpush1.msra.mxu0 0.0
    %2670 = vmatprep.subr.mxu0 0.0
    %2671 = vmatpush1.msra.mxu0 0.0
    %2672 = vmatprep.subr.mxu0 0.0
    %2673 = vmatpush1.msra.mxu0 0.0
    %2674 = vmatprep.subr.mxu0 0.0
    %2675 = vmatpush1.msra.mxu0 %v2567
    %2676 = vmatprep.subr.mxu0 0.0
    %2677 = vmatpush1.msra.mxu0 %v2566
    %2678 = vmatprep.subr.mxu0 0.0
    %2679 = vmatpush1.msra.mxu0 %v2565
    %2680 = vmatprep.subr.mxu0 0.0
    %2681 = vmatpush1.msra.mxu0 %v2564
    %2682 = vmatprep.subr.mxu0 0.0
    %2683 = vmatpush2.msra.mxu0 0.0
    %2684 = vmatprep.subr.mxu0 0.0
    %2685 = vmatpush2.msra.mxu0 0.0
    %2686 = vmatprep.subr.mxu0 0.0
    %2687 = vmatpush2.msra.mxu0 0.0
    %2688 = vmatprep.subr.mxu0 0.0
    %2689 = vmatpush2.msra.mxu0 0.0
    %2690 = vmatprep.subr.mxu0 0.0
    %2691 = vmatpush2.msra.mxu0 0.0
    %2692 = vmatprep.subr.mxu0 0.0
    %2693 = vmatpush2.msra.mxu0 0.0
    %2694 = vmatprep.subr.mxu0 0.0
    %2695 = vmatpush2.msra.mxu0 0.0
    %2696 = vmatprep.subr.mxu0 0.0
    %2697 = vmatpush2.msra.mxu0 0.0
    %2698 = vmatprep.subr.mxu0 0.0
    %2699 = vmatpush2.msra.mxu0 0.0
    %2700 = vmatprep.subr.mxu0 0.0
    %2701 = vmatpush2.msra.mxu0 0.0
    %2702 = vmatprep.subr.mxu0 0.0
    %2703 = vmatpush2.msra.mxu0 0.0
    %2704 = vmatprep.subr.mxu0 0.0
    %2705 = vmatpush2.msra.mxu0 0.0
    %2706 = vmatprep.subr.mxu0 0.0
    %2707 = vmatpush2.msra.mxu0 0.0
    %2708 = vmatprep.subr.mxu0 0.0
    %2709 = vmatpush2.msra.mxu0 0.0
    %2710 = vmatprep.subr.mxu0 0.0
    %2711 = vmatpush2.msra.mxu0 0.0
    %2712 = vmatprep.subr.mxu0 0.0
    %2713 = vmatpush2.msra.mxu0 0.0
    %2714 = vmatprep.mubr.f32.mxu0 0.0
    %2715 = vmatmul.mubr.f32.gmra.mxu0 %v2648
    %v2716 = vpop.f32.mrf.mxu0
    %v2717 = vadd.f32 %v2644, %v2716
    %v2718 = vpop.f32.mrf.mxu0
    %2719 = vdwg.mxu0
    %v2720 = vld [vmem:[%s7] sm:$0x1]
    %v2722 = vlaneseq
    %v2723 = vshrl.u32 %v2722, 7
    %v2724 = vsub.s32 0, %v2723
    %v2725 = vrot.slane %v2720, %v2724
    %v2727 = vadd.f32 %v2717, %v2725
    %v2728 = vxor.u32 %v2727, 2147483648
    %v2729 = vmul.f32 %v2728, 1.442695
    %v2730 = vpow.pop %v2729
    %v2731 = vadd.f32 %v2730, 1.0
    %v2732 = vrcp.pop %v2731
    %v2733 = vmul.f32 1.0, %v2732
    %v2734 = vtanh.pop %v2727
    %v2735 = vmul.f32 %v2733, %v1966
    %2737 = vrot.lane.b32.xlu0 %v2734, 64
    %v2738 = vpop.permute.xlu0 %2737
    %v2740 = vmul.f32 %v2733, %v2738
    %2742 = vrot.lane.b32.xlu0 %v2740, 32
    %v2743 = vpop.permute.xlu0 %2742
    %v2745 = vadd.f32 %v2735, %v2743
    %v2746 = vtanh.pop %v2745
    %2748 = vrot.lane.b32.xlu0 %v2746, 64
    %v2749 = vpop.permute.xlu0 %2748
    %v2751 = vmul.f32 %v2733, %v2749
    %2752 = vrot.lane.b32.xlu0 %v2561, 96
    %v2753 = vpop.permute.xlu0 %2752
    %v2755 = vadd.f32 %v2751, %v2753
    %2757 = vrot.lane.b32.xlu0 %v2755, 32
    %v2758 = vpop.permute.xlu0 %2757
    %v2759 = vsel %vm193, %v2758, 0
    %2761 = vmatprep.subr.mxu0 0.0
    %2762 = vmatpush1.msra.mxu0 0.0
    %2763 = vmatprep.subr.mxu0 0.0
    %2764 = vmatpush1.msra.mxu0 0.0
    %2765 = vmatprep.subr.mxu0 0.0
    %2766 = vmatpush1.msra.mxu0 0.0
    %2767 = vmatprep.subr.mxu0 0.0
    %2768 = vmatpush1.msra.mxu0 0.0
    %2769 = vmatprep.subr.mxu0 0.0
    %2770 = vmatpush1.msra.mxu0 0.0
    %2771 = vmatprep.subr.mxu0 0.0
    %2772 = vmatpush1.msra.mxu0 0.0
    %2773 = vmatprep.subr.mxu0 0.0
    %2774 = vmatpush1.msra.mxu0 0.0
    %2775 = vmatprep.subr.mxu0 0.0
    %2776 = vmatpush1.msra.mxu0 0.0
    %2777 = vmatprep.subr.mxu0 0.0
    %2778 = vmatpush1.msra.mxu0 0.0
    %2779 = vmatprep.subr.mxu0 0.0
    %2780 = vmatpush1.msra.mxu0 0.0
    %2781 = vmatprep.subr.mxu0 0.0
    %2782 = vmatpush1.msra.mxu0 0.0
    %2783 = vmatprep.subr.mxu0 0.0
    %2784 = vmatpush1.msra.mxu0 0.0
    %2785 = vmatprep.subr.mxu0 0.0
    %2786 = vmatpush1.msra.mxu0 %v84
    %2787 = vmatprep.subr.mxu0 0.0
    %2788 = vmatpush1.msra.mxu0 %v83
    %2789 = vmatprep.subr.mxu0 0.0
    %2790 = vmatpush1.msra.mxu0 %v82
    %2791 = vmatprep.subr.mxu0 0.0
    %2792 = vmatpush1.msra.mxu0 %v81
    %2793 = vmatprep.subr.mxu0 0.0
    %2794 = vmatpush2.msra.mxu0 0.0
    %2795 = vmatprep.subr.mxu0 0.0
    %2796 = vmatpush2.msra.mxu0 0.0
    %2797 = vmatprep.subr.mxu0 0.0
    %2798 = vmatpush2.msra.mxu0 0.0
    %2799 = vmatprep.subr.mxu0 0.0
    %2800 = vmatpush2.msra.mxu0 0.0
    %2801 = vmatprep.subr.mxu0 0.0
    %2802 = vmatpush2.msra.mxu0 0.0
    %2803 = vmatprep.subr.mxu0 0.0
    %2804 = vmatpush2.msra.mxu0 0.0
    %2805 = vmatprep.subr.mxu0 0.0
    %2806 = vmatpush2.msra.mxu0 0.0
    %2807 = vmatprep.subr.mxu0 0.0
    %2808 = vmatpush2.msra.mxu0 0.0
    %2809 = vmatprep.subr.mxu0 0.0
    %2810 = vmatpush2.msra.mxu0 0.0
    %2811 = vmatprep.subr.mxu0 0.0
    %2812 = vmatpush2.msra.mxu0 0.0
    %2813 = vmatprep.subr.mxu0 0.0
    %2814 = vmatpush2.msra.mxu0 0.0
    %2815 = vmatprep.subr.mxu0 0.0
    %2816 = vmatpush2.msra.mxu0 0.0
    %2817 = vmatprep.subr.mxu0 0.0
    %2818 = vmatpush2.msra.mxu0 0.0
    %2819 = vmatprep.subr.mxu0 0.0
    %2820 = vmatpush2.msra.mxu0 0.0
    %2821 = vmatprep.subr.mxu0 0.0
    %2822 = vmatpush2.msra.mxu0 0.0
    %2823 = vmatprep.subr.mxu0 0.0
    %2824 = vmatpush2.msra.mxu0 0.0
    %2825 = vmatprep.mubr.f32.mxu0 0.0
    %2826 = vmatmul.mubr.f32.gmra.mxu0 %v2759
    %v2827 = vpop.f32.mrf.mxu0
    %v2828 = vadd.f32 %v383, %v2827
    %v2829 = vpop.f32.mrf.mxu0
    %2830 = vdwg.mxu0
    %v2831 = vadd.f32 %v2828, %v70
    %v2832 = vadd.f32 %v2828, %v71
    %v2833 = vadd.f32 %v2828, %v72
    %v2834 = vadd.f32 %v2828, %v73
    %v2835 = vtanh.pop %v2831
    %v2836 = vtanh.pop %v2832
    %v2837 = vtanh.pop %v2833
    %v2838 = vtanh.pop %v2834
    %v2839 = vmul.f32 %v2835, %v472
    %v2840 = vmul.f32 %v2836, %v472
    %v2841 = vmul.f32 %v2837, %v472
    %v2842 = vmul.f32 %v2838, %v472
    %v2843 = vsel %vm478, %v2839, 0.0
    %2844 = vadd.xlane.f32.xlu0 %v2843
    %v2845 = vpop.xlane.xlu0 %2844
    %v2846 = vsel %vm478, %v2840, 0.0
    %2847 = vadd.xlane.f32.xlu0 %v2846
    %v2848 = vpop.xlane.xlu0 %2847
    %v2849 = vsel %vm478, %v2841, 0.0
    %2850 = vadd.xlane.f32.xlu0 %v2849
    %v2851 = vpop.xlane.xlu0 %2850
    %v2852 = vsel %vm478, %v2842, 0.0
    %2853 = vadd.xlane.f32.xlu0 %v2852
    %v2854 = vpop.xlane.xlu0 %2853
    %v2855 = vadd.f32 %v2845, %v498
    %v2856 = vadd.f32 %v2848, %v498
    %v2857 = vadd.f32 %v2851, %v498
    %v2858 = vadd.f32 %v2854, %v498
    %v2863 = vlaneseq
    %v2864 = vshrl.u32 %v2863, 7
    %v2865 = vsub.s32 %v106, %v2864
    %v2866 = vrot.slane %v2855, %v2865
    %v2867 = vlaneseq
    %v2868 = vshrl.u32 %v2867, 7
    %v2869 = vsub.s32 %v106, %v2868
    %v2870 = vrot.slane %v2856, %v2869
    %v2871 = vlaneseq
    %v2872 = vshrl.u32 %v2871, 7
    %v2873 = vsub.s32 %v106, %v2872
    %v2874 = vrot.slane %v2857, %v2873
    %v2875 = vlaneseq
    %v2876 = vshrl.u32 %v2875, 7
    %v2877 = vsub.s32 %v106, %v2876
    %v2878 = vrot.slane %v2858, %v2877
    %v2879 = vsel %vm525, %v2870, %v2866
    %v2880 = vsel %vm527, %v2874, %v2879
    %v2881 = vsel %vm529, %v2878, %v2880
    %v2883 = vsel %vm504, %v2881, -1000000.0
    %v2884 = vsel %vm533, %v2883, -inf
    %v2885 = vrot.slane %v2884, 4
    %v2886 = vmax.f32 %v2884, %v2885
    %v2887 = vrot.slane %v2886, 2
    %v2888 = vmax.f32 %v2886, %v2887
    %v2889 = vrot.slane %v2888, 1
    %v2890 = vmax.f32 %v2888, %v2889
    %v2891 = vsub.f32 %v2883, %v2890
    %v2892 = vmul.f32 %v2891, 1.442695
    %v2893 = vpow.pop %v2892
    %v2894 = vsel %vm533, %v2893, 0.0
    %v2895 = vrot.slane %v2894, 4
    %v2896 = vadd.f32 %v2894, %v2895
    %v2897 = vrot.slane %v2896, 2
    %v2898 = vadd.f32 %v2896, %v2897
    %v2899 = vrot.slane %v2898, 1
    %v2900 = vadd.f32 %v2898, %v2899
    %v2901 = vrcp.pop %v2900
    %v2902 = vmul.f32 %v2893, %v2901
    %v2903 = vlaneseq
    %v2904 = vshrl.u32 %v2903, 7
    %v2905 = vsub.s32 0, %v2904
    %v2906 = vrot.slane %v2902, %v2905
    %2908 = vbcast.lane.b32.xlu0 %v2906, 256
    %v2909 = vpop.permute.xlu0 %2908
    %v2910 = vlaneseq
    %v2911 = vshrl.u32 %v2910, 7
    %v2912 = vsub.s32 1, %v2911
    %v2913 = vrot.slane %v2902, %v2912
    %2915 = vbcast.lane.b32.xlu0 %v2913, 256
    %v2916 = vpop.permute.xlu0 %2915
    %v2917 = vlaneseq
    %v2918 = vshrl.u32 %v2917, 7
    %v2919 = vsub.s32 2, %v2918
    %v2920 = vrot.slane %v2902, %v2919
    %2922 = vbcast.lane.b32.xlu0 %v2920, 256
    %v2923 = vpop.permute.xlu0 %2922
    %v2924 = vlaneseq
    %v2925 = vshrl.u32 %v2924, 7
    %v2926 = vsub.s32 3, %v2925
    %v2927 = vrot.slane %v2902, %v2926
    %2929 = vbcast.lane.b32.xlu0 %v2927, 256
    %v2930 = vpop.permute.xlu0 %2929
    %v2931 = vmul.f32 %v2909, %v74
    %v2932 = vmul.f32 %v2916, %v75
    %v2933 = vmul.f32 %v2923, %v76
    %v2934 = vmul.f32 %v2930, %v77
    %v2935 = vsel %vm478, %v2931, 0.0
    %v2936 = vsel %vm478, %v2932, 0.0
    %v2937 = vadd.f32 %v2935, %v2936
    %v2938 = vsel %vm478, %v2933, 0.0
    %v2939 = vadd.f32 %v2937, %v2938
    %v2940 = vsel %vm478, %v2934, 0.0
    %v2941 = vadd.f32 %v2939, %v2940
    %v2943 = vsel %vm193, %v2941, 0
    %2945 = vmatprep.subr.mxu0 0.0
    %2946 = vmatpush1.msra.mxu0 0.0
    %2947 = vmatprep.subr.mxu0 0.0
    %2948 = vmatpush1.msra.mxu0 0.0
    %2949 = vmatprep.subr.mxu0 0.0
    %2950 = vmatpush1.msra.mxu0 0.0
    %2951 = vmatprep.subr.mxu0 0.0
    %2952 = vmatpush1.msra.mxu0 0.0
    %2953 = vmatprep.subr.mxu0 0.0
    %2954 = vmatpush1.msra.mxu0 0.0
    %2955 = vmatprep.subr.mxu0 0.0
    %2956 = vmatpush1.msra.mxu0 0.0
    %2957 = vmatprep.subr.mxu0 0.0
    %2958 = vmatpush1.msra.mxu0 0.0
    %2959 = vmatprep.subr.mxu0 0.0
    %2960 = vmatpush1.msra.mxu0 0.0
    %2961 = vmatprep.subr.mxu0 0.0
    %2962 = vmatpush1.msra.mxu0 0.0
    %2963 = vmatprep.subr.mxu0 0.0
    %2964 = vmatpush1.msra.mxu0 0.0
    %2965 = vmatprep.subr.mxu0 0.0
    %2966 = vmatpush1.msra.mxu0 0.0
    %2967 = vmatprep.subr.mxu0 0.0
    %2968 = vmatpush1.msra.mxu0 0.0
    %2969 = vmatprep.subr.mxu0 0.0
    %2970 = vmatpush1.msra.mxu0 %v93
    %2971 = vmatprep.subr.mxu0 0.0
    %2972 = vmatpush1.msra.mxu0 %v92
    %2973 = vmatprep.subr.mxu0 0.0
    %2974 = vmatpush1.msra.mxu0 %v91
    %2975 = vmatprep.subr.mxu0 0.0
    %2976 = vmatpush1.msra.mxu0 %v90
    %2977 = vmatprep.subr.mxu0 0.0
    %2978 = vmatpush2.msra.mxu0 0.0
    %2979 = vmatprep.subr.mxu0 0.0
    %2980 = vmatpush2.msra.mxu0 0.0
    %2981 = vmatprep.subr.mxu0 0.0
    %2982 = vmatpush2.msra.mxu0 0.0
    %2983 = vmatprep.subr.mxu0 0.0
    %2984 = vmatpush2.msra.mxu0 0.0
    %2985 = vmatprep.subr.mxu0 0.0
    %2986 = vmatpush2.msra.mxu0 0.0
    %2987 = vmatprep.subr.mxu0 0.0
    %2988 = vmatpush2.msra.mxu0 0.0
    %2989 = vmatprep.subr.mxu0 0.0
    %2990 = vmatpush2.msra.mxu0 0.0
    %2991 = vmatprep.subr.mxu0 0.0
    %2992 = vmatpush2.msra.mxu0 0.0
    %2993 = vmatprep.subr.mxu0 0.0
    %2994 = vmatpush2.msra.mxu0 0.0
    %2995 = vmatprep.subr.mxu0 0.0
    %2996 = vmatpush2.msra.mxu0 0.0
    %2997 = vmatprep.subr.mxu0 0.0
    %2998 = vmatpush2.msra.mxu0 0.0
    %2999 = vmatprep.subr.mxu0 0.0
    %3000 = vmatpush2.msra.mxu0 0.0
    %3001 = vmatprep.subr.mxu0 0.0
    %3002 = vmatpush2.msra.mxu0 0.0
    %3003 = vmatprep.subr.mxu0 0.0
    %3004 = vmatpush2.msra.mxu0 0.0
    %3005 = vmatprep.subr.mxu0 0.0
    %3006 = vmatpush2.msra.mxu0 0.0
    %3007 = vmatprep.subr.mxu0 0.0
    %3008 = vmatpush2.msra.mxu0 0.0
    %3009 = vmatprep.mubr.f32.mxu0 0.0
    %3010 = vmatmul.mubr.f32.gmra.mxu0 %v2943
    %v3011 = vpop.f32.mrf.mxu0
    %v3012 = vadd.f32 0.0, %v3011
    %v3013 = vpop.f32.mrf.mxu0
    %3014 = vdwg.mxu0
    %3015 = vmatprep.subr.mxu0 0.0
    %3016 = vmatpush1.msra.mxu0 0.0
    %3017 = vmatprep.subr.mxu0 0.0
    %3018 = vmatpush1.msra.mxu0 0.0
    %3019 = vmatprep.subr.mxu0 0.0
    %3020 = vmatpush1.msra.mxu0 0.0
    %3021 = vmatprep.subr.mxu0 0.0
    %3022 = vmatpush1.msra.mxu0 0.0
    %3023 = vmatprep.subr.mxu0 0.0
    %3024 = vmatpush1.msra.mxu0 0.0
    %3025 = vmatprep.subr.mxu0 0.0
    %3026 = vmatpush1.msra.mxu0 0.0
    %3027 = vmatprep.subr.mxu0 0.0
    %3028 = vmatpush1.msra.mxu0 0.0
    %3029 = vmatprep.subr.mxu0 0.0
    %3030 = vmatpush1.msra.mxu0 0.0
    %3031 = vmatprep.subr.mxu0 0.0
    %3032 = vmatpush1.msra.mxu0 0.0
    %3033 = vmatprep.subr.mxu0 0.0
    %3034 = vmatpush1.msra.mxu0 0.0
    %3035 = vmatprep.subr.mxu0 0.0
    %3036 = vmatpush1.msra.mxu0 0.0
    %3037 = vmatprep.subr.mxu0 0.0
    %3038 = vmatpush1.msra.mxu0 0.0
    %3039 = vmatprep.subr.mxu0 0.0
    %3040 = vmatpush1.msra.mxu0 %v89
    %3041 = vmatprep.subr.mxu0 0.0
    %3042 = vmatpush1.msra.mxu0 %v88
    %3043 = vmatprep.subr.mxu0 0.0
    %3044 = vmatpush1.msra.mxu0 %v87
    %3045 = vmatprep.subr.mxu0 0.0
    %3046 = vmatpush1.msra.mxu0 %v86
    %3047 = vmatprep.subr.mxu0 0.0
    %3048 = vmatpush2.msra.mxu0 0.0
    %3049 = vmatprep.subr.mxu0 0.0
    %3050 = vmatpush2.msra.mxu0 0.0
    %3051 = vmatprep.subr.mxu0 0.0
    %3052 = vmatpush2.msra.mxu0 0.0
    %3053 = vmatprep.subr.mxu0 0.0
    %3054 = vmatpush2.msra.mxu0 0.0
    %3055 = vmatprep.subr.mxu0 0.0
    %3056 = vmatpush2.msra.mxu0 0.0
    %3057 = vmatprep.subr.mxu0 0.0
    %3058 = vmatpush2.msra.mxu0 0.0
    %3059 = vmatprep.subr.mxu0 0.0
    %3060 = vmatpush2.msra.mxu0 0.0
    %3061 = vmatprep.subr.mxu0 0.0
    %3062 = vmatpush2.msra.mxu0 0.0
    %3063 = vmatprep.subr.mxu0 0.0
    %3064 = vmatpush2.msra.mxu0 0.0
    %3065 = vmatprep.subr.mxu0 0.0
    %3066 = vmatpush2.msra.mxu0 0.0
    %3067 = vmatprep.subr.mxu0 0.0
    %3068 = vmatpush2.msra.mxu0 0.0
    %3069 = vmatprep.subr.mxu0 0.0
    %3070 = vmatpush2.msra.mxu0 0.0
    %3071 = vmatprep.subr.mxu0 0.0
    %3072 = vmatpush2.msra.mxu0 0.0
    %3073 = vmatprep.subr.mxu0 0.0
    %3074 = vmatpush2.msra.mxu0 0.0
    %3075 = vmatprep.subr.mxu0 0.0
    %3076 = vmatpush2.msra.mxu0 0.0
    %3077 = vmatprep.subr.mxu0 0.0
    %3078 = vmatpush2.msra.mxu0 0.0
    %3079 = vmatprep.mubr.f32.mxu0 0.0
    %3080 = vmatmul.mubr.f32.gmra.mxu0 %v2759
    %v3081 = vpop.f32.mrf.mxu0
    %v3082 = vadd.f32 %v3012, %v3081
    %v3083 = vpop.f32.mrf.mxu0
    %3084 = vdwg.mxu0
    %3085 = vmatprep.subr.mxu0 0.0
    %3086 = vmatpush1.msra.mxu0 0.0
    %3087 = vmatprep.subr.mxu0 0.0
    %3088 = vmatpush1.msra.mxu0 0.0
    %3089 = vmatprep.subr.mxu0 0.0
    %3090 = vmatpush1.msra.mxu0 0.0
    %3091 = vmatprep.subr.mxu0 0.0
    %3092 = vmatpush1.msra.mxu0 0.0
    %3093 = vmatprep.subr.mxu0 0.0
    %3094 = vmatpush1.msra.mxu0 0.0
    %3095 = vmatprep.subr.mxu0 0.0
    %3096 = vmatpush1.msra.mxu0 0.0
    %3097 = vmatprep.subr.mxu0 0.0
    %3098 = vmatpush1.msra.mxu0 0.0
    %3099 = vmatprep.subr.mxu0 0.0
    %3100 = vmatpush1.msra.mxu0 0.0
    %3101 = vmatprep.subr.mxu0 0.0
    %3102 = vmatpush1.msra.mxu0 0.0
    %3103 = vmatprep.subr.mxu0 0.0
    %3104 = vmatpush1.msra.mxu0 0.0
    %3105 = vmatprep.subr.mxu0 0.0
    %3106 = vmatpush1.msra.mxu0 0.0
    %3107 = vmatprep.subr.mxu0 0.0
    %3108 = vmatpush1.msra.mxu0 0.0
    %3109 = vmatprep.subr.mxu0 0.0
    %3110 = vmatpush1.msra.mxu0 %v97
    %3111 = vmatprep.subr.mxu0 0.0
    %3112 = vmatpush1.msra.mxu0 %v96
    %3113 = vmatprep.subr.mxu0 0.0
    %3114 = vmatpush1.msra.mxu0 %v95
    %3115 = vmatprep.subr.mxu0 0.0
    %3116 = vmatpush1.msra.mxu0 %v94
    %3117 = vmatprep.subr.mxu0 0.0
    %3118 = vmatpush2.msra.mxu0 0.0
    %3119 = vmatprep.subr.mxu0 0.0
    %3120 = vmatpush2.msra.mxu0 0.0
    %3121 = vmatprep.subr.mxu0 0.0
    %3122 = vmatpush2.msra.mxu0 0.0
    %3123 = vmatprep.subr.mxu0 0.0
    %3124 = vmatpush2.msra.mxu0 0.0
    %3125 = vmatprep.subr.mxu0 0.0
    %3126 = vmatpush2.msra.mxu0 0.0
    %3127 = vmatprep.subr.mxu0 0.0
    %3128 = vmatpush2.msra.mxu0 0.0
    %3129 = vmatprep.subr.mxu0 0.0
    %3130 = vmatpush2.msra.mxu0 0.0
    %3131 = vmatprep.subr.mxu0 0.0
    %3132 = vmatpush2.msra.mxu0 0.0
    %3133 = vmatprep.subr.mxu0 0.0
    %3134 = vmatpush2.msra.mxu0 0.0
    %3135 = vmatprep.subr.mxu0 0.0
    %3136 = vmatpush2.msra.mxu0 0.0
    %3137 = vmatprep.subr.mxu0 0.0
    %3138 = vmatpush2.msra.mxu0 0.0
    %3139 = vmatprep.subr.mxu0 0.0
    %3140 = vmatpush2.msra.mxu0 0.0
    %3141 = vmatprep.subr.mxu0 0.0
    %3142 = vmatpush2.msra.mxu0 0.0
    %3143 = vmatprep.subr.mxu0 0.0
    %3144 = vmatpush2.msra.mxu0 0.0
    %3145 = vmatprep.subr.mxu0 0.0
    %3146 = vmatpush2.msra.mxu0 0.0
    %3147 = vmatprep.subr.mxu0 0.0
    %3148 = vmatpush2.msra.mxu0 0.0
    %3149 = vmatprep.mubr.f32.mxu0 0.0
    %3150 = vmatmul.mubr.f32.gmra.mxu0 %v2405
    %v3151 = vpop.f32.mrf.mxu0
    %v3152 = vadd.f32 0.0, %v3151
    %v3153 = vpop.f32.mrf.mxu0
    %3154 = vdwg.mxu0
    %v3155 = vadd.f32 %v3082, %v3152
    %v3156 = vadd.f32 %v3155, %v810
    %v3157 = vxor.u32 %v3156, 2147483648
    %v3158 = vmul.f32 %v3157, 1.442695
    %v3159 = vpow.pop %v3158
    %v3160 = vadd.f32 %v3159, 1.0
    %v3161 = vrcp.pop %v3160
    %v3162 = vmul.f32 1.0, %v3161
    %v3163 = vtanh.pop %v3156
    %v3164 = vmul.f32 %v3162, %v2395
    %3166 = vrot.lane.b32.xlu0 %v3163, 64
    %v3167 = vpop.permute.xlu0 %3166
    %v3169 = vmul.f32 %v3162, %v3167
    %3171 = vrot.lane.b32.xlu0 %v3169, 32
    %v3172 = vpop.permute.xlu0 %3171
    %v3174 = vadd.f32 %v3164, %v3172
    %v3175 = vtanh.pop %v3174
    %3177 = vrot.lane.b32.xlu0 %v3175, 64
    %v3178 = vpop.permute.xlu0 %3177
    %v3180 = vmul.f32 %v3162, %v3178
    %3182 = vrot.lane.b32.xlu0 %v3180, 32
    %v3183 = vpop.permute.xlu0 %3182
    %v3184 = vsel %vm193, %v3183, 0
    %3186 = vmatprep.subr.mxu0 0.0
    %3187 = vmatpush1.msra.mxu0 0.0
    %3188 = vmatprep.subr.mxu0 0.0
    %3189 = vmatpush1.msra.mxu0 0.0
    %3190 = vmatprep.subr.mxu0 0.0
    %3191 = vmatpush1.msra.mxu0 0.0
    %3192 = vmatprep.subr.mxu0 0.0
    %3193 = vmatpush1.msra.mxu0 0.0
    %3194 = vmatprep.subr.mxu0 0.0
    %3195 = vmatpush1.msra.mxu0 0.0
    %3196 = vmatprep.subr.mxu0 0.0
    %3197 = vmatpush1.msra.mxu0 0.0
    %3198 = vmatprep.subr.mxu0 0.0
    %3199 = vmatpush1.msra.mxu0 0.0
    %3200 = vmatprep.subr.mxu0 0.0
    %3201 = vmatpush1.msra.mxu0 0.0
    %3202 = vmatprep.subr.mxu0 0.0
    %3203 = vmatpush1.msra.mxu0 0.0
    %3204 = vmatprep.subr.mxu0 0.0
    %3205 = vmatpush1.msra.mxu0 0.0
    %3206 = vmatprep.subr.mxu0 0.0
    %3207 = vmatpush1.msra.mxu0 0.0
    %3208 = vmatprep.subr.mxu0 0.0
    %3209 = vmatpush1.msra.mxu0 0.0
    %3210 = vmatprep.subr.mxu0 0.0
    %3211 = vmatpush1.msra.mxu0 %v102
    %3212 = vmatprep.subr.mxu0 0.0
    %3213 = vmatpush1.msra.mxu0 %v101
    %3214 = vmatprep.subr.mxu0 0.0
    %3215 = vmatpush1.msra.mxu0 %v100
    %3216 = vmatprep.subr.mxu0 0.0
    %3217 = vmatpush1.msra.mxu0 %v99
    %3218 = vmatprep.subr.mxu0 0.0
    %3219 = vmatpush2.msra.mxu0 0.0
    %3220 = vmatprep.subr.mxu0 0.0
    %3221 = vmatpush2.msra.mxu0 0.0
    %3222 = vmatprep.subr.mxu0 0.0
    %3223 = vmatpush2.msra.mxu0 0.0
    %3224 = vmatprep.subr.mxu0 0.0
    %3225 = vmatpush2.msra.mxu0 0.0
    %3226 = vmatprep.subr.mxu0 0.0
    %3227 = vmatpush2.msra.mxu0 0.0
    %3228 = vmatprep.subr.mxu0 0.0
    %3229 = vmatpush2.msra.mxu0 0.0
    %3230 = vmatprep.subr.mxu0 0.0
    %3231 = vmatpush2.msra.mxu0 0.0
    %3232 = vmatprep.subr.mxu0 0.0
    %3233 = vmatpush2.msra.mxu0 0.0
    %3234 = vmatprep.subr.mxu0 0.0
    %3235 = vmatpush2.msra.mxu0 0.0
    %3236 = vmatprep.subr.mxu0 0.0
    %3237 = vmatpush2.msra.mxu0 0.0
    %3238 = vmatprep.subr.mxu0 0.0
    %3239 = vmatpush2.msra.mxu0 0.0
    %3240 = vmatprep.subr.mxu0 0.0
    %3241 = vmatpush2.msra.mxu0 0.0
    %3242 = vmatprep.subr.mxu0 0.0
    %3243 = vmatpush2.msra.mxu0 0.0
    %3244 = vmatprep.subr.mxu0 0.0
    %3245 = vmatpush2.msra.mxu0 0.0
    %3246 = vmatprep.subr.mxu0 0.0
    %3247 = vmatpush2.msra.mxu0 0.0
    %3248 = vmatprep.subr.mxu0 0.0
    %3249 = vmatpush2.msra.mxu0 0.0
    %3250 = vmatprep.mubr.f32.mxu0 0.0
    %3251 = vmatmul.mubr.f32.gmra.mxu0 %v3184
    %v3252 = vpop.f32.mrf.mxu0
    %v3253 = vadd.f32 %v841, %v3252
    %v3254 = vpop.f32.mrf.mxu0
    %3255 = vdwg.mxu0
    %v3256 = vsel %vm918, %v3253, -inf
    %3257 = vmax.xlane.f32.xlu0 %v3256
    %v3258 = vpop.xlane.xlu0 %3257
    %vm3259 = vcmp.ge.f32.partialorder %v3253, %v3258
    %v3260 = vsel %vm3259, %v107, 64.0
    %v3261 = vsel %vm918, %v3260, inf
    %3262 = vmin.xlane.f32.xlu0 %v3261
    %v3263 = vpop.xlane.xlu0 %3262
    %v3264 = vcvt.f32.s32.to.zero.pseudo %v3263
    %vm3265 = vcmask 25624
    %3266 = vst.msk [vmem:[#allocation3] sm:$0x3] %vm3265, %v3264
    %vm3267 = vcmp.eq.s32.totalorder %v3264, %v106
    %v3268 = vsel %vm3267, 1, 0
    %v3269 = vcvt.s32.f32 %v3268
    %v3271 = vsel %vm111, %v3269, 0
    %3273 = vmatprep.subr.mxu0 0.0
    %3274 = vmatpush1.msra.mxu0 0.0
    %3275 = vmatprep.subr.mxu0 0.0
    %3276 = vmatpush1.msra.mxu0 0.0
    %3277 = vmatprep.subr.mxu0 0.0
    %3278 = vmatpush1.msra.mxu0 0.0
    %3279 = vmatprep.subr.mxu0 0.0
    %3280 = vmatpush1.msra.mxu0 0.0
    %3281 = vmatprep.subr.mxu0 0.0
    %3282 = vmatpush1.msra.mxu0 0.0
    %3283 = vmatprep.subr.mxu0 0.0
    %3284 = vmatpush1.msra.mxu0 0.0
    %3285 = vmatprep.subr.mxu0 0.0
    %3286 = vmatpush1.msra.mxu0 0.0
    %3287 = vmatprep.subr.mxu0 0.0
    %3288 = vmatpush1.msra.mxu0 0.0
    %3289 = vmatprep.subr.mxu0 0.0
    %3290 = vmatpush1.msra.mxu0 %v69
    %3291 = vmatprep.subr.mxu0 0.0
    %3292 = vmatpush1.msra.mxu0 %v68
    %3293 = vmatprep.subr.mxu0 0.0
    %3294 = vmatpush1.msra.mxu0 %v67
    %3295 = vmatprep.subr.mxu0 0.0
    %3296 = vmatpush1.msra.mxu0 %v66
    %3297 = vmatprep.subr.mxu0 0.0
    %3298 = vmatpush1.msra.mxu0 %v65
    %3299 = vmatprep.subr.mxu0 0.0
    %3300 = vmatpush1.msra.mxu0 %v64
    %3301 = vmatprep.subr.mxu0 0.0
    %3302 = vmatpush1.msra.mxu0 %v63
    %3303 = vmatprep.subr.mxu0 0.0
    %3304 = vmatpush1.msra.mxu0 %v62
    %3305 = vmatprep.subr.mxu0 0.0
    %3306 = vmatpush2.msra.mxu0 0.0
    %3307 = vmatprep.subr.mxu0 0.0
    %3308 = vmatpush2.msra.mxu0 0.0
    %3309 = vmatprep.subr.mxu0 0.0
    %3310 = vmatpush2.msra.mxu0 0.0
    %3311 = vmatprep.subr.mxu0 0.0
    %3312 = vmatpush2.msra.mxu0 0.0
    %3313 = vmatprep.subr.mxu0 0.0
    %3314 = vmatpush2.msra.mxu0 0.0
    %3315 = vmatprep.subr.mxu0 0.0
    %3316 = vmatpush2.msra.mxu0 0.0
    %3317 = vmatprep.subr.mxu0 0.0
    %3318 = vmatpush2.msra.mxu0 0.0
    %3319 = vmatprep.subr.mxu0 0.0
    %3320 = vmatpush2.msra.mxu0 0.0
    %3321 = vmatprep.subr.mxu0 0.0
    %3322 = vmatpush2.msra.mxu0 0.0
    %3323 = vmatprep.subr.mxu0 0.0
    %3324 = vmatpush2.msra.mxu0 0.0
    %3325 = vmatprep.subr.mxu0 0.0
    %3326 = vmatpush2.msra.mxu0 0.0
    %3327 = vmatprep.subr.mxu0 0.0
    %3328 = vmatpush2.msra.mxu0 0.0
    %3329 = vmatprep.subr.mxu0 0.0
    %3330 = vmatpush2.msra.mxu0 0.0
    %3331 = vmatprep.subr.mxu0 0.0
    %3332 = vmatpush2.msra.mxu0 0.0
    %3333 = vmatprep.subr.mxu0 0.0
    %3334 = vmatpush2.msra.mxu0 0.0
    %3335 = vmatprep.subr.mxu0 0.0
    %3336 = vmatpush2.msra.mxu0 0.0
    %3337 = vmatprep.mubr.f32.mxu0 0.0
    %3338 = vmatmul.mubr.f32.gmra.mxu0 %v3271
    %v3339 = vpop.f32.mrf.mxu0
    %v3340 = vadd.f32 0.0, %v3339
    %v3341 = vpop.f32.mrf.mxu0
    %3342 = vdwg.mxu0
    %v3343 = vld [vmem:[%s5] sm:$0xff]
    %v3344 = vld [vmem:[%s5 + $0x8] sm:$0xff]
    %v3345 = vld [vmem:[%s5 + $0x10] sm:$0xff]
    %v3346 = vld [vmem:[%s5 + $0x18] sm:$0xff]
    %v3347 = vld [vmem:[%s6] sm:$0xff]
    %v3348 = vld [vmem:[%s6 + $0x8] sm:$0xff]
    %v3349 = vld [vmem:[%s6 + $0x10] sm:$0xff]
    %v3350 = vld [vmem:[%s6 + $0x18] sm:$0xff]
    %3352 = vrot.lane.b32.xlu0 %v2751, 32
    %v3353 = vpop.permute.xlu0 %3352
    %v3354 = vsel %vm193, %v3353, 0
    %3356 = vmatprep.subr.mxu0 0.0
    %3357 = vmatpush1.msra.mxu0 0.0
    %3358 = vmatprep.subr.mxu0 0.0
    %3359 = vmatpush1.msra.mxu0 0.0
    %3360 = vmatprep.subr.mxu0 0.0
    %3361 = vmatpush1.msra.mxu0 0.0
    %3362 = vmatprep.subr.mxu0 0.0
    %3363 = vmatpush1.msra.mxu0 0.0
    %3364 = vmatprep.subr.mxu0 0.0
    %3365 = vmatpush1.msra.mxu0 0.0
    %3366 = vmatprep.subr.mxu0 0.0
    %3367 = vmatpush1.msra.mxu0 0.0
    %3368 = vmatprep.subr.mxu0 0.0
    %3369 = vmatpush1.msra.mxu0 0.0
    %3370 = vmatprep.subr.mxu0 0.0
    %3371 = vmatpush1.msra.mxu0 0.0
    %3372 = vmatprep.subr.mxu0 0.0
    %3373 = vmatpush1.msra.mxu0 0.0
    %3374 = vmatprep.subr.mxu0 0.0
    %3375 = vmatpush1.msra.mxu0 0.0
    %3376 = vmatprep.subr.mxu0 0.0
    %3377 = vmatpush1.msra.mxu0 0.0
    %3378 = vmatprep.subr.mxu0 0.0
    %3379 = vmatpush1.msra.mxu0 0.0
    %3380 = vmatprep.subr.mxu0 0.0
    %3381 = vmatpush1.msra.mxu0 %v3350
    %3382 = vmatprep.subr.mxu0 0.0
    %3383 = vmatpush1.msra.mxu0 %v3349
    %3384 = vmatprep.subr.mxu0 0.0
    %3385 = vmatpush1.msra.mxu0 %v3348
    %3386 = vmatprep.subr.mxu0 0.0
    %3387 = vmatpush1.msra.mxu0 %v3347
    %3388 = vmatprep.subr.mxu0 0.0
    %3389 = vmatpush2.msra.mxu0 0.0
    %3390 = vmatprep.subr.mxu0 0.0
    %3391 = vmatpush2.msra.mxu0 0.0
    %3392 = vmatprep.subr.mxu0 0.0
    %3393 = vmatpush2.msra.mxu0 0.0
    %3394 = vmatprep.subr.mxu0 0.0
    %3395 = vmatpush2.msra.mxu0 0.0
    %3396 = vmatprep.subr.mxu0 0.0
    %3397 = vmatpush2.msra.mxu0 0.0
    %3398 = vmatprep.subr.mxu0 0.0
    %3399 = vmatpush2.msra.mxu0 0.0
    %3400 = vmatprep.subr.mxu0 0.0
    %3401 = vmatpush2.msra.mxu0 0.0
    %3402 = vmatprep.subr.mxu0 0.0
    %3403 = vmatpush2.msra.mxu0 0.0
    %3404 = vmatprep.subr.mxu0 0.0
    %3405 = vmatpush2.msra.mxu0 0.0
    %3406 = vmatprep.subr.mxu0 0.0
    %3407 = vmatpush2.msra.mxu0 0.0
    %3408 = vmatprep.subr.mxu0 0.0
    %3409 = vmatpush2.msra.mxu0 0.0
    %3410 = vmatprep.subr.mxu0 0.0
    %3411 = vmatpush2.msra.mxu0 0.0
    %3412 = vmatprep.subr.mxu0 0.0
    %3413 = vmatpush2.msra.mxu0 0.0
    %3414 = vmatprep.subr.mxu0 0.0
    %3415 = vmatpush2.msra.mxu0 0.0
    %3416 = vmatprep.subr.mxu0 0.0
    %3417 = vmatpush2.msra.mxu0 0.0
    %3418 = vmatprep.subr.mxu0 0.0
    %3419 = vmatpush2.msra.mxu0 0.0
    %3420 = vmatprep.mubr.f32.mxu0 0.0
    %3421 = vmatmul.mubr.f32.gmra.mxu0 %v3354
    %v3422 = vpop.f32.mrf.mxu0
    %v3423 = vadd.f32 0.0, %v3422
    %v3424 = vpop.f32.mrf.mxu0
    %3425 = vdwg.mxu0
    %v3427 = vsel %vm193, %v3340, 0
    %3429 = vmatprep.subr.mxu0 0.0
    %3430 = vmatpush1.msra.mxu0 0.0
    %3431 = vmatprep.subr.mxu0 0.0
    %3432 = vmatpush1.msra.mxu0 0.0
    %3433 = vmatprep.subr.mxu0 0.0
    %3434 = vmatpush1.msra.mxu0 0.0
    %3435 = vmatprep.subr.mxu0 0.0
    %3436 = vmatpush1.msra.mxu0 0.0
    %3437 = vmatprep.subr.mxu0 0.0
    %3438 = vmatpush1.msra.mxu0 0.0
    %3439 = vmatprep.subr.mxu0 0.0
    %3440 = vmatpush1.msra.mxu0 0.0
    %3441 = vmatprep.subr.mxu0 0.0
    %3442 = vmatpush1.msra.mxu0 0.0
    %3443 = vmatprep.subr.mxu0 0.0
    %3444 = vmatpush1.msra.mxu0 0.0
    %3445 = vmatprep.subr.mxu0 0.0
    %3446 = vmatpush1.msra.mxu0 0.0
    %3447 = vmatprep.subr.mxu0 0.0
    %3448 = vmatpush1.msra.mxu0 0.0
    %3449 = vmatprep.subr.mxu0 0.0
    %3450 = vmatpush1.msra.mxu0 0.0
    %3451 = vmatprep.subr.mxu0 0.0
    %3452 = vmatpush1.msra.mxu0 0.0
    %3453 = vmatprep.subr.mxu0 0.0
    %3454 = vmatpush1.msra.mxu0 %v3346
    %3455 = vmatprep.subr.mxu0 0.0
    %3456 = vmatpush1.msra.mxu0 %v3345
    %3457 = vmatprep.subr.mxu0 0.0
    %3458 = vmatpush1.msra.mxu0 %v3344
    %3459 = vmatprep.subr.mxu0 0.0
    %3460 = vmatpush1.msra.mxu0 %v3343
    %3461 = vmatprep.subr.mxu0 0.0
    %3462 = vmatpush2.msra.mxu0 0.0
    %3463 = vmatprep.subr.mxu0 0.0
    %3464 = vmatpush2.msra.mxu0 0.0
    %3465 = vmatprep.subr.mxu0 0.0
    %3466 = vmatpush2.msra.mxu0 0.0
    %3467 = vmatprep.subr.mxu0 0.0
    %3468 = vmatpush2.msra.mxu0 0.0
    %3469 = vmatprep.subr.mxu0 0.0
    %3470 = vmatpush2.msra.mxu0 0.0
    %3471 = vmatprep.subr.mxu0 0.0
    %3472 = vmatpush2.msra.mxu0 0.0
    %3473 = vmatprep.subr.mxu0 0.0
    %3474 = vmatpush2.msra.mxu0 0.0
    %3475 = vmatprep.subr.mxu0 0.0
    %3476 = vmatpush2.msra.mxu0 0.0
    %3477 = vmatprep.subr.mxu0 0.0
    %3478 = vmatpush2.msra.mxu0 0.0
    %3479 = vmatprep.subr.mxu0 0.0
    %3480 = vmatpush2.msra.mxu0 0.0
    %3481 = vmatprep.subr.mxu0 0.0
    %3482 = vmatpush2.msra.mxu0 0.0
    %3483 = vmatprep.subr.mxu0 0.0
    %3484 = vmatpush2.msra.mxu0 0.0
    %3485 = vmatprep.subr.mxu0 0.0
    %3486 = vmatpush2.msra.mxu0 0.0
    %3487 = vmatprep.subr.mxu0 0.0
    %3488 = vmatpush2.msra.mxu0 0.0
    %3489 = vmatprep.subr.mxu0 0.0
    %3490 = vmatpush2.msra.mxu0 0.0
    %3491 = vmatprep.subr.mxu0 0.0
    %3492 = vmatpush2.msra.mxu0 0.0
    %3493 = vmatprep.mubr.f32.mxu0 0.0
    %3494 = vmatmul.mubr.f32.gmra.mxu0 %v3427
    %v3495 = vpop.f32.mrf.mxu0
    %v3496 = vadd.f32 %v3423, %v3495
    %v3497 = vpop.f32.mrf.mxu0
    %3498 = vdwg.mxu0
    %v3499 = vld [vmem:[%s7] sm:$0x1]
    %v3501 = vlaneseq
    %v3502 = vshrl.u32 %v3501, 7
    %v3503 = vsub.s32 0, %v3502
    %v3504 = vrot.slane %v3499, %v3503
    %v3506 = vadd.f32 %v3496, %v3504
    %v3507 = vxor.u32 %v3506, 2147483648
    %v3508 = vmul.f32 %v3507, 1.442695
    %v3509 = vpow.pop %v3508
    %v3510 = vadd.f32 %v3509, 1.0
    %v3511 = vrcp.pop %v3510
    %v3512 = vmul.f32 1.0, %v3511
    %v3513 = vtanh.pop %v3506
    %v3514 = vmul.f32 %v3512, %v2745
    %3516 = vrot.lane.b32.xlu0 %v3513, 64
    %v3517 = vpop.permute.xlu0 %3516
    %v3519 = vmul.f32 %v3512, %v3517
    %3521 = vrot.lane.b32.xlu0 %v3519, 32
    %v3522 = vpop.permute.xlu0 %3521
    %v3524 = vadd.f32 %v3514, %v3522
    %v3525 = vtanh.pop %v3524
    %3527 = vrot.lane.b32.xlu0 %v3525, 64
    %v3528 = vpop.permute.xlu0 %3527
    %v3530 = vmul.f32 %v3512, %v3528
    %3531 = vrot.lane.b32.xlu0 %v3340, 96
    %v3532 = vpop.permute.xlu0 %3531
    %v3534 = vadd.f32 %v3530, %v3532
    %3536 = vrot.lane.b32.xlu0 %v3534, 32
    %v3537 = vpop.permute.xlu0 %3536
    %v3538 = vsel %vm193, %v3537, 0
    %3540 = vmatprep.subr.mxu0 0.0
    %3541 = vmatpush1.msra.mxu0 0.0
    %3542 = vmatprep.subr.mxu0 0.0
    %3543 = vmatpush1.msra.mxu0 0.0
    %3544 = vmatprep.subr.mxu0 0.0
    %3545 = vmatpush1.msra.mxu0 0.0
    %3546 = vmatprep.subr.mxu0 0.0
    %3547 = vmatpush1.msra.mxu0 0.0
    %3548 = vmatprep.subr.mxu0 0.0
    %3549 = vmatpush1.msra.mxu0 0.0
    %3550 = vmatprep.subr.mxu0 0.0
    %3551 = vmatpush1.msra.mxu0 0.0
    %3552 = vmatprep.subr.mxu0 0.0
    %3553 = vmatpush1.msra.mxu0 0.0
    %3554 = vmatprep.subr.mxu0 0.0
    %3555 = vmatpush1.msra.mxu0 0.0
    %3556 = vmatprep.subr.mxu0 0.0
    %3557 = vmatpush1.msra.mxu0 0.0
    %3558 = vmatprep.subr.mxu0 0.0
    %3559 = vmatpush1.msra.mxu0 0.0
    %3560 = vmatprep.subr.mxu0 0.0
    %3561 = vmatpush1.msra.mxu0 0.0
    %3562 = vmatprep.subr.mxu0 0.0
    %3563 = vmatpush1.msra.mxu0 0.0
    %3564 = vmatprep.subr.mxu0 0.0
    %3565 = vmatpush1.msra.mxu0 %v84
    %3566 = vmatprep.subr.mxu0 0.0
    %3567 = vmatpush1.msra.mxu0 %v83
    %3568 = vmatprep.subr.mxu0 0.0
    %3569 = vmatpush1.msra.mxu0 %v82
    %3570 = vmatprep.subr.mxu0 0.0
    %3571 = vmatpush1.msra.mxu0 %v81
    %3572 = vmatprep.subr.mxu0 0.0
    %3573 = vmatpush2.msra.mxu0 0.0
    %3574 = vmatprep.subr.mxu0 0.0
    %3575 = vmatpush2.msra.mxu0 0.0
    %3576 = vmatprep.subr.mxu0 0.0
    %3577 = vmatpush2.msra.mxu0 0.0
    %3578 = vmatprep.subr.mxu0 0.0
    %3579 = vmatpush2.msra.mxu0 0.0
    %3580 = vmatprep.subr.mxu0 0.0
    %3581 = vmatpush2.msra.mxu0 0.0
    %3582 = vmatprep.subr.mxu0 0.0
    %3583 = vmatpush2.msra.mxu0 0.0
    %3584 = vmatprep.subr.mxu0 0.0
    %3585 = vmatpush2.msra.mxu0 0.0
    %3586 = vmatprep.subr.mxu0 0.0
    %3587 = vmatpush2.msra.mxu0 0.0
    %3588 = vmatprep.subr.mxu0 0.0
    %3589 = vmatpush2.msra.mxu0 0.0
    %3590 = vmatprep.subr.mxu0 0.0
    %3591 = vmatpush2.msra.mxu0 0.0
    %3592 = vmatprep.subr.mxu0 0.0
    %3593 = vmatpush2.msra.mxu0 0.0
    %3594 = vmatprep.subr.mxu0 0.0
    %3595 = vmatpush2.msra.mxu0 0.0
    %3596 = vmatprep.subr.mxu0 0.0
    %3597 = vmatpush2.msra.mxu0 0.0
    %3598 = vmatprep.subr.mxu0 0.0
    %3599 = vmatpush2.msra.mxu0 0.0
    %3600 = vmatprep.subr.mxu0 0.0
    %3601 = vmatpush2.msra.mxu0 0.0
    %3602 = vmatprep.subr.mxu0 0.0
    %3603 = vmatpush2.msra.mxu0 0.0
    %3604 = vmatprep.mubr.f32.mxu0 0.0
    %3605 = vmatmul.mubr.f32.gmra.mxu0 %v3538
    %v3606 = vpop.f32.mrf.mxu0
    %v3607 = vadd.f32 %v383, %v3606
    %v3608 = vpop.f32.mrf.mxu0
    %3609 = vdwg.mxu0
    %v3610 = vadd.f32 %v3607, %v70
    %v3611 = vadd.f32 %v3607, %v71
    %v3612 = vadd.f32 %v3607, %v72
    %v3613 = vadd.f32 %v3607, %v73
    %v3614 = vtanh.pop %v3610
    %v3615 = vtanh.pop %v3611
    %v3616 = vtanh.pop %v3612
    %v3617 = vtanh.pop %v3613
    %v3618 = vmul.f32 %v3614, %v472
    %v3619 = vmul.f32 %v3615, %v472
    %v3620 = vmul.f32 %v3616, %v472
    %v3621 = vmul.f32 %v3617, %v472
    %v3622 = vsel %vm478, %v3618, 0.0
    %3623 = vadd.xlane.f32.xlu0 %v3622
    %v3624 = vpop.xlane.xlu0 %3623
    %v3625 = vsel %vm478, %v3619, 0.0
    %3626 = vadd.xlane.f32.xlu0 %v3625
    %v3627 = vpop.xlane.xlu0 %3626
    %v3628 = vsel %vm478, %v3620, 0.0
    %3629 = vadd.xlane.f32.xlu0 %v3628
    %v3630 = vpop.xlane.xlu0 %3629
    %v3631 = vsel %vm478, %v3621, 0.0
    %3632 = vadd.xlane.f32.xlu0 %v3631
    %v3633 = vpop.xlane.xlu0 %3632
    %v3634 = vadd.f32 %v3624, %v498
    %v3635 = vadd.f32 %v3627, %v498
    %v3636 = vadd.f32 %v3630, %v498
    %v3637 = vadd.f32 %v3633, %v498
    %v3642 = vlaneseq
    %v3643 = vshrl.u32 %v3642, 7
    %v3644 = vsub.s32 %v106, %v3643
    %v3645 = vrot.slane %v3634, %v3644
    %v3646 = vlaneseq
    %v3647 = vshrl.u32 %v3646, 7
    %v3648 = vsub.s32 %v106, %v3647
    %v3649 = vrot.slane %v3635, %v3648
    %v3650 = vlaneseq
    %v3651 = vshrl.u32 %v3650, 7
    %v3652 = vsub.s32 %v106, %v3651
    %v3653 = vrot.slane %v3636, %v3652
    %v3654 = vlaneseq
    %v3655 = vshrl.u32 %v3654, 7
    %v3656 = vsub.s32 %v106, %v3655
    %v3657 = vrot.slane %v3637, %v3656
    %v3658 = vsel %vm525, %v3649, %v3645
    %v3659 = vsel %vm527, %v3653, %v3658
    %v3660 = vsel %vm529, %v3657, %v3659
    %v3662 = vsel %vm504, %v3660, -1000000.0
    %v3663 = vsel %vm533, %v3662, -inf
    %v3664 = vrot.slane %v3663, 4
    %v3665 = vmax.f32 %v3663, %v3664
    %v3666 = vrot.slane %v3665, 2
    %v3667 = vmax.f32 %v3665, %v3666
    %v3668 = vrot.slane %v3667, 1
    %v3669 = vmax.f32 %v3667, %v3668
    %v3670 = vsub.f32 %v3662, %v3669
    %v3671 = vmul.f32 %v3670, 1.442695
    %v3672 = vpow.pop %v3671
    %v3673 = vsel %vm533, %v3672, 0.0
    %v3674 = vrot.slane %v3673, 4
    %v3675 = vadd.f32 %v3673, %v3674
    %v3676 = vrot.slane %v3675, 2
    %v3677 = vadd.f32 %v3675, %v3676
    %v3678 = vrot.slane %v3677, 1
    %v3679 = vadd.f32 %v3677, %v3678
    %v3680 = vrcp.pop %v3679
    %v3681 = vmul.f32 %v3672, %v3680
    %v3682 = vlaneseq
    %v3683 = vshrl.u32 %v3682, 7
    %v3684 = vsub.s32 0, %v3683
    %v3685 = vrot.slane %v3681, %v3684
    %3687 = vbcast.lane.b32.xlu0 %v3685, 256
    %v3688 = vpop.permute.xlu0 %3687
    %v3689 = vlaneseq
    %v3690 = vshrl.u32 %v3689, 7
    %v3691 = vsub.s32 1, %v3690
    %v3692 = vrot.slane %v3681, %v3691
    %3694 = vbcast.lane.b32.xlu0 %v3692, 256
    %v3695 = vpop.permute.xlu0 %3694
    %v3696 = vlaneseq
    %v3697 = vshrl.u32 %v3696, 7
    %v3698 = vsub.s32 2, %v3697
    %v3699 = vrot.slane %v3681, %v3698
    %3701 = vbcast.lane.b32.xlu0 %v3699, 256
    %v3702 = vpop.permute.xlu0 %3701
    %v3703 = vlaneseq
    %v3704 = vshrl.u32 %v3703, 7
    %v3705 = vsub.s32 3, %v3704
    %v3706 = vrot.slane %v3681, %v3705
    %3708 = vbcast.lane.b32.xlu0 %v3706, 256
    %v3709 = vpop.permute.xlu0 %3708
    %v3710 = vmul.f32 %v3688, %v74
    %v3711 = vmul.f32 %v3695, %v75
    %v3712 = vmul.f32 %v3702, %v76
    %v3713 = vmul.f32 %v3709, %v77
    %v3714 = vsel %vm478, %v3710, 0.0
    %v3715 = vsel %vm478, %v3711, 0.0
    %v3716 = vadd.f32 %v3714, %v3715
    %v3717 = vsel %vm478, %v3712, 0.0
    %v3718 = vadd.f32 %v3716, %v3717
    %v3719 = vsel %vm478, %v3713, 0.0
    %v3720 = vadd.f32 %v3718, %v3719
    %v3722 = vsel %vm193, %v3720, 0
    %3724 = vmatprep.subr.mxu0 0.0
    %3725 = vmatpush1.msra.mxu0 0.0
    %3726 = vmatprep.subr.mxu0 0.0
    %3727 = vmatpush1.msra.mxu0 0.0
    %3728 = vmatprep.subr.mxu0 0.0
    %3729 = vmatpush1.msra.mxu0 0.0
    %3730 = vmatprep.subr.mxu0 0.0
    %3731 = vmatpush1.msra.mxu0 0.0
    %3732 = vmatprep.subr.mxu0 0.0
    %3733 = vmatpush1.msra.mxu0 0.0
    %3734 = vmatprep.subr.mxu0 0.0
    %3735 = vmatpush1.msra.mxu0 0.0
    %3736 = vmatprep.subr.mxu0 0.0
    %3737 = vmatpush1.msra.mxu0 0.0
    %3738 = vmatprep.subr.mxu0 0.0
    %3739 = vmatpush1.msra.mxu0 0.0
    %3740 = vmatprep.subr.mxu0 0.0
    %3741 = vmatpush1.msra.mxu0 0.0
    %3742 = vmatprep.subr.mxu0 0.0
    %3743 = vmatpush1.msra.mxu0 0.0
    %3744 = vmatprep.subr.mxu0 0.0
    %3745 = vmatpush1.msra.mxu0 0.0
    %3746 = vmatprep.subr.mxu0 0.0
    %3747 = vmatpush1.msra.mxu0 0.0
    %3748 = vmatprep.subr.mxu0 0.0
    %3749 = vmatpush1.msra.mxu0 %v93
    %3750 = vmatprep.subr.mxu0 0.0
    %3751 = vmatpush1.msra.mxu0 %v92
    %3752 = vmatprep.subr.mxu0 0.0
    %3753 = vmatpush1.msra.mxu0 %v91
    %3754 = vmatprep.subr.mxu0 0.0
    %3755 = vmatpush1.msra.mxu0 %v90
    %3756 = vmatprep.subr.mxu0 0.0
    %3757 = vmatpush2.msra.mxu0 0.0
    %3758 = vmatprep.subr.mxu0 0.0
    %3759 = vmatpush2.msra.mxu0 0.0
    %3760 = vmatprep.subr.mxu0 0.0
    %3761 = vmatpush2.msra.mxu0 0.0
    %3762 = vmatprep.subr.mxu0 0.0
    %3763 = vmatpush2.msra.mxu0 0.0
    %3764 = vmatprep.subr.mxu0 0.0
    %3765 = vmatpush2.msra.mxu0 0.0
    %3766 = vmatprep.subr.mxu0 0.0
    %3767 = vmatpush2.msra.mxu0 0.0
    %3768 = vmatprep.subr.mxu0 0.0
    %3769 = vmatpush2.msra.mxu0 0.0
    %3770 = vmatprep.subr.mxu0 0.0
    %3771 = vmatpush2.msra.mxu0 0.0
    %3772 = vmatprep.subr.mxu0 0.0
    %3773 = vmatpush2.msra.mxu0 0.0
    %3774 = vmatprep.subr.mxu0 0.0
    %3775 = vmatpush2.msra.mxu0 0.0
    %3776 = vmatprep.subr.mxu0 0.0
    %3777 = vmatpush2.msra.mxu0 0.0
    %3778 = vmatprep.subr.mxu0 0.0
    %3779 = vmatpush2.msra.mxu0 0.0
    %3780 = vmatprep.subr.mxu0 0.0
    %3781 = vmatpush2.msra.mxu0 0.0
    %3782 = vmatprep.subr.mxu0 0.0
    %3783 = vmatpush2.msra.mxu0 0.0
    %3784 = vmatprep.subr.mxu0 0.0
    %3785 = vmatpush2.msra.mxu0 0.0
    %3786 = vmatprep.subr.mxu0 0.0
    %3787 = vmatpush2.msra.mxu0 0.0
    %3788 = vmatprep.mubr.f32.mxu0 0.0
    %3789 = vmatmul.mubr.f32.gmra.mxu0 %v3722
    %v3790 = vpop.f32.mrf.mxu0
    %v3791 = vadd.f32 0.0, %v3790
    %v3792 = vpop.f32.mrf.mxu0
    %3793 = vdwg.mxu0
    %3794 = vmatprep.subr.mxu0 0.0
    %3795 = vmatpush1.msra.mxu0 0.0
    %3796 = vmatprep.subr.mxu0 0.0
    %3797 = vmatpush1.msra.mxu0 0.0
    %3798 = vmatprep.subr.mxu0 0.0
    %3799 = vmatpush1.msra.mxu0 0.0
    %3800 = vmatprep.subr.mxu0 0.0
    %3801 = vmatpush1.msra.mxu0 0.0
    %3802 = vmatprep.subr.mxu0 0.0
    %3803 = vmatpush1.msra.mxu0 0.0
    %3804 = vmatprep.subr.mxu0 0.0
    %3805 = vmatpush1.msra.mxu0 0.0
    %3806 = vmatprep.subr.mxu0 0.0
    %3807 = vmatpush1.msra.mxu0 0.0
    %3808 = vmatprep.subr.mxu0 0.0
    %3809 = vmatpush1.msra.mxu0 0.0
    %3810 = vmatprep.subr.mxu0 0.0
    %3811 = vmatpush1.msra.mxu0 0.0
    %3812 = vmatprep.subr.mxu0 0.0
    %3813 = vmatpush1.msra.mxu0 0.0
    %3814 = vmatprep.subr.mxu0 0.0
    %3815 = vmatpush1.msra.mxu0 0.0
    %3816 = vmatprep.subr.mxu0 0.0
    %3817 = vmatpush1.msra.mxu0 0.0
    %3818 = vmatprep.subr.mxu0 0.0
    %3819 = vmatpush1.msra.mxu0 %v89
    %3820 = vmatprep.subr.mxu0 0.0
    %3821 = vmatpush1.msra.mxu0 %v88
    %3822 = vmatprep.subr.mxu0 0.0
    %3823 = vmatpush1.msra.mxu0 %v87
    %3824 = vmatprep.subr.mxu0 0.0
    %3825 = vmatpush1.msra.mxu0 %v86
    %3826 = vmatprep.subr.mxu0 0.0
    %3827 = vmatpush2.msra.mxu0 0.0
    %3828 = vmatprep.subr.mxu0 0.0
    %3829 = vmatpush2.msra.mxu0 0.0
    %3830 = vmatprep.subr.mxu0 0.0
    %3831 = vmatpush2.msra.mxu0 0.0
    %3832 = vmatprep.subr.mxu0 0.0
    %3833 = vmatpush2.msra.mxu0 0.0
    %3834 = vmatprep.subr.mxu0 0.0
    %3835 = vmatpush2.msra.mxu0 0.0
    %3836 = vmatprep.subr.mxu0 0.0
    %3837 = vmatpush2.msra.mxu0 0.0
    %3838 = vmatprep.subr.mxu0 0.0
    %3839 = vmatpush2.msra.mxu0 0.0
    %3840 = vmatprep.subr.mxu0 0.0
    %3841 = vmatpush2.msra.mxu0 0.0
    %3842 = vmatprep.subr.mxu0 0.0
    %3843 = vmatpush2.msra.mxu0 0.0
    %3844 = vmatprep.subr.mxu0 0.0
    %3845 = vmatpush2.msra.mxu0 0.0
    %3846 = vmatprep.subr.mxu0 0.0
    %3847 = vmatpush2.msra.mxu0 0.0
    %3848 = vmatprep.subr.mxu0 0.0
    %3849 = vmatpush2.msra.mxu0 0.0
    %3850 = vmatprep.subr.mxu0 0.0
    %3851 = vmatpush2.msra.mxu0 0.0
    %3852 = vmatprep.subr.mxu0 0.0
    %3853 = vmatpush2.msra.mxu0 0.0
    %3854 = vmatprep.subr.mxu0 0.0
    %3855 = vmatpush2.msra.mxu0 0.0
    %3856 = vmatprep.subr.mxu0 0.0
    %3857 = vmatpush2.msra.mxu0 0.0
    %3858 = vmatprep.mubr.f32.mxu0 0.0
    %3859 = vmatmul.mubr.f32.gmra.mxu0 %v3538
    %v3860 = vpop.f32.mrf.mxu0
    %v3861 = vadd.f32 %v3791, %v3860
    %v3862 = vpop.f32.mrf.mxu0
    %3863 = vdwg.mxu0
    %3864 = vmatprep.subr.mxu0 0.0
    %3865 = vmatpush1.msra.mxu0 0.0
    %3866 = vmatprep.subr.mxu0 0.0
    %3867 = vmatpush1.msra.mxu0 0.0
    %3868 = vmatprep.subr.mxu0 0.0
    %3869 = vmatpush1.msra.mxu0 0.0
    %3870 = vmatprep.subr.mxu0 0.0
    %3871 = vmatpush1.msra.mxu0 0.0
    %3872 = vmatprep.subr.mxu0 0.0
    %3873 = vmatpush1.msra.mxu0 0.0
    %3874 = vmatprep.subr.mxu0 0.0
    %3875 = vmatpush1.msra.mxu0 0.0
    %3876 = vmatprep.subr.mxu0 0.0
    %3877 = vmatpush1.msra.mxu0 0.0
    %3878 = vmatprep.subr.mxu0 0.0
    %3879 = vmatpush1.msra.mxu0 0.0
    %3880 = vmatprep.subr.mxu0 0.0
    %3881 = vmatpush1.msra.mxu0 0.0
    %3882 = vmatprep.subr.mxu0 0.0
    %3883 = vmatpush1.msra.mxu0 0.0
    %3884 = vmatprep.subr.mxu0 0.0
    %3885 = vmatpush1.msra.mxu0 0.0
    %3886 = vmatprep.subr.mxu0 0.0
    %3887 = vmatpush1.msra.mxu0 0.0
    %3888 = vmatprep.subr.mxu0 0.0
    %3889 = vmatpush1.msra.mxu0 %v97
    %3890 = vmatprep.subr.mxu0 0.0
    %3891 = vmatpush1.msra.mxu0 %v96
    %3892 = vmatprep.subr.mxu0 0.0
    %3893 = vmatpush1.msra.mxu0 %v95
    %3894 = vmatprep.subr.mxu0 0.0
    %3895 = vmatpush1.msra.mxu0 %v94
    %3896 = vmatprep.subr.mxu0 0.0
    %3897 = vmatpush2.msra.mxu0 0.0
    %3898 = vmatprep.subr.mxu0 0.0
    %3899 = vmatpush2.msra.mxu0 0.0
    %3900 = vmatprep.subr.mxu0 0.0
    %3901 = vmatpush2.msra.mxu0 0.0
    %3902 = vmatprep.subr.mxu0 0.0
    %3903 = vmatpush2.msra.mxu0 0.0
    %3904 = vmatprep.subr.mxu0 0.0
    %3905 = vmatpush2.msra.mxu0 0.0
    %3906 = vmatprep.subr.mxu0 0.0
    %3907 = vmatpush2.msra.mxu0 0.0
    %3908 = vmatprep.subr.mxu0 0.0
    %3909 = vmatpush2.msra.mxu0 0.0
    %3910 = vmatprep.subr.mxu0 0.0
    %3911 = vmatpush2.msra.mxu0 0.0
    %3912 = vmatprep.subr.mxu0 0.0
    %3913 = vmatpush2.msra.mxu0 0.0
    %3914 = vmatprep.subr.mxu0 0.0
    %3915 = vmatpush2.msra.mxu0 0.0
    %3916 = vmatprep.subr.mxu0 0.0
    %3917 = vmatpush2.msra.mxu0 0.0
    %3918 = vmatprep.subr.mxu0 0.0
    %3919 = vmatpush2.msra.mxu0 0.0
    %3920 = vmatprep.subr.mxu0 0.0
    %3921 = vmatpush2.msra.mxu0 0.0
    %3922 = vmatprep.subr.mxu0 0.0
    %3923 = vmatpush2.msra.mxu0 0.0
    %3924 = vmatprep.subr.mxu0 0.0
    %3925 = vmatpush2.msra.mxu0 0.0
    %3926 = vmatprep.subr.mxu0 0.0
    %3927 = vmatpush2.msra.mxu0 0.0
    %3928 = vmatprep.mubr.f32.mxu0 0.0
    %3929 = vmatmul.mubr.f32.gmra.mxu0 %v3184
    %v3930 = vpop.f32.mrf.mxu0
    %v3931 = vadd.f32 0.0, %v3930
    %v3932 = vpop.f32.mrf.mxu0
    %3933 = vdwg.mxu0
    %v3934 = vadd.f32 %v3861, %v3931
    %v3935 = vadd.f32 %v3934, %v810
    %v3936 = vxor.u32 %v3935, 2147483648
    %v3937 = vmul.f32 %v3936, 1.442695
    %v3938 = vpow.pop %v3937
    %v3939 = vadd.f32 %v3938, 1.0
    %v3940 = vrcp.pop %v3939
    %v3941 = vmul.f32 1.0, %v3940
    %v3942 = vtanh.pop %v3935
    %v3943 = vmul.f32 %v3941, %v3174
    %3945 = vrot.lane.b32.xlu0 %v3942, 64
    %v3946 = vpop.permute.xlu0 %3945
    %v3948 = vmul.f32 %v3941, %v3946
    %3950 = vrot.lane.b32.xlu0 %v3948, 32
    %v3951 = vpop.permute.xlu0 %3950
    %v3953 = vadd.f32 %v3943, %v3951
    %v3954 = vtanh.pop %v3953
    %3956 = vrot.lane.b32.xlu0 %v3954, 64
    %v3957 = vpop.permute.xlu0 %3956
    %v3959 = vmul.f32 %v3941, %v3957
    %3961 = vrot.lane.b32.xlu0 %v3959, 32
    %v3962 = vpop.permute.xlu0 %3961
    %v3963 = vsel %vm193, %v3962, 0
    %3965 = vmatprep.subr.mxu0 0.0
    %3966 = vmatpush1.msra.mxu0 0.0
    %3967 = vmatprep.subr.mxu0 0.0
    %3968 = vmatpush1.msra.mxu0 0.0
    %3969 = vmatprep.subr.mxu0 0.0
    %3970 = vmatpush1.msra.mxu0 0.0
    %3971 = vmatprep.subr.mxu0 0.0
    %3972 = vmatpush1.msra.mxu0 0.0
    %3973 = vmatprep.subr.mxu0 0.0
    %3974 = vmatpush1.msra.mxu0 0.0
    %3975 = vmatprep.subr.mxu0 0.0
    %3976 = vmatpush1.msra.mxu0 0.0
    %3977 = vmatprep.subr.mxu0 0.0
    %3978 = vmatpush1.msra.mxu0 0.0
    %3979 = vmatprep.subr.mxu0 0.0
    %3980 = vmatpush1.msra.mxu0 0.0
    %3981 = vmatprep.subr.mxu0 0.0
    %3982 = vmatpush1.msra.mxu0 0.0
    %3983 = vmatprep.subr.mxu0 0.0
    %3984 = vmatpush1.msra.mxu0 0.0
    %3985 = vmatprep.subr.mxu0 0.0
    %3986 = vmatpush1.msra.mxu0 0.0
    %3987 = vmatprep.subr.mxu0 0.0
    %3988 = vmatpush1.msra.mxu0 0.0
    %3989 = vmatprep.subr.mxu0 0.0
    %3990 = vmatpush1.msra.mxu0 %v102
    %3991 = vmatprep.subr.mxu0 0.0
    %3992 = vmatpush1.msra.mxu0 %v101
    %3993 = vmatprep.subr.mxu0 0.0
    %3994 = vmatpush1.msra.mxu0 %v100
    %3995 = vmatprep.subr.mxu0 0.0
    %3996 = vmatpush1.msra.mxu0 %v99
    %3997 = vmatprep.subr.mxu0 0.0
    %3998 = vmatpush2.msra.mxu0 0.0
    %3999 = vmatprep.subr.mxu0 0.0
    %4000 = vmatpush2.msra.mxu0 0.0
    %4001 = vmatprep.subr.mxu0 0.0
    %4002 = vmatpush2.msra.mxu0 0.0
    %4003 = vmatprep.subr.mxu0 0.0
    %4004 = vmatpush2.msra.mxu0 0.0
    %4005 = vmatprep.subr.mxu0 0.0
    %4006 = vmatpush2.msra.mxu0 0.0
    %4007 = vmatprep.subr.mxu0 0.0
    %4008 = vmatpush2.msra.mxu0 0.0
    %4009 = vmatprep.subr.mxu0 0.0
    %4010 = vmatpush2.msra.mxu0 0.0
    %4011 = vmatprep.subr.mxu0 0.0
    %4012 = vmatpush2.msra.mxu0 0.0
    %4013 = vmatprep.subr.mxu0 0.0
    %4014 = vmatpush2.msra.mxu0 0.0
    %4015 = vmatprep.subr.mxu0 0.0
    %4016 = vmatpush2.msra.mxu0 0.0
    %4017 = vmatprep.subr.mxu0 0.0
    %4018 = vmatpush2.msra.mxu0 0.0
    %4019 = vmatprep.subr.mxu0 0.0
    %4020 = vmatpush2.msra.mxu0 0.0
    %4021 = vmatprep.subr.mxu0 0.0
    %4022 = vmatpush2.msra.mxu0 0.0
    %4023 = vmatprep.subr.mxu0 0.0
    %4024 = vmatpush2.msra.mxu0 0.0
    %4025 = vmatprep.subr.mxu0 0.0
    %4026 = vmatpush2.msra.mxu0 0.0
    %4027 = vmatprep.subr.mxu0 0.0
    %4028 = vmatpush2.msra.mxu0 0.0
    %4029 = vmatprep.mubr.f32.mxu0 0.0
    %4030 = vmatmul.mubr.f32.gmra.mxu0 %v3963
    %v4031 = vpop.f32.mrf.mxu0
    %v4032 = vadd.f32 %v841, %v4031
    %v4033 = vpop.f32.mrf.mxu0
    %4034 = vdwg.mxu0
    %v4035 = vsel %vm918, %v4032, -inf
    %4036 = vmax.xlane.f32.xlu0 %v4035
    %v4037 = vpop.xlane.xlu0 %4036
    %vm4038 = vcmp.ge.f32.partialorder %v4032, %v4037
    %v4039 = vsel %vm4038, %v107, 64.0
    %v4040 = vsel %vm918, %v4039, inf
    %4041 = vmin.xlane.f32.xlu0 %v4040
    %v4042 = vpop.xlane.xlu0 %4041
    %v4043 = vcvt.f32.s32.to.zero.pseudo %v4042
    %vm4044 = vcmask 33824
    %4045 = vst.msk [vmem:[#allocation3] sm:$0x3] %vm4044, %v4043
    %4046 = vst.msk [vmem:[#allocation5] sm:$0x3] %vm918, %v4032
    // Predicated region
    $region70: #{_forward_device.3} parent=1 // pred_check
      _
    $region71: #{_forward_device.3} parent=1 // pred_check_branch
      %4048 = sbr.rel (0) target = $region73
    $region72: #{_forward_device.3} parent=1 // pred_region
      %s4050 = ssub.s32 32, 32
      %4051 = vsyncadd [#allocation4], %s4050
      %s4053 = sshll.u32 [#allocation3], 4
      %s4054 = int_to_ptr.vmem [resolvable:$true] %s4053
      %4056 = dma.vmem_to_hbm [thread:$0]  %s4054, 32, %s17, [#allocation4]
    $region73: #{_forward_device.3} parent=1 // pred_fallthru
      _
    // Predicated region
    $region74: #{_forward_device.3} parent=1 // pred_check
      _
    $region75: #{_forward_device.3} parent=1 // pred_check_branch
      %4058 = sbr.rel (0) target = $region77
    $region76: #{_forward_device.3} parent=1 // pred_region
      %s4060 = ssub.s32 32, 32
      %4061 = vsyncadd [#allocation6], %s4060
      %s4063 = sshll.u32 [#allocation5], 4
      %s4064 = int_to_ptr.vmem [resolvable:$true] %s4063
      %4066 = dma.vmem_to_hbm [thread:$0]  %s4064, 32, %s18, [#allocation6]
    $region77: #{_forward_device.3} parent=1 // pred_fallthru
      _
    // Predicated region
    $region78: #{_forward_device.3} parent=1 // pred_check
      _
    $region79: #{_forward_device.3} parent=1 // pred_check_branch
      %4068 = sbr.rel (0) target = $region81
    $region80: #{_forward_device.3} parent=1 // pred_region
      %4069 = dma.done [#allocation4], 32
    $region81: #{_forward_device.3} parent=1 // pred_fallthru
      _
    // Predicated region
    $region82: #{_forward_device.3} parent=1 // pred_check
      _
    $region83: #{_forward_device.3} parent=1 // pred_check_branch
      %4071 = sbr.rel (0) target = $region85
    $region84: #{_forward_device.3} parent=1 // pred_region
      %4072 = dma.done [#allocation6], 32
    $region85: #{_forward_device.3} parent=1 // pred_fallthru
      _
    %4073 = vsyncpa [#allocation4], 1
    %4074 = vsyncpa [#allocation6], 1

// kernel: _forward_device.2
$region0: #{_forward_device.2}
  #allocation0 [shape = 'u32[]', space=smem, size = 0x4, offset = 0x4, fixed_abs, tag = 'smem constant byte address 0x4 - core index']
  #allocation1 [shape = 'u32[144,128]{1,0:T(1,128)}', space=vmem, size = 0x12000, scoped, tag = 'internal scratch']
  %s0 = inlined_call_operand.vmem [shape: f32[64,32], index: 0, kind: input, shape index: {}]
  %s1 = inlined_call_operand.vmem [shape: f32[64,32], index: 1, kind: input, shape index: {}]
  %s2 = inlined_call_operand.vmem [shape: f32[64,1], index: 2, kind: input, shape index: {}]
  %s3 = inlined_call_operand.vmem [shape: f32[2,32,128], index: 3, kind: input, shape index: {}]
  %s4 = inlined_call_operand.vmem [shape: f32[2,32,128], index: 4, kind: input, shape index: {}]
  %s5 = inlined_call_operand.vmem [shape: f32[2,1,128], index: 5, kind: input, shape index: {}]
  %s6 = inlined_call_operand.vmem [shape: f32[2,32,128], index: 6, kind: input, shape index: {}]
  %s7 = inlined_call_operand.vmem [shape: f32[2,32,128], index: 7, kind: input, shape index: {}]
  %s8 = inlined_call_operand.vmem [shape: f32[2,1,128], index: 8, kind: input, shape index: {}]
  %s9 = inlined_call_operand.vmem [shape: f32[128,32], index: 9, kind: input, shape index: {}]
  %s10 = inlined_call_operand.vmem [shape: f32[1,32], index: 10, kind: input, shape index: {}]
  %s11 = inlined_call_operand.vmem [shape: f32[8,32], index: 11, kind: output, shape index: {}]
  %s12 = sld [smem:[#allocation0]]
  $region54: #{_forward_device.2} parent=0
    _
  %s14 = ssub.s32 1, %s12
  %s15 = scalar_select 0, %s14, %s12
  // Predicated region
  $region2: #{_forward_device.2} parent=0 // pred_check
    _
  $region3: #{_forward_device.2} parent=0 // pred_check_branch
    %17 = sbr.rel (0) target = $region5
  $region4: #{_forward_device.2} parent=0 // pred_region
    _
  $region5: #{_forward_device.2} parent=0 // pred_fallthru
    _
  // Predicated region
  $region6: #{_forward_device.2} parent=0 // pred_check
    _
  $region7: #{_forward_device.2} parent=0 // pred_check_branch
    %19 = sbr.rel (0) target = $region9
  $region8: #{_forward_device.2} parent=0 // pred_region
    _
  $region9: #{_forward_device.2} parent=0 // pred_fallthru
    _
  // Predicated region
  $region10: #{_forward_device.2} parent=0 // pred_check
    _
  $region11: #{_forward_device.2} parent=0 // pred_check_branch
    %21 = sbr.rel (0) target = $region13
  $region12: #{_forward_device.2} parent=0 // pred_region
    _
  $region13: #{_forward_device.2} parent=0 // pred_fallthru
    _
  // Predicated region
  $region14: #{_forward_device.2} parent=0 // pred_check
    _
  $region15: #{_forward_device.2} parent=0 // pred_check_branch
    %23 = sbr.rel (0) target = $region17
  $region16: #{_forward_device.2} parent=0 // pred_region
    _
  $region17: #{_forward_device.2} parent=0 // pred_fallthru
    _
  // Predicated region
  $region18: #{_forward_device.2} parent=0 // pred_check
    _
  $region19: #{_forward_device.2} parent=0 // pred_check_branch
    %25 = sbr.rel (0) target = $region21
  $region20: #{_forward_device.2} parent=0 // pred_region
    _
  $region21: #{_forward_device.2} parent=0 // pred_fallthru
    _
  // Predicated region
  $region22: #{_forward_device.2} parent=0 // pred_check
    _
  $region23: #{_forward_device.2} parent=0 // pred_check_branch
    %27 = sbr.rel (0) target = $region25
  $region24: #{_forward_device.2} parent=0 // pred_region
    _
  $region25: #{_forward_device.2} parent=0 // pred_fallthru
    _
  // Predicated region
  $region26: #{_forward_device.2} parent=0 // pred_check
    _
  $region27: #{_forward_device.2} parent=0 // pred_check_branch
    %29 = sbr.rel (0) target = $region29
  $region28: #{_forward_device.2} parent=0 // pred_region
    _
  $region29: #{_forward_device.2} parent=0 // pred_fallthru
    _
  // Predicated region
  $region30: #{_forward_device.2} parent=0 // pred_check
    _
  $region31: #{_forward_device.2} parent=0 // pred_check_branch
    %31 = sbr.rel (0) target = $region33
  $region32: #{_forward_device.2} parent=0 // pred_region
    _
  $region33: #{_forward_device.2} parent=0 // pred_fallthru
    _
  // Predicated region
  $region34: #{_forward_device.2} parent=0 // pred_check
    _
  $region35: #{_forward_device.2} parent=0 // pred_check_branch
    %33 = sbr.rel (0) target = $region37
  $region36: #{_forward_device.2} parent=0 // pred_region
    _
  $region37: #{_forward_device.2} parent=0 // pred_fallthru
    _
  // Predicated region
  $region38: #{_forward_device.2} parent=0 // pred_check
    _
  $region39: #{_forward_device.2} parent=0 // pred_check_branch
    %35 = sbr.rel (0) target = $region41
  $region40: #{_forward_device.2} parent=0 // pred_region
    _
  $region41: #{_forward_device.2} parent=0 // pred_fallthru
    _
  // Predicated region
  $region42: #{_forward_device.2} parent=0 // pred_check
    _
  $region43: #{_forward_device.2} parent=0 // pred_check_branch
    %37 = sbr.rel (0) target = $region45
  $region44: #{_forward_device.2} parent=0 // pred_region
    _
  $region45: #{_forward_device.2} parent=0 // pred_fallthru
    _
  %v38 = vld [vmem:[%s2] sm:$0xff]
  %v39 = vld [vmem:[%s2 + $0x8] sm:$0xff]
  %v40 = vld [vmem:[%s2 + $0x10] sm:$0xff]
  %v41 = vld [vmem:[%s2 + $0x18] sm:$0xff]
  %v42 = vld [vmem:[%s2 + $0x20] sm:$0xff]
  %v43 = vld [vmem:[%s2 + $0x28] sm:$0xff]
  %v44 = vld [vmem:[%s2 + $0x30] sm:$0xff]
  %v45 = vld [vmem:[%s2 + $0x38] sm:$0xff]
  %v46 = vld [vmem:[%s0] sm:$0xff]
  %v47 = vld [vmem:[%s0 + $0x8] sm:$0xff]
  %v48 = vld [vmem:[%s0 + $0x10] sm:$0xff]
  %v49 = vld [vmem:[%s0 + $0x18] sm:$0xff]
  %v50 = vld [vmem:[%s0 + $0x20] sm:$0xff]
  %v51 = vld [vmem:[%s0 + $0x28] sm:$0xff]
  %v52 = vld [vmem:[%s0 + $0x30] sm:$0xff]
  %v53 = vld [vmem:[%s0 + $0x38] sm:$0xff]
  %v54 = vld [vmem:[%s1] sm:$0xff]
  %v55 = vld [vmem:[%s1 + $0x8] sm:$0xff]
  %v56 = vld [vmem:[%s1 + $0x10] sm:$0xff]
  %v57 = vld [vmem:[%s1 + $0x18] sm:$0xff]
  %v58 = vld [vmem:[%s1 + $0x20] sm:$0xff]
  %v59 = vld [vmem:[%s1 + $0x28] sm:$0xff]
  %v60 = vld [vmem:[%s1 + $0x30] sm:$0xff]
  %v61 = vld [vmem:[%s1 + $0x38] sm:$0xff]
  %v62 = vld [vmem:[%s3] sm:$0xff]
  %v63 = vld [vmem:[%s3 + $0x8] sm:$0xff]
  %v64 = vld [vmem:[%s3 + $0x10] sm:$0xff]
  %v65 = vld [vmem:[%s3 + $0x18] sm:$0xff]
  %v66 = vld [vmem:[%s4] sm:$0xff]
  %v67 = vld [vmem:[%s4 + $0x8] sm:$0xff]
  %v68 = vld [vmem:[%s4 + $0x10] sm:$0xff]
  %v69 = vld [vmem:[%s4 + $0x18] sm:$0xff]
  %v70 = vld [vmem:[%s5] sm:$0x1]
  %v72 = vlaneseq
  %v73 = vshrl.u32 %v72, 7
  %v74 = vsub.s32 0, %v73
  %v75 = vrot.slane %v70, %v74
  %vm77 = vcmask 261120
  %v79 = vsel %vm77, %v46, 0
  %v82 = vsel %vm77, %v47, 0
  %v85 = vsel %vm77, %v48, 0
  %v88 = vsel %vm77, %v49, 0
  %v91 = vsel %vm77, %v50, 0
  %v94 = vsel %vm77, %v51, 0
  %v97 = vsel %vm77, %v52, 0
  %v100 = vsel %vm77, %v53, 0
  %102 = vmatprep.subr.mxu0 0.0
  %103 = vmatpush1.msra.mxu0 0.0
  %104 = vmatprep.subr.mxu0 0.0
  %105 = vmatpush1.msra.mxu0 0.0
  %106 = vmatprep.subr.mxu0 0.0
  %107 = vmatpush1.msra.mxu0 0.0
  %108 = vmatprep.subr.mxu0 0.0
  %109 = vmatpush1.msra.mxu0 0.0
  %110 = vmatprep.subr.mxu0 0.0
  %111 = vmatpush1.msra.mxu0 0.0
  %112 = vmatprep.subr.mxu0 0.0
  %113 = vmatpush1.msra.mxu0 0.0
  %114 = vmatprep.subr.mxu0 0.0
  %115 = vmatpush1.msra.mxu0 0.0
  %116 = vmatprep.subr.mxu0 0.0
  %117 = vmatpush1.msra.mxu0 0.0
  %118 = vmatprep.subr.mxu0 0.0
  %119 = vmatpush1.msra.mxu0 0.0
  %120 = vmatprep.subr.mxu0 0.0
  %121 = vmatpush1.msra.mxu0 0.0
  %122 = vmatprep.subr.mxu0 0.0
  %123 = vmatpush1.msra.mxu0 0.0
  %124 = vmatprep.subr.mxu0 0.0
  %125 = vmatpush1.msra.mxu0 0.0
  %126 = vmatprep.subr.mxu0 0.0
  %127 = vmatpush1.msra.mxu0 %v65
  %128 = vmatprep.subr.mxu0 0.0
  %129 = vmatpush1.msra.mxu0 %v64
  %130 = vmatprep.subr.mxu0 0.0
  %131 = vmatpush1.msra.mxu0 %v63
  %132 = vmatprep.subr.mxu0 0.0
  %133 = vmatpush1.msra.mxu0 %v62
  %134 = vmatprep.subr.mxu0 0.0
  %135 = vmatpush2.msra.mxu0 0.0
  %136 = vmatprep.subr.mxu0 0.0
  %137 = vmatpush2.msra.mxu0 0.0
  %138 = vmatprep.subr.mxu0 0.0
  %139 = vmatpush2.msra.mxu0 0.0
  %140 = vmatprep.subr.mxu0 0.0
  %141 = vmatpush2.msra.mxu0 0.0
  %142 = vmatprep.subr.mxu0 0.0
  %143 = vmatpush2.msra.mxu0 0.0
  %144 = vmatprep.subr.mxu0 0.0
  %145 = vmatpush2.msra.mxu0 0.0
  %146 = vmatprep.subr.mxu0 0.0
  %147 = vmatpush2.msra.mxu0 0.0
  %148 = vmatprep.subr.mxu0 0.0
  %149 = vmatpush2.msra.mxu0 0.0
  %150 = vmatprep.subr.mxu0 0.0
  %151 = vmatpush2.msra.mxu0 0.0
  %152 = vmatprep.subr.mxu0 0.0
  %153 = vmatpush2.msra.mxu0 0.0
  %154 = vmatprep.subr.mxu0 0.0
  %155 = vmatpush2.msra.mxu0 0.0
  %156 = vmatprep.subr.mxu0 0.0
  %157 = vmatpush2.msra.mxu0 0.0
  %158 = vmatprep.subr.mxu0 0.0
  %159 = vmatpush2.msra.mxu0 0.0
  %160 = vmatprep.subr.mxu0 0.0
  %161 = vmatpush2.msra.mxu0 0.0
  %162 = vmatprep.subr.mxu0 0.0
  %163 = vmatpush2.msra.mxu0 0.0
  %164 = vmatprep.subr.mxu0 0.0
  %165 = vmatpush2.msra.mxu0 0.0
  %166 = vmatprep.mubr.f32.mxu0 0.0
  %167 = vmatmul.mubr.f32.gmra.mxu0 %v79
  %v168 = vpop.f32.mrf.mxu0
  %v169 = vadd.f32 %v75, %v168
  %v170 = vpop.f32.mrf.mxu0
  %171 = vmatprep.mubr.f32.mxu0 0.0
  %172 = vmatmul.mubr.f32.gmra.mxu0 %v82
  %v173 = vpop.f32.mrf.mxu0
  %v174 = vadd.f32 %v75, %v173
  %v175 = vpop.f32.mrf.mxu0
  %176 = vmatprep.mubr.f32.mxu0 0.0
  %177 = vmatmul.mubr.f32.gmra.mxu0 %v85
  %v178 = vpop.f32.mrf.mxu0
  %v179 = vadd.f32 %v75, %v178
  %v180 = vpop.f32.mrf.mxu0
  %181 = vmatprep.mubr.f32.mxu0 0.0
  %182 = vmatmul.mubr.f32.gmra.mxu0 %v88
  %v183 = vpop.f32.mrf.mxu0
  %v184 = vadd.f32 %v75, %v183
  %v185 = vpop.f32.mrf.mxu0
  %186 = vmatprep.mubr.f32.mxu0 0.0
  %187 = vmatmul.mubr.f32.gmra.mxu0 %v91
  %v188 = vpop.f32.mrf.mxu0
  %v189 = vadd.f32 %v75, %v188
  %v190 = vpop.f32.mrf.mxu0
  %191 = vmatprep.mubr.f32.mxu0 0.0
  %192 = vmatmul.mubr.f32.gmra.mxu0 %v94
  %v193 = vpop.f32.mrf.mxu0
  %v194 = vadd.f32 %v75, %v193
  %v195 = vpop.f32.mrf.mxu0
  %196 = vmatprep.mubr.f32.mxu0 0.0
  %197 = vmatmul.mubr.f32.gmra.mxu0 %v97
  %v198 = vpop.f32.mrf.mxu0
  %v199 = vadd.f32 %v75, %v198
  %v200 = vpop.f32.mrf.mxu0
  %201 = vmatprep.mubr.f32.mxu0 0.0
  %202 = vmatmul.mubr.f32.gmra.mxu0 %v100
  %v203 = vpop.f32.mrf.mxu0
  %v204 = vadd.f32 %v75, %v203
  %v205 = vpop.f32.mrf.mxu0
  %206 = vdwg.mxu0
  %v208 = vsel %vm77, 0.0, 0
  %210 = vmatprep.subr.mxu0 0.0
  %211 = vmatpush1.msra.mxu0 0.0
  %212 = vmatprep.subr.mxu0 0.0
  %213 = vmatpush1.msra.mxu0 0.0
  %214 = vmatprep.subr.mxu0 0.0
  %215 = vmatpush1.msra.mxu0 0.0
  %216 = vmatprep.subr.mxu0 0.0
  %217 = vmatpush1.msra.mxu0 0.0
  %218 = vmatprep.subr.mxu0 0.0
  %219 = vmatpush1.msra.mxu0 0.0
  %220 = vmatprep.subr.mxu0 0.0
  %221 = vmatpush1.msra.mxu0 0.0
  %222 = vmatprep.subr.mxu0 0.0
  %223 = vmatpush1.msra.mxu0 0.0
  %224 = vmatprep.subr.mxu0 0.0
  %225 = vmatpush1.msra.mxu0 0.0
  %226 = vmatprep.subr.mxu0 0.0
  %227 = vmatpush1.msra.mxu0 0.0
  %228 = vmatprep.subr.mxu0 0.0
  %229 = vmatpush1.msra.mxu0 0.0
  %230 = vmatprep.subr.mxu0 0.0
  %231 = vmatpush1.msra.mxu0 0.0
  %232 = vmatprep.subr.mxu0 0.0
  %233 = vmatpush1.msra.mxu0 0.0
  %234 = vmatprep.subr.mxu0 0.0
  %235 = vmatpush1.msra.mxu0 %v69
  %236 = vmatprep.subr.mxu0 0.0
  %237 = vmatpush1.msra.mxu0 %v68
  %238 = vmatprep.subr.mxu0 0.0
  %239 = vmatpush1.msra.mxu0 %v67
  %240 = vmatprep.subr.mxu0 0.0
  %241 = vmatpush1.msra.mxu0 %v66
  %242 = vmatprep.subr.mxu0 0.0
  %243 = vmatpush2.msra.mxu0 0.0
  %244 = vmatprep.subr.mxu0 0.0
  %245 = vmatpush2.msra.mxu0 0.0
  %246 = vmatprep.subr.mxu0 0.0
  %247 = vmatpush2.msra.mxu0 0.0
  %248 = vmatprep.subr.mxu0 0.0
  %249 = vmatpush2.msra.mxu0 0.0
  %250 = vmatprep.subr.mxu0 0.0
  %251 = vmatpush2.msra.mxu0 0.0
  %252 = vmatprep.subr.mxu0 0.0
  %253 = vmatpush2.msra.mxu0 0.0
  %254 = vmatprep.subr.mxu0 0.0
  %255 = vmatpush2.msra.mxu0 0.0
  %256 = vmatprep.subr.mxu0 0.0
  %257 = vmatpush2.msra.mxu0 0.0
  %258 = vmatprep.subr.mxu0 0.0
  %259 = vmatpush2.msra.mxu0 0.0
  %260 = vmatprep.subr.mxu0 0.0
  %261 = vmatpush2.msra.mxu0 0.0
  %262 = vmatprep.subr.mxu0 0.0
  %263 = vmatpush2.msra.mxu0 0.0
  %264 = vmatprep.subr.mxu0 0.0
  %265 = vmatpush2.msra.mxu0 0.0
  %266 = vmatprep.subr.mxu0 0.0
  %267 = vmatpush2.msra.mxu0 0.0
  %268 = vmatprep.subr.mxu0 0.0
  %269 = vmatpush2.msra.mxu0 0.0
  %270 = vmatprep.subr.mxu0 0.0
  %271 = vmatpush2.msra.mxu0 0.0
  %272 = vmatprep.subr.mxu0 0.0
  %273 = vmatpush2.msra.mxu0 0.0
  %274 = vmatprep.mubr.f32.mxu0 0.0
  %275 = vmatmul.mubr.f32.gmra.mxu0 %v208
  %v276 = vpop.f32.mrf.mxu0
  %v277 = vadd.f32 0.0, %v276
  %v278 = vpop.f32.mrf.mxu0
  %279 = vdwg.mxu0
  %v280 = vadd.f32 %v169, %v277
  %v281 = vxor.u32 %v280, 2147483648
  %v282 = vmul.f32 %v281, 1.442695
  %v283 = vpow.pop %v282
  %v284 = vadd.f32 %v283, 1.0
  %v285 = vrcp.pop %v284
  %v286 = vmul.f32 1.0, %v285
  %v287 = vtanh.pop %v280
  %v288 = vmul.f32 %v286, 0.0
  %290 = vrot.lane.b32.xlu0 %v287, 64
  %v291 = vpop.permute.xlu0 %290
  %v293 = vmul.f32 %v286, %v291
  %295 = vrot.lane.b32.xlu0 %v293, 32
  %v296 = vpop.permute.xlu0 %295
  %v298 = vadd.f32 %v288, %v296
  %v299 = vtanh.pop %v298
  %301 = vrot.lane.b32.xlu0 %v299, 64
  %v302 = vpop.permute.xlu0 %301
  %v304 = vmul.f32 %v286, %v302
  %306 = vset.pattern.permute.xlu0 0
  %307 = vperm.xlu0 %306, %v38
  %v308 = vpop.permute.xlu0 %307
  %v310 = vmul.f32 %v308, %v304
  %v311 = vsub.f32 1.0, %v38
  %313 = vset.pattern.permute.xlu0 0
  %314 = vperm.xlu0 %313, %v311
  %v315 = vpop.permute.xlu0 %314
  %v317 = vmul.f32 %v315, 0.0
  %v318 = vadd.f32 %v310, %v317
  %v319 = vmul.f32 %v308, %v298
  %v320 = vadd.f32 %v319, %v317
  %v321 = vmul.f32 %v308, %v318
  %323 = vrot.lane.b32.xlu0 %v318, 32
  %v324 = vpop.permute.xlu0 %323
  %v325 = vsel %vm77, %v324, 0
  %327 = vmatprep.subr.mxu0 0.0
  %328 = vmatpush1.msra.mxu0 0.0
  %329 = vmatprep.subr.mxu0 0.0
  %330 = vmatpush1.msra.mxu0 0.0
  %331 = vmatprep.subr.mxu0 0.0
  %332 = vmatpush1.msra.mxu0 0.0
  %333 = vmatprep.subr.mxu0 0.0
  %334 = vmatpush1.msra.mxu0 0.0
  %335 = vmatprep.subr.mxu0 0.0
  %336 = vmatpush1.msra.mxu0 0.0
  %337 = vmatprep.subr.mxu0 0.0
  %338 = vmatpush1.msra.mxu0 0.0
  %339 = vmatprep.subr.mxu0 0.0
  %340 = vmatpush1.msra.mxu0 0.0
  %341 = vmatprep.subr.mxu0 0.0
  %342 = vmatpush1.msra.mxu0 0.0
  %343 = vmatprep.subr.mxu0 0.0
  %344 = vmatpush1.msra.mxu0 0.0
  %345 = vmatprep.subr.mxu0 0.0
  %346 = vmatpush1.msra.mxu0 0.0
  %347 = vmatprep.subr.mxu0 0.0
  %348 = vmatpush1.msra.mxu0 0.0
  %349 = vmatprep.subr.mxu0 0.0
  %350 = vmatpush1.msra.mxu0 0.0
  %351 = vmatprep.subr.mxu0 0.0
  %352 = vmatpush1.msra.mxu0 %v69
  %353 = vmatprep.subr.mxu0 0.0
  %354 = vmatpush1.msra.mxu0 %v68
  %355 = vmatprep.subr.mxu0 0.0
  %356 = vmatpush1.msra.mxu0 %v67
  %357 = vmatprep.subr.mxu0 0.0
  %358 = vmatpush1.msra.mxu0 %v66
  %359 = vmatprep.subr.mxu0 0.0
  %360 = vmatpush2.msra.mxu0 0.0
  %361 = vmatprep.subr.mxu0 0.0
  %362 = vmatpush2.msra.mxu0 0.0
  %363 = vmatprep.subr.mxu0 0.0
  %364 = vmatpush2.msra.mxu0 0.0
  %365 = vmatprep.subr.mxu0 0.0
  %366 = vmatpush2.msra.mxu0 0.0
  %367 = vmatprep.subr.mxu0 0.0
  %368 = vmatpush2.msra.mxu0 0.0
  %369 = vmatprep.subr.mxu0 0.0
  %370 = vmatpush2.msra.mxu0 0.0
  %371 = vmatprep.subr.mxu0 0.0
  %372 = vmatpush2.msra.mxu0 0.0
  %373 = vmatprep.subr.mxu0 0.0
  %374 = vmatpush2.msra.mxu0 0.0
  %375 = vmatprep.subr.mxu0 0.0
  %376 = vmatpush2.msra.mxu0 0.0
  %377 = vmatprep.subr.mxu0 0.0
  %378 = vmatpush2.msra.mxu0 0.0
  %379 = vmatprep.subr.mxu0 0.0
  %380 = vmatpush2.msra.mxu0 0.0
  %381 = vmatprep.subr.mxu0 0.0
  %382 = vmatpush2.msra.mxu0 0.0
  %383 = vmatprep.subr.mxu0 0.0
  %384 = vmatpush2.msra.mxu0 0.0
  %385 = vmatprep.subr.mxu0 0.0
  %386 = vmatpush2.msra.mxu0 0.0
  %387 = vmatprep.subr.mxu0 0.0
  %388 = vmatpush2.msra.mxu0 0.0
  %389 = vmatprep.subr.mxu0 0.0
  %390 = vmatpush2.msra.mxu0 0.0
  %391 = vmatprep.mubr.f32.mxu0 0.0
  %392 = vmatmul.mubr.f32.gmra.mxu0 %v325
  %v393 = vpop.f32.mrf.mxu0
  %v394 = vadd.f32 0.0, %v393
  %v395 = vpop.f32.mrf.mxu0
  %396 = vdwg.mxu0
  %v397 = vadd.f32 %v174, %v394
  %v398 = vxor.u32 %v397, 2147483648
  %v399 = vmul.f32 %v398, 1.442695
  %v400 = vpow.pop %v399
  %v401 = vadd.f32 %v400, 1.0
  %v402 = vrcp.pop %v401
  %v403 = vmul.f32 1.0, %v402
  %v404 = vtanh.pop %v397
  %v405 = vmul.f32 %v403, %v320
  %407 = vrot.lane.b32.xlu0 %v404, 64
  %v408 = vpop.permute.xlu0 %407
  %v410 = vmul.f32 %v403, %v408
  %412 = vrot.lane.b32.xlu0 %v410, 32
  %v413 = vpop.permute.xlu0 %412
  %v415 = vadd.f32 %v405, %v413
  %v416 = vtanh.pop %v415
  %418 = vrot.lane.b32.xlu0 %v416, 64
  %v419 = vpop.permute.xlu0 %418
  %v421 = vmul.f32 %v403, %v419
  %423 = vset.pattern.permute.xlu0 0
  %424 = vperm.xlu0 %423, %v39
  %v425 = vpop.permute.xlu0 %424
  %v427 = vmul.f32 %v425, %v421
  %v428 = vsub.f32 1.0, %v39
  %430 = vset.pattern.permute.xlu0 0
  %431 = vperm.xlu0 %430, %v428
  %v432 = vpop.permute.xlu0 %431
  %v434 = vmul.f32 %v432, %v318
  %v435 = vadd.f32 %v427, %v434
  %v436 = vmul.f32 %v425, %v415
  %v437 = vmul.f32 %v432, %v320
  %v438 = vadd.f32 %v436, %v437
  %v439 = vmul.f32 %v425, %v435
  %441 = vrot.lane.b32.xlu0 %v435, 32
  %v442 = vpop.permute.xlu0 %441
  %v443 = vsel %vm77, %v442, 0
  %445 = vmatprep.subr.mxu0 0.0
  %446 = vmatpush1.msra.mxu0 0.0
  %447 = vmatprep.subr.mxu0 0.0
  %448 = vmatpush1.msra.mxu0 0.0
  %449 = vmatprep.subr.mxu0 0.0
  %450 = vmatpush1.msra.mxu0 0.0
  %451 = vmatprep.subr.mxu0 0.0
  %452 = vmatpush1.msra.mxu0 0.0
  %453 = vmatprep.subr.mxu0 0.0
  %454 = vmatpush1.msra.mxu0 0.0
  %455 = vmatprep.subr.mxu0 0.0
  %456 = vmatpush1.msra.mxu0 0.0
  %457 = vmatprep.subr.mxu0 0.0
  %458 = vmatpush1.msra.mxu0 0.0
  %459 = vmatprep.subr.mxu0 0.0
  %460 = vmatpush1.msra.mxu0 0.0
  %461 = vmatprep.subr.mxu0 0.0
  %462 = vmatpush1.msra.mxu0 0.0
  %463 = vmatprep.subr.mxu0 0.0
  %464 = vmatpush1.msra.mxu0 0.0
  %465 = vmatprep.subr.mxu0 0.0
  %466 = vmatpush1.msra.mxu0 0.0
  %467 = vmatprep.subr.mxu0 0.0
  %468 = vmatpush1.msra.mxu0 0.0
  %469 = vmatprep.subr.mxu0 0.0
  %470 = vmatpush1.msra.mxu0 %v69
  %471 = vmatprep.subr.mxu0 0.0
  %472 = vmatpush1.msra.mxu0 %v68
  %473 = vmatprep.subr.mxu0 0.0
  %474 = vmatpush1.msra.mxu0 %v67
  %475 = vmatprep.subr.mxu0 0.0
  %476 = vmatpush1.msra.mxu0 %v66
  %477 = vmatprep.subr.mxu0 0.0
  %478 = vmatpush2.msra.mxu0 0.0
  %479 = vmatprep.subr.mxu0 0.0
  %480 = vmatpush2.msra.mxu0 0.0
  %481 = vmatprep.subr.mxu0 0.0
  %482 = vmatpush2.msra.mxu0 0.0
  %483 = vmatprep.subr.mxu0 0.0
  %484 = vmatpush2.msra.mxu0 0.0
  %485 = vmatprep.subr.mxu0 0.0
  %486 = vmatpush2.msra.mxu0 0.0
  %487 = vmatprep.subr.mxu0 0.0
  %488 = vmatpush2.msra.mxu0 0.0
  %489 = vmatprep.subr.mxu0 0.0
  %490 = vmatpush2.msra.mxu0 0.0
  %491 = vmatprep.subr.mxu0 0.0
  %492 = vmatpush2.msra.mxu0 0.0
  %493 = vmatprep.subr.mxu0 0.0
  %494 = vmatpush2.msra.mxu0 0.0
  %495 = vmatprep.subr.mxu0 0.0
  %496 = vmatpush2.msra.mxu0 0.0
  %497 = vmatprep.subr.mxu0 0.0
  %498 = vmatpush2.msra.mxu0 0.0
  %499 = vmatprep.subr.mxu0 0.0
  %500 = vmatpush2.msra.mxu0 0.0
  %501 = vmatprep.subr.mxu0 0.0
  %502 = vmatpush2.msra.mxu0 0.0
  %503 = vmatprep.subr.mxu0 0.0
  %504 = vmatpush2.msra.mxu0 0.0
  %505 = vmatprep.subr.mxu0 0.0
  %506 = vmatpush2.msra.mxu0 0.0
  %507 = vmatprep.subr.mxu0 0.0
  %508 = vmatpush2.msra.mxu0 0.0
  %509 = vmatprep.mubr.f32.mxu0 0.0
  %510 = vmatmul.mubr.f32.gmra.mxu0 %v443
  %v511 = vpop.f32.mrf.mxu0
  %v512 = vadd.f32 0.0, %v511
  %v513 = vpop.f32.mrf.mxu0
  %514 = vdwg.mxu0
  %v515 = vadd.f32 %v179, %v512
  %v516 = vxor.u32 %v515, 2147483648
  %v517 = vmul.f32 %v516, 1.442695
  %v518 = vpow.pop %v517
  %v519 = vadd.f32 %v518, 1.0
  %v520 = vrcp.pop %v519
  %v521 = vmul.f32 1.0, %v520
  %v522 = vtanh.pop %v515
  %v523 = vmul.f32 %v521, %v438
  %525 = vrot.lane.b32.xlu0 %v522, 64
  %v526 = vpop.permute.xlu0 %525
  %v528 = vmul.f32 %v521, %v526
  %530 = vrot.lane.b32.xlu0 %v528, 32
  %v531 = vpop.permute.xlu0 %530
  %v533 = vadd.f32 %v523, %v531
  %v534 = vtanh.pop %v533
  %536 = vrot.lane.b32.xlu0 %v534, 64
  %v537 = vpop.permute.xlu0 %536
  %v539 = vmul.f32 %v521, %v537
  %541 = vset.pattern.permute.xlu0 0
  %542 = vperm.xlu0 %541, %v40
  %v543 = vpop.permute.xlu0 %542
  %v545 = vmul.f32 %v543, %v539
  %v546 = vsub.f32 1.0, %v40
  %548 = vset.pattern.permute.xlu0 0
  %549 = vperm.xlu0 %548, %v546
  %v550 = vpop.permute.xlu0 %549
  %v552 = vmul.f32 %v550, %v435
  %v553 = vadd.f32 %v545, %v552
  %v554 = vmul.f32 %v543, %v533
  %v555 = vmul.f32 %v550, %v438
  %v556 = vadd.f32 %v554, %v555
  %v557 = vmul.f32 %v543, %v553
  %559 = vrot.lane.b32.xlu0 %v553, 32
  %v560 = vpop.permute.xlu0 %559
  %v561 = vsel %vm77, %v560, 0
  %563 = vmatprep.subr.mxu0 0.0
  %564 = vmatpush1.msra.mxu0 0.0
  %565 = vmatprep.subr.mxu0 0.0
  %566 = vmatpush1.msra.mxu0 0.0
  %567 = vmatprep.subr.mxu0 0.0
  %568 = vmatpush1.msra.mxu0 0.0
  %569 = vmatprep.subr.mxu0 0.0
  %570 = vmatpush1.msra.mxu0 0.0
  %571 = vmatprep.subr.mxu0 0.0
  %572 = vmatpush1.msra.mxu0 0.0
  %573 = vmatprep.subr.mxu0 0.0
  %574 = vmatpush1.msra.mxu0 0.0
  %575 = vmatprep.subr.mxu0 0.0
  %576 = vmatpush1.msra.mxu0 0.0
  %577 = vmatprep.subr.mxu0 0.0
  %578 = vmatpush1.msra.mxu0 0.0
  %579 = vmatprep.subr.mxu0 0.0
  %580 = vmatpush1.msra.mxu0 0.0
  %581 = vmatprep.subr.mxu0 0.0
  %582 = vmatpush1.msra.mxu0 0.0
  %583 = vmatprep.subr.mxu0 0.0
  %584 = vmatpush1.msra.mxu0 0.0
  %585 = vmatprep.subr.mxu0 0.0
  %586 = vmatpush1.msra.mxu0 0.0
  %587 = vmatprep.subr.mxu0 0.0
  %588 = vmatpush1.msra.mxu0 %v69
  %589 = vmatprep.subr.mxu0 0.0
  %590 = vmatpush1.msra.mxu0 %v68
  %591 = vmatprep.subr.mxu0 0.0
  %592 = vmatpush1.msra.mxu0 %v67
  %593 = vmatprep.subr.mxu0 0.0
  %594 = vmatpush1.msra.mxu0 %v66
  %595 = vmatprep.subr.mxu0 0.0
  %596 = vmatpush2.msra.mxu0 0.0
  %597 = vmatprep.subr.mxu0 0.0
  %598 = vmatpush2.msra.mxu0 0.0
  %599 = vmatprep.subr.mxu0 0.0
  %600 = vmatpush2.msra.mxu0 0.0
  %601 = vmatprep.subr.mxu0 0.0
  %602 = vmatpush2.msra.mxu0 0.0
  %603 = vmatprep.subr.mxu0 0.0
  %604 = vmatpush2.msra.mxu0 0.0
  %605 = vmatprep.subr.mxu0 0.0
  %606 = vmatpush2.msra.mxu0 0.0
  %607 = vmatprep.subr.mxu0 0.0
  %608 = vmatpush2.msra.mxu0 0.0
  %609 = vmatprep.subr.mxu0 0.0
  %610 = vmatpush2.msra.mxu0 0.0
  %611 = vmatprep.subr.mxu0 0.0
  %612 = vmatpush2.msra.mxu0 0.0
  %613 = vmatprep.subr.mxu0 0.0
  %614 = vmatpush2.msra.mxu0 0.0
  %615 = vmatprep.subr.mxu0 0.0
  %616 = vmatpush2.msra.mxu0 0.0
  %617 = vmatprep.subr.mxu0 0.0
  %618 = vmatpush2.msra.mxu0 0.0
  %619 = vmatprep.subr.mxu0 0.0
  %620 = vmatpush2.msra.mxu0 0.0
  %621 = vmatprep.subr.mxu0 0.0
  %622 = vmatpush2.msra.mxu0 0.0
  %623 = vmatprep.subr.mxu0 0.0
  %624 = vmatpush2.msra.mxu0 0.0
  %625 = vmatprep.subr.mxu0 0.0
  %626 = vmatpush2.msra.mxu0 0.0
  %627 = vmatprep.mubr.f32.mxu0 0.0
  %628 = vmatmul.mubr.f32.gmra.mxu0 %v561
  %v629 = vpop.f32.mrf.mxu0
  %v630 = vadd.f32 0.0, %v629
  %v631 = vpop.f32.mrf.mxu0
  %632 = vdwg.mxu0
  %v633 = vadd.f32 %v184, %v630
  %v634 = vxor.u32 %v633, 2147483648
  %v635 = vmul.f32 %v634, 1.442695
  %v636 = vpow.pop %v635
  %v637 = vadd.f32 %v636, 1.0
  %v638 = vrcp.pop %v637
  %v639 = vmul.f32 1.0, %v638
  %v640 = vtanh.pop %v633
  %v641 = vmul.f32 %v639, %v556
  %643 = vrot.lane.b32.xlu0 %v640, 64
  %v644 = vpop.permute.xlu0 %643
  %v646 = vmul.f32 %v639, %v644
  %648 = vrot.lane.b32.xlu0 %v646, 32
  %v649 = vpop.permute.xlu0 %648
  %v651 = vadd.f32 %v641, %v649
  %v652 = vtanh.pop %v651
  %654 = vrot.lane.b32.xlu0 %v652, 64
  %v655 = vpop.permute.xlu0 %654
  %v657 = vmul.f32 %v639, %v655
  %659 = vset.pattern.permute.xlu0 0
  %660 = vperm.xlu0 %659, %v41
  %v661 = vpop.permute.xlu0 %660
  %v663 = vmul.f32 %v661, %v657
  %v664 = vsub.f32 1.0, %v41
  %666 = vset.pattern.permute.xlu0 0
  %667 = vperm.xlu0 %666, %v664
  %v668 = vpop.permute.xlu0 %667
  %v670 = vmul.f32 %v668, %v553
  %v671 = vadd.f32 %v663, %v670
  %v672 = vmul.f32 %v661, %v651
  %v673 = vmul.f32 %v668, %v556
  %v674 = vadd.f32 %v672, %v673
  %v675 = vmul.f32 %v661, %v671
  %677 = vrot.lane.b32.xlu0 %v671, 32
  %v678 = vpop.permute.xlu0 %677
  %v679 = vsel %vm77, %v678, 0
  %681 = vmatprep.subr.mxu0 0.0
  %682 = vmatpush1.msra.mxu0 0.0
  %683 = vmatprep.subr.mxu0 0.0
  %684 = vmatpush1.msra.mxu0 0.0
  %685 = vmatprep.subr.mxu0 0.0
  %686 = vmatpush1.msra.mxu0 0.0
  %687 = vmatprep.subr.mxu0 0.0
  %688 = vmatpush1.msra.mxu0 0.0
  %689 = vmatprep.subr.mxu0 0.0
  %690 = vmatpush1.msra.mxu0 0.0
  %691 = vmatprep.subr.mxu0 0.0
  %692 = vmatpush1.msra.mxu0 0.0
  %693 = vmatprep.subr.mxu0 0.0
  %694 = vmatpush1.msra.mxu0 0.0
  %695 = vmatprep.subr.mxu0 0.0
  %696 = vmatpush1.msra.mxu0 0.0
  %697 = vmatprep.subr.mxu0 0.0
  %698 = vmatpush1.msra.mxu0 0.0
  %699 = vmatprep.subr.mxu0 0.0
  %700 = vmatpush1.msra.mxu0 0.0
  %701 = vmatprep.subr.mxu0 0.0
  %702 = vmatpush1.msra.mxu0 0.0
  %703 = vmatprep.subr.mxu0 0.0
  %704 = vmatpush1.msra.mxu0 0.0
  %705 = vmatprep.subr.mxu0 0.0
  %706 = vmatpush1.msra.mxu0 %v69
  %707 = vmatprep.subr.mxu0 0.0
  %708 = vmatpush1.msra.mxu0 %v68
  %709 = vmatprep.subr.mxu0 0.0
  %710 = vmatpush1.msra.mxu0 %v67
  %711 = vmatprep.subr.mxu0 0.0
  %712 = vmatpush1.msra.mxu0 %v66
  %713 = vmatprep.subr.mxu0 0.0
  %714 = vmatpush2.msra.mxu0 0.0
  %715 = vmatprep.subr.mxu0 0.0
  %716 = vmatpush2.msra.mxu0 0.0
  %717 = vmatprep.subr.mxu0 0.0
  %718 = vmatpush2.msra.mxu0 0.0
  %719 = vmatprep.subr.mxu0 0.0
  %720 = vmatpush2.msra.mxu0 0.0
  %721 = vmatprep.subr.mxu0 0.0
  %722 = vmatpush2.msra.mxu0 0.0
  %723 = vmatprep.subr.mxu0 0.0
  %724 = vmatpush2.msra.mxu0 0.0
  %725 = vmatprep.subr.mxu0 0.0
  %726 = vmatpush2.msra.mxu0 0.0
  %727 = vmatprep.subr.mxu0 0.0
  %728 = vmatpush2.msra.mxu0 0.0
  %729 = vmatprep.subr.mxu0 0.0
  %730 = vmatpush2.msra.mxu0 0.0
  %731 = vmatprep.subr.mxu0 0.0
  %732 = vmatpush2.msra.mxu0 0.0
  %733 = vmatprep.subr.mxu0 0.0
  %734 = vmatpush2.msra.mxu0 0.0
  %735 = vmatprep.subr.mxu0 0.0
  %736 = vmatpush2.msra.mxu0 0.0
  %737 = vmatprep.subr.mxu0 0.0
  %738 = vmatpush2.msra.mxu0 0.0
  %739 = vmatprep.subr.mxu0 0.0
  %740 = vmatpush2.msra.mxu0 0.0
  %741 = vmatprep.subr.mxu0 0.0
  %742 = vmatpush2.msra.mxu0 0.0
  %743 = vmatprep.subr.mxu0 0.0
  %744 = vmatpush2.msra.mxu0 0.0
  %745 = vmatprep.mubr.f32.mxu0 0.0
  %746 = vmatmul.mubr.f32.gmra.mxu0 %v679
  %v747 = vpop.f32.mrf.mxu0
  %v748 = vadd.f32 0.0, %v747
  %v749 = vpop.f32.mrf.mxu0
  %750 = vdwg.mxu0
  %v751 = vadd.f32 %v189, %v748
  %v752 = vxor.u32 %v751, 2147483648
  %v753 = vmul.f32 %v752, 1.442695
  %v754 = vpow.pop %v753
  %v755 = vadd.f32 %v754, 1.0
  %v756 = vrcp.pop %v755
  %v757 = vmul.f32 1.0, %v756
  %v758 = vtanh.pop %v751
  %v759 = vmul.f32 %v757, %v674
  %761 = vrot.lane.b32.xlu0 %v758, 64
  %v762 = vpop.permute.xlu0 %761
  %v764 = vmul.f32 %v757, %v762
  %766 = vrot.lane.b32.xlu0 %v764, 32
  %v767 = vpop.permute.xlu0 %766
  %v769 = vadd.f32 %v759, %v767
  %v770 = vtanh.pop %v769
  %772 = vrot.lane.b32.xlu0 %v770, 64
  %v773 = vpop.permute.xlu0 %772
  %v775 = vmul.f32 %v757, %v773
  %777 = vset.pattern.permute.xlu0 0
  %778 = vperm.xlu0 %777, %v42
  %v779 = vpop.permute.xlu0 %778
  %v781 = vmul.f32 %v779, %v775
  %v782 = vsub.f32 1.0, %v42
  %784 = vset.pattern.permute.xlu0 0
  %785 = vperm.xlu0 %784, %v782
  %v786 = vpop.permute.xlu0 %785
  %v788 = vmul.f32 %v786, %v671
  %v789 = vadd.f32 %v781, %v788
  %v790 = vmul.f32 %v779, %v769
  %v791 = vmul.f32 %v786, %v674
  %v792 = vadd.f32 %v790, %v791
  %v793 = vmul.f32 %v779, %v789
  %795 = vrot.lane.b32.xlu0 %v789, 32
  %v796 = vpop.permute.xlu0 %795
  %v797 = vsel %vm77, %v796, 0
  %799 = vmatprep.subr.mxu0 0.0
  %800 = vmatpush1.msra.mxu0 0.0
  %801 = vmatprep.subr.mxu0 0.0
  %802 = vmatpush1.msra.mxu0 0.0
  %803 = vmatprep.subr.mxu0 0.0
  %804 = vmatpush1.msra.mxu0 0.0
  %805 = vmatprep.subr.mxu0 0.0
  %806 = vmatpush1.msra.mxu0 0.0
  %807 = vmatprep.subr.mxu0 0.0
  %808 = vmatpush1.msra.mxu0 0.0
  %809 = vmatprep.subr.mxu0 0.0
  %810 = vmatpush1.msra.mxu0 0.0
  %811 = vmatprep.subr.mxu0 0.0
  %812 = vmatpush1.msra.mxu0 0.0
  %813 = vmatprep.subr.mxu0 0.0
  %814 = vmatpush1.msra.mxu0 0.0
  %815 = vmatprep.subr.mxu0 0.0
  %816 = vmatpush1.msra.mxu0 0.0
  %817 = vmatprep.subr.mxu0 0.0
  %818 = vmatpush1.msra.mxu0 0.0
  %819 = vmatprep.subr.mxu0 0.0
  %820 = vmatpush1.msra.mxu0 0.0
  %821 = vmatprep.subr.mxu0 0.0
  %822 = vmatpush1.msra.mxu0 0.0
  %823 = vmatprep.subr.mxu0 0.0
  %824 = vmatpush1.msra.mxu0 %v69
  %825 = vmatprep.subr.mxu0 0.0
  %826 = vmatpush1.msra.mxu0 %v68
  %827 = vmatprep.subr.mxu0 0.0
  %828 = vmatpush1.msra.mxu0 %v67
  %829 = vmatprep.subr.mxu0 0.0
  %830 = vmatpush1.msra.mxu0 %v66
  %831 = vmatprep.subr.mxu0 0.0
  %832 = vmatpush2.msra.mxu0 0.0
  %833 = vmatprep.subr.mxu0 0.0
  %834 = vmatpush2.msra.mxu0 0.0
  %835 = vmatprep.subr.mxu0 0.0
  %836 = vmatpush2.msra.mxu0 0.0
  %837 = vmatprep.subr.mxu0 0.0
  %838 = vmatpush2.msra.mxu0 0.0
  %839 = vmatprep.subr.mxu0 0.0
  %840 = vmatpush2.msra.mxu0 0.0
  %841 = vmatprep.subr.mxu0 0.0
  %842 = vmatpush2.msra.mxu0 0.0
  %843 = vmatprep.subr.mxu0 0.0
  %844 = vmatpush2.msra.mxu0 0.0
  %845 = vmatprep.subr.mxu0 0.0
  %846 = vmatpush2.msra.mxu0 0.0
  %847 = vmatprep.subr.mxu0 0.0
  %848 = vmatpush2.msra.mxu0 0.0
  %849 = vmatprep.subr.mxu0 0.0
  %850 = vmatpush2.msra.mxu0 0.0
  %851 = vmatprep.subr.mxu0 0.0
  %852 = vmatpush2.msra.mxu0 0.0
  %853 = vmatprep.subr.mxu0 0.0
  %854 = vmatpush2.msra.mxu0 0.0
  %855 = vmatprep.subr.mxu0 0.0
  %856 = vmatpush2.msra.mxu0 0.0
  %857 = vmatprep.subr.mxu0 0.0
  %858 = vmatpush2.msra.mxu0 0.0
  %859 = vmatprep.subr.mxu0 0.0
  %860 = vmatpush2.msra.mxu0 0.0
  %861 = vmatprep.subr.mxu0 0.0
  %862 = vmatpush2.msra.mxu0 0.0
  %863 = vmatprep.mubr.f32.mxu0 0.0
  %864 = vmatmul.mubr.f32.gmra.mxu0 %v797
  %v865 = vpop.f32.mrf.mxu0
  %v866 = vadd.f32 0.0, %v865
  %v867 = vpop.f32.mrf.mxu0
  %868 = vdwg.mxu0
  %v869 = vadd.f32 %v194, %v866
  %v870 = vxor.u32 %v869, 2147483648
  %v871 = vmul.f32 %v870, 1.442695
  %v872 = vpow.pop %v871
  %v873 = vadd.f32 %v872, 1.0
  %v874 = vrcp.pop %v873
  %v875 = vmul.f32 1.0, %v874
  %v876 = vtanh.pop %v869
  %v877 = vmul.f32 %v875, %v792
  %879 = vrot.lane.b32.xlu0 %v876, 64
  %v880 = vpop.permute.xlu0 %879
  %v882 = vmul.f32 %v875, %v880
  %884 = vrot.lane.b32.xlu0 %v882, 32
  %v885 = vpop.permute.xlu0 %884
  %v887 = vadd.f32 %v877, %v885
  %v888 = vtanh.pop %v887
  %890 = vrot.lane.b32.xlu0 %v888, 64
  %v891 = vpop.permute.xlu0 %890
  %v893 = vmul.f32 %v875, %v891
  %895 = vset.pattern.permute.xlu0 0
  %896 = vperm.xlu0 %895, %v43
  %v897 = vpop.permute.xlu0 %896
  %v899 = vmul.f32 %v897, %v893
  %v900 = vsub.f32 1.0, %v43
  %902 = vset.pattern.permute.xlu0 0
  %903 = vperm.xlu0 %902, %v900
  %v904 = vpop.permute.xlu0 %903
  %v906 = vmul.f32 %v904, %v789
  %v907 = vadd.f32 %v899, %v906
  %v908 = vmul.f32 %v897, %v887
  %v909 = vmul.f32 %v904, %v792
  %v910 = vadd.f32 %v908, %v909
  %v911 = vmul.f32 %v897, %v907
  %913 = vrot.lane.b32.xlu0 %v907, 32
  %v914 = vpop.permute.xlu0 %913
  %v915 = vsel %vm77, %v914, 0
  %917 = vmatprep.subr.mxu0 0.0
  %918 = vmatpush1.msra.mxu0 0.0
  %919 = vmatprep.subr.mxu0 0.0
  %920 = vmatpush1.msra.mxu0 0.0
  %921 = vmatprep.subr.mxu0 0.0
  %922 = vmatpush1.msra.mxu0 0.0
  %923 = vmatprep.subr.mxu0 0.0
  %924 = vmatpush1.msra.mxu0 0.0
  %925 = vmatprep.subr.mxu0 0.0
  %926 = vmatpush1.msra.mxu0 0.0
  %927 = vmatprep.subr.mxu0 0.0
  %928 = vmatpush1.msra.mxu0 0.0
  %929 = vmatprep.subr.mxu0 0.0
  %930 = vmatpush1.msra.mxu0 0.0
  %931 = vmatprep.subr.mxu0 0.0
  %932 = vmatpush1.msra.mxu0 0.0
  %933 = vmatprep.subr.mxu0 0.0
  %934 = vmatpush1.msra.mxu0 0.0
  %935 = vmatprep.subr.mxu0 0.0
  %936 = vmatpush1.msra.mxu0 0.0
  %937 = vmatprep.subr.mxu0 0.0
  %938 = vmatpush1.msra.mxu0 0.0
  %939 = vmatprep.subr.mxu0 0.0
  %940 = vmatpush1.msra.mxu0 0.0
  %941 = vmatprep.subr.mxu0 0.0
  %942 = vmatpush1.msra.mxu0 %v69
  %943 = vmatprep.subr.mxu0 0.0
  %944 = vmatpush1.msra.mxu0 %v68
  %945 = vmatprep.subr.mxu0 0.0
  %946 = vmatpush1.msra.mxu0 %v67
  %947 = vmatprep.subr.mxu0 0.0
  %948 = vmatpush1.msra.mxu0 %v66
  %949 = vmatprep.subr.mxu0 0.0
  %950 = vmatpush2.msra.mxu0 0.0
  %951 = vmatprep.subr.mxu0 0.0
  %952 = vmatpush2.msra.mxu0 0.0
  %953 = vmatprep.subr.mxu0 0.0
  %954 = vmatpush2.msra.mxu0 0.0
  %955 = vmatprep.subr.mxu0 0.0
  %956 = vmatpush2.msra.mxu0 0.0
  %957 = vmatprep.subr.mxu0 0.0
  %958 = vmatpush2.msra.mxu0 0.0
  %959 = vmatprep.subr.mxu0 0.0
  %960 = vmatpush2.msra.mxu0 0.0
  %961 = vmatprep.subr.mxu0 0.0
  %962 = vmatpush2.msra.mxu0 0.0
  %963 = vmatprep.subr.mxu0 0.0
  %964 = vmatpush2.msra.mxu0 0.0
  %965 = vmatprep.subr.mxu0 0.0
  %966 = vmatpush2.msra.mxu0 0.0
  %967 = vmatprep.subr.mxu0 0.0
  %968 = vmatpush2.msra.mxu0 0.0
  %969 = vmatprep.subr.mxu0 0.0
  %970 = vmatpush2.msra.mxu0 0.0
  %971 = vmatprep.subr.mxu0 0.0
  %972 = vmatpush2.msra.mxu0 0.0
  %973 = vmatprep.subr.mxu0 0.0
  %974 = vmatpush2.msra.mxu0 0.0
  %975 = vmatprep.subr.mxu0 0.0
  %976 = vmatpush2.msra.mxu0 0.0
  %977 = vmatprep.subr.mxu0 0.0
  %978 = vmatpush2.msra.mxu0 0.0
  %979 = vmatprep.subr.mxu0 0.0
  %980 = vmatpush2.msra.mxu0 0.0
  %981 = vmatprep.mubr.f32.mxu0 0.0
  %982 = vmatmul.mubr.f32.gmra.mxu0 %v915
  %v983 = vpop.f32.mrf.mxu0
  %v984 = vadd.f32 0.0, %v983
  %v985 = vpop.f32.mrf.mxu0
  %986 = vdwg.mxu0
  %v987 = vadd.f32 %v199, %v984
  %v988 = vxor.u32 %v987, 2147483648
  %v989 = vmul.f32 %v988, 1.442695
  %v990 = vpow.pop %v989
  %v991 = vadd.f32 %v990, 1.0
  %v992 = vrcp.pop %v991
  %v993 = vmul.f32 1.0, %v992
  %v994 = vtanh.pop %v987
  %v995 = vmul.f32 %v993, %v910
  %997 = vrot.lane.b32.xlu0 %v994, 64
  %v998 = vpop.permute.xlu0 %997
  %v1000 = vmul.f32 %v993, %v998
  %1002 = vrot.lane.b32.xlu0 %v1000, 32
  %v1003 = vpop.permute.xlu0 %1002
  %v1005 = vadd.f32 %v995, %v1003
  %v1006 = vtanh.pop %v1005
  %1008 = vrot.lane.b32.xlu0 %v1006, 64
  %v1009 = vpop.permute.xlu0 %1008
  %v1011 = vmul.f32 %v993, %v1009
  %1013 = vset.pattern.permute.xlu0 0
  %1014 = vperm.xlu0 %1013, %v44
  %v1015 = vpop.permute.xlu0 %1014
  %v1017 = vmul.f32 %v1015, %v1011
  %v1018 = vsub.f32 1.0, %v44
  %1020 = vset.pattern.permute.xlu0 0
  %1021 = vperm.xlu0 %1020, %v1018
  %v1022 = vpop.permute.xlu0 %1021
  %v1024 = vmul.f32 %v1022, %v907
  %v1025 = vadd.f32 %v1017, %v1024
  %v1026 = vmul.f32 %v1015, %v1005
  %v1027 = vmul.f32 %v1022, %v910
  %v1028 = vadd.f32 %v1026, %v1027
  %v1029 = vmul.f32 %v1015, %v1025
  %1031 = vrot.lane.b32.xlu0 %v1025, 32
  %v1032 = vpop.permute.xlu0 %1031
  %v1033 = vsel %vm77, %v1032, 0
  %1035 = vmatprep.subr.mxu0 0.0
  %1036 = vmatpush1.msra.mxu0 0.0
  %1037 = vmatprep.subr.mxu0 0.0
  %1038 = vmatpush1.msra.mxu0 0.0
  %1039 = vmatprep.subr.mxu0 0.0
  %1040 = vmatpush1.msra.mxu0 0.0
  %1041 = vmatprep.subr.mxu0 0.0
  %1042 = vmatpush1.msra.mxu0 0.0
  %1043 = vmatprep.subr.mxu0 0.0
  %1044 = vmatpush1.msra.mxu0 0.0
  %1045 = vmatprep.subr.mxu0 0.0
  %1046 = vmatpush1.msra.mxu0 0.0
  %1047 = vmatprep.subr.mxu0 0.0
  %1048 = vmatpush1.msra.mxu0 0.0
  %1049 = vmatprep.subr.mxu0 0.0
  %1050 = vmatpush1.msra.mxu0 0.0
  %1051 = vmatprep.subr.mxu0 0.0
  %1052 = vmatpush1.msra.mxu0 0.0
  %1053 = vmatprep.subr.mxu0 0.0
  %1054 = vmatpush1.msra.mxu0 0.0
  %1055 = vmatprep.subr.mxu0 0.0
  %1056 = vmatpush1.msra.mxu0 0.0
  %1057 = vmatprep.subr.mxu0 0.0
  %1058 = vmatpush1.msra.mxu0 0.0
  %1059 = vmatprep.subr.mxu0 0.0
  %1060 = vmatpush1.msra.mxu0 %v69
  %1061 = vmatprep.subr.mxu0 0.0
  %1062 = vmatpush1.msra.mxu0 %v68
  %1063 = vmatprep.subr.mxu0 0.0
  %1064 = vmatpush1.msra.mxu0 %v67
  %1065 = vmatprep.subr.mxu0 0.0
  %1066 = vmatpush1.msra.mxu0 %v66
  %1067 = vmatprep.subr.mxu0 0.0
  %1068 = vmatpush2.msra.mxu0 0.0
  %1069 = vmatprep.subr.mxu0 0.0
  %1070 = vmatpush2.msra.mxu0 0.0
  %1071 = vmatprep.subr.mxu0 0.0
  %1072 = vmatpush2.msra.mxu0 0.0
  %1073 = vmatprep.subr.mxu0 0.0
  %1074 = vmatpush2.msra.mxu0 0.0
  %1075 = vmatprep.subr.mxu0 0.0
  %1076 = vmatpush2.msra.mxu0 0.0
  %1077 = vmatprep.subr.mxu0 0.0
  %1078 = vmatpush2.msra.mxu0 0.0
  %1079 = vmatprep.subr.mxu0 0.0
  %1080 = vmatpush2.msra.mxu0 0.0
  %1081 = vmatprep.subr.mxu0 0.0
  %1082 = vmatpush2.msra.mxu0 0.0
  %1083 = vmatprep.subr.mxu0 0.0
  %1084 = vmatpush2.msra.mxu0 0.0
  %1085 = vmatprep.subr.mxu0 0.0
  %1086 = vmatpush2.msra.mxu0 0.0
  %1087 = vmatprep.subr.mxu0 0.0
  %1088 = vmatpush2.msra.mxu0 0.0
  %1089 = vmatprep.subr.mxu0 0.0
  %1090 = vmatpush2.msra.mxu0 0.0
  %1091 = vmatprep.subr.mxu0 0.0
  %1092 = vmatpush2.msra.mxu0 0.0
  %1093 = vmatprep.subr.mxu0 0.0
  %1094 = vmatpush2.msra.mxu0 0.0
  %1095 = vmatprep.subr.mxu0 0.0
  %1096 = vmatpush2.msra.mxu0 0.0
  %1097 = vmatprep.subr.mxu0 0.0
  %1098 = vmatpush2.msra.mxu0 0.0
  %1099 = vmatprep.mubr.f32.mxu0 0.0
  %1100 = vmatmul.mubr.f32.gmra.mxu0 %v1033
  %v1101 = vpop.f32.mrf.mxu0
  %v1102 = vadd.f32 0.0, %v1101
  %v1103 = vpop.f32.mrf.mxu0
  %1104 = vdwg.mxu0
  %v1105 = vadd.f32 %v204, %v1102
  %v1106 = vxor.u32 %v1105, 2147483648
  %v1107 = vmul.f32 %v1106, 1.442695
  %v1108 = vpow.pop %v1107
  %v1109 = vadd.f32 %v1108, 1.0
  %v1110 = vrcp.pop %v1109
  %v1111 = vmul.f32 1.0, %v1110
  %v1112 = vtanh.pop %v1105
  %v1113 = vmul.f32 %v1111, %v1028
  %1115 = vrot.lane.b32.xlu0 %v1112, 64
  %v1116 = vpop.permute.xlu0 %1115
  %v1118 = vmul.f32 %v1111, %v1116
  %1120 = vrot.lane.b32.xlu0 %v1118, 32
  %v1121 = vpop.permute.xlu0 %1120
  %v1123 = vadd.f32 %v1113, %v1121
  %v1124 = vtanh.pop %v1123
  %1126 = vrot.lane.b32.xlu0 %v1124, 64
  %v1127 = vpop.permute.xlu0 %1126
  %v1129 = vmul.f32 %v1111, %v1127
  %1131 = vset.pattern.permute.xlu0 0
  %1132 = vperm.xlu0 %1131, %v45
  %v1133 = vpop.permute.xlu0 %1132
  %v1135 = vmul.f32 %v1133, %v1129
  %v1136 = vsub.f32 1.0, %v45
  %1138 = vset.pattern.permute.xlu0 0
  %1139 = vperm.xlu0 %1138, %v1136
  %v1140 = vpop.permute.xlu0 %1139
  %v1142 = vmul.f32 %v1140, %v1025
  %v1143 = vadd.f32 %v1135, %v1142
  %v1144 = vmul.f32 %v1133, %v1143
  %1145 = vrot.lane.b32.xlu0 %v46, 96
  %v1146 = vpop.permute.xlu0 %1145
  %1147 = vrot.lane.b32.xlu0 %v47, 96
  %v1148 = vpop.permute.xlu0 %1147
  %1149 = vrot.lane.b32.xlu0 %v48, 96
  %v1150 = vpop.permute.xlu0 %1149
  %1151 = vrot.lane.b32.xlu0 %v49, 96
  %v1152 = vpop.permute.xlu0 %1151
  %1153 = vrot.lane.b32.xlu0 %v50, 96
  %v1154 = vpop.permute.xlu0 %1153
  %1155 = vrot.lane.b32.xlu0 %v51, 96
  %v1156 = vpop.permute.xlu0 %1155
  %1157 = vrot.lane.b32.xlu0 %v52, 96
  %v1158 = vpop.permute.xlu0 %1157
  %1159 = vrot.lane.b32.xlu0 %v53, 96
  %v1160 = vpop.permute.xlu0 %1159
  %v1169 = vadd.f32 %v321, %v1146
  %v1170 = vadd.f32 %v439, %v1148
  %v1171 = vadd.f32 %v557, %v1150
  %v1172 = vadd.f32 %v675, %v1152
  %v1173 = vadd.f32 %v793, %v1154
  %v1174 = vadd.f32 %v911, %v1156
  %v1175 = vadd.f32 %v1029, %v1158
  %v1176 = vadd.f32 %v1144, %v1160
  %s1177 = scalar_lea.vmem %s3, 32
  %v1178 = vld [vmem:[%s1177] sm:$0xff]
  %v1179 = vld [vmem:[%s1177 + $0x8] sm:$0xff]
  %v1180 = vld [vmem:[%s1177 + $0x10] sm:$0xff]
  %v1181 = vld [vmem:[%s1177 + $0x18] sm:$0xff]
  %s1182 = scalar_lea.vmem %s4, 32
  %v1183 = vld [vmem:[%s1182] sm:$0xff]
  %v1184 = vld [vmem:[%s1182 + $0x8] sm:$0xff]
  %v1185 = vld [vmem:[%s1182 + $0x10] sm:$0xff]
  %v1186 = vld [vmem:[%s1182 + $0x18] sm:$0xff]
  %s1187 = scalar_lea.vmem %s5, 1
  %v1188 = vld [vmem:[%s1187] sm:$0x1]
  %v1190 = vlaneseq
  %v1191 = vshrl.u32 %v1190, 7
  %v1192 = vsub.s32 0, %v1191
  %v1193 = vrot.slane %v1188, %v1192
  %1203 = vrot.lane.b32.xlu0 %v1169, 32
  %v1204 = vpop.permute.xlu0 %1203
  %1205 = vrot.lane.b32.xlu0 %v1170, 32
  %v1206 = vpop.permute.xlu0 %1205
  %1207 = vrot.lane.b32.xlu0 %v1171, 32
  %v1208 = vpop.permute.xlu0 %1207
  %1209 = vrot.lane.b32.xlu0 %v1172, 32
  %v1210 = vpop.permute.xlu0 %1209
  %1211 = vrot.lane.b32.xlu0 %v1173, 32
  %v1212 = vpop.permute.xlu0 %1211
  %1213 = vrot.lane.b32.xlu0 %v1174, 32
  %v1214 = vpop.permute.xlu0 %1213
  %1215 = vrot.lane.b32.xlu0 %v1175, 32
  %v1216 = vpop.permute.xlu0 %1215
  %1217 = vrot.lane.b32.xlu0 %v1176, 32
  %v1218 = vpop.permute.xlu0 %1217
  %v1219 = vsel %vm77, %v1204, 0
  %v1221 = vsel %vm77, %v1206, 0
  %v1223 = vsel %vm77, %v1208, 0
  %v1225 = vsel %vm77, %v1210, 0
  %v1227 = vsel %vm77, %v1212, 0
  %v1229 = vsel %vm77, %v1214, 0
  %v1231 = vsel %vm77, %v1216, 0
  %v1233 = vsel %vm77, %v1218, 0
  %1235 = vmatprep.subr.mxu0 0.0
  %1236 = vmatpush1.msra.mxu0 0.0
  %1237 = vmatprep.subr.mxu0 0.0
  %1238 = vmatpush1.msra.mxu0 0.0
  %1239 = vmatprep.subr.mxu0 0.0
  %1240 = vmatpush1.msra.mxu0 0.0
  %1241 = vmatprep.subr.mxu0 0.0
  %1242 = vmatpush1.msra.mxu0 0.0
  %1243 = vmatprep.subr.mxu0 0.0
  %1244 = vmatpush1.msra.mxu0 0.0
  %1245 = vmatprep.subr.mxu0 0.0
  %1246 = vmatpush1.msra.mxu0 0.0
  %1247 = vmatprep.subr.mxu0 0.0
  %1248 = vmatpush1.msra.mxu0 0.0
  %1249 = vmatprep.subr.mxu0 0.0
  %1250 = vmatpush1.msra.mxu0 0.0
  %1251 = vmatprep.subr.mxu0 0.0
  %1252 = vmatpush1.msra.mxu0 0.0
  %1253 = vmatprep.subr.mxu0 0.0
  %1254 = vmatpush1.msra.mxu0 0.0
  %1255 = vmatprep.subr.mxu0 0.0
  %1256 = vmatpush1.msra.mxu0 0.0
  %1257 = vmatprep.subr.mxu0 0.0
  %1258 = vmatpush1.msra.mxu0 0.0
  %1259 = vmatprep.subr.mxu0 0.0
  %1260 = vmatpush1.msra.mxu0 %v1181
  %1261 = vmatprep.subr.mxu0 0.0
  %1262 = vmatpush1.msra.mxu0 %v1180
  %1263 = vmatprep.subr.mxu0 0.0
  %1264 = vmatpush1.msra.mxu0 %v1179
  %1265 = vmatprep.subr.mxu0 0.0
  %1266 = vmatpush1.msra.mxu0 %v1178
  %1267 = vmatprep.subr.mxu0 0.0
  %1268 = vmatpush2.msra.mxu0 0.0
  %1269 = vmatprep.subr.mxu0 0.0
  %1270 = vmatpush2.msra.mxu0 0.0
  %1271 = vmatprep.subr.mxu0 0.0
  %1272 = vmatpush2.msra.mxu0 0.0
  %1273 = vmatprep.subr.mxu0 0.0
  %1274 = vmatpush2.msra.mxu0 0.0
  %1275 = vmatprep.subr.mxu0 0.0
  %1276 = vmatpush2.msra.mxu0 0.0
  %1277 = vmatprep.subr.mxu0 0.0
  %1278 = vmatpush2.msra.mxu0 0.0
  %1279 = vmatprep.subr.mxu0 0.0
  %1280 = vmatpush2.msra.mxu0 0.0
  %1281 = vmatprep.subr.mxu0 0.0
  %1282 = vmatpush2.msra.mxu0 0.0
  %1283 = vmatprep.subr.mxu0 0.0
  %1284 = vmatpush2.msra.mxu0 0.0
  %1285 = vmatprep.subr.mxu0 0.0
  %1286 = vmatpush2.msra.mxu0 0.0
  %1287 = vmatprep.subr.mxu0 0.0
  %1288 = vmatpush2.msra.mxu0 0.0
  %1289 = vmatprep.subr.mxu0 0.0
  %1290 = vmatpush2.msra.mxu0 0.0
  %1291 = vmatprep.subr.mxu0 0.0
  %1292 = vmatpush2.msra.mxu0 0.0
  %1293 = vmatprep.subr.mxu0 0.0
  %1294 = vmatpush2.msra.mxu0 0.0
  %1295 = vmatprep.subr.mxu0 0.0
  %1296 = vmatpush2.msra.mxu0 0.0
  %1297 = vmatprep.subr.mxu0 0.0
  %1298 = vmatpush2.msra.mxu0 0.0
  %1299 = vmatprep.mubr.f32.mxu0 0.0
  %1300 = vmatmul.mubr.f32.gmra.mxu0 %v1219
  %v1301 = vpop.f32.mrf.mxu0
  %v1302 = vadd.f32 %v1193, %v1301
  %v1303 = vpop.f32.mrf.mxu0
  %1304 = vmatprep.mubr.f32.mxu0 0.0
  %1305 = vmatmul.mubr.f32.gmra.mxu0 %v1221
  %v1306 = vpop.f32.mrf.mxu0
  %v1307 = vadd.f32 %v1193, %v1306
  %v1308 = vpop.f32.mrf.mxu0
  %1309 = vmatprep.mubr.f32.mxu0 0.0
  %1310 = vmatmul.mubr.f32.gmra.mxu0 %v1223
  %v1311 = vpop.f32.mrf.mxu0
  %v1312 = vadd.f32 %v1193, %v1311
  %v1313 = vpop.f32.mrf.mxu0
  %1314 = vmatprep.mubr.f32.mxu0 0.0
  %1315 = vmatmul.mubr.f32.gmra.mxu0 %v1225
  %v1316 = vpop.f32.mrf.mxu0
  %v1317 = vadd.f32 %v1193, %v1316
  %v1318 = vpop.f32.mrf.mxu0
  %1319 = vmatprep.mubr.f32.mxu0 0.0
  %1320 = vmatmul.mubr.f32.gmra.mxu0 %v1227
  %v1321 = vpop.f32.mrf.mxu0
  %v1322 = vadd.f32 %v1193, %v1321
  %v1323 = vpop.f32.mrf.mxu0
  %1324 = vmatprep.mubr.f32.mxu0 0.0
  %1325 = vmatmul.mubr.f32.gmra.mxu0 %v1229
  %v1326 = vpop.f32.mrf.mxu0
  %v1327 = vadd.f32 %v1193, %v1326
  %v1328 = vpop.f32.mrf.mxu0
  %1329 = vmatprep.mubr.f32.mxu0 0.0
  %1330 = vmatmul.mubr.f32.gmra.mxu0 %v1231
  %v1331 = vpop.f32.mrf.mxu0
  %v1332 = vadd.f32 %v1193, %v1331
  %v1333 = vpop.f32.mrf.mxu0
  %1334 = vmatprep.mubr.f32.mxu0 0.0
  %1335 = vmatmul.mubr.f32.gmra.mxu0 %v1233
  %v1336 = vpop.f32.mrf.mxu0
  %v1337 = vadd.f32 %v1193, %v1336
  %v1338 = vpop.f32.mrf.mxu0
  %1339 = vdwg.mxu0
  %1340 = vmatprep.subr.mxu0 0.0
  %1341 = vmatpush1.msra.mxu0 0.0
  %1342 = vmatprep.subr.mxu0 0.0
  %1343 = vmatpush1.msra.mxu0 0.0
  %1344 = vmatprep.subr.mxu0 0.0
  %1345 = vmatpush1.msra.mxu0 0.0
  %1346 = vmatprep.subr.mxu0 0.0
  %1347 = vmatpush1.msra.mxu0 0.0
  %1348 = vmatprep.subr.mxu0 0.0
  %1349 = vmatpush1.msra.mxu0 0.0
  %1350 = vmatprep.subr.mxu0 0.0
  %1351 = vmatpush1.msra.mxu0 0.0
  %1352 = vmatprep.subr.mxu0 0.0
  %1353 = vmatpush1.msra.mxu0 0.0
  %1354 = vmatprep.subr.mxu0 0.0
  %1355 = vmatpush1.msra.mxu0 0.0
  %1356 = vmatprep.subr.mxu0 0.0
  %1357 = vmatpush1.msra.mxu0 0.0
  %1358 = vmatprep.subr.mxu0 0.0
  %1359 = vmatpush1.msra.mxu0 0.0
  %1360 = vmatprep.subr.mxu0 0.0
  %1361 = vmatpush1.msra.mxu0 0.0
  %1362 = vmatprep.subr.mxu0 0.0
  %1363 = vmatpush1.msra.mxu0 0.0
  %1364 = vmatprep.subr.mxu0 0.0
  %1365 = vmatpush1.msra.mxu0 %v1186
  %1366 = vmatprep.subr.mxu0 0.0
  %1367 = vmatpush1.msra.mxu0 %v1185
  %1368 = vmatprep.subr.mxu0 0.0
  %1369 = vmatpush1.msra.mxu0 %v1184
  %1370 = vmatprep.subr.mxu0 0.0
  %1371 = vmatpush1.msra.mxu0 %v1183
  %1372 = vmatprep.subr.mxu0 0.0
  %1373 = vmatpush2.msra.mxu0 0.0
  %1374 = vmatprep.subr.mxu0 0.0
  %1375 = vmatpush2.msra.mxu0 0.0
  %1376 = vmatprep.subr.mxu0 0.0
  %1377 = vmatpush2.msra.mxu0 0.0
  %1378 = vmatprep.subr.mxu0 0.0
  %1379 = vmatpush2.msra.mxu0 0.0
  %1380 = vmatprep.subr.mxu0 0.0
  %1381 = vmatpush2.msra.mxu0 0.0
  %1382 = vmatprep.subr.mxu0 0.0
  %1383 = vmatpush2.msra.mxu0 0.0
  %1384 = vmatprep.subr.mxu0 0.0
  %1385 = vmatpush2.msra.mxu0 0.0
  %1386 = vmatprep.subr.mxu0 0.0
  %1387 = vmatpush2.msra.mxu0 0.0
  %1388 = vmatprep.subr.mxu0 0.0
  %1389 = vmatpush2.msra.mxu0 0.0
  %1390 = vmatprep.subr.mxu0 0.0
  %1391 = vmatpush2.msra.mxu0 0.0
  %1392 = vmatprep.subr.mxu0 0.0
  %1393 = vmatpush2.msra.mxu0 0.0
  %1394 = vmatprep.subr.mxu0 0.0
  %1395 = vmatpush2.msra.mxu0 0.0
  %1396 = vmatprep.subr.mxu0 0.0
  %1397 = vmatpush2.msra.mxu0 0.0
  %1398 = vmatprep.subr.mxu0 0.0
  %1399 = vmatpush2.msra.mxu0 0.0
  %1400 = vmatprep.subr.mxu0 0.0
  %1401 = vmatpush2.msra.mxu0 0.0
  %1402 = vmatprep.subr.mxu0 0.0
  %1403 = vmatpush2.msra.mxu0 0.0
  %1404 = vmatprep.mubr.f32.mxu0 0.0
  %1405 = vmatmul.mubr.f32.gmra.mxu0 %v208
  %v1406 = vpop.f32.mrf.mxu0
  %v1407 = vadd.f32 0.0, %v1406
  %v1408 = vpop.f32.mrf.mxu0
  %1409 = vdwg.mxu0
  %v1410 = vadd.f32 %v1302, %v1407
  %v1411 = vxor.u32 %v1410, 2147483648
  %v1412 = vmul.f32 %v1411, 1.442695
  %v1413 = vpow.pop %v1412
  %v1414 = vadd.f32 %v1413, 1.0
  %v1415 = vrcp.pop %v1414
  %v1416 = vmul.f32 1.0, %v1415
  %v1417 = vtanh.pop %v1410
  %v1418 = vmul.f32 %v1416, 0.0
  %1420 = vrot.lane.b32.xlu0 %v1417, 64
  %v1421 = vpop.permute.xlu0 %1420
  %v1423 = vmul.f32 %v1416, %v1421
  %1425 = vrot.lane.b32.xlu0 %v1423, 32
  %v1426 = vpop.permute.xlu0 %1425
  %v1428 = vadd.f32 %v1418, %v1426
  %v1429 = vtanh.pop %v1428
  %1431 = vrot.lane.b32.xlu0 %v1429, 64
  %v1432 = vpop.permute.xlu0 %1431
  %v1434 = vmul.f32 %v1416, %v1432
  %v1435 = vmul.f32 %v308, %v1434
  %v1436 = vadd.f32 %v1435, %v317
  %v1437 = vmul.f32 %v308, %v1428
  %v1438 = vadd.f32 %v1437, %v317
  %1440 = vrot.lane.b32.xlu0 %v1436, 32
  %v1441 = vpop.permute.xlu0 %1440
  %v1442 = vsel %vm77, %v1441, 0
  %1444 = vmatprep.subr.mxu0 0.0
  %1445 = vmatpush1.msra.mxu0 0.0
  %1446 = vmatprep.subr.mxu0 0.0
  %1447 = vmatpush1.msra.mxu0 0.0
  %1448 = vmatprep.subr.mxu0 0.0
  %1449 = vmatpush1.msra.mxu0 0.0
  %1450 = vmatprep.subr.mxu0 0.0
  %1451 = vmatpush1.msra.mxu0 0.0
  %1452 = vmatprep.subr.mxu0 0.0
  %1453 = vmatpush1.msra.mxu0 0.0
  %1454 = vmatprep.subr.mxu0 0.0
  %1455 = vmatpush1.msra.mxu0 0.0
  %1456 = vmatprep.subr.mxu0 0.0
  %1457 = vmatpush1.msra.mxu0 0.0
  %1458 = vmatprep.subr.mxu0 0.0
  %1459 = vmatpush1.msra.mxu0 0.0
  %1460 = vmatprep.subr.mxu0 0.0
  %1461 = vmatpush1.msra.mxu0 0.0
  %1462 = vmatprep.subr.mxu0 0.0
  %1463 = vmatpush1.msra.mxu0 0.0
  %1464 = vmatprep.subr.mxu0 0.0
  %1465 = vmatpush1.msra.mxu0 0.0
  %1466 = vmatprep.subr.mxu0 0.0
  %1467 = vmatpush1.msra.mxu0 0.0
  %1468 = vmatprep.subr.mxu0 0.0
  %1469 = vmatpush1.msra.mxu0 %v1186
  %1470 = vmatprep.subr.mxu0 0.0
  %1471 = vmatpush1.msra.mxu0 %v1185
  %1472 = vmatprep.subr.mxu0 0.0
  %1473 = vmatpush1.msra.mxu0 %v1184
  %1474 = vmatprep.subr.mxu0 0.0
  %1475 = vmatpush1.msra.mxu0 %v1183
  %1476 = vmatprep.subr.mxu0 0.0
  %1477 = vmatpush2.msra.mxu0 0.0
  %1478 = vmatprep.subr.mxu0 0.0
  %1479 = vmatpush2.msra.mxu0 0.0
  %1480 = vmatprep.subr.mxu0 0.0
  %1481 = vmatpush2.msra.mxu0 0.0
  %1482 = vmatprep.subr.mxu0 0.0
  %1483 = vmatpush2.msra.mxu0 0.0
  %1484 = vmatprep.subr.mxu0 0.0
  %1485 = vmatpush2.msra.mxu0 0.0
  %1486 = vmatprep.subr.mxu0 0.0
  %1487 = vmatpush2.msra.mxu0 0.0
  %1488 = vmatprep.subr.mxu0 0.0
  %1489 = vmatpush2.msra.mxu0 0.0
  %1490 = vmatprep.subr.mxu0 0.0
  %1491 = vmatpush2.msra.mxu0 0.0
  %1492 = vmatprep.subr.mxu0 0.0
  %1493 = vmatpush2.msra.mxu0 0.0
  %1494 = vmatprep.subr.mxu0 0.0
  %1495 = vmatpush2.msra.mxu0 0.0
  %1496 = vmatprep.subr.mxu0 0.0
  %1497 = vmatpush2.msra.mxu0 0.0
  %1498 = vmatprep.subr.mxu0 0.0
  %1499 = vmatpush2.msra.mxu0 0.0
  %1500 = vmatprep.subr.mxu0 0.0
  %1501 = vmatpush2.msra.mxu0 0.0
  %1502 = vmatprep.subr.mxu0 0.0
  %1503 = vmatpush2.msra.mxu0 0.0
  %1504 = vmatprep.subr.mxu0 0.0
  %1505 = vmatpush2.msra.mxu0 0.0
  %1506 = vmatprep.subr.mxu0 0.0
  %1507 = vmatpush2.msra.mxu0 0.0
  %1508 = vmatprep.mubr.f32.mxu0 0.0
  %1509 = vmatmul.mubr.f32.gmra.mxu0 %v1442
  %v1510 = vpop.f32.mrf.mxu0
  %v1511 = vadd.f32 0.0, %v1510
  %v1512 = vpop.f32.mrf.mxu0
  %1513 = vdwg.mxu0
  %v1514 = vadd.f32 %v1307, %v1511
  %v1515 = vxor.u32 %v1514, 2147483648
  %v1516 = vmul.f32 %v1515, 1.442695
  %v1517 = vpow.pop %v1516
  %v1518 = vadd.f32 %v1517, 1.0
  %v1519 = vrcp.pop %v1518
  %v1520 = vmul.f32 1.0, %v1519
  %v1521 = vtanh.pop %v1514
  %v1522 = vmul.f32 %v1520, %v1438
  %1524 = vrot.lane.b32.xlu0 %v1521, 64
  %v1525 = vpop.permute.xlu0 %1524
  %v1527 = vmul.f32 %v1520, %v1525
  %1529 = vrot.lane.b32.xlu0 %v1527, 32
  %v1530 = vpop.permute.xlu0 %1529
  %v1532 = vadd.f32 %v1522, %v1530
  %v1533 = vtanh.pop %v1532
  %1535 = vrot.lane.b32.xlu0 %v1533, 64
  %v1536 = vpop.permute.xlu0 %1535
  %v1538 = vmul.f32 %v1520, %v1536
  %v1539 = vmul.f32 %v425, %v1538
  %v1540 = vmul.f32 %v432, %v1436
  %v1541 = vadd.f32 %v1539, %v1540
  %v1542 = vmul.f32 %v425, %v1532
  %v1543 = vmul.f32 %v432, %v1438
  %v1544 = vadd.f32 %v1542, %v1543
  %1546 = vrot.lane.b32.xlu0 %v1541, 32
  %v1547 = vpop.permute.xlu0 %1546
  %v1548 = vsel %vm77, %v1547, 0
  %1550 = vmatprep.subr.mxu0 0.0
  %1551 = vmatpush1.msra.mxu0 0.0
  %1552 = vmatprep.subr.mxu0 0.0
  %1553 = vmatpush1.msra.mxu0 0.0
  %1554 = vmatprep.subr.mxu0 0.0
  %1555 = vmatpush1.msra.mxu0 0.0
  %1556 = vmatprep.subr.mxu0 0.0
  %1557 = vmatpush1.msra.mxu0 0.0
  %1558 = vmatprep.subr.mxu0 0.0
  %1559 = vmatpush1.msra.mxu0 0.0
  %1560 = vmatprep.subr.mxu0 0.0
  %1561 = vmatpush1.msra.mxu0 0.0
  %1562 = vmatprep.subr.mxu0 0.0
  %1563 = vmatpush1.msra.mxu0 0.0
  %1564 = vmatprep.subr.mxu0 0.0
  %1565 = vmatpush1.msra.mxu0 0.0
  %1566 = vmatprep.subr.mxu0 0.0
  %1567 = vmatpush1.msra.mxu0 0.0
  %1568 = vmatprep.subr.mxu0 0.0
  %1569 = vmatpush1.msra.mxu0 0.0
  %1570 = vmatprep.subr.mxu0 0.0
  %1571 = vmatpush1.msra.mxu0 0.0
  %1572 = vmatprep.subr.mxu0 0.0
  %1573 = vmatpush1.msra.mxu0 0.0
  %1574 = vmatprep.subr.mxu0 0.0
  %1575 = vmatpush1.msra.mxu0 %v1186
  %1576 = vmatprep.subr.mxu0 0.0
  %1577 = vmatpush1.msra.mxu0 %v1185
  %1578 = vmatprep.subr.mxu0 0.0
  %1579 = vmatpush1.msra.mxu0 %v1184
  %1580 = vmatprep.subr.mxu0 0.0
  %1581 = vmatpush1.msra.mxu0 %v1183
  %1582 = vmatprep.subr.mxu0 0.0
  %1583 = vmatpush2.msra.mxu0 0.0
  %1584 = vmatprep.subr.mxu0 0.0
  %1585 = vmatpush2.msra.mxu0 0.0
  %1586 = vmatprep.subr.mxu0 0.0
  %1587 = vmatpush2.msra.mxu0 0.0
  %1588 = vmatprep.subr.mxu0 0.0
  %1589 = vmatpush2.msra.mxu0 0.0
  %1590 = vmatprep.subr.mxu0 0.0
  %1591 = vmatpush2.msra.mxu0 0.0
  %1592 = vmatprep.subr.mxu0 0.0
  %1593 = vmatpush2.msra.mxu0 0.0
  %1594 = vmatprep.subr.mxu0 0.0
  %1595 = vmatpush2.msra.mxu0 0.0
  %1596 = vmatprep.subr.mxu0 0.0
  %1597 = vmatpush2.msra.mxu0 0.0
  %1598 = vmatprep.subr.mxu0 0.0
  %1599 = vmatpush2.msra.mxu0 0.0
  %1600 = vmatprep.subr.mxu0 0.0
  %1601 = vmatpush2.msra.mxu0 0.0
  %1602 = vmatprep.subr.mxu0 0.0
  %1603 = vmatpush2.msra.mxu0 0.0
  %1604 = vmatprep.subr.mxu0 0.0
  %1605 = vmatpush2.msra.mxu0 0.0
  %1606 = vmatprep.subr.mxu0 0.0
  %1607 = vmatpush2.msra.mxu0 0.0
  %1608 = vmatprep.subr.mxu0 0.0
  %1609 = vmatpush2.msra.mxu0 0.0
  %1610 = vmatprep.subr.mxu0 0.0
  %1611 = vmatpush2.msra.mxu0 0.0
  %1612 = vmatprep.subr.mxu0 0.0
  %1613 = vmatpush2.msra.mxu0 0.0
  %1614 = vmatprep.mubr.f32.mxu0 0.0
  %1615 = vmatmul.mubr.f32.gmra.mxu0 %v1548
  %v1616 = vpop.f32.mrf.mxu0
  %v1617 = vadd.f32 0.0, %v1616
  %v1618 = vpop.f32.mrf.mxu0
  %1619 = vdwg.mxu0
  %v1620 = vadd.f32 %v1312, %v1617
  %v1621 = vxor.u32 %v1620, 2147483648
  %v1622 = vmul.f32 %v1621, 1.442695
  %v1623 = vpow.pop %v1622
  %v1624 = vadd.f32 %v1623, 1.0
  %v1625 = vrcp.pop %v1624
  %v1626 = vmul.f32 1.0, %v1625
  %v1627 = vtanh.pop %v1620
  %v1628 = vmul.f32 %v1626, %v1544
  %1630 = vrot.lane.b32.xlu0 %v1627, 64
  %v1631 = vpop.permute.xlu0 %1630
  %v1633 = vmul.f32 %v1626, %v1631
  %1635 = vrot.lane.b32.xlu0 %v1633, 32
  %v1636 = vpop.permute.xlu0 %1635
  %v1638 = vadd.f32 %v1628, %v1636
  %v1639 = vtanh.pop %v1638
  %1641 = vrot.lane.b32.xlu0 %v1639, 64
  %v1642 = vpop.permute.xlu0 %1641
  %v1644 = vmul.f32 %v1626, %v1642
  %v1645 = vmul.f32 %v543, %v1644
  %v1646 = vmul.f32 %v550, %v1541
  %v1647 = vadd.f32 %v1645, %v1646
  %v1648 = vmul.f32 %v543, %v1638
  %v1649 = vmul.f32 %v550, %v1544
  %v1650 = vadd.f32 %v1648, %v1649
  %1652 = vrot.lane.b32.xlu0 %v1647, 32
  %v1653 = vpop.permute.xlu0 %1652
  %v1654 = vsel %vm77, %v1653, 0
  %1656 = vmatprep.subr.mxu0 0.0
  %1657 = vmatpush1.msra.mxu0 0.0
  %1658 = vmatprep.subr.mxu0 0.0
  %1659 = vmatpush1.msra.mxu0 0.0
  %1660 = vmatprep.subr.mxu0 0.0
  %1661 = vmatpush1.msra.mxu0 0.0
  %1662 = vmatprep.subr.mxu0 0.0
  %1663 = vmatpush1.msra.mxu0 0.0
  %1664 = vmatprep.subr.mxu0 0.0
  %1665 = vmatpush1.msra.mxu0 0.0
  %1666 = vmatprep.subr.mxu0 0.0
  %1667 = vmatpush1.msra.mxu0 0.0
  %1668 = vmatprep.subr.mxu0 0.0
  %1669 = vmatpush1.msra.mxu0 0.0
  %1670 = vmatprep.subr.mxu0 0.0
  %1671 = vmatpush1.msra.mxu0 0.0
  %1672 = vmatprep.subr.mxu0 0.0
  %1673 = vmatpush1.msra.mxu0 0.0
  %1674 = vmatprep.subr.mxu0 0.0
  %1675 = vmatpush1.msra.mxu0 0.0
  %1676 = vmatprep.subr.mxu0 0.0
  %1677 = vmatpush1.msra.mxu0 0.0
  %1678 = vmatprep.subr.mxu0 0.0
  %1679 = vmatpush1.msra.mxu0 0.0
  %1680 = vmatprep.subr.mxu0 0.0
  %1681 = vmatpush1.msra.mxu0 %v1186
  %1682 = vmatprep.subr.mxu0 0.0
  %1683 = vmatpush1.msra.mxu0 %v1185
  %1684 = vmatprep.subr.mxu0 0.0
  %1685 = vmatpush1.msra.mxu0 %v1184
  %1686 = vmatprep.subr.mxu0 0.0
  %1687 = vmatpush1.msra.mxu0 %v1183
  %1688 = vmatprep.subr.mxu0 0.0
  %1689 = vmatpush2.msra.mxu0 0.0
  %1690 = vmatprep.subr.mxu0 0.0
  %1691 = vmatpush2.msra.mxu0 0.0
  %1692 = vmatprep.subr.mxu0 0.0
  %1693 = vmatpush2.msra.mxu0 0.0
  %1694 = vmatprep.subr.mxu0 0.0
  %1695 = vmatpush2.msra.mxu0 0.0
  %1696 = vmatprep.subr.mxu0 0.0
  %1697 = vmatpush2.msra.mxu0 0.0
  %1698 = vmatprep.subr.mxu0 0.0
  %1699 = vmatpush2.msra.mxu0 0.0
  %1700 = vmatprep.subr.mxu0 0.0
  %1701 = vmatpush2.msra.mxu0 0.0
  %1702 = vmatprep.subr.mxu0 0.0
  %1703 = vmatpush2.msra.mxu0 0.0
  %1704 = vmatprep.subr.mxu0 0.0
  %1705 = vmatpush2.msra.mxu0 0.0
  %1706 = vmatprep.subr.mxu0 0.0
  %1707 = vmatpush2.msra.mxu0 0.0
  %1708 = vmatprep.subr.mxu0 0.0
  %1709 = vmatpush2.msra.mxu0 0.0
  %1710 = vmatprep.subr.mxu0 0.0
  %1711 = vmatpush2.msra.mxu0 0.0
  %1712 = vmatprep.subr.mxu0 0.0
  %1713 = vmatpush2.msra.mxu0 0.0
  %1714 = vmatprep.subr.mxu0 0.0
  %1715 = vmatpush2.msra.mxu0 0.0
  %1716 = vmatprep.subr.mxu0 0.0
  %1717 = vmatpush2.msra.mxu0 0.0
  %1718 = vmatprep.subr.mxu0 0.0
  %1719 = vmatpush2.msra.mxu0 0.0
  %1720 = vmatprep.mubr.f32.mxu0 0.0
  %1721 = vmatmul.mubr.f32.gmra.mxu0 %v1654
  %v1722 = vpop.f32.mrf.mxu0
  %v1723 = vadd.f32 0.0, %v1722
  %v1724 = vpop.f32.mrf.mxu0
  %1725 = vdwg.mxu0
  %v1726 = vadd.f32 %v1317, %v1723
  %v1727 = vxor.u32 %v1726, 2147483648
  %v1728 = vmul.f32 %v1727, 1.442695
  %v1729 = vpow.pop %v1728
  %v1730 = vadd.f32 %v1729, 1.0
  %v1731 = vrcp.pop %v1730
  %v1732 = vmul.f32 1.0, %v1731
  %v1733 = vtanh.pop %v1726
  %v1734 = vmul.f32 %v1732, %v1650
  %1736 = vrot.lane.b32.xlu0 %v1733, 64
  %v1737 = vpop.permute.xlu0 %1736
  %v1739 = vmul.f32 %v1732, %v1737
  %1741 = vrot.lane.b32.xlu0 %v1739, 32
  %v1742 = vpop.permute.xlu0 %1741
  %v1744 = vadd.f32 %v1734, %v1742
  %v1745 = vtanh.pop %v1744
  %1747 = vrot.lane.b32.xlu0 %v1745, 64
  %v1748 = vpop.permute.xlu0 %1747
  %v1750 = vmul.f32 %v1732, %v1748
  %v1751 = vmul.f32 %v661, %v1750
  %v1752 = vmul.f32 %v668, %v1647
  %v1753 = vadd.f32 %v1751, %v1752
  %v1754 = vmul.f32 %v661, %v1744
  %v1755 = vmul.f32 %v668, %v1650
  %v1756 = vadd.f32 %v1754, %v1755
  %1758 = vrot.lane.b32.xlu0 %v1753, 32
  %v1759 = vpop.permute.xlu0 %1758
  %v1760 = vsel %vm77, %v1759, 0
  %1762 = vmatprep.subr.mxu0 0.0
  %1763 = vmatpush1.msra.mxu0 0.0
  %1764 = vmatprep.subr.mxu0 0.0
  %1765 = vmatpush1.msra.mxu0 0.0
  %1766 = vmatprep.subr.mxu0 0.0
  %1767 = vmatpush1.msra.mxu0 0.0
  %1768 = vmatprep.subr.mxu0 0.0
  %1769 = vmatpush1.msra.mxu0 0.0
  %1770 = vmatprep.subr.mxu0 0.0
  %1771 = vmatpush1.msra.mxu0 0.0
  %1772 = vmatprep.subr.mxu0 0.0
  %1773 = vmatpush1.msra.mxu0 0.0
  %1774 = vmatprep.subr.mxu0 0.0
  %1775 = vmatpush1.msra.mxu0 0.0
  %1776 = vmatprep.subr.mxu0 0.0
  %1777 = vmatpush1.msra.mxu0 0.0
  %1778 = vmatprep.subr.mxu0 0.0
  %1779 = vmatpush1.msra.mxu0 0.0
  %1780 = vmatprep.subr.mxu0 0.0
  %1781 = vmatpush1.msra.mxu0 0.0
  %1782 = vmatprep.subr.mxu0 0.0
  %1783 = vmatpush1.msra.mxu0 0.0
  %1784 = vmatprep.subr.mxu0 0.0
  %1785 = vmatpush1.msra.mxu0 0.0
  %1786 = vmatprep.subr.mxu0 0.0
  %1787 = vmatpush1.msra.mxu0 %v1186
  %1788 = vmatprep.subr.mxu0 0.0
  %1789 = vmatpush1.msra.mxu0 %v1185
  %1790 = vmatprep.subr.mxu0 0.0
  %1791 = vmatpush1.msra.mxu0 %v1184
  %1792 = vmatprep.subr.mxu0 0.0
  %1793 = vmatpush1.msra.mxu0 %v1183
  %1794 = vmatprep.subr.mxu0 0.0
  %1795 = vmatpush2.msra.mxu0 0.0
  %1796 = vmatprep.subr.mxu0 0.0
  %1797 = vmatpush2.msra.mxu0 0.0
  %1798 = vmatprep.subr.mxu0 0.0
  %1799 = vmatpush2.msra.mxu0 0.0
  %1800 = vmatprep.subr.mxu0 0.0
  %1801 = vmatpush2.msra.mxu0 0.0
  %1802 = vmatprep.subr.mxu0 0.0
  %1803 = vmatpush2.msra.mxu0 0.0
  %1804 = vmatprep.subr.mxu0 0.0
  %1805 = vmatpush2.msra.mxu0 0.0
  %1806 = vmatprep.subr.mxu0 0.0
  %1807 = vmatpush2.msra.mxu0 0.0
  %1808 = vmatprep.subr.mxu0 0.0
  %1809 = vmatpush2.msra.mxu0 0.0
  %1810 = vmatprep.subr.mxu0 0.0
  %1811 = vmatpush2.msra.mxu0 0.0
  %1812 = vmatprep.subr.mxu0 0.0
  %1813 = vmatpush2.msra.mxu0 0.0
  %1814 = vmatprep.subr.mxu0 0.0
  %1815 = vmatpush2.msra.mxu0 0.0
  %1816 = vmatprep.subr.mxu0 0.0
  %1817 = vmatpush2.msra.mxu0 0.0
  %1818 = vmatprep.subr.mxu0 0.0
  %1819 = vmatpush2.msra.mxu0 0.0
  %1820 = vmatprep.subr.mxu0 0.0
  %1821 = vmatpush2.msra.mxu0 0.0
  %1822 = vmatprep.subr.mxu0 0.0
  %1823 = vmatpush2.msra.mxu0 0.0
  %1824 = vmatprep.subr.mxu0 0.0
  %1825 = vmatpush2.msra.mxu0 0.0
  %1826 = vmatprep.mubr.f32.mxu0 0.0
  %1827 = vmatmul.mubr.f32.gmra.mxu0 %v1760
  %v1828 = vpop.f32.mrf.mxu0
  %v1829 = vadd.f32 0.0, %v1828
  %v1830 = vpop.f32.mrf.mxu0
  %1831 = vdwg.mxu0
  %v1832 = vadd.f32 %v1322, %v1829
  %v1833 = vxor.u32 %v1832, 2147483648
  %v1834 = vmul.f32 %v1833, 1.442695
  %v1835 = vpow.pop %v1834
  %v1836 = vadd.f32 %v1835, 1.0
  %v1837 = vrcp.pop %v1836
  %v1838 = vmul.f32 1.0, %v1837
  %v1839 = vtanh.pop %v1832
  %v1840 = vmul.f32 %v1838, %v1756
  %1842 = vrot.lane.b32.xlu0 %v1839, 64
  %v1843 = vpop.permute.xlu0 %1842
  %v1845 = vmul.f32 %v1838, %v1843
  %1847 = vrot.lane.b32.xlu0 %v1845, 32
  %v1848 = vpop.permute.xlu0 %1847
  %v1850 = vadd.f32 %v1840, %v1848
  %v1851 = vtanh.pop %v1850
  %1853 = vrot.lane.b32.xlu0 %v1851, 64
  %v1854 = vpop.permute.xlu0 %1853
  %v1856 = vmul.f32 %v1838, %v1854
  %v1857 = vmul.f32 %v779, %v1856
  %v1858 = vmul.f32 %v786, %v1753
  %v1859 = vadd.f32 %v1857, %v1858
  %v1860 = vmul.f32 %v779, %v1850
  %v1861 = vmul.f32 %v786, %v1756
  %v1862 = vadd.f32 %v1860, %v1861
  %1864 = vrot.lane.b32.xlu0 %v1859, 32
  %v1865 = vpop.permute.xlu0 %1864
  %v1866 = vsel %vm77, %v1865, 0
  %1868 = vmatprep.subr.mxu0 0.0
  %1869 = vmatpush1.msra.mxu0 0.0
  %1870 = vmatprep.subr.mxu0 0.0
  %1871 = vmatpush1.msra.mxu0 0.0
  %1872 = vmatprep.subr.mxu0 0.0
  %1873 = vmatpush1.msra.mxu0 0.0
  %1874 = vmatprep.subr.mxu0 0.0
  %1875 = vmatpush1.msra.mxu0 0.0
  %1876 = vmatprep.subr.mxu0 0.0
  %1877 = vmatpush1.msra.mxu0 0.0
  %1878 = vmatprep.subr.mxu0 0.0
  %1879 = vmatpush1.msra.mxu0 0.0
  %1880 = vmatprep.subr.mxu0 0.0
  %1881 = vmatpush1.msra.mxu0 0.0
  %1882 = vmatprep.subr.mxu0 0.0
  %1883 = vmatpush1.msra.mxu0 0.0
  %1884 = vmatprep.subr.mxu0 0.0
  %1885 = vmatpush1.msra.mxu0 0.0
  %1886 = vmatprep.subr.mxu0 0.0
  %1887 = vmatpush1.msra.mxu0 0.0
  %1888 = vmatprep.subr.mxu0 0.0
  %1889 = vmatpush1.msra.mxu0 0.0
  %1890 = vmatprep.subr.mxu0 0.0
  %1891 = vmatpush1.msra.mxu0 0.0
  %1892 = vmatprep.subr.mxu0 0.0
  %1893 = vmatpush1.msra.mxu0 %v1186
  %1894 = vmatprep.subr.mxu0 0.0
  %1895 = vmatpush1.msra.mxu0 %v1185
  %1896 = vmatprep.subr.mxu0 0.0
  %1897 = vmatpush1.msra.mxu0 %v1184
  %1898 = vmatprep.subr.mxu0 0.0
  %1899 = vmatpush1.msra.mxu0 %v1183
  %1900 = vmatprep.subr.mxu0 0.0
  %1901 = vmatpush2.msra.mxu0 0.0
  %1902 = vmatprep.subr.mxu0 0.0
  %1903 = vmatpush2.msra.mxu0 0.0
  %1904 = vmatprep.subr.mxu0 0.0
  %1905 = vmatpush2.msra.mxu0 0.0
  %1906 = vmatprep.subr.mxu0 0.0
  %1907 = vmatpush2.msra.mxu0 0.0
  %1908 = vmatprep.subr.mxu0 0.0
  %1909 = vmatpush2.msra.mxu0 0.0
  %1910 = vmatprep.subr.mxu0 0.0
  %1911 = vmatpush2.msra.mxu0 0.0
  %1912 = vmatprep.subr.mxu0 0.0
  %1913 = vmatpush2.msra.mxu0 0.0
  %1914 = vmatprep.subr.mxu0 0.0
  %1915 = vmatpush2.msra.mxu0 0.0
  %1916 = vmatprep.subr.mxu0 0.0
  %1917 = vmatpush2.msra.mxu0 0.0
  %1918 = vmatprep.subr.mxu0 0.0
  %1919 = vmatpush2.msra.mxu0 0.0
  %1920 = vmatprep.subr.mxu0 0.0
  %1921 = vmatpush2.msra.mxu0 0.0
  %1922 = vmatprep.subr.mxu0 0.0
  %1923 = vmatpush2.msra.mxu0 0.0
  %1924 = vmatprep.subr.mxu0 0.0
  %1925 = vmatpush2.msra.mxu0 0.0
  %1926 = vmatprep.subr.mxu0 0.0
  %1927 = vmatpush2.msra.mxu0 0.0
  %1928 = vmatprep.subr.mxu0 0.0
  %1929 = vmatpush2.msra.mxu0 0.0
  %1930 = vmatprep.subr.mxu0 0.0
  %1931 = vmatpush2.msra.mxu0 0.0
  %1932 = vmatprep.mubr.f32.mxu0 0.0
  %1933 = vmatmul.mubr.f32.gmra.mxu0 %v1866
  %v1934 = vpop.f32.mrf.mxu0
  %v1935 = vadd.f32 0.0, %v1934
  %v1936 = vpop.f32.mrf.mxu0
  %1937 = vdwg.mxu0
  %v1938 = vadd.f32 %v1327, %v1935
  %v1939 = vxor.u32 %v1938, 2147483648
  %v1940 = vmul.f32 %v1939, 1.442695
  %v1941 = vpow.pop %v1940
  %v1942 = vadd.f32 %v1941, 1.0
  %v1943 = vrcp.pop %v1942
  %v1944 = vmul.f32 1.0, %v1943
  %v1945 = vtanh.pop %v1938
  %v1946 = vmul.f32 %v1944, %v1862
  %1948 = vrot.lane.b32.xlu0 %v1945, 64
  %v1949 = vpop.permute.xlu0 %1948
  %v1951 = vmul.f32 %v1944, %v1949
  %1953 = vrot.lane.b32.xlu0 %v1951, 32
  %v1954 = vpop.permute.xlu0 %1953
  %v1956 = vadd.f32 %v1946, %v1954
  %v1957 = vtanh.pop %v1956
  %1959 = vrot.lane.b32.xlu0 %v1957, 64
  %v1960 = vpop.permute.xlu0 %1959
  %v1962 = vmul.f32 %v1944, %v1960
  %v1963 = vmul.f32 %v897, %v1962
  %v1964 = vmul.f32 %v904, %v1859
  %v1965 = vadd.f32 %v1963, %v1964
  %v1966 = vmul.f32 %v897, %v1956
  %v1967 = vmul.f32 %v904, %v1862
  %v1968 = vadd.f32 %v1966, %v1967
  %1970 = vrot.lane.b32.xlu0 %v1965, 32
  %v1971 = vpop.permute.xlu0 %1970
  %v1972 = vsel %vm77, %v1971, 0
  %1974 = vmatprep.subr.mxu0 0.0
  %1975 = vmatpush1.msra.mxu0 0.0
  %1976 = vmatprep.subr.mxu0 0.0
  %1977 = vmatpush1.msra.mxu0 0.0
  %1978 = vmatprep.subr.mxu0 0.0
  %1979 = vmatpush1.msra.mxu0 0.0
  %1980 = vmatprep.subr.mxu0 0.0
  %1981 = vmatpush1.msra.mxu0 0.0
  %1982 = vmatprep.subr.mxu0 0.0
  %1983 = vmatpush1.msra.mxu0 0.0
  %1984 = vmatprep.subr.mxu0 0.0
  %1985 = vmatpush1.msra.mxu0 0.0
  %1986 = vmatprep.subr.mxu0 0.0
  %1987 = vmatpush1.msra.mxu0 0.0
  %1988 = vmatprep.subr.mxu0 0.0
  %1989 = vmatpush1.msra.mxu0 0.0
  %1990 = vmatprep.subr.mxu0 0.0
  %1991 = vmatpush1.msra.mxu0 0.0
  %1992 = vmatprep.subr.mxu0 0.0
  %1993 = vmatpush1.msra.mxu0 0.0
  %1994 = vmatprep.subr.mxu0 0.0
  %1995 = vmatpush1.msra.mxu0 0.0
  %1996 = vmatprep.subr.mxu0 0.0
  %1997 = vmatpush1.msra.mxu0 0.0
  %1998 = vmatprep.subr.mxu0 0.0
  %1999 = vmatpush1.msra.mxu0 %v1186
  %2000 = vmatprep.subr.mxu0 0.0
  %2001 = vmatpush1.msra.mxu0 %v1185
  %2002 = vmatprep.subr.mxu0 0.0
  %2003 = vmatpush1.msra.mxu0 %v1184
  %2004 = vmatprep.subr.mxu0 0.0
  %2005 = vmatpush1.msra.mxu0 %v1183
  %2006 = vmatprep.subr.mxu0 0.0
  %2007 = vmatpush2.msra.mxu0 0.0
  %2008 = vmatprep.subr.mxu0 0.0
  %2009 = vmatpush2.msra.mxu0 0.0
  %2010 = vmatprep.subr.mxu0 0.0
  %2011 = vmatpush2.msra.mxu0 0.0
  %2012 = vmatprep.subr.mxu0 0.0
  %2013 = vmatpush2.msra.mxu0 0.0
  %2014 = vmatprep.subr.mxu0 0.0
  %2015 = vmatpush2.msra.mxu0 0.0
  %2016 = vmatprep.subr.mxu0 0.0
  %2017 = vmatpush2.msra.mxu0 0.0
  %2018 = vmatprep.subr.mxu0 0.0
  %2019 = vmatpush2.msra.mxu0 0.0
  %2020 = vmatprep.subr.mxu0 0.0
  %2021 = vmatpush2.msra.mxu0 0.0
  %2022 = vmatprep.subr.mxu0 0.0
  %2023 = vmatpush2.msra.mxu0 0.0
  %2024 = vmatprep.subr.mxu0 0.0
  %2025 = vmatpush2.msra.mxu0 0.0
  %2026 = vmatprep.subr.mxu0 0.0
  %2027 = vmatpush2.msra.mxu0 0.0
  %2028 = vmatprep.subr.mxu0 0.0
  %2029 = vmatpush2.msra.mxu0 0.0
  %2030 = vmatprep.subr.mxu0 0.0
  %2031 = vmatpush2.msra.mxu0 0.0
  %2032 = vmatprep.subr.mxu0 0.0
  %2033 = vmatpush2.msra.mxu0 0.0
  %2034 = vmatprep.subr.mxu0 0.0
  %2035 = vmatpush2.msra.mxu0 0.0
  %2036 = vmatprep.subr.mxu0 0.0
  %2037 = vmatpush2.msra.mxu0 0.0
  %2038 = vmatprep.mubr.f32.mxu0 0.0
  %2039 = vmatmul.mubr.f32.gmra.mxu0 %v1972
  %v2040 = vpop.f32.mrf.mxu0
  %v2041 = vadd.f32 0.0, %v2040
  %v2042 = vpop.f32.mrf.mxu0
  %2043 = vdwg.mxu0
  %v2044 = vadd.f32 %v1332, %v2041
  %v2045 = vxor.u32 %v2044, 2147483648
  %v2046 = vmul.f32 %v2045, 1.442695
  %v2047 = vpow.pop %v2046
  %v2048 = vadd.f32 %v2047, 1.0
  %v2049 = vrcp.pop %v2048
  %v2050 = vmul.f32 1.0, %v2049
  %v2051 = vtanh.pop %v2044
  %v2052 = vmul.f32 %v2050, %v1968
  %2054 = vrot.lane.b32.xlu0 %v2051, 64
  %v2055 = vpop.permute.xlu0 %2054
  %v2057 = vmul.f32 %v2050, %v2055
  %2059 = vrot.lane.b32.xlu0 %v2057, 32
  %v2060 = vpop.permute.xlu0 %2059
  %v2062 = vadd.f32 %v2052, %v2060
  %v2063 = vtanh.pop %v2062
  %2065 = vrot.lane.b32.xlu0 %v2063, 64
  %v2066 = vpop.permute.xlu0 %2065
  %v2068 = vmul.f32 %v2050, %v2066
  %v2069 = vmul.f32 %v1015, %v2068
  %v2070 = vmul.f32 %v1022, %v1965
  %v2071 = vadd.f32 %v2069, %v2070
  %v2072 = vmul.f32 %v1015, %v2062
  %v2073 = vmul.f32 %v1022, %v1968
  %v2074 = vadd.f32 %v2072, %v2073
  %2076 = vrot.lane.b32.xlu0 %v2071, 32
  %v2077 = vpop.permute.xlu0 %2076
  %v2078 = vsel %vm77, %v2077, 0
  %2080 = vmatprep.subr.mxu0 0.0
  %2081 = vmatpush1.msra.mxu0 0.0
  %2082 = vmatprep.subr.mxu0 0.0
  %2083 = vmatpush1.msra.mxu0 0.0
  %2084 = vmatprep.subr.mxu0 0.0
  %2085 = vmatpush1.msra.mxu0 0.0
  %2086 = vmatprep.subr.mxu0 0.0
  %2087 = vmatpush1.msra.mxu0 0.0
  %2088 = vmatprep.subr.mxu0 0.0
  %2089 = vmatpush1.msra.mxu0 0.0
  %2090 = vmatprep.subr.mxu0 0.0
  %2091 = vmatpush1.msra.mxu0 0.0
  %2092 = vmatprep.subr.mxu0 0.0
  %2093 = vmatpush1.msra.mxu0 0.0
  %2094 = vmatprep.subr.mxu0 0.0
  %2095 = vmatpush1.msra.mxu0 0.0
  %2096 = vmatprep.subr.mxu0 0.0
  %2097 = vmatpush1.msra.mxu0 0.0
  %2098 = vmatprep.subr.mxu0 0.0
  %2099 = vmatpush1.msra.mxu0 0.0
  %2100 = vmatprep.subr.mxu0 0.0
  %2101 = vmatpush1.msra.mxu0 0.0
  %2102 = vmatprep.subr.mxu0 0.0
  %2103 = vmatpush1.msra.mxu0 0.0
  %2104 = vmatprep.subr.mxu0 0.0
  %2105 = vmatpush1.msra.mxu0 %v1186
  %2106 = vmatprep.subr.mxu0 0.0
  %2107 = vmatpush1.msra.mxu0 %v1185
  %2108 = vmatprep.subr.mxu0 0.0
  %2109 = vmatpush1.msra.mxu0 %v1184
  %2110 = vmatprep.subr.mxu0 0.0
  %2111 = vmatpush1.msra.mxu0 %v1183
  %2112 = vmatprep.subr.mxu0 0.0
  %2113 = vmatpush2.msra.mxu0 0.0
  %2114 = vmatprep.subr.mxu0 0.0
  %2115 = vmatpush2.msra.mxu0 0.0
  %2116 = vmatprep.subr.mxu0 0.0
  %2117 = vmatpush2.msra.mxu0 0.0
  %2118 = vmatprep.subr.mxu0 0.0
  %2119 = vmatpush2.msra.mxu0 0.0
  %2120 = vmatprep.subr.mxu0 0.0
  %2121 = vmatpush2.msra.mxu0 0.0
  %2122 = vmatprep.subr.mxu0 0.0
  %2123 = vmatpush2.msra.mxu0 0.0
  %2124 = vmatprep.subr.mxu0 0.0
  %2125 = vmatpush2.msra.mxu0 0.0
  %2126 = vmatprep.subr.mxu0 0.0
  %2127 = vmatpush2.msra.mxu0 0.0
  %2128 = vmatprep.subr.mxu0 0.0
  %2129 = vmatpush2.msra.mxu0 0.0
  %2130 = vmatprep.subr.mxu0 0.0
  %2131 = vmatpush2.msra.mxu0 0.0
  %2132 = vmatprep.subr.mxu0 0.0
  %2133 = vmatpush2.msra.mxu0 0.0
  %2134 = vmatprep.subr.mxu0 0.0
  %2135 = vmatpush2.msra.mxu0 0.0
  %2136 = vmatprep.subr.mxu0 0.0
  %2137 = vmatpush2.msra.mxu0 0.0
  %2138 = vmatprep.subr.mxu0 0.0
  %2139 = vmatpush2.msra.mxu0 0.0
  %2140 = vmatprep.subr.mxu0 0.0
  %2141 = vmatpush2.msra.mxu0 0.0
  %2142 = vmatprep.subr.mxu0 0.0
  %2143 = vmatpush2.msra.mxu0 0.0
  %2144 = vmatprep.mubr.f32.mxu0 0.0
  %2145 = vmatmul.mubr.f32.gmra.mxu0 %v2078
  %v2146 = vpop.f32.mrf.mxu0
  %v2147 = vadd.f32 0.0, %v2146
  %v2148 = vpop.f32.mrf.mxu0
  %2149 = vdwg.mxu0
  %v2150 = vadd.f32 %v1337, %v2147
  %v2151 = vxor.u32 %v2150, 2147483648
  %v2152 = vmul.f32 %v2151, 1.442695
  %v2153 = vpow.pop %v2152
  %v2154 = vadd.f32 %v2153, 1.0
  %v2155 = vrcp.pop %v2154
  %v2156 = vmul.f32 1.0, %v2155
  %v2157 = vtanh.pop %v2150
  %v2158 = vmul.f32 %v2156, %v2074
  %2160 = vrot.lane.b32.xlu0 %v2157, 64
  %v2161 = vpop.permute.xlu0 %2160
  %v2163 = vmul.f32 %v2156, %v2161
  %2165 = vrot.lane.b32.xlu0 %v2163, 32
  %v2166 = vpop.permute.xlu0 %2165
  %v2168 = vadd.f32 %v2158, %v2166
  %v2169 = vtanh.pop %v2168
  %2171 = vrot.lane.b32.xlu0 %v2169, 64
  %v2172 = vpop.permute.xlu0 %2171
  %v2174 = vmul.f32 %v2156, %v2172
  %v2175 = vmul.f32 %v1133, %v2174
  %v2176 = vmul.f32 %v1140, %v2071
  %v2177 = vadd.f32 %v2175, %v2176
  %v2178 = vld [vmem:[%s6] sm:$0xff]
  %v2179 = vld [vmem:[%s6 + $0x8] sm:$0xff]
  %v2180 = vld [vmem:[%s6 + $0x10] sm:$0xff]
  %v2181 = vld [vmem:[%s6 + $0x18] sm:$0xff]
  %v2182 = vld [vmem:[%s7] sm:$0xff]
  %v2183 = vld [vmem:[%s7 + $0x8] sm:$0xff]
  %v2184 = vld [vmem:[%s7 + $0x10] sm:$0xff]
  %v2185 = vld [vmem:[%s7 + $0x18] sm:$0xff]
  %v2186 = vld [vmem:[%s8] sm:$0x1]
  %v2188 = vlaneseq
  %v2189 = vshrl.u32 %v2188, 7
  %v2190 = vsub.s32 0, %v2189
  %v2191 = vrot.slane %v2186, %v2190
  %v2194 = vsel %vm77, %v54, 0
  %v2197 = vsel %vm77, %v55, 0
  %v2200 = vsel %vm77, %v56, 0
  %v2203 = vsel %vm77, %v57, 0
  %v2206 = vsel %vm77, %v58, 0
  %v2209 = vsel %vm77, %v59, 0
  %v2212 = vsel %vm77, %v60, 0
  %v2215 = vsel %vm77, %v61, 0
  %2217 = vmatprep.subr.mxu0 0.0
  %2218 = vmatpush1.msra.mxu0 0.0
  %2219 = vmatprep.subr.mxu0 0.0
  %2220 = vmatpush1.msra.mxu0 0.0
  %2221 = vmatprep.subr.mxu0 0.0
  %2222 = vmatpush1.msra.mxu0 0.0
  %2223 = vmatprep.subr.mxu0 0.0
  %2224 = vmatpush1.msra.mxu0 0.0
  %2225 = vmatprep.subr.mxu0 0.0
  %2226 = vmatpush1.msra.mxu0 0.0
  %2227 = vmatprep.subr.mxu0 0.0
  %2228 = vmatpush1.msra.mxu0 0.0
  %2229 = vmatprep.subr.mxu0 0.0
  %2230 = vmatpush1.msra.mxu0 0.0
  %2231 = vmatprep.subr.mxu0 0.0
  %2232 = vmatpush1.msra.mxu0 0.0
  %2233 = vmatprep.subr.mxu0 0.0
  %2234 = vmatpush1.msra.mxu0 0.0
  %2235 = vmatprep.subr.mxu0 0.0
  %2236 = vmatpush1.msra.mxu0 0.0
  %2237 = vmatprep.subr.mxu0 0.0
  %2238 = vmatpush1.msra.mxu0 0.0
  %2239 = vmatprep.subr.mxu0 0.0
  %2240 = vmatpush1.msra.mxu0 0.0
  %2241 = vmatprep.subr.mxu0 0.0
  %2242 = vmatpush1.msra.mxu0 %v2181
  %2243 = vmatprep.subr.mxu0 0.0
  %2244 = vmatpush1.msra.mxu0 %v2180
  %2245 = vmatprep.subr.mxu0 0.0
  %2246 = vmatpush1.msra.mxu0 %v2179
  %2247 = vmatprep.subr.mxu0 0.0
  %2248 = vmatpush1.msra.mxu0 %v2178
  %2249 = vmatprep.subr.mxu0 0.0
  %2250 = vmatpush2.msra.mxu0 0.0
  %2251 = vmatprep.subr.mxu0 0.0
  %2252 = vmatpush2.msra.mxu0 0.0
  %2253 = vmatprep.subr.mxu0 0.0
  %2254 = vmatpush2.msra.mxu0 0.0
  %2255 = vmatprep.subr.mxu0 0.0
  %2256 = vmatpush2.msra.mxu0 0.0
  %2257 = vmatprep.subr.mxu0 0.0
  %2258 = vmatpush2.msra.mxu0 0.0
  %2259 = vmatprep.subr.mxu0 0.0
  %2260 = vmatpush2.msra.mxu0 0.0
  %2261 = vmatprep.subr.mxu0 0.0
  %2262 = vmatpush2.msra.mxu0 0.0
  %2263 = vmatprep.subr.mxu0 0.0
  %2264 = vmatpush2.msra.mxu0 0.0
  %2265 = vmatprep.subr.mxu0 0.0
  %2266 = vmatpush2.msra.mxu0 0.0
  %2267 = vmatprep.subr.mxu0 0.0
  %2268 = vmatpush2.msra.mxu0 0.0
  %2269 = vmatprep.subr.mxu0 0.0
  %2270 = vmatpush2.msra.mxu0 0.0
  %2271 = vmatprep.subr.mxu0 0.0
  %2272 = vmatpush2.msra.mxu0 0.0
  %2273 = vmatprep.subr.mxu0 0.0
  %2274 = vmatpush2.msra.mxu0 0.0
  %2275 = vmatprep.subr.mxu0 0.0
  %2276 = vmatpush2.msra.mxu0 0.0
  %2277 = vmatprep.subr.mxu0 0.0
  %2278 = vmatpush2.msra.mxu0 0.0
  %2279 = vmatprep.subr.mxu0 0.0
  %2280 = vmatpush2.msra.mxu0 0.0
  %2281 = vmatprep.mubr.f32.mxu0 0.0
  %2282 = vmatmul.mubr.f32.gmra.mxu0 %v2194
  %v2283 = vpop.f32.mrf.mxu0
  %v2284 = vadd.f32 %v2191, %v2283
  %v2285 = vpop.f32.mrf.mxu0
  %2286 = vmatprep.mubr.f32.mxu0 0.0
  %2287 = vmatmul.mubr.f32.gmra.mxu0 %v2197
  %v2288 = vpop.f32.mrf.mxu0
  %v2289 = vadd.f32 %v2191, %v2288
  %v2290 = vpop.f32.mrf.mxu0
  %2291 = vmatprep.mubr.f32.mxu0 0.0
  %2292 = vmatmul.mubr.f32.gmra.mxu0 %v2200
  %v2293 = vpop.f32.mrf.mxu0
  %v2294 = vadd.f32 %v2191, %v2293
  %v2295 = vpop.f32.mrf.mxu0
  %2296 = vmatprep.mubr.f32.mxu0 0.0
  %2297 = vmatmul.mubr.f32.gmra.mxu0 %v2203
  %v2298 = vpop.f32.mrf.mxu0
  %v2299 = vadd.f32 %v2191, %v2298
  %v2300 = vpop.f32.mrf.mxu0
  %2301 = vmatprep.mubr.f32.mxu0 0.0
  %2302 = vmatmul.mubr.f32.gmra.mxu0 %v2206
  %v2303 = vpop.f32.mrf.mxu0
  %v2304 = vadd.f32 %v2191, %v2303
  %v2305 = vpop.f32.mrf.mxu0
  %2306 = vmatprep.mubr.f32.mxu0 0.0
  %2307 = vmatmul.mubr.f32.gmra.mxu0 %v2209
  %v2308 = vpop.f32.mrf.mxu0
  %v2309 = vadd.f32 %v2191, %v2308
  %v2310 = vpop.f32.mrf.mxu0
  %2311 = vmatprep.mubr.f32.mxu0 0.0
  %2312 = vmatmul.mubr.f32.gmra.mxu0 %v2212
  %v2313 = vpop.f32.mrf.mxu0
  %v2314 = vadd.f32 %v2191, %v2313
  %v2315 = vpop.f32.mrf.mxu0
  %2316 = vmatprep.mubr.f32.mxu0 0.0
  %2317 = vmatmul.mubr.f32.gmra.mxu0 %v2215
  %v2318 = vpop.f32.mrf.mxu0
  %v2319 = vadd.f32 %v2191, %v2318
  %v2320 = vpop.f32.mrf.mxu0
  %2321 = vdwg.mxu0
  %2322 = vmatprep.subr.mxu0 0.0
  %2323 = vmatpush1.msra.mxu0 0.0
  %2324 = vmatprep.subr.mxu0 0.0
  %2325 = vmatpush1.msra.mxu0 0.0
  %2326 = vmatprep.subr.mxu0 0.0
  %2327 = vmatpush1.msra.mxu0 0.0
  %2328 = vmatprep.subr.mxu0 0.0
  %2329 = vmatpush1.msra.mxu0 0.0
  %2330 = vmatprep.subr.mxu0 0.0
  %2331 = vmatpush1.msra.mxu0 0.0
  %2332 = vmatprep.subr.mxu0 0.0
  %2333 = vmatpush1.msra.mxu0 0.0
  %2334 = vmatprep.subr.mxu0 0.0
  %2335 = vmatpush1.msra.mxu0 0.0
  %2336 = vmatprep.subr.mxu0 0.0
  %2337 = vmatpush1.msra.mxu0 0.0
  %2338 = vmatprep.subr.mxu0 0.0
  %2339 = vmatpush1.msra.mxu0 0.0
  %2340 = vmatprep.subr.mxu0 0.0
  %2341 = vmatpush1.msra.mxu0 0.0
  %2342 = vmatprep.subr.mxu0 0.0
  %2343 = vmatpush1.msra.mxu0 0.0
  %2344 = vmatprep.subr.mxu0 0.0
  %2345 = vmatpush1.msra.mxu0 0.0
  %2346 = vmatprep.subr.mxu0 0.0
  %2347 = vmatpush1.msra.mxu0 %v2185
  %2348 = vmatprep.subr.mxu0 0.0
  %2349 = vmatpush1.msra.mxu0 %v2184
  %2350 = vmatprep.subr.mxu0 0.0
  %2351 = vmatpush1.msra.mxu0 %v2183
  %2352 = vmatprep.subr.mxu0 0.0
  %2353 = vmatpush1.msra.mxu0 %v2182
  %2354 = vmatprep.subr.mxu0 0.0
  %2355 = vmatpush2.msra.mxu0 0.0
  %2356 = vmatprep.subr.mxu0 0.0
  %2357 = vmatpush2.msra.mxu0 0.0
  %2358 = vmatprep.subr.mxu0 0.0
  %2359 = vmatpush2.msra.mxu0 0.0
  %2360 = vmatprep.subr.mxu0 0.0
  %2361 = vmatpush2.msra.mxu0 0.0
  %2362 = vmatprep.subr.mxu0 0.0
  %2363 = vmatpush2.msra.mxu0 0.0
  %2364 = vmatprep.subr.mxu0 0.0
  %2365 = vmatpush2.msra.mxu0 0.0
  %2366 = vmatprep.subr.mxu0 0.0
  %2367 = vmatpush2.msra.mxu0 0.0
  %2368 = vmatprep.subr.mxu0 0.0
  %2369 = vmatpush2.msra.mxu0 0.0
  %2370 = vmatprep.subr.mxu0 0.0
  %2371 = vmatpush2.msra.mxu0 0.0
  %2372 = vmatprep.subr.mxu0 0.0
  %2373 = vmatpush2.msra.mxu0 0.0
  %2374 = vmatprep.subr.mxu0 0.0
  %2375 = vmatpush2.msra.mxu0 0.0
  %2376 = vmatprep.subr.mxu0 0.0
  %2377 = vmatpush2.msra.mxu0 0.0
  %2378 = vmatprep.subr.mxu0 0.0
  %2379 = vmatpush2.msra.mxu0 0.0
  %2380 = vmatprep.subr.mxu0 0.0
  %2381 = vmatpush2.msra.mxu0 0.0
  %2382 = vmatprep.subr.mxu0 0.0
  %2383 = vmatpush2.msra.mxu0 0.0
  %2384 = vmatprep.subr.mxu0 0.0
  %2385 = vmatpush2.msra.mxu0 0.0
  %2386 = vmatprep.mubr.f32.mxu0 0.0
  %2387 = vmatmul.mubr.f32.gmra.mxu0 %v208
  %v2388 = vpop.f32.mrf.mxu0
  %v2389 = vadd.f32 0.0, %v2388
  %v2390 = vpop.f32.mrf.mxu0
  %2391 = vdwg.mxu0
  %v2392 = vadd.f32 %v2284, %v2389
  %v2393 = vxor.u32 %v2392, 2147483648
  %v2394 = vmul.f32 %v2393, 1.442695
  %v2395 = vpow.pop %v2394
  %v2396 = vadd.f32 %v2395, 1.0
  %v2397 = vrcp.pop %v2396
  %v2398 = vmul.f32 1.0, %v2397
  %v2399 = vtanh.pop %v2392
  %v2400 = vmul.f32 %v2398, 0.0
  %2402 = vrot.lane.b32.xlu0 %v2399, 64
  %v2403 = vpop.permute.xlu0 %2402
  %v2405 = vmul.f32 %v2398, %v2403
  %2407 = vrot.lane.b32.xlu0 %v2405, 32
  %v2408 = vpop.permute.xlu0 %2407
  %v2410 = vadd.f32 %v2400, %v2408
  %v2411 = vtanh.pop %v2410
  %2413 = vrot.lane.b32.xlu0 %v2411, 64
  %v2414 = vpop.permute.xlu0 %2413
  %v2416 = vmul.f32 %v2398, %v2414
  %v2417 = vmul.f32 %v308, %v2416
  %v2418 = vadd.f32 %v2417, %v317
  %v2419 = vmul.f32 %v308, %v2410
  %v2420 = vadd.f32 %v2419, %v317
  %v2421 = vmul.f32 %v308, %v2418
  %2423 = vrot.lane.b32.xlu0 %v2418, 32
  %v2424 = vpop.permute.xlu0 %2423
  %v2425 = vsel %vm77, %v2424, 0
  %2427 = vmatprep.subr.mxu0 0.0
  %2428 = vmatpush1.msra.mxu0 0.0
  %2429 = vmatprep.subr.mxu0 0.0
  %2430 = vmatpush1.msra.mxu0 0.0
  %2431 = vmatprep.subr.mxu0 0.0
  %2432 = vmatpush1.msra.mxu0 0.0
  %2433 = vmatprep.subr.mxu0 0.0
  %2434 = vmatpush1.msra.mxu0 0.0
  %2435 = vmatprep.subr.mxu0 0.0
  %2436 = vmatpush1.msra.mxu0 0.0
  %2437 = vmatprep.subr.mxu0 0.0
  %2438 = vmatpush1.msra.mxu0 0.0
  %2439 = vmatprep.subr.mxu0 0.0
  %2440 = vmatpush1.msra.mxu0 0.0
  %2441 = vmatprep.subr.mxu0 0.0
  %2442 = vmatpush1.msra.mxu0 0.0
  %2443 = vmatprep.subr.mxu0 0.0
  %2444 = vmatpush1.msra.mxu0 0.0
  %2445 = vmatprep.subr.mxu0 0.0
  %2446 = vmatpush1.msra.mxu0 0.0
  %2447 = vmatprep.subr.mxu0 0.0
  %2448 = vmatpush1.msra.mxu0 0.0
  %2449 = vmatprep.subr.mxu0 0.0
  %2450 = vmatpush1.msra.mxu0 0.0
  %2451 = vmatprep.subr.mxu0 0.0
  %2452 = vmatpush1.msra.mxu0 %v2185
  %2453 = vmatprep.subr.mxu0 0.0
  %2454 = vmatpush1.msra.mxu0 %v2184
  %2455 = vmatprep.subr.mxu0 0.0
  %2456 = vmatpush1.msra.mxu0 %v2183
  %2457 = vmatprep.subr.mxu0 0.0
  %2458 = vmatpush1.msra.mxu0 %v2182
  %2459 = vmatprep.subr.mxu0 0.0
  %2460 = vmatpush2.msra.mxu0 0.0
  %2461 = vmatprep.subr.mxu0 0.0
  %2462 = vmatpush2.msra.mxu0 0.0
  %2463 = vmatprep.subr.mxu0 0.0
  %2464 = vmatpush2.msra.mxu0 0.0
  %2465 = vmatprep.subr.mxu0 0.0
  %2466 = vmatpush2.msra.mxu0 0.0
  %2467 = vmatprep.subr.mxu0 0.0
  %2468 = vmatpush2.msra.mxu0 0.0
  %2469 = vmatprep.subr.mxu0 0.0
  %2470 = vmatpush2.msra.mxu0 0.0
  %2471 = vmatprep.subr.mxu0 0.0
  %2472 = vmatpush2.msra.mxu0 0.0
  %2473 = vmatprep.subr.mxu0 0.0
  %2474 = vmatpush2.msra.mxu0 0.0
  %2475 = vmatprep.subr.mxu0 0.0
  %2476 = vmatpush2.msra.mxu0 0.0
  %2477 = vmatprep.subr.mxu0 0.0
  %2478 = vmatpush2.msra.mxu0 0.0
  %2479 = vmatprep.subr.mxu0 0.0
  %2480 = vmatpush2.msra.mxu0 0.0
  %2481 = vmatprep.subr.mxu0 0.0
  %2482 = vmatpush2.msra.mxu0 0.0
  %2483 = vmatprep.subr.mxu0 0.0
  %2484 = vmatpush2.msra.mxu0 0.0
  %2485 = vmatprep.subr.mxu0 0.0
  %2486 = vmatpush2.msra.mxu0 0.0
  %2487 = vmatprep.subr.mxu0 0.0
  %2488 = vmatpush2.msra.mxu0 0.0
  %2489 = vmatprep.subr.mxu0 0.0
  %2490 = vmatpush2.msra.mxu0 0.0
  %2491 = vmatprep.mubr.f32.mxu0 0.0
  %2492 = vmatmul.mubr.f32.gmra.mxu0 %v2425
  %v2493 = vpop.f32.mrf.mxu0
  %v2494 = vadd.f32 0.0, %v2493
  %v2495 = vpop.f32.mrf.mxu0
  %2496 = vdwg.mxu0
  %v2497 = vadd.f32 %v2289, %v2494
  %v2498 = vxor.u32 %v2497, 2147483648
  %v2499 = vmul.f32 %v2498, 1.442695
  %v2500 = vpow.pop %v2499
  %v2501 = vadd.f32 %v2500, 1.0
  %v2502 = vrcp.pop %v2501
  %v2503 = vmul.f32 1.0, %v2502
  %v2504 = vtanh.pop %v2497
  %v2505 = vmul.f32 %v2503, %v2420
  %2507 = vrot.lane.b32.xlu0 %v2504, 64
  %v2508 = vpop.permute.xlu0 %2507
  %v2510 = vmul.f32 %v2503, %v2508
  %2512 = vrot.lane.b32.xlu0 %v2510, 32
  %v2513 = vpop.permute.xlu0 %2512
  %v2515 = vadd.f32 %v2505, %v2513
  %v2516 = vtanh.pop %v2515
  %2518 = vrot.lane.b32.xlu0 %v2516, 64
  %v2519 = vpop.permute.xlu0 %2518
  %v2521 = vmul.f32 %v2503, %v2519
  %v2522 = vmul.f32 %v425, %v2521
  %v2523 = vmul.f32 %v432, %v2418
  %v2524 = vadd.f32 %v2522, %v2523
  %v2525 = vmul.f32 %v425, %v2515
  %v2526 = vmul.f32 %v432, %v2420
  %v2527 = vadd.f32 %v2525, %v2526
  %v2528 = vmul.f32 %v425, %v2524
  %2530 = vrot.lane.b32.xlu0 %v2524, 32
  %v2531 = vpop.permute.xlu0 %2530
  %v2532 = vsel %vm77, %v2531, 0
  %2534 = vmatprep.subr.mxu0 0.0
  %2535 = vmatpush1.msra.mxu0 0.0
  %2536 = vmatprep.subr.mxu0 0.0
  %2537 = vmatpush1.msra.mxu0 0.0
  %2538 = vmatprep.subr.mxu0 0.0
  %2539 = vmatpush1.msra.mxu0 0.0
  %2540 = vmatprep.subr.mxu0 0.0
  %2541 = vmatpush1.msra.mxu0 0.0
  %2542 = vmatprep.subr.mxu0 0.0
  %2543 = vmatpush1.msra.mxu0 0.0
  %2544 = vmatprep.subr.mxu0 0.0
  %2545 = vmatpush1.msra.mxu0 0.0
  %2546 = vmatprep.subr.mxu0 0.0
  %2547 = vmatpush1.msra.mxu0 0.0
  %2548 = vmatprep.subr.mxu0 0.0
  %2549 = vmatpush1.msra.mxu0 0.0
  %2550 = vmatprep.subr.mxu0 0.0
  %2551 = vmatpush1.msra.mxu0 0.0
  %2552 = vmatprep.subr.mxu0 0.0
  %2553 = vmatpush1.msra.mxu0 0.0
  %2554 = vmatprep.subr.mxu0 0.0
  %2555 = vmatpush1.msra.mxu0 0.0
  %2556 = vmatprep.subr.mxu0 0.0
  %2557 = vmatpush1.msra.mxu0 0.0
  %2558 = vmatprep.subr.mxu0 0.0
  %2559 = vmatpush1.msra.mxu0 %v2185
  %2560 = vmatprep.subr.mxu0 0.0
  %2561 = vmatpush1.msra.mxu0 %v2184
  %2562 = vmatprep.subr.mxu0 0.0
  %2563 = vmatpush1.msra.mxu0 %v2183
  %2564 = vmatprep.subr.mxu0 0.0
  %2565 = vmatpush1.msra.mxu0 %v2182
  %2566 = vmatprep.subr.mxu0 0.0
  %2567 = vmatpush2.msra.mxu0 0.0
  %2568 = vmatprep.subr.mxu0 0.0
  %2569 = vmatpush2.msra.mxu0 0.0
  %2570 = vmatprep.subr.mxu0 0.0
  %2571 = vmatpush2.msra.mxu0 0.0
  %2572 = vmatprep.subr.mxu0 0.0
  %2573 = vmatpush2.msra.mxu0 0.0
  %2574 = vmatprep.subr.mxu0 0.0
  %2575 = vmatpush2.msra.mxu0 0.0
  %2576 = vmatprep.subr.mxu0 0.0
  %2577 = vmatpush2.msra.mxu0 0.0
  %2578 = vmatprep.subr.mxu0 0.0
  %2579 = vmatpush2.msra.mxu0 0.0
  %2580 = vmatprep.subr.mxu0 0.0
  %2581 = vmatpush2.msra.mxu0 0.0
  %2582 = vmatprep.subr.mxu0 0.0
  %2583 = vmatpush2.msra.mxu0 0.0
  %2584 = vmatprep.subr.mxu0 0.0
  %2585 = vmatpush2.msra.mxu0 0.0
  %2586 = vmatprep.subr.mxu0 0.0
  %2587 = vmatpush2.msra.mxu0 0.0
  %2588 = vmatprep.subr.mxu0 0.0
  %2589 = vmatpush2.msra.mxu0 0.0
  %2590 = vmatprep.subr.mxu0 0.0
  %2591 = vmatpush2.msra.mxu0 0.0
  %2592 = vmatprep.subr.mxu0 0.0
  %2593 = vmatpush2.msra.mxu0 0.0
  %2594 = vmatprep.subr.mxu0 0.0
  %2595 = vmatpush2.msra.mxu0 0.0
  %2596 = vmatprep.subr.mxu0 0.0
  %2597 = vmatpush2.msra.mxu0 0.0
  %2598 = vmatprep.mubr.f32.mxu0 0.0
  %2599 = vmatmul.mubr.f32.gmra.mxu0 %v2532
  %v2600 = vpop.f32.mrf.mxu0
  %v2601 = vadd.f32 0.0, %v2600
  %v2602 = vpop.f32.mrf.mxu0
  %2603 = vdwg.mxu0
  %v2604 = vadd.f32 %v2294, %v2601
  %v2605 = vxor.u32 %v2604, 2147483648
  %v2606 = vmul.f32 %v2605, 1.442695
  %v2607 = vpow.pop %v2606
  %v2608 = vadd.f32 %v2607, 1.0
  %v2609 = vrcp.pop %v2608
  %v2610 = vmul.f32 1.0, %v2609
  %v2611 = vtanh.pop %v2604
  %v2612 = vmul.f32 %v2610, %v2527
  %2614 = vrot.lane.b32.xlu0 %v2611, 64
  %v2615 = vpop.permute.xlu0 %2614
  %v2617 = vmul.f32 %v2610, %v2615
  %2619 = vrot.lane.b32.xlu0 %v2617, 32
  %v2620 = vpop.permute.xlu0 %2619
  %v2622 = vadd.f32 %v2612, %v2620
  %v2623 = vtanh.pop %v2622
  %2625 = vrot.lane.b32.xlu0 %v2623, 64
  %v2626 = vpop.permute.xlu0 %2625
  %v2628 = vmul.f32 %v2610, %v2626
  %v2629 = vmul.f32 %v543, %v2628
  %v2630 = vmul.f32 %v550, %v2524
  %v2631 = vadd.f32 %v2629, %v2630
  %v2632 = vmul.f32 %v543, %v2622
  %v2633 = vmul.f32 %v550, %v2527
  %v2634 = vadd.f32 %v2632, %v2633
  %v2635 = vmul.f32 %v543, %v2631
  %2637 = vrot.lane.b32.xlu0 %v2631, 32
  %v2638 = vpop.permute.xlu0 %2637
  %v2639 = vsel %vm77, %v2638, 0
  %2641 = vmatprep.subr.mxu0 0.0
  %2642 = vmatpush1.msra.mxu0 0.0
  %2643 = vmatprep.subr.mxu0 0.0
  %2644 = vmatpush1.msra.mxu0 0.0
  %2645 = vmatprep.subr.mxu0 0.0
  %2646 = vmatpush1.msra.mxu0 0.0
  %2647 = vmatprep.subr.mxu0 0.0
  %2648 = vmatpush1.msra.mxu0 0.0
  %2649 = vmatprep.subr.mxu0 0.0
  %2650 = vmatpush1.msra.mxu0 0.0
  %2651 = vmatprep.subr.mxu0 0.0
  %2652 = vmatpush1.msra.mxu0 0.0
  %2653 = vmatprep.subr.mxu0 0.0
  %2654 = vmatpush1.msra.mxu0 0.0
  %2655 = vmatprep.subr.mxu0 0.0
  %2656 = vmatpush1.msra.mxu0 0.0
  %2657 = vmatprep.subr.mxu0 0.0
  %2658 = vmatpush1.msra.mxu0 0.0
  %2659 = vmatprep.subr.mxu0 0.0
  %2660 = vmatpush1.msra.mxu0 0.0
  %2661 = vmatprep.subr.mxu0 0.0
  %2662 = vmatpush1.msra.mxu0 0.0
  %2663 = vmatprep.subr.mxu0 0.0
  %2664 = vmatpush1.msra.mxu0 0.0
  %2665 = vmatprep.subr.mxu0 0.0
  %2666 = vmatpush1.msra.mxu0 %v2185
  %2667 = vmatprep.subr.mxu0 0.0
  %2668 = vmatpush1.msra.mxu0 %v2184
  %2669 = vmatprep.subr.mxu0 0.0
  %2670 = vmatpush1.msra.mxu0 %v2183
  %2671 = vmatprep.subr.mxu0 0.0
  %2672 = vmatpush1.msra.mxu0 %v2182
  %2673 = vmatprep.subr.mxu0 0.0
  %2674 = vmatpush2.msra.mxu0 0.0
  %2675 = vmatprep.subr.mxu0 0.0
  %2676 = vmatpush2.msra.mxu0 0.0
  %2677 = vmatprep.subr.mxu0 0.0
  %2678 = vmatpush2.msra.mxu0 0.0
  %2679 = vmatprep.subr.mxu0 0.0
  %2680 = vmatpush2.msra.mxu0 0.0
  %2681 = vmatprep.subr.mxu0 0.0
  %2682 = vmatpush2.msra.mxu0 0.0
  %2683 = vmatprep.subr.mxu0 0.0
  %2684 = vmatpush2.msra.mxu0 0.0
  %2685 = vmatprep.subr.mxu0 0.0
  %2686 = vmatpush2.msra.mxu0 0.0
  %2687 = vmatprep.subr.mxu0 0.0
  %2688 = vmatpush2.msra.mxu0 0.0
  %2689 = vmatprep.subr.mxu0 0.0
  %2690 = vmatpush2.msra.mxu0 0.0
  %2691 = vmatprep.subr.mxu0 0.0
  %2692 = vmatpush2.msra.mxu0 0.0
  %2693 = vmatprep.subr.mxu0 0.0
  %2694 = vmatpush2.msra.mxu0 0.0
  %2695 = vmatprep.subr.mxu0 0.0
  %2696 = vmatpush2.msra.mxu0 0.0
  %2697 = vmatprep.subr.mxu0 0.0
  %2698 = vmatpush2.msra.mxu0 0.0
  %2699 = vmatprep.subr.mxu0 0.0
  %2700 = vmatpush2.msra.mxu0 0.0
  %2701 = vmatprep.subr.mxu0 0.0
  %2702 = vmatpush2.msra.mxu0 0.0
  %2703 = vmatprep.subr.mxu0 0.0
  %2704 = vmatpush2.msra.mxu0 0.0
  %2705 = vmatprep.mubr.f32.mxu0 0.0
  %2706 = vmatmul.mubr.f32.gmra.mxu0 %v2639
  %v2707 = vpop.f32.mrf.mxu0
  %v2708 = vadd.f32 0.0, %v2707
  %v2709 = vpop.f32.mrf.mxu0
  %2710 = vdwg.mxu0
  %v2711 = vadd.f32 %v2299, %v2708
  %v2712 = vxor.u32 %v2711, 2147483648
  %v2713 = vmul.f32 %v2712, 1.442695
  %v2714 = vpow.pop %v2713
  %v2715 = vadd.f32 %v2714, 1.0
  %v2716 = vrcp.pop %v2715
  %v2717 = vmul.f32 1.0, %v2716
  %v2718 = vtanh.pop %v2711
  %v2719 = vmul.f32 %v2717, %v2634
  %2721 = vrot.lane.b32.xlu0 %v2718, 64
  %v2722 = vpop.permute.xlu0 %2721
  %v2724 = vmul.f32 %v2717, %v2722
  %2726 = vrot.lane.b32.xlu0 %v2724, 32
  %v2727 = vpop.permute.xlu0 %2726
  %v2729 = vadd.f32 %v2719, %v2727
  %v2730 = vtanh.pop %v2729
  %2732 = vrot.lane.b32.xlu0 %v2730, 64
  %v2733 = vpop.permute.xlu0 %2732
  %v2735 = vmul.f32 %v2717, %v2733
  %v2736 = vmul.f32 %v661, %v2735
  %v2737 = vmul.f32 %v668, %v2631
  %v2738 = vadd.f32 %v2736, %v2737
  %v2739 = vmul.f32 %v661, %v2729
  %v2740 = vmul.f32 %v668, %v2634
  %v2741 = vadd.f32 %v2739, %v2740
  %v2742 = vmul.f32 %v661, %v2738
  %2744 = vrot.lane.b32.xlu0 %v2738, 32
  %v2745 = vpop.permute.xlu0 %2744
  %v2746 = vsel %vm77, %v2745, 0
  %2748 = vmatprep.subr.mxu0 0.0
  %2749 = vmatpush1.msra.mxu0 0.0
  %2750 = vmatprep.subr.mxu0 0.0
  %2751 = vmatpush1.msra.mxu0 0.0
  %2752 = vmatprep.subr.mxu0 0.0
  %2753 = vmatpush1.msra.mxu0 0.0
  %2754 = vmatprep.subr.mxu0 0.0
  %2755 = vmatpush1.msra.mxu0 0.0
  %2756 = vmatprep.subr.mxu0 0.0
  %2757 = vmatpush1.msra.mxu0 0.0
  %2758 = vmatprep.subr.mxu0 0.0
  %2759 = vmatpush1.msra.mxu0 0.0
  %2760 = vmatprep.subr.mxu0 0.0
  %2761 = vmatpush1.msra.mxu0 0.0
  %2762 = vmatprep.subr.mxu0 0.0
  %2763 = vmatpush1.msra.mxu0 0.0
  %2764 = vmatprep.subr.mxu0 0.0
  %2765 = vmatpush1.msra.mxu0 0.0
  %2766 = vmatprep.subr.mxu0 0.0
  %2767 = vmatpush1.msra.mxu0 0.0
  %2768 = vmatprep.subr.mxu0 0.0
  %2769 = vmatpush1.msra.mxu0 0.0
  %2770 = vmatprep.subr.mxu0 0.0
  %2771 = vmatpush1.msra.mxu0 0.0
  %2772 = vmatprep.subr.mxu0 0.0
  %2773 = vmatpush1.msra.mxu0 %v2185
  %2774 = vmatprep.subr.mxu0 0.0
  %2775 = vmatpush1.msra.mxu0 %v2184
  %2776 = vmatprep.subr.mxu0 0.0
  %2777 = vmatpush1.msra.mxu0 %v2183
  %2778 = vmatprep.subr.mxu0 0.0
  %2779 = vmatpush1.msra.mxu0 %v2182
  %2780 = vmatprep.subr.mxu0 0.0
  %2781 = vmatpush2.msra.mxu0 0.0
  %2782 = vmatprep.subr.mxu0 0.0
  %2783 = vmatpush2.msra.mxu0 0.0
  %2784 = vmatprep.subr.mxu0 0.0
  %2785 = vmatpush2.msra.mxu0 0.0
  %2786 = vmatprep.subr.mxu0 0.0
  %2787 = vmatpush2.msra.mxu0 0.0
  %2788 = vmatprep.subr.mxu0 0.0
  %2789 = vmatpush2.msra.mxu0 0.0
  %2790 = vmatprep.subr.mxu0 0.0
  %2791 = vmatpush2.msra.mxu0 0.0
  %2792 = vmatprep.subr.mxu0 0.0
  %2793 = vmatpush2.msra.mxu0 0.0
  %2794 = vmatprep.subr.mxu0 0.0
  %2795 = vmatpush2.msra.mxu0 0.0
  %2796 = vmatprep.subr.mxu0 0.0
  %2797 = vmatpush2.msra.mxu0 0.0
  %2798 = vmatprep.subr.mxu0 0.0
  %2799 = vmatpush2.msra.mxu0 0.0
  %2800 = vmatprep.subr.mxu0 0.0
  %2801 = vmatpush2.msra.mxu0 0.0
  %2802 = vmatprep.subr.mxu0 0.0
  %2803 = vmatpush2.msra.mxu0 0.0
  %2804 = vmatprep.subr.mxu0 0.0
  %2805 = vmatpush2.msra.mxu0 0.0
  %2806 = vmatprep.subr.mxu0 0.0
  %2807 = vmatpush2.msra.mxu0 0.0
  %2808 = vmatprep.subr.mxu0 0.0
  %2809 = vmatpush2.msra.mxu0 0.0
  %2810 = vmatprep.subr.mxu0 0.0
  %2811 = vmatpush2.msra.mxu0 0.0
  %2812 = vmatprep.mubr.f32.mxu0 0.0
  %2813 = vmatmul.mubr.f32.gmra.mxu0 %v2746
  %v2814 = vpop.f32.mrf.mxu0
  %v2815 = vadd.f32 0.0, %v2814
  %v2816 = vpop.f32.mrf.mxu0
  %2817 = vdwg.mxu0
  %v2818 = vadd.f32 %v2304, %v2815
  %v2819 = vxor.u32 %v2818, 2147483648
  %v2820 = vmul.f32 %v2819, 1.442695
  %v2821 = vpow.pop %v2820
  %v2822 = vadd.f32 %v2821, 1.0
  %v2823 = vrcp.pop %v2822
  %v2824 = vmul.f32 1.0, %v2823
  %v2825 = vtanh.pop %v2818
  %v2826 = vmul.f32 %v2824, %v2741
  %2828 = vrot.lane.b32.xlu0 %v2825, 64
  %v2829 = vpop.permute.xlu0 %2828
  %v2831 = vmul.f32 %v2824, %v2829
  %2833 = vrot.lane.b32.xlu0 %v2831, 32
  %v2834 = vpop.permute.xlu0 %2833
  %v2836 = vadd.f32 %v2826, %v2834
  %v2837 = vtanh.pop %v2836
  %2839 = vrot.lane.b32.xlu0 %v2837, 64
  %v2840 = vpop.permute.xlu0 %2839
  %v2842 = vmul.f32 %v2824, %v2840
  %v2843 = vmul.f32 %v779, %v2842
  %v2844 = vmul.f32 %v786, %v2738
  %v2845 = vadd.f32 %v2843, %v2844
  %v2846 = vmul.f32 %v779, %v2836
  %v2847 = vmul.f32 %v786, %v2741
  %v2848 = vadd.f32 %v2846, %v2847
  %v2849 = vmul.f32 %v779, %v2845
  %2851 = vrot.lane.b32.xlu0 %v2845, 32
  %v2852 = vpop.permute.xlu0 %2851
  %v2853 = vsel %vm77, %v2852, 0
  %2855 = vmatprep.subr.mxu0 0.0
  %2856 = vmatpush1.msra.mxu0 0.0
  %2857 = vmatprep.subr.mxu0 0.0
  %2858 = vmatpush1.msra.mxu0 0.0
  %2859 = vmatprep.subr.mxu0 0.0
  %2860 = vmatpush1.msra.mxu0 0.0
  %2861 = vmatprep.subr.mxu0 0.0
  %2862 = vmatpush1.msra.mxu0 0.0
  %2863 = vmatprep.subr.mxu0 0.0
  %2864 = vmatpush1.msra.mxu0 0.0
  %2865 = vmatprep.subr.mxu0 0.0
  %2866 = vmatpush1.msra.mxu0 0.0
  %2867 = vmatprep.subr.mxu0 0.0
  %2868 = vmatpush1.msra.mxu0 0.0
  %2869 = vmatprep.subr.mxu0 0.0
  %2870 = vmatpush1.msra.mxu0 0.0
  %2871 = vmatprep.subr.mxu0 0.0
  %2872 = vmatpush1.msra.mxu0 0.0
  %2873 = vmatprep.subr.mxu0 0.0
  %2874 = vmatpush1.msra.mxu0 0.0
  %2875 = vmatprep.subr.mxu0 0.0
  %2876 = vmatpush1.msra.mxu0 0.0
  %2877 = vmatprep.subr.mxu0 0.0
  %2878 = vmatpush1.msra.mxu0 0.0
  %2879 = vmatprep.subr.mxu0 0.0
  %2880 = vmatpush1.msra.mxu0 %v2185
  %2881 = vmatprep.subr.mxu0 0.0
  %2882 = vmatpush1.msra.mxu0 %v2184
  %2883 = vmatprep.subr.mxu0 0.0
  %2884 = vmatpush1.msra.mxu0 %v2183
  %2885 = vmatprep.subr.mxu0 0.0
  %2886 = vmatpush1.msra.mxu0 %v2182
  %2887 = vmatprep.subr.mxu0 0.0
  %2888 = vmatpush2.msra.mxu0 0.0
  %2889 = vmatprep.subr.mxu0 0.0
  %2890 = vmatpush2.msra.mxu0 0.0
  %2891 = vmatprep.subr.mxu0 0.0
  %2892 = vmatpush2.msra.mxu0 0.0
  %2893 = vmatprep.subr.mxu0 0.0
  %2894 = vmatpush2.msra.mxu0 0.0
  %2895 = vmatprep.subr.mxu0 0.0
  %2896 = vmatpush2.msra.mxu0 0.0
  %2897 = vmatprep.subr.mxu0 0.0
  %2898 = vmatpush2.msra.mxu0 0.0
  %2899 = vmatprep.subr.mxu0 0.0
  %2900 = vmatpush2.msra.mxu0 0.0
  %2901 = vmatprep.subr.mxu0 0.0
  %2902 = vmatpush2.msra.mxu0 0.0
  %2903 = vmatprep.subr.mxu0 0.0
  %2904 = vmatpush2.msra.mxu0 0.0
  %2905 = vmatprep.subr.mxu0 0.0
  %2906 = vmatpush2.msra.mxu0 0.0
  %2907 = vmatprep.subr.mxu0 0.0
  %2908 = vmatpush2.msra.mxu0 0.0
  %2909 = vmatprep.subr.mxu0 0.0
  %2910 = vmatpush2.msra.mxu0 0.0
  %2911 = vmatprep.subr.mxu0 0.0
  %2912 = vmatpush2.msra.mxu0 0.0
  %2913 = vmatprep.subr.mxu0 0.0
  %2914 = vmatpush2.msra.mxu0 0.0
  %2915 = vmatprep.subr.mxu0 0.0
  %2916 = vmatpush2.msra.mxu0 0.0
  %2917 = vmatprep.subr.mxu0 0.0
  %2918 = vmatpush2.msra.mxu0 0.0
  %2919 = vmatprep.mubr.f32.mxu0 0.0
  %2920 = vmatmul.mubr.f32.gmra.mxu0 %v2853
  %v2921 = vpop.f32.mrf.mxu0
  %v2922 = vadd.f32 0.0, %v2921
  %v2923 = vpop.f32.mrf.mxu0
  %2924 = vdwg.mxu0
  %v2925 = vadd.f32 %v2309, %v2922
  %v2926 = vxor.u32 %v2925, 2147483648
  %v2927 = vmul.f32 %v2926, 1.442695
  %v2928 = vpow.pop %v2927
  %v2929 = vadd.f32 %v2928, 1.0
  %v2930 = vrcp.pop %v2929
  %v2931 = vmul.f32 1.0, %v2930
  %v2932 = vtanh.pop %v2925
  %v2933 = vmul.f32 %v2931, %v2848
  %2935 = vrot.lane.b32.xlu0 %v2932, 64
  %v2936 = vpop.permute.xlu0 %2935
  %v2938 = vmul.f32 %v2931, %v2936
  %2940 = vrot.lane.b32.xlu0 %v2938, 32
  %v2941 = vpop.permute.xlu0 %2940
  %v2943 = vadd.f32 %v2933, %v2941
  %v2944 = vtanh.pop %v2943
  %2946 = vrot.lane.b32.xlu0 %v2944, 64
  %v2947 = vpop.permute.xlu0 %2946
  %v2949 = vmul.f32 %v2931, %v2947
  %v2950 = vmul.f32 %v897, %v2949
  %v2951 = vmul.f32 %v904, %v2845
  %v2952 = vadd.f32 %v2950, %v2951
  %v2953 = vmul.f32 %v897, %v2943
  %v2954 = vmul.f32 %v904, %v2848
  %v2955 = vadd.f32 %v2953, %v2954
  %v2956 = vmul.f32 %v897, %v2952
  %2958 = vrot.lane.b32.xlu0 %v2952, 32
  %v2959 = vpop.permute.xlu0 %2958
  %v2960 = vsel %vm77, %v2959, 0
  %2962 = vmatprep.subr.mxu0 0.0
  %2963 = vmatpush1.msra.mxu0 0.0
  %2964 = vmatprep.subr.mxu0 0.0
  %2965 = vmatpush1.msra.mxu0 0.0
  %2966 = vmatprep.subr.mxu0 0.0
  %2967 = vmatpush1.msra.mxu0 0.0
  %2968 = vmatprep.subr.mxu0 0.0
  %2969 = vmatpush1.msra.mxu0 0.0
  %2970 = vmatprep.subr.mxu0 0.0
  %2971 = vmatpush1.msra.mxu0 0.0
  %2972 = vmatprep.subr.mxu0 0.0
  %2973 = vmatpush1.msra.mxu0 0.0
  %2974 = vmatprep.subr.mxu0 0.0
  %2975 = vmatpush1.msra.mxu0 0.0
  %2976 = vmatprep.subr.mxu0 0.0
  %2977 = vmatpush1.msra.mxu0 0.0
  %2978 = vmatprep.subr.mxu0 0.0
  %2979 = vmatpush1.msra.mxu0 0.0
  %2980 = vmatprep.subr.mxu0 0.0
  %2981 = vmatpush1.msra.mxu0 0.0
  %2982 = vmatprep.subr.mxu0 0.0
  %2983 = vmatpush1.msra.mxu0 0.0
  %2984 = vmatprep.subr.mxu0 0.0
  %2985 = vmatpush1.msra.mxu0 0.0
  %2986 = vmatprep.subr.mxu0 0.0
  %2987 = vmatpush1.msra.mxu0 %v2185
  %2988 = vmatprep.subr.mxu0 0.0
  %2989 = vmatpush1.msra.mxu0 %v2184
  %2990 = vmatprep.subr.mxu0 0.0
  %2991 = vmatpush1.msra.mxu0 %v2183
  %2992 = vmatprep.subr.mxu0 0.0
  %2993 = vmatpush1.msra.mxu0 %v2182
  %2994 = vmatprep.subr.mxu0 0.0
  %2995 = vmatpush2.msra.mxu0 0.0
  %2996 = vmatprep.subr.mxu0 0.0
  %2997 = vmatpush2.msra.mxu0 0.0
  %2998 = vmatprep.subr.mxu0 0.0
  %2999 = vmatpush2.msra.mxu0 0.0
  %3000 = vmatprep.subr.mxu0 0.0
  %3001 = vmatpush2.msra.mxu0 0.0
  %3002 = vmatprep.subr.mxu0 0.0
  %3003 = vmatpush2.msra.mxu0 0.0
  %3004 = vmatprep.subr.mxu0 0.0
  %3005 = vmatpush2.msra.mxu0 0.0
  %3006 = vmatprep.subr.mxu0 0.0
  %3007 = vmatpush2.msra.mxu0 0.0
  %3008 = vmatprep.subr.mxu0 0.0
  %3009 = vmatpush2.msra.mxu0 0.0
  %3010 = vmatprep.subr.mxu0 0.0
  %3011 = vmatpush2.msra.mxu0 0.0
  %3012 = vmatprep.subr.mxu0 0.0
  %3013 = vmatpush2.msra.mxu0 0.0
  %3014 = vmatprep.subr.mxu0 0.0
  %3015 = vmatpush2.msra.mxu0 0.0
  %3016 = vmatprep.subr.mxu0 0.0
  %3017 = vmatpush2.msra.mxu0 0.0
  %3018 = vmatprep.subr.mxu0 0.0
  %3019 = vmatpush2.msra.mxu0 0.0
  %3020 = vmatprep.subr.mxu0 0.0
  %3021 = vmatpush2.msra.mxu0 0.0
  %3022 = vmatprep.subr.mxu0 0.0
  %3023 = vmatpush2.msra.mxu0 0.0
  %3024 = vmatprep.subr.mxu0 0.0
  %3025 = vmatpush2.msra.mxu0 0.0
  %3026 = vmatprep.mubr.f32.mxu0 0.0
  %3027 = vmatmul.mubr.f32.gmra.mxu0 %v2960
  %v3028 = vpop.f32.mrf.mxu0
  %v3029 = vadd.f32 0.0, %v3028
  %v3030 = vpop.f32.mrf.mxu0
  %3031 = vdwg.mxu0
  %v3032 = vadd.f32 %v2314, %v3029
  %v3033 = vxor.u32 %v3032, 2147483648
  %v3034 = vmul.f32 %v3033, 1.442695
  %v3035 = vpow.pop %v3034
  %v3036 = vadd.f32 %v3035, 1.0
  %v3037 = vrcp.pop %v3036
  %v3038 = vmul.f32 1.0, %v3037
  %v3039 = vtanh.pop %v3032
  %v3040 = vmul.f32 %v3038, %v2955
  %3042 = vrot.lane.b32.xlu0 %v3039, 64
  %v3043 = vpop.permute.xlu0 %3042
  %v3045 = vmul.f32 %v3038, %v3043
  %3047 = vrot.lane.b32.xlu0 %v3045, 32
  %v3048 = vpop.permute.xlu0 %3047
  %v3050 = vadd.f32 %v3040, %v3048
  %v3051 = vtanh.pop %v3050
  %3053 = vrot.lane.b32.xlu0 %v3051, 64
  %v3054 = vpop.permute.xlu0 %3053
  %v3056 = vmul.f32 %v3038, %v3054
  %v3057 = vmul.f32 %v1015, %v3056
  %v3058 = vmul.f32 %v1022, %v2952
  %v3059 = vadd.f32 %v3057, %v3058
  %v3060 = vmul.f32 %v1015, %v3050
  %v3061 = vmul.f32 %v1022, %v2955
  %v3062 = vadd.f32 %v3060, %v3061
  %v3063 = vmul.f32 %v1015, %v3059
  %3065 = vrot.lane.b32.xlu0 %v3059, 32
  %v3066 = vpop.permute.xlu0 %3065
  %v3067 = vsel %vm77, %v3066, 0
  %3069 = vmatprep.subr.mxu0 0.0
  %3070 = vmatpush1.msra.mxu0 0.0
  %3071 = vmatprep.subr.mxu0 0.0
  %3072 = vmatpush1.msra.mxu0 0.0
  %3073 = vmatprep.subr.mxu0 0.0
  %3074 = vmatpush1.msra.mxu0 0.0
  %3075 = vmatprep.subr.mxu0 0.0
  %3076 = vmatpush1.msra.mxu0 0.0
  %3077 = vmatprep.subr.mxu0 0.0
  %3078 = vmatpush1.msra.mxu0 0.0
  %3079 = vmatprep.subr.mxu0 0.0
  %3080 = vmatpush1.msra.mxu0 0.0
  %3081 = vmatprep.subr.mxu0 0.0
  %3082 = vmatpush1.msra.mxu0 0.0
  %3083 = vmatprep.subr.mxu0 0.0
  %3084 = vmatpush1.msra.mxu0 0.0
  %3085 = vmatprep.subr.mxu0 0.0
  %3086 = vmatpush1.msra.mxu0 0.0
  %3087 = vmatprep.subr.mxu0 0.0
  %3088 = vmatpush1.msra.mxu0 0.0
  %3089 = vmatprep.subr.mxu0 0.0
  %3090 = vmatpush1.msra.mxu0 0.0
  %3091 = vmatprep.subr.mxu0 0.0
  %3092 = vmatpush1.msra.mxu0 0.0
  %3093 = vmatprep.subr.mxu0 0.0
  %3094 = vmatpush1.msra.mxu0 %v2185
  %3095 = vmatprep.subr.mxu0 0.0
  %3096 = vmatpush1.msra.mxu0 %v2184
  %3097 = vmatprep.subr.mxu0 0.0
  %3098 = vmatpush1.msra.mxu0 %v2183
  %3099 = vmatprep.subr.mxu0 0.0
  %3100 = vmatpush1.msra.mxu0 %v2182
  %3101 = vmatprep.subr.mxu0 0.0
  %3102 = vmatpush2.msra.mxu0 0.0
  %3103 = vmatprep.subr.mxu0 0.0
  %3104 = vmatpush2.msra.mxu0 0.0
  %3105 = vmatprep.subr.mxu0 0.0
  %3106 = vmatpush2.msra.mxu0 0.0
  %3107 = vmatprep.subr.mxu0 0.0
  %3108 = vmatpush2.msra.mxu0 0.0
  %3109 = vmatprep.subr.mxu0 0.0
  %3110 = vmatpush2.msra.mxu0 0.0
  %3111 = vmatprep.subr.mxu0 0.0
  %3112 = vmatpush2.msra.mxu0 0.0
  %3113 = vmatprep.subr.mxu0 0.0
  %3114 = vmatpush2.msra.mxu0 0.0
  %3115 = vmatprep.subr.mxu0 0.0
  %3116 = vmatpush2.msra.mxu0 0.0
  %3117 = vmatprep.subr.mxu0 0.0
  %3118 = vmatpush2.msra.mxu0 0.0
  %3119 = vmatprep.subr.mxu0 0.0
  %3120 = vmatpush2.msra.mxu0 0.0
  %3121 = vmatprep.subr.mxu0 0.0
  %3122 = vmatpush2.msra.mxu0 0.0
  %3123 = vmatprep.subr.mxu0 0.0
  %3124 = vmatpush2.msra.mxu0 0.0
  %3125 = vmatprep.subr.mxu0 0.0
  %3126 = vmatpush2.msra.mxu0 0.0
  %3127 = vmatprep.subr.mxu0 0.0
  %3128 = vmatpush2.msra.mxu0 0.0
  %3129 = vmatprep.subr.mxu0 0.0
  %3130 = vmatpush2.msra.mxu0 0.0
  %3131 = vmatprep.subr.mxu0 0.0
  %3132 = vmatpush2.msra.mxu0 0.0
  %3133 = vmatprep.mubr.f32.mxu0 0.0
  %3134 = vmatmul.mubr.f32.gmra.mxu0 %v3067
  %v3135 = vpop.f32.mrf.mxu0
  %v3136 = vadd.f32 0.0, %v3135
  %v3137 = vpop.f32.mrf.mxu0
  %3138 = vdwg.mxu0
  %v3139 = vadd.f32 %v2319, %v3136
  %v3140 = vxor.u32 %v3139, 2147483648
  %v3141 = vmul.f32 %v3140, 1.442695
  %v3142 = vpow.pop %v3141
  %v3143 = vadd.f32 %v3142, 1.0
  %v3144 = vrcp.pop %v3143
  %v3145 = vmul.f32 1.0, %v3144
  %v3146 = vtanh.pop %v3139
  %v3147 = vmul.f32 %v3145, %v3062
  %3149 = vrot.lane.b32.xlu0 %v3146, 64
  %v3150 = vpop.permute.xlu0 %3149
  %v3152 = vmul.f32 %v3145, %v3150
  %3154 = vrot.lane.b32.xlu0 %v3152, 32
  %v3155 = vpop.permute.xlu0 %3154
  %v3157 = vadd.f32 %v3147, %v3155
  %v3158 = vtanh.pop %v3157
  %3160 = vrot.lane.b32.xlu0 %v3158, 64
  %v3161 = vpop.permute.xlu0 %3160
  %v3163 = vmul.f32 %v3145, %v3161
  %v3164 = vmul.f32 %v1133, %v3163
  %v3165 = vmul.f32 %v1140, %v3059
  %v3166 = vadd.f32 %v3164, %v3165
  %v3167 = vmul.f32 %v1133, %v3166
  %3168 = vrot.lane.b32.xlu0 %v54, 96
  %v3169 = vpop.permute.xlu0 %3168
  %3170 = vrot.lane.b32.xlu0 %v55, 96
  %v3171 = vpop.permute.xlu0 %3170
  %3172 = vrot.lane.b32.xlu0 %v56, 96
  %v3173 = vpop.permute.xlu0 %3172
  %3174 = vrot.lane.b32.xlu0 %v57, 96
  %v3175 = vpop.permute.xlu0 %3174
  %3176 = vrot.lane.b32.xlu0 %v58, 96
  %v3177 = vpop.permute.xlu0 %3176
  %3178 = vrot.lane.b32.xlu0 %v59, 96
  %v3179 = vpop.permute.xlu0 %3178
  %3180 = vrot.lane.b32.xlu0 %v60, 96
  %v3181 = vpop.permute.xlu0 %3180
  %3182 = vrot.lane.b32.xlu0 %v61, 96
  %v3183 = vpop.permute.xlu0 %3182
  %v3192 = vadd.f32 %v2421, %v3169
  %v3193 = vadd.f32 %v2528, %v3171
  %v3194 = vadd.f32 %v2635, %v3173
  %v3195 = vadd.f32 %v2742, %v3175
  %v3196 = vadd.f32 %v2849, %v3177
  %v3197 = vadd.f32 %v2956, %v3179
  %v3198 = vadd.f32 %v3063, %v3181
  %v3199 = vadd.f32 %v3167, %v3183
  %s3200 = scalar_lea.vmem %s6, 32
  %v3201 = vld [vmem:[%s3200] sm:$0xff]
  %v3202 = vld [vmem:[%s3200 + $0x8] sm:$0xff]
  %v3203 = vld [vmem:[%s3200 + $0x10] sm:$0xff]
  %v3204 = vld [vmem:[%s3200 + $0x18] sm:$0xff]
  %s3205 = scalar_lea.vmem %s7, 32
  %v3206 = vld [vmem:[%s3205] sm:$0xff]
  %v3207 = vld [vmem:[%s3205 + $0x8] sm:$0xff]
  %v3208 = vld [vmem:[%s3205 + $0x10] sm:$0xff]
  %v3209 = vld [vmem:[%s3205 + $0x18] sm:$0xff]
  %s3210 = scalar_lea.vmem %s8, 1
  %v3211 = vld [vmem:[%s3210] sm:$0x1]
  %v3213 = vlaneseq
  %v3214 = vshrl.u32 %v3213, 7
  %v3215 = vsub.s32 0, %v3214
  %v3216 = vrot.slane %v3211, %v3215
  %3226 = vrot.lane.b32.xlu0 %v3192, 32
  %v3227 = vpop.permute.xlu0 %3226
  %3228 = vrot.lane.b32.xlu0 %v3193, 32
  %v3229 = vpop.permute.xlu0 %3228
  %3230 = vrot.lane.b32.xlu0 %v3194, 32
  %v3231 = vpop.permute.xlu0 %3230
  %3232 = vrot.lane.b32.xlu0 %v3195, 32
  %v3233 = vpop.permute.xlu0 %3232
  %3234 = vrot.lane.b32.xlu0 %v3196, 32
  %v3235 = vpop.permute.xlu0 %3234
  %3236 = vrot.lane.b32.xlu0 %v3197, 32
  %v3237 = vpop.permute.xlu0 %3236
  %3238 = vrot.lane.b32.xlu0 %v3198, 32
  %v3239 = vpop.permute.xlu0 %3238
  %3240 = vrot.lane.b32.xlu0 %v3199, 32
  %v3241 = vpop.permute.xlu0 %3240
  %v3242 = vsel %vm77, %v3227, 0
  %v3244 = vsel %vm77, %v3229, 0
  %v3246 = vsel %vm77, %v3231, 0
  %v3248 = vsel %vm77, %v3233, 0
  %v3250 = vsel %vm77, %v3235, 0
  %v3252 = vsel %vm77, %v3237, 0
  %v3254 = vsel %vm77, %v3239, 0
  %v3256 = vsel %vm77, %v3241, 0
  %3258 = vmatprep.subr.mxu0 0.0
  %3259 = vmatpush1.msra.mxu0 0.0
  %3260 = vmatprep.subr.mxu0 0.0
  %3261 = vmatpush1.msra.mxu0 0.0
  %3262 = vmatprep.subr.mxu0 0.0
  %3263 = vmatpush1.msra.mxu0 0.0
  %3264 = vmatprep.subr.mxu0 0.0
  %3265 = vmatpush1.msra.mxu0 0.0
  %3266 = vmatprep.subr.mxu0 0.0
  %3267 = vmatpush1.msra.mxu0 0.0
  %3268 = vmatprep.subr.mxu0 0.0
  %3269 = vmatpush1.msra.mxu0 0.0
  %3270 = vmatprep.subr.mxu0 0.0
  %3271 = vmatpush1.msra.mxu0 0.0
  %3272 = vmatprep.subr.mxu0 0.0
  %3273 = vmatpush1.msra.mxu0 0.0
  %3274 = vmatprep.subr.mxu0 0.0
  %3275 = vmatpush1.msra.mxu0 0.0
  %3276 = vmatprep.subr.mxu0 0.0
  %3277 = vmatpush1.msra.mxu0 0.0
  %3278 = vmatprep.subr.mxu0 0.0
  %3279 = vmatpush1.msra.mxu0 0.0
  %3280 = vmatprep.subr.mxu0 0.0
  %3281 = vmatpush1.msra.mxu0 0.0
  %3282 = vmatprep.subr.mxu0 0.0
  %3283 = vmatpush1.msra.mxu0 %v3204
  %3284 = vmatprep.subr.mxu0 0.0
  %3285 = vmatpush1.msra.mxu0 %v3203
  %3286 = vmatprep.subr.mxu0 0.0
  %3287 = vmatpush1.msra.mxu0 %v3202
  %3288 = vmatprep.subr.mxu0 0.0
  %3289 = vmatpush1.msra.mxu0 %v3201
  %3290 = vmatprep.subr.mxu0 0.0
  %3291 = vmatpush2.msra.mxu0 0.0
  %3292 = vmatprep.subr.mxu0 0.0
  %3293 = vmatpush2.msra.mxu0 0.0
  %3294 = vmatprep.subr.mxu0 0.0
  %3295 = vmatpush2.msra.mxu0 0.0
  %3296 = vmatprep.subr.mxu0 0.0
  %3297 = vmatpush2.msra.mxu0 0.0
  %3298 = vmatprep.subr.mxu0 0.0
  %3299 = vmatpush2.msra.mxu0 0.0
  %3300 = vmatprep.subr.mxu0 0.0
  %3301 = vmatpush2.msra.mxu0 0.0
  %3302 = vmatprep.subr.mxu0 0.0
  %3303 = vmatpush2.msra.mxu0 0.0
  %3304 = vmatprep.subr.mxu0 0.0
  %3305 = vmatpush2.msra.mxu0 0.0
  %3306 = vmatprep.subr.mxu0 0.0
  %3307 = vmatpush2.msra.mxu0 0.0
  %3308 = vmatprep.subr.mxu0 0.0
  %3309 = vmatpush2.msra.mxu0 0.0
  %3310 = vmatprep.subr.mxu0 0.0
  %3311 = vmatpush2.msra.mxu0 0.0
  %3312 = vmatprep.subr.mxu0 0.0
  %3313 = vmatpush2.msra.mxu0 0.0
  %3314 = vmatprep.subr.mxu0 0.0
  %3315 = vmatpush2.msra.mxu0 0.0
  %3316 = vmatprep.subr.mxu0 0.0
  %3317 = vmatpush2.msra.mxu0 0.0
  %3318 = vmatprep.subr.mxu0 0.0
  %3319 = vmatpush2.msra.mxu0 0.0
  %3320 = vmatprep.subr.mxu0 0.0
  %3321 = vmatpush2.msra.mxu0 0.0
  %3322 = vmatprep.mubr.f32.mxu0 0.0
  %3323 = vmatmul.mubr.f32.gmra.mxu0 %v3242
  %v3324 = vpop.f32.mrf.mxu0
  %v3325 = vadd.f32 %v3216, %v3324
  %v3326 = vpop.f32.mrf.mxu0
  %3327 = vmatprep.mubr.f32.mxu0 0.0
  %3328 = vmatmul.mubr.f32.gmra.mxu0 %v3244
  %v3329 = vpop.f32.mrf.mxu0
  %v3330 = vadd.f32 %v3216, %v3329
  %v3331 = vpop.f32.mrf.mxu0
  %3332 = vmatprep.mubr.f32.mxu0 0.0
  %3333 = vmatmul.mubr.f32.gmra.mxu0 %v3246
  %v3334 = vpop.f32.mrf.mxu0
  %v3335 = vadd.f32 %v3216, %v3334
  %v3336 = vpop.f32.mrf.mxu0
  %3337 = vmatprep.mubr.f32.mxu0 0.0
  %3338 = vmatmul.mubr.f32.gmra.mxu0 %v3248
  %v3339 = vpop.f32.mrf.mxu0
  %v3340 = vadd.f32 %v3216, %v3339
  %v3341 = vpop.f32.mrf.mxu0
  %3342 = vmatprep.mubr.f32.mxu0 0.0
  %3343 = vmatmul.mubr.f32.gmra.mxu0 %v3250
  %v3344 = vpop.f32.mrf.mxu0
  %v3345 = vadd.f32 %v3216, %v3344
  %v3346 = vpop.f32.mrf.mxu0
  %3347 = vmatprep.mubr.f32.mxu0 0.0
  %3348 = vmatmul.mubr.f32.gmra.mxu0 %v3252
  %v3349 = vpop.f32.mrf.mxu0
  %v3350 = vadd.f32 %v3216, %v3349
  %v3351 = vpop.f32.mrf.mxu0
  %3352 = vmatprep.mubr.f32.mxu0 0.0
  %3353 = vmatmul.mubr.f32.gmra.mxu0 %v3254
  %v3354 = vpop.f32.mrf.mxu0
  %v3355 = vadd.f32 %v3216, %v3354
  %v3356 = vpop.f32.mrf.mxu0
  %3357 = vmatprep.mubr.f32.mxu0 0.0
  %3358 = vmatmul.mubr.f32.gmra.mxu0 %v3256
  %v3359 = vpop.f32.mrf.mxu0
  %v3360 = vadd.f32 %v3216, %v3359
  %v3361 = vpop.f32.mrf.mxu0
  %3362 = vdwg.mxu0
  %3363 = vmatprep.subr.mxu0 0.0
  %3364 = vmatpush1.msra.mxu0 0.0
  %3365 = vmatprep.subr.mxu0 0.0
  %3366 = vmatpush1.msra.mxu0 0.0
  %3367 = vmatprep.subr.mxu0 0.0
  %3368 = vmatpush1.msra.mxu0 0.0
  %3369 = vmatprep.subr.mxu0 0.0
  %3370 = vmatpush1.msra.mxu0 0.0
  %3371 = vmatprep.subr.mxu0 0.0
  %3372 = vmatpush1.msra.mxu0 0.0
  %3373 = vmatprep.subr.mxu0 0.0
  %3374 = vmatpush1.msra.mxu0 0.0
  %3375 = vmatprep.subr.mxu0 0.0
  %3376 = vmatpush1.msra.mxu0 0.0
  %3377 = vmatprep.subr.mxu0 0.0
  %3378 = vmatpush1.msra.mxu0 0.0
  %3379 = vmatprep.subr.mxu0 0.0
  %3380 = vmatpush1.msra.mxu0 0.0
  %3381 = vmatprep.subr.mxu0 0.0
  %3382 = vmatpush1.msra.mxu0 0.0
  %3383 = vmatprep.subr.mxu0 0.0
  %3384 = vmatpush1.msra.mxu0 0.0
  %3385 = vmatprep.subr.mxu0 0.0
  %3386 = vmatpush1.msra.mxu0 0.0
  %3387 = vmatprep.subr.mxu0 0.0
  %3388 = vmatpush1.msra.mxu0 %v3209
  %3389 = vmatprep.subr.mxu0 0.0
  %3390 = vmatpush1.msra.mxu0 %v3208
  %3391 = vmatprep.subr.mxu0 0.0
  %3392 = vmatpush1.msra.mxu0 %v3207
  %3393 = vmatprep.subr.mxu0 0.0
  %3394 = vmatpush1.msra.mxu0 %v3206
  %3395 = vmatprep.subr.mxu0 0.0
  %3396 = vmatpush2.msra.mxu0 0.0
  %3397 = vmatprep.subr.mxu0 0.0
  %3398 = vmatpush2.msra.mxu0 0.0
  %3399 = vmatprep.subr.mxu0 0.0
  %3400 = vmatpush2.msra.mxu0 0.0
  %3401 = vmatprep.subr.mxu0 0.0
  %3402 = vmatpush2.msra.mxu0 0.0
  %3403 = vmatprep.subr.mxu0 0.0
  %3404 = vmatpush2.msra.mxu0 0.0
  %3405 = vmatprep.subr.mxu0 0.0
  %3406 = vmatpush2.msra.mxu0 0.0
  %3407 = vmatprep.subr.mxu0 0.0
  %3408 = vmatpush2.msra.mxu0 0.0
  %3409 = vmatprep.subr.mxu0 0.0
  %3410 = vmatpush2.msra.mxu0 0.0
  %3411 = vmatprep.subr.mxu0 0.0
  %3412 = vmatpush2.msra.mxu0 0.0
  %3413 = vmatprep.subr.mxu0 0.0
  %3414 = vmatpush2.msra.mxu0 0.0
  %3415 = vmatprep.subr.mxu0 0.0
  %3416 = vmatpush2.msra.mxu0 0.0
  %3417 = vmatprep.subr.mxu0 0.0
  %3418 = vmatpush2.msra.mxu0 0.0
  %3419 = vmatprep.subr.mxu0 0.0
  %3420 = vmatpush2.msra.mxu0 0.0
  %3421 = vmatprep.subr.mxu0 0.0
  %3422 = vmatpush2.msra.mxu0 0.0
  %3423 = vmatprep.subr.mxu0 0.0
  %3424 = vmatpush2.msra.mxu0 0.0
  %3425 = vmatprep.subr.mxu0 0.0
  %3426 = vmatpush2.msra.mxu0 0.0
  %3427 = vmatprep.mubr.f32.mxu0 0.0
  %3428 = vmatmul.mubr.f32.gmra.mxu0 %v208
  %v3429 = vpop.f32.mrf.mxu0
  %v3430 = vadd.f32 0.0, %v3429
  %v3431 = vpop.f32.mrf.mxu0
  %3432 = vdwg.mxu0
  %v3433 = vadd.f32 %v3325, %v3430
  %v3434 = vxor.u32 %v3433, 2147483648
  %v3435 = vmul.f32 %v3434, 1.442695
  %v3436 = vpow.pop %v3435
  %v3437 = vadd.f32 %v3436, 1.0
  %v3438 = vrcp.pop %v3437
  %v3439 = vmul.f32 1.0, %v3438
  %v3440 = vtanh.pop %v3433
  %v3441 = vmul.f32 %v3439, 0.0
  %3443 = vrot.lane.b32.xlu0 %v3440, 64
  %v3444 = vpop.permute.xlu0 %3443
  %v3446 = vmul.f32 %v3439, %v3444
  %3448 = vrot.lane.b32.xlu0 %v3446, 32
  %v3449 = vpop.permute.xlu0 %3448
  %v3451 = vadd.f32 %v3441, %v3449
  %v3452 = vtanh.pop %v3451
  %3454 = vrot.lane.b32.xlu0 %v3452, 64
  %v3455 = vpop.permute.xlu0 %3454
  %v3457 = vmul.f32 %v3439, %v3455
  %v3458 = vmul.f32 %v308, %v3457
  %v3459 = vadd.f32 %v3458, %v317
  %v3460 = vmul.f32 %v308, %v3451
  %v3461 = vadd.f32 %v3460, %v317
  %3463 = vrot.lane.b32.xlu0 %v3459, 32
  %v3464 = vpop.permute.xlu0 %3463
  %v3465 = vsel %vm77, %v3464, 0
  %3467 = vmatprep.subr.mxu0 0.0
  %3468 = vmatpush1.msra.mxu0 0.0
  %3469 = vmatprep.subr.mxu0 0.0
  %3470 = vmatpush1.msra.mxu0 0.0
  %3471 = vmatprep.subr.mxu0 0.0
  %3472 = vmatpush1.msra.mxu0 0.0
  %3473 = vmatprep.subr.mxu0 0.0
  %3474 = vmatpush1.msra.mxu0 0.0
  %3475 = vmatprep.subr.mxu0 0.0
  %3476 = vmatpush1.msra.mxu0 0.0
  %3477 = vmatprep.subr.mxu0 0.0
  %3478 = vmatpush1.msra.mxu0 0.0
  %3479 = vmatprep.subr.mxu0 0.0
  %3480 = vmatpush1.msra.mxu0 0.0
  %3481 = vmatprep.subr.mxu0 0.0
  %3482 = vmatpush1.msra.mxu0 0.0
  %3483 = vmatprep.subr.mxu0 0.0
  %3484 = vmatpush1.msra.mxu0 0.0
  %3485 = vmatprep.subr.mxu0 0.0
  %3486 = vmatpush1.msra.mxu0 0.0
  %3487 = vmatprep.subr.mxu0 0.0
  %3488 = vmatpush1.msra.mxu0 0.0
  %3489 = vmatprep.subr.mxu0 0.0
  %3490 = vmatpush1.msra.mxu0 0.0
  %3491 = vmatprep.subr.mxu0 0.0
  %3492 = vmatpush1.msra.mxu0 %v3209
  %3493 = vmatprep.subr.mxu0 0.0
  %3494 = vmatpush1.msra.mxu0 %v3208
  %3495 = vmatprep.subr.mxu0 0.0
  %3496 = vmatpush1.msra.mxu0 %v3207
  %3497 = vmatprep.subr.mxu0 0.0
  %3498 = vmatpush1.msra.mxu0 %v3206
  %3499 = vmatprep.subr.mxu0 0.0
  %3500 = vmatpush2.msra.mxu0 0.0
  %3501 = vmatprep.subr.mxu0 0.0
  %3502 = vmatpush2.msra.mxu0 0.0
  %3503 = vmatprep.subr.mxu0 0.0
  %3504 = vmatpush2.msra.mxu0 0.0
  %3505 = vmatprep.subr.mxu0 0.0
  %3506 = vmatpush2.msra.mxu0 0.0
  %3507 = vmatprep.subr.mxu0 0.0
  %3508 = vmatpush2.msra.mxu0 0.0
  %3509 = vmatprep.subr.mxu0 0.0
  %3510 = vmatpush2.msra.mxu0 0.0
  %3511 = vmatprep.subr.mxu0 0.0
  %3512 = vmatpush2.msra.mxu0 0.0
  %3513 = vmatprep.subr.mxu0 0.0
  %3514 = vmatpush2.msra.mxu0 0.0
  %3515 = vmatprep.subr.mxu0 0.0
  %3516 = vmatpush2.msra.mxu0 0.0
  %3517 = vmatprep.subr.mxu0 0.0
  %3518 = vmatpush2.msra.mxu0 0.0
  %3519 = vmatprep.subr.mxu0 0.0
  %3520 = vmatpush2.msra.mxu0 0.0
  %3521 = vmatprep.subr.mxu0 0.0
  %3522 = vmatpush2.msra.mxu0 0.0
  %3523 = vmatprep.subr.mxu0 0.0
  %3524 = vmatpush2.msra.mxu0 0.0
  %3525 = vmatprep.subr.mxu0 0.0
  %3526 = vmatpush2.msra.mxu0 0.0
  %3527 = vmatprep.subr.mxu0 0.0
  %3528 = vmatpush2.msra.mxu0 0.0
  %3529 = vmatprep.subr.mxu0 0.0
  %3530 = vmatpush2.msra.mxu0 0.0
  %3531 = vmatprep.mubr.f32.mxu0 0.0
  %3532 = vmatmul.mubr.f32.gmra.mxu0 %v3465
  %v3533 = vpop.f32.mrf.mxu0
  %v3534 = vadd.f32 0.0, %v3533
  %v3535 = vpop.f32.mrf.mxu0
  %3536 = vdwg.mxu0
  %v3537 = vadd.f32 %v3330, %v3534
  %v3538 = vxor.u32 %v3537, 2147483648
  %v3539 = vmul.f32 %v3538, 1.442695
  %v3540 = vpow.pop %v3539
  %v3541 = vadd.f32 %v3540, 1.0
  %v3542 = vrcp.pop %v3541
  %v3543 = vmul.f32 1.0, %v3542
  %v3544 = vtanh.pop %v3537
  %v3545 = vmul.f32 %v3543, %v3461
  %3547 = vrot.lane.b32.xlu0 %v3544, 64
  %v3548 = vpop.permute.xlu0 %3547
  %v3550 = vmul.f32 %v3543, %v3548
  %3552 = vrot.lane.b32.xlu0 %v3550, 32
  %v3553 = vpop.permute.xlu0 %3552
  %v3555 = vadd.f32 %v3545, %v3553
  %v3556 = vtanh.pop %v3555
  %3558 = vrot.lane.b32.xlu0 %v3556, 64
  %v3559 = vpop.permute.xlu0 %3558
  %v3561 = vmul.f32 %v3543, %v3559
  %v3562 = vmul.f32 %v425, %v3561
  %v3563 = vmul.f32 %v432, %v3459
  %v3564 = vadd.f32 %v3562, %v3563
  %v3565 = vmul.f32 %v425, %v3555
  %v3566 = vmul.f32 %v432, %v3461
  %v3567 = vadd.f32 %v3565, %v3566
  %3569 = vrot.lane.b32.xlu0 %v3564, 32
  %v3570 = vpop.permute.xlu0 %3569
  %v3571 = vsel %vm77, %v3570, 0
  %3573 = vmatprep.subr.mxu0 0.0
  %3574 = vmatpush1.msra.mxu0 0.0
  %3575 = vmatprep.subr.mxu0 0.0
  %3576 = vmatpush1.msra.mxu0 0.0
  %3577 = vmatprep.subr.mxu0 0.0
  %3578 = vmatpush1.msra.mxu0 0.0
  %3579 = vmatprep.subr.mxu0 0.0
  %3580 = vmatpush1.msra.mxu0 0.0
  %3581 = vmatprep.subr.mxu0 0.0
  %3582 = vmatpush1.msra.mxu0 0.0
  %3583 = vmatprep.subr.mxu0 0.0
  %3584 = vmatpush1.msra.mxu0 0.0
  %3585 = vmatprep.subr.mxu0 0.0
  %3586 = vmatpush1.msra.mxu0 0.0
  %3587 = vmatprep.subr.mxu0 0.0
  %3588 = vmatpush1.msra.mxu0 0.0
  %3589 = vmatprep.subr.mxu0 0.0
  %3590 = vmatpush1.msra.mxu0 0.0
  %3591 = vmatprep.subr.mxu0 0.0
  %3592 = vmatpush1.msra.mxu0 0.0
  %3593 = vmatprep.subr.mxu0 0.0
  %3594 = vmatpush1.msra.mxu0 0.0
  %3595 = vmatprep.subr.mxu0 0.0
  %3596 = vmatpush1.msra.mxu0 0.0
  %3597 = vmatprep.subr.mxu0 0.0
  %3598 = vmatpush1.msra.mxu0 %v3209
  %3599 = vmatprep.subr.mxu0 0.0
  %3600 = vmatpush1.msra.mxu0 %v3208
  %3601 = vmatprep.subr.mxu0 0.0
  %3602 = vmatpush1.msra.mxu0 %v3207
  %3603 = vmatprep.subr.mxu0 0.0
  %3604 = vmatpush1.msra.mxu0 %v3206
  %3605 = vmatprep.subr.mxu0 0.0
  %3606 = vmatpush2.msra.mxu0 0.0
  %3607 = vmatprep.subr.mxu0 0.0
  %3608 = vmatpush2.msra.mxu0 0.0
  %3609 = vmatprep.subr.mxu0 0.0
  %3610 = vmatpush2.msra.mxu0 0.0
  %3611 = vmatprep.subr.mxu0 0.0
  %3612 = vmatpush2.msra.mxu0 0.0
  %3613 = vmatprep.subr.mxu0 0.0
  %3614 = vmatpush2.msra.mxu0 0.0
  %3615 = vmatprep.subr.mxu0 0.0
  %3616 = vmatpush2.msra.mxu0 0.0
  %3617 = vmatprep.subr.mxu0 0.0
  %3618 = vmatpush2.msra.mxu0 0.0
  %3619 = vmatprep.subr.mxu0 0.0
  %3620 = vmatpush2.msra.mxu0 0.0
  %3621 = vmatprep.subr.mxu0 0.0
  %3622 = vmatpush2.msra.mxu0 0.0
  %3623 = vmatprep.subr.mxu0 0.0
  %3624 = vmatpush2.msra.mxu0 0.0
  %3625 = vmatprep.subr.mxu0 0.0
  %3626 = vmatpush2.msra.mxu0 0.0
  %3627 = vmatprep.subr.mxu0 0.0
  %3628 = vmatpush2.msra.mxu0 0.0
  %3629 = vmatprep.subr.mxu0 0.0
  %3630 = vmatpush2.msra.mxu0 0.0
  %3631 = vmatprep.subr.mxu0 0.0
  %3632 = vmatpush2.msra.mxu0 0.0
  %3633 = vmatprep.subr.mxu0 0.0
  %3634 = vmatpush2.msra.mxu0 0.0
  %3635 = vmatprep.subr.mxu0 0.0
  %3636 = vmatpush2.msra.mxu0 0.0
  %3637 = vmatprep.mubr.f32.mxu0 0.0
  %3638 = vmatmul.mubr.f32.gmra.mxu0 %v3571
  %v3639 = vpop.f32.mrf.mxu0
  %v3640 = vadd.f32 0.0, %v3639
  %v3641 = vpop.f32.mrf.mxu0
  %3642 = vdwg.mxu0
  %v3643 = vadd.f32 %v3335, %v3640
  %v3644 = vxor.u32 %v3643, 2147483648
  %v3645 = vmul.f32 %v3644, 1.442695
  %v3646 = vpow.pop %v3645
  %v3647 = vadd.f32 %v3646, 1.0
  %v3648 = vrcp.pop %v3647
  %v3649 = vmul.f32 1.0, %v3648
  %v3650 = vtanh.pop %v3643
  %v3651 = vmul.f32 %v3649, %v3567
  %3653 = vrot.lane.b32.xlu0 %v3650, 64
  %v3654 = vpop.permute.xlu0 %3653
  %v3656 = vmul.f32 %v3649, %v3654
  %3658 = vrot.lane.b32.xlu0 %v3656, 32
  %v3659 = vpop.permute.xlu0 %3658
  %v3661 = vadd.f32 %v3651, %v3659
  %v3662 = vtanh.pop %v3661
  %3664 = vrot.lane.b32.xlu0 %v3662, 64
  %v3665 = vpop.permute.xlu0 %3664
  %v3667 = vmul.f32 %v3649, %v3665
  %v3668 = vmul.f32 %v543, %v3667
  %v3669 = vmul.f32 %v550, %v3564
  %v3670 = vadd.f32 %v3668, %v3669
  %v3671 = vmul.f32 %v543, %v3661
  %v3672 = vmul.f32 %v550, %v3567
  %v3673 = vadd.f32 %v3671, %v3672
  %3675 = vrot.lane.b32.xlu0 %v3670, 32
  %v3676 = vpop.permute.xlu0 %3675
  %v3677 = vsel %vm77, %v3676, 0
  %3679 = vmatprep.subr.mxu0 0.0
  %3680 = vmatpush1.msra.mxu0 0.0
  %3681 = vmatprep.subr.mxu0 0.0
  %3682 = vmatpush1.msra.mxu0 0.0
  %3683 = vmatprep.subr.mxu0 0.0
  %3684 = vmatpush1.msra.mxu0 0.0
  %3685 = vmatprep.subr.mxu0 0.0
  %3686 = vmatpush1.msra.mxu0 0.0
  %3687 = vmatprep.subr.mxu0 0.0
  %3688 = vmatpush1.msra.mxu0 0.0
  %3689 = vmatprep.subr.mxu0 0.0
  %3690 = vmatpush1.msra.mxu0 0.0
  %3691 = vmatprep.subr.mxu0 0.0
  %3692 = vmatpush1.msra.mxu0 0.0
  %3693 = vmatprep.subr.mxu0 0.0
  %3694 = vmatpush1.msra.mxu0 0.0
  %3695 = vmatprep.subr.mxu0 0.0
  %3696 = vmatpush1.msra.mxu0 0.0
  %3697 = vmatprep.subr.mxu0 0.0
  %3698 = vmatpush1.msra.mxu0 0.0
  %3699 = vmatprep.subr.mxu0 0.0
  %3700 = vmatpush1.msra.mxu0 0.0
  %3701 = vmatprep.subr.mxu0 0.0
  %3702 = vmatpush1.msra.mxu0 0.0
  %3703 = vmatprep.subr.mxu0 0.0
  %3704 = vmatpush1.msra.mxu0 %v3209
  %3705 = vmatprep.subr.mxu0 0.0
  %3706 = vmatpush1.msra.mxu0 %v3208
  %3707 = vmatprep.subr.mxu0 0.0
  %3708 = vmatpush1.msra.mxu0 %v3207
  %3709 = vmatprep.subr.mxu0 0.0
  %3710 = vmatpush1.msra.mxu0 %v3206
  %3711 = vmatprep.subr.mxu0 0.0
  %3712 = vmatpush2.msra.mxu0 0.0
  %3713 = vmatprep.subr.mxu0 0.0
  %3714 = vmatpush2.msra.mxu0 0.0
  %3715 = vmatprep.subr.mxu0 0.0
  %3716 = vmatpush2.msra.mxu0 0.0
  %3717 = vmatprep.subr.mxu0 0.0
  %3718 = vmatpush2.msra.mxu0 0.0
  %3719 = vmatprep.subr.mxu0 0.0
  %3720 = vmatpush2.msra.mxu0 0.0
  %3721 = vmatprep.subr.mxu0 0.0
  %3722 = vmatpush2.msra.mxu0 0.0
  %3723 = vmatprep.subr.mxu0 0.0
  %3724 = vmatpush2.msra.mxu0 0.0
  %3725 = vmatprep.subr.mxu0 0.0
  %3726 = vmatpush2.msra.mxu0 0.0
  %3727 = vmatprep.subr.mxu0 0.0
  %3728 = vmatpush2.msra.mxu0 0.0
  %3729 = vmatprep.subr.mxu0 0.0
  %3730 = vmatpush2.msra.mxu0 0.0
  %3731 = vmatprep.subr.mxu0 0.0
  %3732 = vmatpush2.msra.mxu0 0.0
  %3733 = vmatprep.subr.mxu0 0.0
  %3734 = vmatpush2.msra.mxu0 0.0
  %3735 = vmatprep.subr.mxu0 0.0
  %3736 = vmatpush2.msra.mxu0 0.0
  %3737 = vmatprep.subr.mxu0 0.0
  %3738 = vmatpush2.msra.mxu0 0.0
  %3739 = vmatprep.subr.mxu0 0.0
  %3740 = vmatpush2.msra.mxu0 0.0
  %3741 = vmatprep.subr.mxu0 0.0
  %3742 = vmatpush2.msra.mxu0 0.0
  %3743 = vmatprep.mubr.f32.mxu0 0.0
  %3744 = vmatmul.mubr.f32.gmra.mxu0 %v3677
  %v3745 = vpop.f32.mrf.mxu0
  %v3746 = vadd.f32 0.0, %v3745
  %v3747 = vpop.f32.mrf.mxu0
  %3748 = vdwg.mxu0
  %v3749 = vadd.f32 %v3340, %v3746
  %v3750 = vxor.u32 %v3749, 2147483648
  %v3751 = vmul.f32 %v3750, 1.442695
  %v3752 = vpow.pop %v3751
  %v3753 = vadd.f32 %v3752, 1.0
  %v3754 = vrcp.pop %v3753
  %v3755 = vmul.f32 1.0, %v3754
  %v3756 = vtanh.pop %v3749
  %v3757 = vmul.f32 %v3755, %v3673
  %3759 = vrot.lane.b32.xlu0 %v3756, 64
  %v3760 = vpop.permute.xlu0 %3759
  %v3762 = vmul.f32 %v3755, %v3760
  %3764 = vrot.lane.b32.xlu0 %v3762, 32
  %v3765 = vpop.permute.xlu0 %3764
  %v3767 = vadd.f32 %v3757, %v3765
  %v3768 = vtanh.pop %v3767
  %3770 = vrot.lane.b32.xlu0 %v3768, 64
  %v3771 = vpop.permute.xlu0 %3770
  %v3773 = vmul.f32 %v3755, %v3771
  %v3774 = vmul.f32 %v661, %v3773
  %v3775 = vmul.f32 %v668, %v3670
  %v3776 = vadd.f32 %v3774, %v3775
  %v3777 = vmul.f32 %v661, %v3767
  %v3778 = vmul.f32 %v668, %v3673
  %v3779 = vadd.f32 %v3777, %v3778
  %3781 = vrot.lane.b32.xlu0 %v3776, 32
  %v3782 = vpop.permute.xlu0 %3781
  %v3783 = vsel %vm77, %v3782, 0
  %3785 = vmatprep.subr.mxu0 0.0
  %3786 = vmatpush1.msra.mxu0 0.0
  %3787 = vmatprep.subr.mxu0 0.0
  %3788 = vmatpush1.msra.mxu0 0.0
  %3789 = vmatprep.subr.mxu0 0.0
  %3790 = vmatpush1.msra.mxu0 0.0
  %3791 = vmatprep.subr.mxu0 0.0
  %3792 = vmatpush1.msra.mxu0 0.0
  %3793 = vmatprep.subr.mxu0 0.0
  %3794 = vmatpush1.msra.mxu0 0.0
  %3795 = vmatprep.subr.mxu0 0.0
  %3796 = vmatpush1.msra.mxu0 0.0
  %3797 = vmatprep.subr.mxu0 0.0
  %3798 = vmatpush1.msra.mxu0 0.0
  %3799 = vmatprep.subr.mxu0 0.0
  %3800 = vmatpush1.msra.mxu0 0.0
  %3801 = vmatprep.subr.mxu0 0.0
  %3802 = vmatpush1.msra.mxu0 0.0
  %3803 = vmatprep.subr.mxu0 0.0
  %3804 = vmatpush1.msra.mxu0 0.0
  %3805 = vmatprep.subr.mxu0 0.0
  %3806 = vmatpush1.msra.mxu0 0.0
  %3807 = vmatprep.subr.mxu0 0.0
  %3808 = vmatpush1.msra.mxu0 0.0
  %3809 = vmatprep.subr.mxu0 0.0
  %3810 = vmatpush1.msra.mxu0 %v3209
  %3811 = vmatprep.subr.mxu0 0.0
  %3812 = vmatpush1.msra.mxu0 %v3208
  %3813 = vmatprep.subr.mxu0 0.0
  %3814 = vmatpush1.msra.mxu0 %v3207
  %3815 = vmatprep.subr.mxu0 0.0
  %3816 = vmatpush1.msra.mxu0 %v3206
  %3817 = vmatprep.subr.mxu0 0.0
  %3818 = vmatpush2.msra.mxu0 0.0
  %3819 = vmatprep.subr.mxu0 0.0
  %3820 = vmatpush2.msra.mxu0 0.0
  %3821 = vmatprep.subr.mxu0 0.0
  %3822 = vmatpush2.msra.mxu0 0.0
  %3823 = vmatprep.subr.mxu0 0.0
  %3824 = vmatpush2.msra.mxu0 0.0
  %3825 = vmatprep.subr.mxu0 0.0
  %3826 = vmatpush2.msra.mxu0 0.0
  %3827 = vmatprep.subr.mxu0 0.0
  %3828 = vmatpush2.msra.mxu0 0.0
  %3829 = vmatprep.subr.mxu0 0.0
  %3830 = vmatpush2.msra.mxu0 0.0
  %3831 = vmatprep.subr.mxu0 0.0
  %3832 = vmatpush2.msra.mxu0 0.0
  %3833 = vmatprep.subr.mxu0 0.0
  %3834 = vmatpush2.msra.mxu0 0.0
  %3835 = vmatprep.subr.mxu0 0.0
  %3836 = vmatpush2.msra.mxu0 0.0
  %3837 = vmatprep.subr.mxu0 0.0
  %3838 = vmatpush2.msra.mxu0 0.0
  %3839 = vmatprep.subr.mxu0 0.0
  %3840 = vmatpush2.msra.mxu0 0.0
  %3841 = vmatprep.subr.mxu0 0.0
  %3842 = vmatpush2.msra.mxu0 0.0
  %3843 = vmatprep.subr.mxu0 0.0
  %3844 = vmatpush2.msra.mxu0 0.0
  %3845 = vmatprep.subr.mxu0 0.0
  %3846 = vmatpush2.msra.mxu0 0.0
  %3847 = vmatprep.subr.mxu0 0.0
  %3848 = vmatpush2.msra.mxu0 0.0
  %3849 = vmatprep.mubr.f32.mxu0 0.0
  %3850 = vmatmul.mubr.f32.gmra.mxu0 %v3783
  %v3851 = vpop.f32.mrf.mxu0
  %v3852 = vadd.f32 0.0, %v3851
  %v3853 = vpop.f32.mrf.mxu0
  %3854 = vdwg.mxu0
  %v3855 = vadd.f32 %v3345, %v3852
  %v3856 = vxor.u32 %v3855, 2147483648
  %v3857 = vmul.f32 %v3856, 1.442695
  %v3858 = vpow.pop %v3857
  %v3859 = vadd.f32 %v3858, 1.0
  %v3860 = vrcp.pop %v3859
  %v3861 = vmul.f32 1.0, %v3860
  %v3862 = vtanh.pop %v3855
  %v3863 = vmul.f32 %v3861, %v3779
  %3865 = vrot.lane.b32.xlu0 %v3862, 64
  %v3866 = vpop.permute.xlu0 %3865
  %v3868 = vmul.f32 %v3861, %v3866
  %3870 = vrot.lane.b32.xlu0 %v3868, 32
  %v3871 = vpop.permute.xlu0 %3870
  %v3873 = vadd.f32 %v3863, %v3871
  %v3874 = vtanh.pop %v3873
  %3876 = vrot.lane.b32.xlu0 %v3874, 64
  %v3877 = vpop.permute.xlu0 %3876
  %v3879 = vmul.f32 %v3861, %v3877
  %v3880 = vmul.f32 %v779, %v3879
  %v3881 = vmul.f32 %v786, %v3776
  %v3882 = vadd.f32 %v3880, %v3881
  %v3883 = vmul.f32 %v779, %v3873
  %v3884 = vmul.f32 %v786, %v3779
  %v3885 = vadd.f32 %v3883, %v3884
  %3887 = vrot.lane.b32.xlu0 %v3882, 32
  %v3888 = vpop.permute.xlu0 %3887
  %v3889 = vsel %vm77, %v3888, 0
  %3891 = vmatprep.subr.mxu0 0.0
  %3892 = vmatpush1.msra.mxu0 0.0
  %3893 = vmatprep.subr.mxu0 0.0
  %3894 = vmatpush1.msra.mxu0 0.0
  %3895 = vmatprep.subr.mxu0 0.0
  %3896 = vmatpush1.msra.mxu0 0.0
  %3897 = vmatprep.subr.mxu0 0.0
  %3898 = vmatpush1.msra.mxu0 0.0
  %3899 = vmatprep.subr.mxu0 0.0
  %3900 = vmatpush1.msra.mxu0 0.0
  %3901 = vmatprep.subr.mxu0 0.0
  %3902 = vmatpush1.msra.mxu0 0.0
  %3903 = vmatprep.subr.mxu0 0.0
  %3904 = vmatpush1.msra.mxu0 0.0
  %3905 = vmatprep.subr.mxu0 0.0
  %3906 = vmatpush1.msra.mxu0 0.0
  %3907 = vmatprep.subr.mxu0 0.0
  %3908 = vmatpush1.msra.mxu0 0.0
  %3909 = vmatprep.subr.mxu0 0.0
  %3910 = vmatpush1.msra.mxu0 0.0
  %3911 = vmatprep.subr.mxu0 0.0
  %3912 = vmatpush1.msra.mxu0 0.0
  %3913 = vmatprep.subr.mxu0 0.0
  %3914 = vmatpush1.msra.mxu0 0.0
  %3915 = vmatprep.subr.mxu0 0.0
  %3916 = vmatpush1.msra.mxu0 %v3209
  %3917 = vmatprep.subr.mxu0 0.0
  %3918 = vmatpush1.msra.mxu0 %v3208
  %3919 = vmatprep.subr.mxu0 0.0
  %3920 = vmatpush1.msra.mxu0 %v3207
  %3921 = vmatprep.subr.mxu0 0.0
  %3922 = vmatpush1.msra.mxu0 %v3206
  %3923 = vmatprep.subr.mxu0 0.0
  %3924 = vmatpush2.msra.mxu0 0.0
  %3925 = vmatprep.subr.mxu0 0.0
  %3926 = vmatpush2.msra.mxu0 0.0
  %3927 = vmatprep.subr.mxu0 0.0
  %3928 = vmatpush2.msra.mxu0 0.0
  %3929 = vmatprep.subr.mxu0 0.0
  %3930 = vmatpush2.msra.mxu0 0.0
  %3931 = vmatprep.subr.mxu0 0.0
  %3932 = vmatpush2.msra.mxu0 0.0
  %3933 = vmatprep.subr.mxu0 0.0
  %3934 = vmatpush2.msra.mxu0 0.0
  %3935 = vmatprep.subr.mxu0 0.0
  %3936 = vmatpush2.msra.mxu0 0.0
  %3937 = vmatprep.subr.mxu0 0.0
  %3938 = vmatpush2.msra.mxu0 0.0
  %3939 = vmatprep.subr.mxu0 0.0
  %3940 = vmatpush2.msra.mxu0 0.0
  %3941 = vmatprep.subr.mxu0 0.0
  %3942 = vmatpush2.msra.mxu0 0.0
  %3943 = vmatprep.subr.mxu0 0.0
  %3944 = vmatpush2.msra.mxu0 0.0
  %3945 = vmatprep.subr.mxu0 0.0
  %3946 = vmatpush2.msra.mxu0 0.0
  %3947 = vmatprep.subr.mxu0 0.0
  %3948 = vmatpush2.msra.mxu0 0.0
  %3949 = vmatprep.subr.mxu0 0.0
  %3950 = vmatpush2.msra.mxu0 0.0
  %3951 = vmatprep.subr.mxu0 0.0
  %3952 = vmatpush2.msra.mxu0 0.0
  %3953 = vmatprep.subr.mxu0 0.0
  %3954 = vmatpush2.msra.mxu0 0.0
  %3955 = vmatprep.mubr.f32.mxu0 0.0
  %3956 = vmatmul.mubr.f32.gmra.mxu0 %v3889
  %v3957 = vpop.f32.mrf.mxu0
  %v3958 = vadd.f32 0.0, %v3957
  %v3959 = vpop.f32.mrf.mxu0
  %3960 = vdwg.mxu0
  %v3961 = vadd.f32 %v3350, %v3958
  %v3962 = vxor.u32 %v3961, 2147483648
  %v3963 = vmul.f32 %v3962, 1.442695
  %v3964 = vpow.pop %v3963
  %v3965 = vadd.f32 %v3964, 1.0
  %v3966 = vrcp.pop %v3965
  %v3967 = vmul.f32 1.0, %v3966
  %v3968 = vtanh.pop %v3961
  %v3969 = vmul.f32 %v3967, %v3885
  %3971 = vrot.lane.b32.xlu0 %v3968, 64
  %v3972 = vpop.permute.xlu0 %3971
  %v3974 = vmul.f32 %v3967, %v3972
  %3976 = vrot.lane.b32.xlu0 %v3974, 32
  %v3977 = vpop.permute.xlu0 %3976
  %v3979 = vadd.f32 %v3969, %v3977
  %v3980 = vtanh.pop %v3979
  %3982 = vrot.lane.b32.xlu0 %v3980, 64
  %v3983 = vpop.permute.xlu0 %3982
  %v3985 = vmul.f32 %v3967, %v3983
  %v3986 = vmul.f32 %v897, %v3985
  %v3987 = vmul.f32 %v904, %v3882
  %v3988 = vadd.f32 %v3986, %v3987
  %v3989 = vmul.f32 %v897, %v3979
  %v3990 = vmul.f32 %v904, %v3885
  %v3991 = vadd.f32 %v3989, %v3990
  %3993 = vrot.lane.b32.xlu0 %v3988, 32
  %v3994 = vpop.permute.xlu0 %3993
  %v3995 = vsel %vm77, %v3994, 0
  %3997 = vmatprep.subr.mxu0 0.0
  %3998 = vmatpush1.msra.mxu0 0.0
  %3999 = vmatprep.subr.mxu0 0.0
  %4000 = vmatpush1.msra.mxu0 0.0
  %4001 = vmatprep.subr.mxu0 0.0
  %4002 = vmatpush1.msra.mxu0 0.0
  %4003 = vmatprep.subr.mxu0 0.0
  %4004 = vmatpush1.msra.mxu0 0.0
  %4005 = vmatprep.subr.mxu0 0.0
  %4006 = vmatpush1.msra.mxu0 0.0
  %4007 = vmatprep.subr.mxu0 0.0
  %4008 = vmatpush1.msra.mxu0 0.0
  %4009 = vmatprep.subr.mxu0 0.0
  %4010 = vmatpush1.msra.mxu0 0.0
  %4011 = vmatprep.subr.mxu0 0.0
  %4012 = vmatpush1.msra.mxu0 0.0
  %4013 = vmatprep.subr.mxu0 0.0
  %4014 = vmatpush1.msra.mxu0 0.0
  %4015 = vmatprep.subr.mxu0 0.0
  %4016 = vmatpush1.msra.mxu0 0.0
  %4017 = vmatprep.subr.mxu0 0.0
  %4018 = vmatpush1.msra.mxu0 0.0
  %4019 = vmatprep.subr.mxu0 0.0
  %4020 = vmatpush1.msra.mxu0 0.0
  %4021 = vmatprep.subr.mxu0 0.0
  %4022 = vmatpush1.msra.mxu0 %v3209
  %4023 = vmatprep.subr.mxu0 0.0
  %4024 = vmatpush1.msra.mxu0 %v3208
  %4025 = vmatprep.subr.mxu0 0.0
  %4026 = vmatpush1.msra.mxu0 %v3207
  %4027 = vmatprep.subr.mxu0 0.0
  %4028 = vmatpush1.msra.mxu0 %v3206
  %4029 = vmatprep.subr.mxu0 0.0
  %4030 = vmatpush2.msra.mxu0 0.0
  %4031 = vmatprep.subr.mxu0 0.0
  %4032 = vmatpush2.msra.mxu0 0.0
  %4033 = vmatprep.subr.mxu0 0.0
  %4034 = vmatpush2.msra.mxu0 0.0
  %4035 = vmatprep.subr.mxu0 0.0
  %4036 = vmatpush2.msra.mxu0 0.0
  %4037 = vmatprep.subr.mxu0 0.0
  %4038 = vmatpush2.msra.mxu0 0.0
  %4039 = vmatprep.subr.mxu0 0.0
  %4040 = vmatpush2.msra.mxu0 0.0
  %4041 = vmatprep.subr.mxu0 0.0
  %4042 = vmatpush2.msra.mxu0 0.0
  %4043 = vmatprep.subr.mxu0 0.0
  %4044 = vmatpush2.msra.mxu0 0.0
  %4045 = vmatprep.subr.mxu0 0.0
  %4046 = vmatpush2.msra.mxu0 0.0
  %4047 = vmatprep.subr.mxu0 0.0
  %4048 = vmatpush2.msra.mxu0 0.0
  %4049 = vmatprep.subr.mxu0 0.0
  %4050 = vmatpush2.msra.mxu0 0.0
  %4051 = vmatprep.subr.mxu0 0.0
  %4052 = vmatpush2.msra.mxu0 0.0
  %4053 = vmatprep.subr.mxu0 0.0
  %4054 = vmatpush2.msra.mxu0 0.0
  %4055 = vmatprep.subr.mxu0 0.0
  %4056 = vmatpush2.msra.mxu0 0.0
  %4057 = vmatprep.subr.mxu0 0.0
  %4058 = vmatpush2.msra.mxu0 0.0
  %4059 = vmatprep.subr.mxu0 0.0
  %4060 = vmatpush2.msra.mxu0 0.0
  %4061 = vmatprep.mubr.f32.mxu0 0.0
  %4062 = vmatmul.mubr.f32.gmra.mxu0 %v3995
  %v4063 = vpop.f32.mrf.mxu0
  %v4064 = vadd.f32 0.0, %v4063
  %v4065 = vpop.f32.mrf.mxu0
  %4066 = vdwg.mxu0
  %v4067 = vadd.f32 %v3355, %v4064
  %v4068 = vxor.u32 %v4067, 2147483648
  %v4069 = vmul.f32 %v4068, 1.442695
  %v4070 = vpow.pop %v4069
  %v4071 = vadd.f32 %v4070, 1.0
  %v4072 = vrcp.pop %v4071
  %v4073 = vmul.f32 1.0, %v4072
  %v4074 = vtanh.pop %v4067
  %v4075 = vmul.f32 %v4073, %v3991
  %4077 = vrot.lane.b32.xlu0 %v4074, 64
  %v4078 = vpop.permute.xlu0 %4077
  %v4080 = vmul.f32 %v4073, %v4078
  %4082 = vrot.lane.b32.xlu0 %v4080, 32
  %v4083 = vpop.permute.xlu0 %4082
  %v4085 = vadd.f32 %v4075, %v4083
  %v4086 = vtanh.pop %v4085
  %4088 = vrot.lane.b32.xlu0 %v4086, 64
  %v4089 = vpop.permute.xlu0 %4088
  %v4091 = vmul.f32 %v4073, %v4089
  %v4092 = vmul.f32 %v1015, %v4091
  %v4093 = vmul.f32 %v1022, %v3988
  %v4094 = vadd.f32 %v4092, %v4093
  %v4095 = vmul.f32 %v1015, %v4085
  %v4096 = vmul.f32 %v1022, %v3991
  %v4097 = vadd.f32 %v4095, %v4096
  %4099 = vrot.lane.b32.xlu0 %v4094, 32
  %v4100 = vpop.permute.xlu0 %4099
  %v4101 = vsel %vm77, %v4100, 0
  %4103 = vmatprep.subr.mxu0 0.0
  %4104 = vmatpush1.msra.mxu0 0.0
  %4105 = vmatprep.subr.mxu0 0.0
  %4106 = vmatpush1.msra.mxu0 0.0
  %4107 = vmatprep.subr.mxu0 0.0
  %4108 = vmatpush1.msra.mxu0 0.0
  %4109 = vmatprep.subr.mxu0 0.0
  %4110 = vmatpush1.msra.mxu0 0.0
  %4111 = vmatprep.subr.mxu0 0.0
  %4112 = vmatpush1.msra.mxu0 0.0
  %4113 = vmatprep.subr.mxu0 0.0
  %4114 = vmatpush1.msra.mxu0 0.0
  %4115 = vmatprep.subr.mxu0 0.0
  %4116 = vmatpush1.msra.mxu0 0.0
  %4117 = vmatprep.subr.mxu0 0.0
  %4118 = vmatpush1.msra.mxu0 0.0
  %4119 = vmatprep.subr.mxu0 0.0
  %4120 = vmatpush1.msra.mxu0 0.0
  %4121 = vmatprep.subr.mxu0 0.0
  %4122 = vmatpush1.msra.mxu0 0.0
  %4123 = vmatprep.subr.mxu0 0.0
  %4124 = vmatpush1.msra.mxu0 0.0
  %4125 = vmatprep.subr.mxu0 0.0
  %4126 = vmatpush1.msra.mxu0 0.0
  %4127 = vmatprep.subr.mxu0 0.0
  %4128 = vmatpush1.msra.mxu0 %v3209
  %4129 = vmatprep.subr.mxu0 0.0
  %4130 = vmatpush1.msra.mxu0 %v3208
  %4131 = vmatprep.subr.mxu0 0.0
  %4132 = vmatpush1.msra.mxu0 %v3207
  %4133 = vmatprep.subr.mxu0 0.0
  %4134 = vmatpush1.msra.mxu0 %v3206
  %4135 = vmatprep.subr.mxu0 0.0
  %4136 = vmatpush2.msra.mxu0 0.0
  %4137 = vmatprep.subr.mxu0 0.0
  %4138 = vmatpush2.msra.mxu0 0.0
  %4139 = vmatprep.subr.mxu0 0.0
  %4140 = vmatpush2.msra.mxu0 0.0
  %4141 = vmatprep.subr.mxu0 0.0
  %4142 = vmatpush2.msra.mxu0 0.0
  %4143 = vmatprep.subr.mxu0 0.0
  %4144 = vmatpush2.msra.mxu0 0.0
  %4145 = vmatprep.subr.mxu0 0.0
  %4146 = vmatpush2.msra.mxu0 0.0
  %4147 = vmatprep.subr.mxu0 0.0
  %4148 = vmatpush2.msra.mxu0 0.0
  %4149 = vmatprep.subr.mxu0 0.0
  %4150 = vmatpush2.msra.mxu0 0.0
  %4151 = vmatprep.subr.mxu0 0.0
  %4152 = vmatpush2.msra.mxu0 0.0
  %4153 = vmatprep.subr.mxu0 0.0
  %4154 = vmatpush2.msra.mxu0 0.0
  %4155 = vmatprep.subr.mxu0 0.0
  %4156 = vmatpush2.msra.mxu0 0.0
  %4157 = vmatprep.subr.mxu0 0.0
  %4158 = vmatpush2.msra.mxu0 0.0
  %4159 = vmatprep.subr.mxu0 0.0
  %4160 = vmatpush2.msra.mxu0 0.0
  %4161 = vmatprep.subr.mxu0 0.0
  %4162 = vmatpush2.msra.mxu0 0.0
  %4163 = vmatprep.subr.mxu0 0.0
  %4164 = vmatpush2.msra.mxu0 0.0
  %4165 = vmatprep.subr.mxu0 0.0
  %4166 = vmatpush2.msra.mxu0 0.0
  %4167 = vmatprep.mubr.f32.mxu0 0.0
  %4168 = vmatmul.mubr.f32.gmra.mxu0 %v4101
  %v4169 = vpop.f32.mrf.mxu0
  %v4170 = vadd.f32 0.0, %v4169
  %v4171 = vpop.f32.mrf.mxu0
  %4172 = vdwg.mxu0
  %v4173 = vadd.f32 %v3360, %v4170
  %v4174 = vxor.u32 %v4173, 2147483648
  %v4175 = vmul.f32 %v4174, 1.442695
  %v4176 = vpow.pop %v4175
  %v4177 = vadd.f32 %v4176, 1.0
  %v4178 = vrcp.pop %v4177
  %v4179 = vmul.f32 1.0, %v4178
  %v4180 = vtanh.pop %v4173
  %v4181 = vmul.f32 %v4179, %v4097
  %4183 = vrot.lane.b32.xlu0 %v4180, 64
  %v4184 = vpop.permute.xlu0 %4183
  %v4186 = vmul.f32 %v4179, %v4184
  %4188 = vrot.lane.b32.xlu0 %v4186, 32
  %v4189 = vpop.permute.xlu0 %4188
  %v4191 = vadd.f32 %v4181, %v4189
  %v4192 = vtanh.pop %v4191
  %4194 = vrot.lane.b32.xlu0 %v4192, 64
  %v4195 = vpop.permute.xlu0 %4194
  %v4197 = vmul.f32 %v4179, %v4195
  %v4198 = vmul.f32 %v1133, %v4197
  %v4199 = vmul.f32 %v1140, %v4094
  %v4200 = vadd.f32 %v4198, %v4199
  %v4201 = vld [vmem:[%s9] sm:$0xff]
  %v4202 = vld [vmem:[%s9 + $0x8] sm:$0xff]
  %v4203 = vld [vmem:[%s9 + $0x10] sm:$0xff]
  %v4204 = vld [vmem:[%s9 + $0x18] sm:$0xff]
  %v4205 = vld [vmem:[%s9 + $0x20] sm:$0xff]
  %v4206 = vld [vmem:[%s9 + $0x28] sm:$0xff]
  %v4207 = vld [vmem:[%s9 + $0x30] sm:$0xff]
  %v4208 = vld [vmem:[%s9 + $0x38] sm:$0xff]
  %v4209 = vld [vmem:[%s9 + $0x40] sm:$0xff]
  %v4210 = vld [vmem:[%s9 + $0x48] sm:$0xff]
  %v4211 = vld [vmem:[%s9 + $0x50] sm:$0xff]
  %v4212 = vld [vmem:[%s9 + $0x58] sm:$0xff]
  %v4213 = vld [vmem:[%s9 + $0x60] sm:$0xff]
  %v4214 = vld [vmem:[%s9 + $0x68] sm:$0xff]
  %v4215 = vld [vmem:[%s9 + $0x70] sm:$0xff]
  %v4216 = vld [vmem:[%s9 + $0x78] sm:$0xff]
  %4218 = vrot.lane.b32.xlu0 %v2177, 32
  %v4219 = vpop.permute.xlu0 %4218
  %v4220 = vsel %vm77, %v4219, 0
  %4222 = vmatprep.subr.mxu0 0.0
  %4223 = vmatpush1.msra.mxu0 0.0
  %4224 = vmatprep.subr.mxu0 0.0
  %4225 = vmatpush1.msra.mxu0 0.0
  %4226 = vmatprep.subr.mxu0 0.0
  %4227 = vmatpush1.msra.mxu0 0.0
  %4228 = vmatprep.subr.mxu0 0.0
  %4229 = vmatpush1.msra.mxu0 0.0
  %4230 = vmatprep.subr.mxu0 0.0
  %4231 = vmatpush1.msra.mxu0 0.0
  %4232 = vmatprep.subr.mxu0 0.0
  %4233 = vmatpush1.msra.mxu0 0.0
  %4234 = vmatprep.subr.mxu0 0.0
  %4235 = vmatpush1.msra.mxu0 0.0
  %4236 = vmatprep.subr.mxu0 0.0
  %4237 = vmatpush1.msra.mxu0 0.0
  %4238 = vmatprep.subr.mxu0 0.0
  %4239 = vmatpush1.msra.mxu0 0.0
  %4240 = vmatprep.subr.mxu0 0.0
  %4241 = vmatpush1.msra.mxu0 0.0
  %4242 = vmatprep.subr.mxu0 0.0
  %4243 = vmatpush1.msra.mxu0 0.0
  %4244 = vmatprep.subr.mxu0 0.0
  %4245 = vmatpush1.msra.mxu0 0.0
  %4246 = vmatprep.subr.mxu0 0.0
  %4247 = vmatpush1.msra.mxu0 %v4208
  %4248 = vmatprep.subr.mxu0 0.0
  %4249 = vmatpush1.msra.mxu0 %v4207
  %4250 = vmatprep.subr.mxu0 0.0
  %4251 = vmatpush1.msra.mxu0 %v4206
  %4252 = vmatprep.subr.mxu0 0.0
  %4253 = vmatpush1.msra.mxu0 %v4205
  %4254 = vmatprep.subr.mxu0 0.0
  %4255 = vmatpush2.msra.mxu0 0.0
  %4256 = vmatprep.subr.mxu0 0.0
  %4257 = vmatpush2.msra.mxu0 0.0
  %4258 = vmatprep.subr.mxu0 0.0
  %4259 = vmatpush2.msra.mxu0 0.0
  %4260 = vmatprep.subr.mxu0 0.0
  %4261 = vmatpush2.msra.mxu0 0.0
  %4262 = vmatprep.subr.mxu0 0.0
  %4263 = vmatpush2.msra.mxu0 0.0
  %4264 = vmatprep.subr.mxu0 0.0
  %4265 = vmatpush2.msra.mxu0 0.0
  %4266 = vmatprep.subr.mxu0 0.0
  %4267 = vmatpush2.msra.mxu0 0.0
  %4268 = vmatprep.subr.mxu0 0.0
  %4269 = vmatpush2.msra.mxu0 0.0
  %4270 = vmatprep.subr.mxu0 0.0
  %4271 = vmatpush2.msra.mxu0 0.0
  %4272 = vmatprep.subr.mxu0 0.0
  %4273 = vmatpush2.msra.mxu0 0.0
  %4274 = vmatprep.subr.mxu0 0.0
  %4275 = vmatpush2.msra.mxu0 0.0
  %4276 = vmatprep.subr.mxu0 0.0
  %4277 = vmatpush2.msra.mxu0 0.0
  %4278 = vmatprep.subr.mxu0 0.0
  %4279 = vmatpush2.msra.mxu0 0.0
  %4280 = vmatprep.subr.mxu0 0.0
  %4281 = vmatpush2.msra.mxu0 0.0
  %4282 = vmatprep.subr.mxu0 0.0
  %4283 = vmatpush2.msra.mxu0 0.0
  %4284 = vmatprep.subr.mxu0 0.0
  %4285 = vmatpush2.msra.mxu0 0.0
  %4286 = vmatprep.mubr.f32.mxu0 0.0
  %4287 = vmatmul.mubr.f32.gmra.mxu0 %v4220
  %v4288 = vpop.f32.mrf.mxu0
  %v4289 = vadd.f32 0.0, %v4288
  %v4290 = vpop.f32.mrf.mxu0
  %4291 = vdwg.mxu0
  %4292 = vmatprep.subr.mxu0 0.0
  %4293 = vmatpush1.msra.mxu0 0.0
  %4294 = vmatprep.subr.mxu0 0.0
  %4295 = vmatpush1.msra.mxu0 0.0
  %4296 = vmatprep.subr.mxu0 0.0
  %4297 = vmatpush1.msra.mxu0 0.0
  %4298 = vmatprep.subr.mxu0 0.0
  %4299 = vmatpush1.msra.mxu0 0.0
  %4300 = vmatprep.subr.mxu0 0.0
  %4301 = vmatpush1.msra.mxu0 0.0
  %4302 = vmatprep.subr.mxu0 0.0
  %4303 = vmatpush1.msra.mxu0 0.0
  %4304 = vmatprep.subr.mxu0 0.0
  %4305 = vmatpush1.msra.mxu0 0.0
  %4306 = vmatprep.subr.mxu0 0.0
  %4307 = vmatpush1.msra.mxu0 0.0
  %4308 = vmatprep.subr.mxu0 0.0
  %4309 = vmatpush1.msra.mxu0 0.0
  %4310 = vmatprep.subr.mxu0 0.0
  %4311 = vmatpush1.msra.mxu0 0.0
  %4312 = vmatprep.subr.mxu0 0.0
  %4313 = vmatpush1.msra.mxu0 0.0
  %4314 = vmatprep.subr.mxu0 0.0
  %4315 = vmatpush1.msra.mxu0 0.0
  %4316 = vmatprep.subr.mxu0 0.0
  %4317 = vmatpush1.msra.mxu0 %v4204
  %4318 = vmatprep.subr.mxu0 0.0
  %4319 = vmatpush1.msra.mxu0 %v4203
  %4320 = vmatprep.subr.mxu0 0.0
  %4321 = vmatpush1.msra.mxu0 %v4202
  %4322 = vmatprep.subr.mxu0 0.0
  %4323 = vmatpush1.msra.mxu0 %v4201
  %4324 = vmatprep.subr.mxu0 0.0
  %4325 = vmatpush2.msra.mxu0 0.0
  %4326 = vmatprep.subr.mxu0 0.0
  %4327 = vmatpush2.msra.mxu0 0.0
  %4328 = vmatprep.subr.mxu0 0.0
  %4329 = vmatpush2.msra.mxu0 0.0
  %4330 = vmatprep.subr.mxu0 0.0
  %4331 = vmatpush2.msra.mxu0 0.0
  %4332 = vmatprep.subr.mxu0 0.0
  %4333 = vmatpush2.msra.mxu0 0.0
  %4334 = vmatprep.subr.mxu0 0.0
  %4335 = vmatpush2.msra.mxu0 0.0
  %4336 = vmatprep.subr.mxu0 0.0
  %4337 = vmatpush2.msra.mxu0 0.0
  %4338 = vmatprep.subr.mxu0 0.0
  %4339 = vmatpush2.msra.mxu0 0.0
  %4340 = vmatprep.subr.mxu0 0.0
  %4341 = vmatpush2.msra.mxu0 0.0
  %4342 = vmatprep.subr.mxu0 0.0
  %4343 = vmatpush2.msra.mxu0 0.0
  %4344 = vmatprep.subr.mxu0 0.0
  %4345 = vmatpush2.msra.mxu0 0.0
  %4346 = vmatprep.subr.mxu0 0.0
  %4347 = vmatpush2.msra.mxu0 0.0
  %4348 = vmatprep.subr.mxu0 0.0
  %4349 = vmatpush2.msra.mxu0 0.0
  %4350 = vmatprep.subr.mxu0 0.0
  %4351 = vmatpush2.msra.mxu0 0.0
  %4352 = vmatprep.subr.mxu0 0.0
  %4353 = vmatpush2.msra.mxu0 0.0
  %4354 = vmatprep.subr.mxu0 0.0
  %4355 = vmatpush2.msra.mxu0 0.0
  %4356 = vmatprep.mubr.f32.mxu0 0.0
  %4357 = vmatmul.mubr.f32.gmra.mxu0 %v79
  %v4358 = vpop.f32.mrf.mxu0
  %v4359 = vadd.f32 %v4289, %v4358
  %v4360 = vpop.f32.mrf.mxu0
  %4361 = vdwg.mxu0
  %4363 = vrot.lane.b32.xlu0 %v4200, 32
  %v4364 = vpop.permute.xlu0 %4363
  %v4365 = vsel %vm77, %v4364, 0
  %4367 = vmatprep.subr.mxu0 0.0
  %4368 = vmatpush1.msra.mxu0 0.0
  %4369 = vmatprep.subr.mxu0 0.0
  %4370 = vmatpush1.msra.mxu0 0.0
  %4371 = vmatprep.subr.mxu0 0.0
  %4372 = vmatpush1.msra.mxu0 0.0
  %4373 = vmatprep.subr.mxu0 0.0
  %4374 = vmatpush1.msra.mxu0 0.0
  %4375 = vmatprep.subr.mxu0 0.0
  %4376 = vmatpush1.msra.mxu0 0.0
  %4377 = vmatprep.subr.mxu0 0.0
  %4378 = vmatpush1.msra.mxu0 0.0
  %4379 = vmatprep.subr.mxu0 0.0
  %4380 = vmatpush1.msra.mxu0 0.0
  %4381 = vmatprep.subr.mxu0 0.0
  %4382 = vmatpush1.msra.mxu0 0.0
  %4383 = vmatprep.subr.mxu0 0.0
  %4384 = vmatpush1.msra.mxu0 0.0
  %4385 = vmatprep.subr.mxu0 0.0
  %4386 = vmatpush1.msra.mxu0 0.0
  %4387 = vmatprep.subr.mxu0 0.0
  %4388 = vmatpush1.msra.mxu0 0.0
  %4389 = vmatprep.subr.mxu0 0.0
  %4390 = vmatpush1.msra.mxu0 0.0
  %4391 = vmatprep.subr.mxu0 0.0
  %4392 = vmatpush1.msra.mxu0 %v4212
  %4393 = vmatprep.subr.mxu0 0.0
  %4394 = vmatpush1.msra.mxu0 %v4211
  %4395 = vmatprep.subr.mxu0 0.0
  %4396 = vmatpush1.msra.mxu0 %v4210
  %4397 = vmatprep.subr.mxu0 0.0
  %4398 = vmatpush1.msra.mxu0 %v4209
  %4399 = vmatprep.subr.mxu0 0.0
  %4400 = vmatpush2.msra.mxu0 0.0
  %4401 = vmatprep.subr.mxu0 0.0
  %4402 = vmatpush2.msra.mxu0 0.0
  %4403 = vmatprep.subr.mxu0 0.0
  %4404 = vmatpush2.msra.mxu0 0.0
  %4405 = vmatprep.subr.mxu0 0.0
  %4406 = vmatpush2.msra.mxu0 0.0
  %4407 = vmatprep.subr.mxu0 0.0
  %4408 = vmatpush2.msra.mxu0 0.0
  %4409 = vmatprep.subr.mxu0 0.0
  %4410 = vmatpush2.msra.mxu0 0.0
  %4411 = vmatprep.subr.mxu0 0.0
  %4412 = vmatpush2.msra.mxu0 0.0
  %4413 = vmatprep.subr.mxu0 0.0
  %4414 = vmatpush2.msra.mxu0 0.0
  %4415 = vmatprep.subr.mxu0 0.0
  %4416 = vmatpush2.msra.mxu0 0.0
  %4417 = vmatprep.subr.mxu0 0.0
  %4418 = vmatpush2.msra.mxu0 0.0
  %4419 = vmatprep.subr.mxu0 0.0
  %4420 = vmatpush2.msra.mxu0 0.0
  %4421 = vmatprep.subr.mxu0 0.0
  %4422 = vmatpush2.msra.mxu0 0.0
  %4423 = vmatprep.subr.mxu0 0.0
  %4424 = vmatpush2.msra.mxu0 0.0
  %4425 = vmatprep.subr.mxu0 0.0
  %4426 = vmatpush2.msra.mxu0 0.0
  %4427 = vmatprep.subr.mxu0 0.0
  %4428 = vmatpush2.msra.mxu0 0.0
  %4429 = vmatprep.subr.mxu0 0.0
  %4430 = vmatpush2.msra.mxu0 0.0
  %4431 = vmatprep.mubr.f32.mxu0 0.0
  %4432 = vmatmul.mubr.f32.gmra.mxu0 %v4365
  %v4433 = vpop.f32.mrf.mxu0
  %v4434 = vadd.f32 0.0, %v4433
  %v4435 = vpop.f32.mrf.mxu0
  %4436 = vdwg.mxu0
  %v4437 = vadd.f32 %v4359, %v4434
  %4438 = vmatprep.subr.mxu0 0.0
  %4439 = vmatpush1.msra.mxu0 0.0
  %4440 = vmatprep.subr.mxu0 0.0
  %4441 = vmatpush1.msra.mxu0 0.0
  %4442 = vmatprep.subr.mxu0 0.0
  %4443 = vmatpush1.msra.mxu0 0.0
  %4444 = vmatprep.subr.mxu0 0.0
  %4445 = vmatpush1.msra.mxu0 0.0
  %4446 = vmatprep.subr.mxu0 0.0
  %4447 = vmatpush1.msra.mxu0 0.0
  %4448 = vmatprep.subr.mxu0 0.0
  %4449 = vmatpush1.msra.mxu0 0.0
  %4450 = vmatprep.subr.mxu0 0.0
  %4451 = vmatpush1.msra.mxu0 0.0
  %4452 = vmatprep.subr.mxu0 0.0
  %4453 = vmatpush1.msra.mxu0 0.0
  %4454 = vmatprep.subr.mxu0 0.0
  %4455 = vmatpush1.msra.mxu0 0.0
  %4456 = vmatprep.subr.mxu0 0.0
  %4457 = vmatpush1.msra.mxu0 0.0
  %4458 = vmatprep.subr.mxu0 0.0
  %4459 = vmatpush1.msra.mxu0 0.0
  %4460 = vmatprep.subr.mxu0 0.0
  %4461 = vmatpush1.msra.mxu0 0.0
  %4462 = vmatprep.subr.mxu0 0.0
  %4463 = vmatpush1.msra.mxu0 %v4216
  %4464 = vmatprep.subr.mxu0 0.0
  %4465 = vmatpush1.msra.mxu0 %v4215
  %4466 = vmatprep.subr.mxu0 0.0
  %4467 = vmatpush1.msra.mxu0 %v4214
  %4468 = vmatprep.subr.mxu0 0.0
  %4469 = vmatpush1.msra.mxu0 %v4213
  %4470 = vmatprep.subr.mxu0 0.0
  %4471 = vmatpush2.msra.mxu0 0.0
  %4472 = vmatprep.subr.mxu0 0.0
  %4473 = vmatpush2.msra.mxu0 0.0
  %4474 = vmatprep.subr.mxu0 0.0
  %4475 = vmatpush2.msra.mxu0 0.0
  %4476 = vmatprep.subr.mxu0 0.0
  %4477 = vmatpush2.msra.mxu0 0.0
  %4478 = vmatprep.subr.mxu0 0.0
  %4479 = vmatpush2.msra.mxu0 0.0
  %4480 = vmatprep.subr.mxu0 0.0
  %4481 = vmatpush2.msra.mxu0 0.0
  %4482 = vmatprep.subr.mxu0 0.0
  %4483 = vmatpush2.msra.mxu0 0.0
  %4484 = vmatprep.subr.mxu0 0.0
  %4485 = vmatpush2.msra.mxu0 0.0
  %4486 = vmatprep.subr.mxu0 0.0
  %4487 = vmatpush2.msra.mxu0 0.0
  %4488 = vmatprep.subr.mxu0 0.0
  %4489 = vmatpush2.msra.mxu0 0.0
  %4490 = vmatprep.subr.mxu0 0.0
  %4491 = vmatpush2.msra.mxu0 0.0
  %4492 = vmatprep.subr.mxu0 0.0
  %4493 = vmatpush2.msra.mxu0 0.0
  %4494 = vmatprep.subr.mxu0 0.0
  %4495 = vmatpush2.msra.mxu0 0.0
  %4496 = vmatprep.subr.mxu0 0.0
  %4497 = vmatpush2.msra.mxu0 0.0
  %4498 = vmatprep.subr.mxu0 0.0
  %4499 = vmatpush2.msra.mxu0 0.0
  %4500 = vmatprep.subr.mxu0 0.0
  %4501 = vmatpush2.msra.mxu0 0.0
  %4502 = vmatprep.mubr.f32.mxu0 0.0
  %4503 = vmatmul.mubr.f32.gmra.mxu0 %v2194
  %v4504 = vpop.f32.mrf.mxu0
  %v4505 = vadd.f32 0.0, %v4504
  %v4506 = vpop.f32.mrf.mxu0
  %4507 = vdwg.mxu0
  %v4508 = vadd.f32 %v4437, %v4505
  %v4509 = vld [vmem:[%s10] sm:$0x1]
  %v4511 = vlaneseq
  %v4512 = vshrl.u32 %v4511, 7
  %v4513 = vsub.s32 0, %v4512
  %v4514 = vrot.slane %v4509, %v4513
  %v4516 = vadd.f32 %v4508, %v4514
  %v4517 = vtanh.pop %v4516
  %4518 = vst.msk [vmem:[%s11] sm:$0xff] %vm77, %v4517
  // Predicated region
  $region46: #{_forward_device.2} parent=0 // pred_check
    _
  $region47: #{_forward_device.2} parent=0 // pred_check_branch
    %4520 = sbr.rel (0) target = $region49
  $region48: #{_forward_device.2} parent=0 // pred_region
    _
  $region49: #{_forward_device.2} parent=0 // pred_fallthru
    _
  // Predicated region
  $region50: #{_forward_device.2} parent=0 // pred_check
    _
  $region51: #{_forward_device.2} parent=0 // pred_check_branch
    %4522 = sbr.rel (0) target = $region53
  $region52: #{_forward_device.2} parent=0 // pred_region
    _
  $region53: #{_forward_device.2} parent=0 // pred_fallthru
    _

</llo_original>
